<compile_context>
chip_gen: v7x
topology: tpu7x:2x2x1
jax: 0.10.0
libtpu: 0.0.40
codegen_flags: <defaults>
</compile_context>

<pallas_src>
import jax
import jax.numpy as jnp
from jax.experimental import pallas as pl
from jax.experimental.pallas import tpu as pltpu

CAPACITY = 32
X_FDIM = 128
NEG_SLOPE = 0.2

C2 = 2 * CAPACITY          # 64  : conv2 input channels (fc output channels)
C1 = CAPACITY              # 32  : conv2 output / conv1 input channels
HW = 7                     # fc output spatial size
S = HW * HW                # 49
N2 = 4 * C1                # 128 : conv2 output, 2x2 phases stacked on lanes
N1 = 16                    # conv1 output, 4x4 phases stacked on lanes
K2 = 9 * C2                # 576 : conv2 im2col contraction depth
K3 = 9 * N1                # 144 : conv1 matmul-then-shift-add width (tap-grouped)

# 3x3 neighbourhood offsets on the 7x7 grid (row-major)
OFFSETS = [(-1, -1), (-1, 0), (-1, 1),
           (0, -1),  (0, 0),  (0, 1),
           (1, -1),  (1, 0),  (1, 1)]


def _leaky(v):
    return jnp.where(v >= 0, v, NEG_SLOPE * v)


# ------------------------------ fused kernel --------------------------------
def _net3_kernel(x_ref, w1_ref, b1_ref, w2_ref, b2_ref, w3_ref, b3_ref,
                 o_ref, fc_scr, h1_scr, im2_scr, t_scr):
    bt = x_ref.shape[0]            # samples in this grid step (power of two)
    R = S * bt                     # rows of the (spatial-major, batch-minor) layout
    PAD = 8 * bt                   # max |row shift| = (7*1 + 1)*bt

    # ---- in-kernel 3x3-shift validity (replaces the old (R, 9) mask input) ----
    row = jax.lax.broadcasted_iota(jnp.int32, (R, 1), 0).astype(jnp.float32)
    s_f = jnp.floor(row * (1.0 / bt))                   # spatial index s (exact)
    n_f = s_f - 7.0 * jnp.floor(s_f * (1.0 / 7.0))      # column n = s % 7 (exact)
    ok_n = jnp.where(s_f >= 7.0, 1.0, 0.0)              # row above exists  (dh = -1)
    ok_s = jnp.where(s_f <= 41.0, 1.0, 0.0)             # row below exists  (dh = +1)
    ok_w = jnp.where(n_f >= 0.5, 1.0, 0.0)              # col to the left   (dw = -1)
    ok_e = jnp.where(n_f <= 5.5, 1.0, 0.0)              # col to the right  (dw = +1)

    def tap_mask(dh, dw):
        m = None
        for use, term in ((dh < 0, ok_n), (dh > 0, ok_s),
                          (dw < 0, ok_w), (dw > 0, ok_e)):
            if use:
                m = term if m is None else m * term
        return m                                        # None -> tap always valid

    masks = [tap_mask(dh, dw) for (dh, dw) in OFFSETS]

    # ---------------- fc1: leaky(leaky(x) @ W1 + b1) ----------------
    xv = _leaky(x_ref[...])
    h = jnp.dot(xv, w1_ref[...], preferred_element_type=jnp.float32) + b1_ref[...]
    fc_scr[...] = _leaky(h)                       # (bt, 49*64), cols = s*64 + c

    # zero ONLY the halo rows; the data region is fully overwritten below
    h1_scr[0:PAD, :] = jnp.zeros((PAD, C2), jnp.float32)
    h1_scr[PAD + R:PAD + R + PAD, :] = jnp.zeros((PAD, C2), jnp.float32)

    # lane->sublane relayout of the fc output into spatial-major rows
    # (aligned 8-row destination blocks; see header comment for why this stays)
    for s in range(S):
        h1_scr[PAD + s * bt: PAD + (s + 1) * bt, :] = fc_scr[:, s * C2:(s + 1) * C2]

    # ------- conv2 (ConvT 4x4 s2 p1, 64->32) as ONE K=576 im2col matmul -------
    for k, (dh, dw) in enumerate(OFFSETS):
        off = (dh * HW + dw) * bt                 # multiple of 8 -> aligned reads
        tap = h1_scr[PAD + off: PAD + off + R, :]
        if masks[k] is not None:
            tap = tap * masks[k]
        im2_scr[:, k * C2:(k + 1) * C2] = tap
    acc2 = jnp.dot(im2_scr[...], w2_ref[...],
                   preferred_element_type=jnp.float32) + b2_ref[...]
    y2 = _leaky(acc2)                             # (R, 128) phase-stacked h2

    # -- conv1 (ConvT 4x4 s2 p1, 32->1): one N=144 matmul + 9 masked shift-adds --
    t_scr[0:PAD, :] = jnp.zeros((PAD, K3), jnp.float32)
    t_scr[PAD + R:PAD + R + PAD, :] = jnp.zeros((PAD, K3), jnp.float32)
    t_scr[PAD:PAD + R, :] = jnp.dot(y2, w3_ref[...],
                                    preferred_element_type=jnp.float32)

    acc1 = jnp.zeros((R, N1), jnp.float32) + b3_ref[...]
    for k, (dh, dw) in enumerate(OFFSETS):
        off = (dh * HW + dw) * bt
        sl = t_scr[PAD + off: PAD + off + R, k * N1:(k + 1) * N1]
        if masks[k] is not None:
            sl = sl * masks[k]
        acc1 = acc1 + sl
    o_ref[...] = jax.nn.sigmoid(acc1)             # (R, 16) = 4x4 output phases


# --------------------------- host-side preparation ---------------------------
def prepare_params(p):
    """One-time re-layout of the PyTorch-layout parameters for the fused kernel."""
    # fc: permute output columns from (c, h, w) to (h, w, c)  (NHWC-flat)
    w1p = p["w1"].reshape(X_FDIM, C2, S).transpose(0, 2, 1).reshape(X_FDIM, S * C2)
    b1p = p["b1"].reshape(C2, S).T.reshape(1, S * C2)

    # conv2 as 3x3 sub-pixel conv, im2col weight:
    #   rows = (tap k, in-ch), cols = (2x2 phase, out-ch)            -> (576, 128)
    blocks = []
    for (dh, dw) in OFFSETS:
        cols = []
        for ph in range(2):
            for pw in range(2):
                kh, kw = ph + 1 - 2 * dh, pw + 1 - 2 * dw
                if 0 <= kh < 4 and 0 <= kw < 4:
                    cols.append(p["w2"][:, :, kh, kw])            # (64, 32)
                else:
                    cols.append(jnp.zeros((C2, C1), jnp.float32))
        blocks.append(jnp.concatenate(cols, axis=1))               # (64, 128)
    w2s = jnp.concatenate(blocks, axis=0)                          # (576, 128)
    b2s = jnp.tile(p["b2"], 4).reshape(1, N2)

    # conv1 composed onto conv2's phase-stacked output, repacked for the
    # matmul-then-shift-add formulation:
    #   rows = (conv2 phase p2*2+q2, in-ch), cols = (tap k, 4x4 out phase) -> (128, 144)
    blocks = []
    for (dh, dw) in OFFSETS:
        rows = []
        for p2 in range(2):
            for q2 in range(2):
                cols = []
                for rh in range(4):
                    for rw in range(4):
                        kh = rh + 1 - 4 * dh - 2 * p2
                        kw = rw + 1 - 4 * dw - 2 * q2
                        if 0 <= kh < 4 and 0 <= kw < 4:
                            cols.append(p["w3"][:, 0, kh, kw])     # (32,)
                        else:
                            cols.append(jnp.zeros((C1,), jnp.float32))
                rows.append(jnp.stack(cols, axis=1))               # (32, 16)
        blocks.append(jnp.concatenate(rows, axis=0))               # (128, 16) = W3_k
    w3c = jnp.concatenate(blocks, axis=1)                          # (128, 144)
    b3s = jnp.full((1, N1), p["b3"][0], jnp.float32)
    return dict(w1=w1p, b1=b1p, w2=w2s, b2=b2s, w3=w3c, b3=b3s)


# --------------------------------- forward ----------------------------------
def _default_batch_tile(B):
    # Perf-review guidance: v5e caps ~64 (16 MiB default scoped VMEM), v6e can take
    # 128, v7x wants G >= 2 so both TensorCores get a grid step.  64 with G >= 2 is a
    # good common default; tiny batches stay at 8 (one aligned sublane group).
    for bt in (64, 32, 16, 8):
        if B >= 2 * bt:
            return bt
    return 8


def net3_forward(x, prep, *, batch_tile=None):
    B = x.shape[0]
    bt = _default_batch_tile(B) if batch_tile is None else batch_tile
    assert bt >= 8 and (bt & (bt - 1)) == 0, "batch_tile must be a power of two >= 8"
    B_pad = ((B + bt - 1) // bt) * bt
    G = B_pad // bt
    if B_pad != B:
        x = jnp.pad(x, ((0, B_pad - B), (0, 0)))
    x = x.astype(jnp.float32)
    R = S * bt
    PAD = 8 * bt

    flops = 2 * B_pad * (X_FDIM * S * C2 + S * K2 * N2 + S * N2 * K3)
    bytes_accessed = 4 * int(x.size + prep["w1"].size + prep["b1"].size +
                             prep["w2"].size + prep["b2"].size + prep["w3"].size +
                             prep["b3"].size + B_pad * S * N1)

    out = pl.pallas_call(
        _net3_kernel,
        out_shape=jax.ShapeDtypeStruct((G * R, N1), jnp.float32),
        grid_spec=pltpu.PrefetchScalarGridSpec(
            num_scalar_prefetch=0,
            grid=(G,),
            in_specs=[
                pl.BlockSpec((bt, X_FDIM), lambda i: (i, 0)),       # x
                pl.BlockSpec((X_FDIM, S * C2), lambda i: (0, 0)),   # w1
                pl.BlockSpec((1, S * C2), lambda i: (0, 0)),        # b1
                pl.BlockSpec((K2, N2), lambda i: (0, 0)),           # w2 (im2col)
                pl.BlockSpec((1, N2), lambda i: (0, 0)),            # b2
                pl.BlockSpec((N2, K3), lambda i: (0, 0)),           # w3 (tap-grouped)
                pl.BlockSpec((1, N1), lambda i: (0, 0)),            # b3
            ],
            out_specs=pl.BlockSpec((R, N1), lambda i: (i, 0)),
            scratch_shapes=[
                pltpu.VMEM((bt, S * C2), jnp.float32),              # fc output
                pltpu.VMEM((R + 2 * PAD, C2), jnp.float32),         # h1 (+ zero halo)
                pltpu.VMEM((R, K2), jnp.float32),                   # conv2 im2col
                pltpu.VMEM((R + 2 * PAD, K3), jnp.float32),         # conv1 taps (+ halo)
            ],
        ),
        compiler_params=pltpu.CompilerParams(
            dimension_semantics=("parallel",),
            # headroom for bt=64 tiles on v5e's 16 MiB default scoped VMEM; safe on
            # v6e (128 MiB physical) and v7x (64 MiB physical).
            vmem_limit_bytes=32 * 1024 * 1024),
        cost_estimate=pl.CostEstimate(flops=flops,
                                      transcendentals=B_pad * S * N1,
                                      bytes_accessed=bytes_accessed),
    )(x, prep["w1"], prep["b1"], prep["w2"], prep["b2"], prep["w3"], prep["b3"])

    # tiny host glue: phase-stacked rows -> (B, 1, 28, 28) NCHW
    img = out.reshape(G, HW, HW, bt, 4, 4).transpose(0, 3, 1, 4, 2, 5)
    img = img.reshape(B_pad, 4 * HW, 4 * HW)[:B]
    return img.reshape(B, 1, 4 * HW, 4 * HW)


# ------------------------------ params / reference ---------------------------
def init_params(key):
    c = CAPACITY
    k1, k2, k3, k4, k5, k6 = jax.random.split(key, 6)

    def u(k, shape, fan_in):
        bound = 1.0 / jnp.sqrt(jnp.float32(fan_in))
        return jax.random.uniform(k, shape, jnp.float32, -bound, bound)

    return dict(
        w1=u(k1, (X_FDIM, c * 2 * 7 * 7), X_FDIM),     # Linear, stored (in, out)
        b1=u(k2, (c * 2 * 7 * 7,), X_FDIM),
        w2=u(k3, (c * 2, c, 4, 4), c * 2 * 16),        # ConvTranspose2d: (IC, OC, kH, kW)
        b2=u(k4, (c,), c * 2 * 16),
        w3=u(k5, (c, 1, 4, 4), c * 16),
        b3=u(k6, (1,), c * 16),
    )


def ref_forward(x, p):
    lr = lambda v: jnp.where(v >= 0, v, NEG_SLOPE * v)
    h = lr(x)
    h = lr(h @ p["w1"] + p["b1"])
    h = h.reshape(x.shape[0], CAPACITY * 2, 7, 7)

    def convT(h, w, b):
        wf = jnp.transpose(w[:, :, ::-1, ::-1], (1, 0, 2, 3))  # (OC, IC, kh, kw)
        y = jax.lax.conv_general_dilated(
            h, wf, window_strides=(1, 1), padding=[(2, 2), (2, 2)],
            lhs_dilation=(2, 2), dimension_numbers=("NCHW", "OIHW", "NCHW"))
        return y + b.reshape(1, -1, 1, 1)

    h = lr(convT(h, p["w2"], p["b2"]))
    return jax.nn.sigmoid(convT(h, p["w3"], p["b3"]))


if __name__ == "__main__":
    key = jax.random.PRNGKey(0)
    pkey, xkey = jax.random.split(key)
    params = init_params(pkey)
    prep = prepare_params(params)
    x = jax.random.normal(xkey, (2, X_FDIM), jnp.float32)

    fwd = jax.jit(net3_forward)
    out = jax.block_until_ready(fwd(x, prep))
    assert out.shape == (2, 1, 28, 28), out.shape

    ref = ref_forward(x, params)
    err = float(jnp.max(jnp.abs(out - ref)))
    assert jnp.allclose(out, ref, atol=2e-3, rtol=2e-3), err

    print("KERNEL_OK")
</pallas_src>

<mosaic_0001>
module attributes {stable_mosaic.version = 11 : i64} {
  func.func @_net3_kernel(%arg0: i32, %arg1: memref<8x128xf32, #tpu.memory_space<vmem>>, %arg2: memref<128x3136xf32, #tpu.memory_space<vmem>>, %arg3: memref<1x3136xf32, #tpu.memory_space<vmem>>, %arg4: memref<576x128xf32, #tpu.memory_space<vmem>>, %arg5: memref<1x128xf32, #tpu.memory_space<vmem>>, %arg6: memref<128x144xf32, #tpu.memory_space<vmem>>, %arg7: memref<1x16xf32, #tpu.memory_space<vmem>>, %arg8: memref<392x16xf32, #tpu.memory_space<vmem>>, %arg9: memref<8x3136xf32, #tpu.memory_space<vmem>>, %arg10: memref<520x64xf32, #tpu.memory_space<vmem>>, %arg11: memref<392x576xf32, #tpu.memory_space<vmem>>, %arg12: memref<520x144xf32, #tpu.memory_space<vmem>>) attributes {dimension_semantics = [#tpu.dimension_semantics<parallel>], iteration_bounds = array<i64: 1>, scalar_prefetch = 0 : i64, scratch_operands = 4 : i64, tpu.core_type = #tpu.core_type<tc>, window_params = [{transform_indices = @transform_0, window_bounds = array<i64: 8, 128>}, {pipeline_mode = #tpu.pipeline_mode<synchronous>, transform_indices = @transform_1, window_bounds = array<i64: 128, 3136>}, {pipeline_mode = #tpu.pipeline_mode<synchronous>, transform_indices = @transform_2, window_bounds = array<i64: 1, 3136>}, {pipeline_mode = #tpu.pipeline_mode<synchronous>, transform_indices = @transform_3, window_bounds = array<i64: 576, 128>}, {pipeline_mode = #tpu.pipeline_mode<synchronous>, transform_indices = @transform_4, window_bounds = array<i64: 1, 128>}, {pipeline_mode = #tpu.pipeline_mode<synchronous>, transform_indices = @transform_5, window_bounds = array<i64: 128, 144>}, {pipeline_mode = #tpu.pipeline_mode<synchronous>, transform_indices = @transform_6, window_bounds = array<i64: 1, 16>}, {transform_indices = @transform_7, window_bounds = array<i64: 392, 16>}]} {
    %0 = tpu.iota {dimensions = array<i32: 0>} : vector<392x1xi32>
    %1 = arith.sitofp %0 : vector<392x1xi32> to vector<392x1xf32>
    %cst = arith.constant 1.250000e-01 : f32
    %2 = vector.broadcast %cst : f32 to vector<392x1xf32>
    %3 = arith.mulf %1, %2 : vector<392x1xf32>
    %4 = math.floor %3 : vector<392x1xf32>
    %cst_0 = arith.constant 0.142857149 : f32
    %5 = vector.broadcast %cst_0 : f32 to vector<392x1xf32>
    %6 = arith.mulf %4, %5 : vector<392x1xf32>
    %7 = math.floor %6 : vector<392x1xf32>
    %cst_1 = arith.constant 7.000000e+00 : f32
    %8 = vector.broadcast %cst_1 : f32 to vector<392x1xf32>
    %9 = arith.mulf %8, %7 : vector<392x1xf32>
    %10 = arith.subf %4, %9 : vector<392x1xf32>
    %cst_2 = arith.constant 7.000000e+00 : f32
    %11 = vector.broadcast %cst_2 : f32 to vector<392x1xf32>
    %12 = arith.cmpf oge, %4, %11 : vector<392x1xf32>
    %cst_3 = arith.constant 1.000000e+00 : f32
    %cst_4 = arith.constant 0.000000e+00 : f32
    %13 = vector.broadcast %cst_3 : f32 to vector<392x1xf32>
    %14 = vector.broadcast %cst_4 : f32 to vector<392x1xf32>
    %15 = arith.select %12, %13, %14 : vector<392x1xi1>, vector<392x1xf32>
    %cst_5 = arith.constant 4.100000e+01 : f32
    %16 = vector.broadcast %cst_5 : f32 to vector<392x1xf32>
    %17 = arith.cmpf ole, %4, %16 : vector<392x1xf32>
    %cst_6 = arith.constant 1.000000e+00 : f32
    %cst_7 = arith.constant 0.000000e+00 : f32
    %18 = vector.broadcast %cst_6 : f32 to vector<392x1xf32>
    %19 = vector.broadcast %cst_7 : f32 to vector<392x1xf32>
    %20 = arith.select %17, %18, %19 : vector<392x1xi1>, vector<392x1xf32>
    %cst_8 = arith.constant 5.000000e-01 : f32
    %21 = vector.broadcast %cst_8 : f32 to vector<392x1xf32>
    %22 = arith.cmpf oge, %10, %21 : vector<392x1xf32>
    %cst_9 = arith.constant 1.000000e+00 : f32
    %cst_10 = arith.constant 0.000000e+00 : f32
    %23 = vector.broadcast %cst_9 : f32 to vector<392x1xf32>
    %24 = vector.broadcast %cst_10 : f32 to vector<392x1xf32>
    %25 = arith.select %22, %23, %24 : vector<392x1xi1>, vector<392x1xf32>
    %cst_11 = arith.constant 5.500000e+00 : f32
    %26 = vector.broadcast %cst_11 : f32 to vector<392x1xf32>
    %27 = arith.cmpf ole, %10, %26 : vector<392x1xf32>
    %cst_12 = arith.constant 1.000000e+00 : f32
    %cst_13 = arith.constant 0.000000e+00 : f32
    %28 = vector.broadcast %cst_12 : f32 to vector<392x1xf32>
    %29 = vector.broadcast %cst_13 : f32 to vector<392x1xf32>
    %30 = arith.select %27, %28, %29 : vector<392x1xi1>, vector<392x1xf32>
    %31 = arith.mulf %15, %25 : vector<392x1xf32>
    %32 = arith.mulf %15, %30 : vector<392x1xf32>
    %33 = arith.mulf %20, %25 : vector<392x1xf32>
    %34 = arith.mulf %20, %30 : vector<392x1xf32>
    %c0 = arith.constant 0 : index
    %c0_14 = arith.constant 0 : index
    %35 = vector.load %arg1[%c0, %c0_14] : memref<8x128xf32, #tpu.memory_space<vmem>>, vector<8x128xf32>
    %cst_15 = arith.constant 0.000000e+00 : f32
    %36 = vector.broadcast %cst_15 : f32 to vector<8x128xf32>
    %37 = arith.cmpf oge, %35, %36 : vector<8x128xf32>
    %cst_16 = arith.constant 2.000000e-01 : f32
    %38 = vector.broadcast %cst_16 : f32 to vector<8x128xf32>
    %39 = arith.mulf %38, %35 : vector<8x128xf32>
    %40 = arith.select %37, %35, %39 : vector<8x128xi1>, vector<8x128xf32>
    %c0_17 = arith.constant 0 : index
    %c0_18 = arith.constant 0 : index
    %41 = vector.load %arg2[%c0_17, %c0_18] : memref<128x3136xf32, #tpu.memory_space<vmem>>, vector<128x3136xf32>
    %cst_19 = arith.constant dense<0.000000e+00> : vector<8x3136xf32>
    %42 = tpu.matmul %40, %41, %cst_19 {dimension_numbers = #tpu.dot_dimension_numbers<[1], [0], [0], [1], [0, 0, 1, 1], [], []>} : vector<8x128xf32>, vector<128x3136xf32>, vector<8x3136xf32> -> vector<8x3136xf32>
    %c0_20 = arith.constant 0 : index
    %c0_21 = arith.constant 0 : index
    %43 = vector.load %arg3[%c0_20, %c0_21] : memref<1x3136xf32, #tpu.memory_space<vmem>>, vector<1x3136xf32>
    %44 = vector.broadcast %43 : vector<1x3136xf32> to vector<8x3136xf32>
    %45 = arith.addf %42, %44 : vector<8x3136xf32>
    %cst_22 = arith.constant 0.000000e+00 : f32
    %46 = vector.broadcast %cst_22 : f32 to vector<8x3136xf32>
    %47 = arith.cmpf oge, %45, %46 : vector<8x3136xf32>
    %cst_23 = arith.constant 2.000000e-01 : f32
    %48 = vector.broadcast %cst_23 : f32 to vector<8x3136xf32>
    %49 = arith.mulf %48, %45 : vector<8x3136xf32>
    %50 = arith.select %47, %45, %49 : vector<8x3136xi1>, vector<8x3136xf32>
    %c0_24 = arith.constant 0 : index
    %c0_25 = arith.constant 0 : index
    %51 = vector.load %arg9[%c0_24, %c0_25] : memref<8x3136xf32, #tpu.memory_space<vmem>>, vector<8x3136xf32>
    tpu.vector_store %arg9[%c0_24, %c0_25], %50 {strides = array<i32>} : memref<8x3136xf32, #tpu.memory_space<vmem>>, vector<8x3136xf32>,
    %cst_26 = arith.constant 0.000000e+00 : f32
    %52 = vector.broadcast %cst_26 : f32 to vector<64x64xf32>
    %c0_27 = arith.constant 0 : index
    %c0_28 = arith.constant 0 : index
    %53 = vector.load %arg10[%c0_27, %c0_28] : memref<520x64xf32, #tpu.memory_space<vmem>>, vector<64x64xf32>
    tpu.vector_store %arg10[%c0_27, %c0_28], %52 {strides = array<i32>} : memref<520x64xf32, #tpu.memory_space<vmem>>, vector<64x64xf32>,
    %cst_29 = arith.constant 0.000000e+00 : f32
    %54 = vector.broadcast %cst_29 : f32 to vector<64x64xf32>
    %c456 = arith.constant 456 : index
    %c0_30 = arith.constant 0 : index
    %55 = vector.load %arg10[%c456, %c0_30] : memref<520x64xf32, #tpu.memory_space<vmem>>, vector<64x64xf32>
    tpu.vector_store %arg10[%c456, %c0_30], %54 {strides = array<i32>} : memref<520x64xf32, #tpu.memory_space<vmem>>, vector<64x64xf32>,
    %c0_31 = arith.constant 0 : index
    %c0_32 = arith.constant 0 : index
    %56 = vector.load %arg9[%c0_31, %c0_32] : memref<8x3136xf32, #tpu.memory_space<vmem>>, vector<8x64xf32>
    %c64 = arith.constant 64 : index
    %c0_33 = arith.constant 0 : index
    %57 = vector.load %arg10[%c64, %c0_33] : memref<520x64xf32, #tpu.memory_space<vmem>>, vector<8x64xf32>
    tpu.vector_store %arg10[%c64, %c0_33], %56 {strides = array<i32>} : memref<520x64xf32, #tpu.memory_space<vmem>>, vector<8x64xf32>,
    %c0_34 = arith.constant 0 : index
    %c64_35 = arith.constant 64 : index
    %58 = vector.load %arg9[%c0_34, %c64_35] : memref<8x3136xf32, #tpu.memory_space<vmem>>, vector<8x64xf32>
    %c72 = arith.constant 72 : index
    %c0_36 = arith.constant 0 : index
    %59 = vector.load %arg10[%c72, %c0_36] : memref<520x64xf32, #tpu.memory_space<vmem>>, vector<8x64xf32>
    tpu.vector_store %arg10[%c72, %c0_36], %58 {strides = array<i32>} : memref<520x64xf32, #tpu.memory_space<vmem>>, vector<8x64xf32>,
    %c0_37 = arith.constant 0 : index
    %c128 = arith.constant 128 : index
    %60 = vector.load %arg9[%c0_37, %c128] : memref<8x3136xf32, #tpu.memory_space<vmem>>, vector<8x64xf32>
    %c80 = arith.constant 80 : index
    %c0_38 = arith.constant 0 : index
    %61 = vector.load %arg10[%c80, %c0_38] : memref<520x64xf32, #tpu.memory_space<vmem>>, vector<8x64xf32>
    tpu.vector_store %arg10[%c80, %c0_38], %60 {strides = array<i32>} : memref<520x64xf32, #tpu.memory_space<vmem>>, vector<8x64xf32>,
    %c0_39 = arith.constant 0 : index
    %c192 = arith.constant 192 : index
    %62 = vector.load %arg9[%c0_39, %c192] : memref<8x3136xf32, #tpu.memory_space<vmem>>, vector<8x64xf32>
    %c88 = arith.constant 88 : index
    %c0_40 = arith.constant 0 : index
    %63 = vector.load %arg10[%c88, %c0_40] : memref<520x64xf32, #tpu.memory_space<vmem>>, vector<8x64xf32>
    tpu.vector_store %arg10[%c88, %c0_40], %62 {strides = array<i32>} : memref<520x64xf32, #tpu.memory_space<vmem>>, vector<8x64xf32>,
    %c0_41 = arith.constant 0 : index
    %c256 = arith.constant 256 : index
    %64 = vector.load %arg9[%c0_41, %c256] : memref<8x3136xf32, #tpu.memory_space<vmem>>, vector<8x64xf32>
    %c96 = arith.constant 96 : index
    %c0_42 = arith.constant 0 : index
    %65 = vector.load %arg10[%c96, %c0_42] : memref<520x64xf32, #tpu.memory_space<vmem>>, vector<8x64xf32>
    tpu.vector_store %arg10[%c96, %c0_42], %64 {strides = array<i32>} : memref<520x64xf32, #tpu.memory_space<vmem>>, vector<8x64xf32>,
    %c0_43 = arith.constant 0 : index
    %c320 = arith.constant 320 : index
    %66 = vector.load %arg9[%c0_43, %c320] : memref<8x3136xf32, #tpu.memory_space<vmem>>, vector<8x64xf32>
    %c104 = arith.constant 104 : index
    %c0_44 = arith.constant 0 : index
    %67 = vector.load %arg10[%c104, %c0_44] : memref<520x64xf32, #tpu.memory_space<vmem>>, vector<8x64xf32>
    tpu.vector_store %arg10[%c104, %c0_44], %66 {strides = array<i32>} : memref<520x64xf32, #tpu.memory_space<vmem>>, vector<8x64xf32>,
    %c0_45 = arith.constant 0 : index
    %c384 = arith.constant 384 : index
    %68 = vector.load %arg9[%c0_45, %c384] : memref<8x3136xf32, #tpu.memory_space<vmem>>, vector<8x64xf32>
    %c112 = arith.constant 112 : index
    %c0_46 = arith.constant 0 : index
    %69 = vector.load %arg10[%c112, %c0_46] : memref<520x64xf32, #tpu.memory_space<vmem>>, vector<8x64xf32>
    tpu.vector_store %arg10[%c112, %c0_46], %68 {strides = array<i32>} : memref<520x64xf32, #tpu.memory_space<vmem>>, vector<8x64xf32>,
    %c0_47 = arith.constant 0 : index
    %c448 = arith.constant 448 : index
    %70 = vector.load %arg9[%c0_47, %c448] : memref<8x3136xf32, #tpu.memory_space<vmem>>, vector<8x64xf32>
    %c120 = arith.constant 120 : index
    %c0_48 = arith.constant 0 : index
    %71 = vector.load %arg10[%c120, %c0_48] : memref<520x64xf32, #tpu.memory_space<vmem>>, vector<8x64xf32>
    tpu.vector_store %arg10[%c120, %c0_48], %70 {strides = array<i32>} : memref<520x64xf32, #tpu.memory_space<vmem>>, vector<8x64xf32>,
    %c0_49 = arith.constant 0 : index
    %c512 = arith.constant 512 : index
    %72 = vector.load %arg9[%c0_49, %c512] : memref<8x3136xf32, #tpu.memory_space<vmem>>, vector<8x64xf32>
    %c128_50 = arith.constant 128 : index
    %c0_51 = arith.constant 0 : index
    %73 = vector.load %arg10[%c128_50, %c0_51] : memref<520x64xf32, #tpu.memory_space<vmem>>, vector<8x64xf32>
    tpu.vector_store %arg10[%c128_50, %c0_51], %72 {strides = array<i32>} : memref<520x64xf32, #tpu.memory_space<vmem>>, vector<8x64xf32>,
    %c0_52 = arith.constant 0 : index
    %c576 = arith.constant 576 : index
    %74 = vector.load %arg9[%c0_52, %c576] : memref<8x3136xf32, #tpu.memory_space<vmem>>, vector<8x64xf32>
    %c136 = arith.constant 136 : index
    %c0_53 = arith.constant 0 : index
    %75 = vector.load %arg10[%c136, %c0_53] : memref<520x64xf32, #tpu.memory_space<vmem>>, vector<8x64xf32>
    tpu.vector_store %arg10[%c136, %c0_53], %74 {strides = array<i32>} : memref<520x64xf32, #tpu.memory_space<vmem>>, vector<8x64xf32>,
    %c0_54 = arith.constant 0 : index
    %c640 = arith.constant 640 : index
    %76 = vector.load %arg9[%c0_54, %c640] : memref<8x3136xf32, #tpu.memory_space<vmem>>, vector<8x64xf32>
    %c144 = arith.constant 144 : index
    %c0_55 = arith.constant 0 : index
    %77 = vector.load %arg10[%c144, %c0_55] : memref<520x64xf32, #tpu.memory_space<vmem>>, vector<8x64xf32>
    tpu.vector_store %arg10[%c144, %c0_55], %76 {strides = array<i32>} : memref<520x64xf32, #tpu.memory_space<vmem>>, vector<8x64xf32>,
    %c0_56 = arith.constant 0 : index
    %c704 = arith.constant 704 : index
    %78 = vector.load %arg9[%c0_56, %c704] : memref<8x3136xf32, #tpu.memory_space<vmem>>, vector<8x64xf32>
    %c152 = arith.constant 152 : index
    %c0_57 = arith.constant 0 : index
    %79 = vector.load %arg10[%c152, %c0_57] : memref<520x64xf32, #tpu.memory_space<vmem>>, vector<8x64xf32>
    tpu.vector_store %arg10[%c152, %c0_57], %78 {strides = array<i32>} : memref<520x64xf32, #tpu.memory_space<vmem>>, vector<8x64xf32>,
    %c0_58 = arith.constant 0 : index
    %c768 = arith.constant 768 : index
    %80 = vector.load %arg9[%c0_58, %c768] : memref<8x3136xf32, #tpu.memory_space<vmem>>, vector<8x64xf32>
    %c160 = arith.constant 160 : index
    %c0_59 = arith.constant 0 : index
    %81 = vector.load %arg10[%c160, %c0_59] : memref<520x64xf32, #tpu.memory_space<vmem>>, vector<8x64xf32>
    tpu.vector_store %arg10[%c160, %c0_59], %80 {strides = array<i32>} : memref<520x64xf32, #tpu.memory_space<vmem>>, vector<8x64xf32>,
    %c0_60 = arith.constant 0 : index
    %c832 = arith.constant 832 : index
    %82 = vector.load %arg9[%c0_60, %c832] : memref<8x3136xf32, #tpu.memory_space<vmem>>, vector<8x64xf32>
    %c168 = arith.constant 168 : index
    %c0_61 = arith.constant 0 : index
    %83 = vector.load %arg10[%c168, %c0_61] : memref<520x64xf32, #tpu.memory_space<vmem>>, vector<8x64xf32>
    tpu.vector_store %arg10[%c168, %c0_61], %82 {strides = array<i32>} : memref<520x64xf32, #tpu.memory_space<vmem>>, vector<8x64xf32>,
    %c0_62 = arith.constant 0 : index
    %c896 = arith.constant 896 : index
    %84 = vector.load %arg9[%c0_62, %c896] : memref<8x3136xf32, #tpu.memory_space<vmem>>, vector<8x64xf32>
    %c176 = arith.constant 176 : index
    %c0_63 = arith.constant 0 : index
    %85 = vector.load %arg10[%c176, %c0_63] : memref<520x64xf32, #tpu.memory_space<vmem>>, vector<8x64xf32>
    tpu.vector_store %arg10[%c176, %c0_63], %84 {strides = array<i32>} : memref<520x64xf32, #tpu.memory_space<vmem>>, vector<8x64xf32>,
    %c0_64 = arith.constant 0 : index
    %c960 = arith.constant 960 : index
    %86 = vector.load %arg9[%c0_64, %c960] : memref<8x3136xf32, #tpu.memory_space<vmem>>, vector<8x64xf32>
    %c184 = arith.constant 184 : index
    %c0_65 = arith.constant 0 : index
    %87 = vector.load %arg10[%c184, %c0_65] : memref<520x64xf32, #tpu.memory_space<vmem>>, vector<8x64xf32>
    tpu.vector_store %arg10[%c184, %c0_65], %86 {strides = array<i32>} : memref<520x64xf32, #tpu.memory_space<vmem>>, vector<8x64xf32>,
    %c0_66 = arith.constant 0 : index
    %c1024 = arith.constant 1024 : index
    %88 = vector.load %arg9[%c0_66, %c1024] : memref<8x3136xf32, #tpu.memory_space<vmem>>, vector<8x64xf32>
    %c192_67 = arith.constant 192 : index
    %c0_68 = arith.constant 0 : index
    %89 = vector.load %arg10[%c192_67, %c0_68] : memref<520x64xf32, #tpu.memory_space<vmem>>, vector<8x64xf32>
    tpu.vector_store %arg10[%c192_67, %c0_68], %88 {strides = array<i32>} : memref<520x64xf32, #tpu.memory_space<vmem>>, vector<8x64xf32>,
    %c0_69 = arith.constant 0 : index
    %c1088 = arith.constant 1088 : index
    %90 = vector.load %arg9[%c0_69, %c1088] : memref<8x3136xf32, #tpu.memory_space<vmem>>, vector<8x64xf32>
    %c200 = arith.constant 200 : index
    %c0_70 = arith.constant 0 : index
    %91 = vector.load %arg10[%c200, %c0_70] : memref<520x64xf32, #tpu.memory_space<vmem>>, vector<8x64xf32>
    tpu.vector_store %arg10[%c200, %c0_70], %90 {strides = array<i32>} : memref<520x64xf32, #tpu.memory_space<vmem>>, vector<8x64xf32>,
    %c0_71 = arith.constant 0 : index
    %c1152 = arith.constant 1152 : index
    %92 = vector.load %arg9[%c0_71, %c1152] : memref<8x3136xf32, #tpu.memory_space<vmem>>, vector<8x64xf32>
    %c208 = arith.constant 208 : index
    %c0_72 = arith.constant 0 : index
    %93 = vector.load %arg10[%c208, %c0_72] : memref<520x64xf32, #tpu.memory_space<vmem>>, vector<8x64xf32>
    tpu.vector_store %arg10[%c208, %c0_72], %92 {strides = array<i32>} : memref<520x64xf32, #tpu.memory_space<vmem>>, vector<8x64xf32>,
    %c0_73 = arith.constant 0 : index
    %c1216 = arith.constant 1216 : index
    %94 = vector.load %arg9[%c0_73, %c1216] : memref<8x3136xf32, #tpu.memory_space<vmem>>, vector<8x64xf32>
    %c216 = arith.constant 216 : index
    %c0_74 = arith.constant 0 : index
    %95 = vector.load %arg10[%c216, %c0_74] : memref<520x64xf32, #tpu.memory_space<vmem>>, vector<8x64xf32>
    tpu.vector_store %arg10[%c216, %c0_74], %94 {strides = array<i32>} : memref<520x64xf32, #tpu.memory_space<vmem>>, vector<8x64xf32>,
    %c0_75 = arith.constant 0 : index
    %c1280 = arith.constant 1280 : index
    %96 = vector.load %arg9[%c0_75, %c1280] : memref<8x3136xf32, #tpu.memory_space<vmem>>, vector<8x64xf32>
    %c224 = arith.constant 224 : index
    %c0_76 = arith.constant 0 : index
    %97 = vector.load %arg10[%c224, %c0_76] : memref<520x64xf32, #tpu.memory_space<vmem>>, vector<8x64xf32>
    tpu.vector_store %arg10[%c224, %c0_76], %96 {strides = array<i32>} : memref<520x64xf32, #tpu.memory_space<vmem>>, vector<8x64xf32>,
    %c0_77 = arith.constant 0 : index
    %c1344 = arith.constant 1344 : index
    %98 = vector.load %arg9[%c0_77, %c1344] : memref<8x3136xf32, #tpu.memory_space<vmem>>, vector<8x64xf32>
    %c232 = arith.constant 232 : index
    %c0_78 = arith.constant 0 : index
    %99 = vector.load %arg10[%c232, %c0_78] : memref<520x64xf32, #tpu.memory_space<vmem>>, vector<8x64xf32>
    tpu.vector_store %arg10[%c232, %c0_78], %98 {strides = array<i32>} : memref<520x64xf32, #tpu.memory_space<vmem>>, vector<8x64xf32>,
    %c0_79 = arith.constant 0 : index
    %c1408 = arith.constant 1408 : index
    %100 = vector.load %arg9[%c0_79, %c1408] : memref<8x3136xf32, #tpu.memory_space<vmem>>, vector<8x64xf32>
    %c240 = arith.constant 240 : index
    %c0_80 = arith.constant 0 : index
    %101 = vector.load %arg10[%c240, %c0_80] : memref<520x64xf32, #tpu.memory_space<vmem>>, vector<8x64xf32>
    tpu.vector_store %arg10[%c240, %c0_80], %100 {strides = array<i32>} : memref<520x64xf32, #tpu.memory_space<vmem>>, vector<8x64xf32>,
    %c0_81 = arith.constant 0 : index
    %c1472 = arith.constant 1472 : index
    %102 = vector.load %arg9[%c0_81, %c1472] : memref<8x3136xf32, #tpu.memory_space<vmem>>, vector<8x64xf32>
    %c248 = arith.constant 248 : index
    %c0_82 = arith.constant 0 : index
    %103 = vector.load %arg10[%c248, %c0_82] : memref<520x64xf32, #tpu.memory_space<vmem>>, vector<8x64xf32>
    tpu.vector_store %arg10[%c248, %c0_82], %102 {strides = array<i32>} : memref<520x64xf32, #tpu.memory_space<vmem>>, vector<8x64xf32>,
    %c0_83 = arith.constant 0 : index
    %c1536 = arith.constant 1536 : index
    %104 = vector.load %arg9[%c0_83, %c1536] : memref<8x3136xf32, #tpu.memory_space<vmem>>, vector<8x64xf32>
    %c256_84 = arith.constant 256 : index
    %c0_85 = arith.constant 0 : index
    %105 = vector.load %arg10[%c256_84, %c0_85] : memref<520x64xf32, #tpu.memory_space<vmem>>, vector<8x64xf32>
    tpu.vector_store %arg10[%c256_84, %c0_85], %104 {strides = array<i32>} : memref<520x64xf32, #tpu.memory_space<vmem>>, vector<8x64xf32>,
    %c0_86 = arith.constant 0 : index
    %c1600 = arith.constant 1600 : index
    %106 = vector.load %arg9[%c0_86, %c1600] : memref<8x3136xf32, #tpu.memory_space<vmem>>, vector<8x64xf32>
    %c264 = arith.constant 264 : index
    %c0_87 = arith.constant 0 : index
    %107 = vector.load %arg10[%c264, %c0_87] : memref<520x64xf32, #tpu.memory_space<vmem>>, vector<8x64xf32>
    tpu.vector_store %arg10[%c264, %c0_87], %106 {strides = array<i32>} : memref<520x64xf32, #tpu.memory_space<vmem>>, vector<8x64xf32>,
    %c0_88 = arith.constant 0 : index
    %c1664 = arith.constant 1664 : index
    %108 = vector.load %arg9[%c0_88, %c1664] : memref<8x3136xf32, #tpu.memory_space<vmem>>, vector<8x64xf32>
    %c272 = arith.constant 272 : index
    %c0_89 = arith.constant 0 : index
    %109 = vector.load %arg10[%c272, %c0_89] : memref<520x64xf32, #tpu.memory_space<vmem>>, vector<8x64xf32>
    tpu.vector_store %arg10[%c272, %c0_89], %108 {strides = array<i32>} : memref<520x64xf32, #tpu.memory_space<vmem>>, vector<8x64xf32>,
    %c0_90 = arith.constant 0 : index
    %c1728 = arith.constant 1728 : index
    %110 = vector.load %arg9[%c0_90, %c1728] : memref<8x3136xf32, #tpu.memory_space<vmem>>, vector<8x64xf32>
    %c280 = arith.constant 280 : index
    %c0_91 = arith.constant 0 : index
    %111 = vector.load %arg10[%c280, %c0_91] : memref<520x64xf32, #tpu.memory_space<vmem>>, vector<8x64xf32>
    tpu.vector_store %arg10[%c280, %c0_91], %110 {strides = array<i32>} : memref<520x64xf32, #tpu.memory_space<vmem>>, vector<8x64xf32>,
    %c0_92 = arith.constant 0 : index
    %c1792 = arith.constant 1792 : index
    %112 = vector.load %arg9[%c0_92, %c1792] : memref<8x3136xf32, #tpu.memory_space<vmem>>, vector<8x64xf32>
    %c288 = arith.constant 288 : index
    %c0_93 = arith.constant 0 : index
    %113 = vector.load %arg10[%c288, %c0_93] : memref<520x64xf32, #tpu.memory_space<vmem>>, vector<8x64xf32>
    tpu.vector_store %arg10[%c288, %c0_93], %112 {strides = array<i32>} : memref<520x64xf32, #tpu.memory_space<vmem>>, vector<8x64xf32>,
    %c0_94 = arith.constant 0 : index
    %c1856 = arith.constant 1856 : index
    %114 = vector.load %arg9[%c0_94, %c1856] : memref<8x3136xf32, #tpu.memory_space<vmem>>, vector<8x64xf32>
    %c296 = arith.constant 296 : index
    %c0_95 = arith.constant 0 : index
    %115 = vector.load %arg10[%c296, %c0_95] : memref<520x64xf32, #tpu.memory_space<vmem>>, vector<8x64xf32>
    tpu.vector_store %arg10[%c296, %c0_95], %114 {strides = array<i32>} : memref<520x64xf32, #tpu.memory_space<vmem>>, vector<8x64xf32>,
    %c0_96 = arith.constant 0 : index
    %c1920 = arith.constant 1920 : index
    %116 = vector.load %arg9[%c0_96, %c1920] : memref<8x3136xf32, #tpu.memory_space<vmem>>, vector<8x64xf32>
    %c304 = arith.constant 304 : index
    %c0_97 = arith.constant 0 : index
    %117 = vector.load %arg10[%c304, %c0_97] : memref<520x64xf32, #tpu.memory_space<vmem>>, vector<8x64xf32>
    tpu.vector_store %arg10[%c304, %c0_97], %116 {strides = array<i32>} : memref<520x64xf32, #tpu.memory_space<vmem>>, vector<8x64xf32>,
    %c0_98 = arith.constant 0 : index
    %c1984 = arith.constant 1984 : index
    %118 = vector.load %arg9[%c0_98, %c1984] : memref<8x3136xf32, #tpu.memory_space<vmem>>, vector<8x64xf32>
    %c312 = arith.constant 312 : index
    %c0_99 = arith.constant 0 : index
    %119 = vector.load %arg10[%c312, %c0_99] : memref<520x64xf32, #tpu.memory_space<vmem>>, vector<8x64xf32>
    tpu.vector_store %arg10[%c312, %c0_99], %118 {strides = array<i32>} : memref<520x64xf32, #tpu.memory_space<vmem>>, vector<8x64xf32>,
    %c0_100 = arith.constant 0 : index
    %c2048 = arith.constant 2048 : index
    %120 = vector.load %arg9[%c0_100, %c2048] : memref<8x3136xf32, #tpu.memory_space<vmem>>, vector<8x64xf32>
    %c320_101 = arith.constant 320 : index
    %c0_102 = arith.constant 0 : index
    %121 = vector.load %arg10[%c320_101, %c0_102] : memref<520x64xf32, #tpu.memory_space<vmem>>, vector<8x64xf32>
    tpu.vector_store %arg10[%c320_101, %c0_102], %120 {strides = array<i32>} : memref<520x64xf32, #tpu.memory_space<vmem>>, vector<8x64xf32>,
    %c0_103 = arith.constant 0 : index
    %c2112 = arith.constant 2112 : index
    %122 = vector.load %arg9[%c0_103, %c2112] : memref<8x3136xf32, #tpu.memory_space<vmem>>, vector<8x64xf32>
    %c328 = arith.constant 328 : index
    %c0_104 = arith.constant 0 : index
    %123 = vector.load %arg10[%c328, %c0_104] : memref<520x64xf32, #tpu.memory_space<vmem>>, vector<8x64xf32>
    tpu.vector_store %arg10[%c328, %c0_104], %122 {strides = array<i32>} : memref<520x64xf32, #tpu.memory_space<vmem>>, vector<8x64xf32>,
    %c0_105 = arith.constant 0 : index
    %c2176 = arith.constant 2176 : index
    %124 = vector.load %arg9[%c0_105, %c2176] : memref<8x3136xf32, #tpu.memory_space<vmem>>, vector<8x64xf32>
    %c336 = arith.constant 336 : index
    %c0_106 = arith.constant 0 : index
    %125 = vector.load %arg10[%c336, %c0_106] : memref<520x64xf32, #tpu.memory_space<vmem>>, vector<8x64xf32>
    tpu.vector_store %arg10[%c336, %c0_106], %124 {strides = array<i32>} : memref<520x64xf32, #tpu.memory_space<vmem>>, vector<8x64xf32>,
    %c0_107 = arith.constant 0 : index
    %c2240 = arith.constant 2240 : index
    %126 = vector.load %arg9[%c0_107, %c2240] : memref<8x3136xf32, #tpu.memory_space<vmem>>, vector<8x64xf32>
    %c344 = arith.constant 344 : index
    %c0_108 = arith.constant 0 : index
    %127 = vector.load %arg10[%c344, %c0_108] : memref<520x64xf32, #tpu.memory_space<vmem>>, vector<8x64xf32>
    tpu.vector_store %arg10[%c344, %c0_108], %126 {strides = array<i32>} : memref<520x64xf32, #tpu.memory_space<vmem>>, vector<8x64xf32>,
    %c0_109 = arith.constant 0 : index
    %c2304 = arith.constant 2304 : index
    %128 = vector.load %arg9[%c0_109, %c2304] : memref<8x3136xf32, #tpu.memory_space<vmem>>, vector<8x64xf32>
    %c352 = arith.constant 352 : index
    %c0_110 = arith.constant 0 : index
    %129 = vector.load %arg10[%c352, %c0_110] : memref<520x64xf32, #tpu.memory_space<vmem>>, vector<8x64xf32>
    tpu.vector_store %arg10[%c352, %c0_110], %128 {strides = array<i32>} : memref<520x64xf32, #tpu.memory_space<vmem>>, vector<8x64xf32>,
    %c0_111 = arith.constant 0 : index
    %c2368 = arith.constant 2368 : index
    %130 = vector.load %arg9[%c0_111, %c2368] : memref<8x3136xf32, #tpu.memory_space<vmem>>, vector<8x64xf32>
    %c360 = arith.constant 360 : index
    %c0_112 = arith.constant 0 : index
    %131 = vector.load %arg10[%c360, %c0_112] : memref<520x64xf32, #tpu.memory_space<vmem>>, vector<8x64xf32>
    tpu.vector_store %arg10[%c360, %c0_112], %130 {strides = array<i32>} : memref<520x64xf32, #tpu.memory_space<vmem>>, vector<8x64xf32>,
    %c0_113 = arith.constant 0 : index
    %c2432 = arith.constant 2432 : index
    %132 = vector.load %arg9[%c0_113, %c2432] : memref<8x3136xf32, #tpu.memory_space<vmem>>, vector<8x64xf32>
    %c368 = arith.constant 368 : index
    %c0_114 = arith.constant 0 : index
    %133 = vector.load %arg10[%c368, %c0_114] : memref<520x64xf32, #tpu.memory_space<vmem>>, vector<8x64xf32>
    tpu.vector_store %arg10[%c368, %c0_114], %132 {strides = array<i32>} : memref<520x64xf32, #tpu.memory_space<vmem>>, vector<8x64xf32>,
    %c0_115 = arith.constant 0 : index
    %c2496 = arith.constant 2496 : index
    %134 = vector.load %arg9[%c0_115, %c2496] : memref<8x3136xf32, #tpu.memory_space<vmem>>, vector<8x64xf32>
    %c376 = arith.constant 376 : index
    %c0_116 = arith.constant 0 : index
    %135 = vector.load %arg10[%c376, %c0_116] : memref<520x64xf32, #tpu.memory_space<vmem>>, vector<8x64xf32>
    tpu.vector_store %arg10[%c376, %c0_116], %134 {strides = array<i32>} : memref<520x64xf32, #tpu.memory_space<vmem>>, vector<8x64xf32>,
    %c0_117 = arith.constant 0 : index
    %c2560 = arith.constant 2560 : index
    %136 = vector.load %arg9[%c0_117, %c2560] : memref<8x3136xf32, #tpu.memory_space<vmem>>, vector<8x64xf32>
    %c384_118 = arith.constant 384 : index
    %c0_119 = arith.constant 0 : index
    %137 = vector.load %arg10[%c384_118, %c0_119] : memref<520x64xf32, #tpu.memory_space<vmem>>, vector<8x64xf32>
    tpu.vector_store %arg10[%c384_118, %c0_119], %136 {strides = array<i32>} : memref<520x64xf32, #tpu.memory_space<vmem>>, vector<8x64xf32>,
    %c0_120 = arith.constant 0 : index
    %c2624 = arith.constant 2624 : index
    %138 = vector.load %arg9[%c0_120, %c2624] : memref<8x3136xf32, #tpu.memory_space<vmem>>, vector<8x64xf32>
    %c392 = arith.constant 392 : index
    %c0_121 = arith.constant 0 : index
    %139 = vector.load %arg10[%c392, %c0_121] : memref<520x64xf32, #tpu.memory_space<vmem>>, vector<8x64xf32>
    tpu.vector_store %arg10[%c392, %c0_121], %138 {strides = array<i32>} : memref<520x64xf32, #tpu.memory_space<vmem>>, vector<8x64xf32>,
    %c0_122 = arith.constant 0 : index
    %c2688 = arith.constant 2688 : index
    %140 = vector.load %arg9[%c0_122, %c2688] : memref<8x3136xf32, #tpu.memory_space<vmem>>, vector<8x64xf32>
    %c400 = arith.constant 400 : index
    %c0_123 = arith.constant 0 : index
    %141 = vector.load %arg10[%c400, %c0_123] : memref<520x64xf32, #tpu.memory_space<vmem>>, vector<8x64xf32>
    tpu.vector_store %arg10[%c400, %c0_123], %140 {strides = array<i32>} : memref<520x64xf32, #tpu.memory_space<vmem>>, vector<8x64xf32>,
    %c0_124 = arith.constant 0 : index
    %c2752 = arith.constant 2752 : index
    %142 = vector.load %arg9[%c0_124, %c2752] : memref<8x3136xf32, #tpu.memory_space<vmem>>, vector<8x64xf32>
    %c408 = arith.constant 408 : index
    %c0_125 = arith.constant 0 : index
    %143 = vector.load %arg10[%c408, %c0_125] : memref<520x64xf32, #tpu.memory_space<vmem>>, vector<8x64xf32>
    tpu.vector_store %arg10[%c408, %c0_125], %142 {strides = array<i32>} : memref<520x64xf32, #tpu.memory_space<vmem>>, vector<8x64xf32>,
    %c0_126 = arith.constant 0 : index
    %c2816 = arith.constant 2816 : index
    %144 = vector.load %arg9[%c0_126, %c2816] : memref<8x3136xf32, #tpu.memory_space<vmem>>, vector<8x64xf32>
    %c416 = arith.constant 416 : index
    %c0_127 = arith.constant 0 : index
    %145 = vector.load %arg10[%c416, %c0_127] : memref<520x64xf32, #tpu.memory_space<vmem>>, vector<8x64xf32>
    tpu.vector_store %arg10[%c416, %c0_127], %144 {strides = array<i32>} : memref<520x64xf32, #tpu.memory_space<vmem>>, vector<8x64xf32>,
    %c0_128 = arith.constant 0 : index
    %c2880 = arith.constant 2880 : index
    %146 = vector.load %arg9[%c0_128, %c2880] : memref<8x3136xf32, #tpu.memory_space<vmem>>, vector<8x64xf32>
    %c424 = arith.constant 424 : index
    %c0_129 = arith.constant 0 : index
    %147 = vector.load %arg10[%c424, %c0_129] : memref<520x64xf32, #tpu.memory_space<vmem>>, vector<8x64xf32>
    tpu.vector_store %arg10[%c424, %c0_129], %146 {strides = array<i32>} : memref<520x64xf32, #tpu.memory_space<vmem>>, vector<8x64xf32>,
    %c0_130 = arith.constant 0 : index
    %c2944 = arith.constant 2944 : index
    %148 = vector.load %arg9[%c0_130, %c2944] : memref<8x3136xf32, #tpu.memory_space<vmem>>, vector<8x64xf32>
    %c432 = arith.constant 432 : index
    %c0_131 = arith.constant 0 : index
    %149 = vector.load %arg10[%c432, %c0_131] : memref<520x64xf32, #tpu.memory_space<vmem>>, vector<8x64xf32>
    tpu.vector_store %arg10[%c432, %c0_131], %148 {strides = array<i32>} : memref<520x64xf32, #tpu.memory_space<vmem>>, vector<8x64xf32>,
    %c0_132 = arith.constant 0 : index
    %c3008 = arith.constant 3008 : index
    %150 = vector.load %arg9[%c0_132, %c3008] : memref<8x3136xf32, #tpu.memory_space<vmem>>, vector<8x64xf32>
    %c440 = arith.constant 440 : index
    %c0_133 = arith.constant 0 : index
    %151 = vector.load %arg10[%c440, %c0_133] : memref<520x64xf32, #tpu.memory_space<vmem>>, vector<8x64xf32>
    tpu.vector_store %arg10[%c440, %c0_133], %150 {strides = array<i32>} : memref<520x64xf32, #tpu.memory_space<vmem>>, vector<8x64xf32>,
    %c0_134 = arith.constant 0 : index
    %c3072 = arith.constant 3072 : index
    %152 = vector.load %arg9[%c0_134, %c3072] : memref<8x3136xf32, #tpu.memory_space<vmem>>, vector<8x64xf32>
    %c448_135 = arith.constant 448 : index
    %c0_136 = arith.constant 0 : index
    %153 = vector.load %arg10[%c448_135, %c0_136] : memref<520x64xf32, #tpu.memory_space<vmem>>, vector<8x64xf32>
    tpu.vector_store %arg10[%c448_135, %c0_136], %152 {strides = array<i32>} : memref<520x64xf32, #tpu.memory_space<vmem>>, vector<8x64xf32>,
    %c0_137 = arith.constant 0 : index
    %c0_138 = arith.constant 0 : index
    %154 = vector.load %arg10[%c0_137, %c0_138] : memref<520x64xf32, #tpu.memory_space<vmem>>, vector<392x64xf32>
    %155 = vector.broadcast %31 : vector<392x1xf32> to vector<392x64xf32>
    %156 = arith.mulf %154, %155 : vector<392x64xf32>
    %c0_139 = arith.constant 0 : index
    %c0_140 = arith.constant 0 : index
    %157 = vector.load %arg11[%c0_139, %c0_140] : memref<392x576xf32, #tpu.memory_space<vmem>>, vector<392x64xf32>
    tpu.vector_store %arg11[%c0_139, %c0_140], %156 {strides = array<i32>} : memref<392x576xf32, #tpu.memory_space<vmem>>, vector<392x64xf32>,
    %c8 = arith.constant 8 : index
    %c0_141 = arith.constant 0 : index
    %158 = vector.load %arg10[%c8, %c0_141] : memref<520x64xf32, #tpu.memory_space<vmem>>, vector<392x64xf32>
    %159 = vector.broadcast %15 : vector<392x1xf32> to vector<392x64xf32>
    %160 = arith.mulf %158, %159 : vector<392x64xf32>
    %c0_142 = arith.constant 0 : index
    %c64_143 = arith.constant 64 : index
    %161 = vector.load %arg11[%c0_142, %c64_143] : memref<392x576xf32, #tpu.memory_space<vmem>>, vector<392x64xf32>
    tpu.vector_store %arg11[%c0_142, %c64_143], %160 {strides = array<i32>} : memref<392x576xf32, #tpu.memory_space<vmem>>, vector<392x64xf32>,
    %c16 = arith.constant 16 : index
    %c0_144 = arith.constant 0 : index
    %162 = vector.load %arg10[%c16, %c0_144] : memref<520x64xf32, #tpu.memory_space<vmem>>, vector<392x64xf32>
    %163 = vector.broadcast %32 : vector<392x1xf32> to vector<392x64xf32>
    %164 = arith.mulf %162, %163 : vector<392x64xf32>
    %c0_145 = arith.constant 0 : index
    %c128_146 = arith.constant 128 : index
    %165 = vector.load %arg11[%c0_145, %c128_146] : memref<392x576xf32, #tpu.memory_space<vmem>>, vector<392x64xf32>
    tpu.vector_store %arg11[%c0_145, %c128_146], %164 {strides = array<i32>} : memref<392x576xf32, #tpu.memory_space<vmem>>, vector<392x64xf32>,
    %c56 = arith.constant 56 : index
    %c0_147 = arith.constant 0 : index
    %166 = vector.load %arg10[%c56, %c0_147] : memref<520x64xf32, #tpu.memory_space<vmem>>, vector<392x64xf32>
    %167 = vector.broadcast %25 : vector<392x1xf32> to vector<392x64xf32>
    %168 = arith.mulf %166, %167 : vector<392x64xf32>
    %c0_148 = arith.constant 0 : index
    %c192_149 = arith.constant 192 : index
    %169 = vector.load %arg11[%c0_148, %c192_149] : memref<392x576xf32, #tpu.memory_space<vmem>>, vector<392x64xf32>
    tpu.vector_store %arg11[%c0_148, %c192_149], %168 {strides = array<i32>} : memref<392x576xf32, #tpu.memory_space<vmem>>, vector<392x64xf32>,
    %c64_150 = arith.constant 64 : index
    %c0_151 = arith.constant 0 : index
    %170 = vector.load %arg10[%c64_150, %c0_151] : memref<520x64xf32, #tpu.memory_space<vmem>>, vector<392x64xf32>
    %c0_152 = arith.constant 0 : index
    %c256_153 = arith.constant 256 : index
    %171 = vector.load %arg11[%c0_152, %c256_153] : memref<392x576xf32, #tpu.memory_space<vmem>>, vector<392x64xf32>
    tpu.vector_store %arg11[%c0_152, %c256_153], %170 {strides = array<i32>} : memref<392x576xf32, #tpu.memory_space<vmem>>, vector<392x64xf32>,
    %c72_154 = arith.constant 72 : index
    %c0_155 = arith.constant 0 : index
    %172 = vector.load %arg10[%c72_154, %c0_155] : memref<520x64xf32, #tpu.memory_space<vmem>>, vector<392x64xf32>
    %173 = vector.broadcast %30 : vector<392x1xf32> to vector<392x64xf32>
    %174 = arith.mulf %172, %173 : vector<392x64xf32>
    %c0_156 = arith.constant 0 : index
    %c320_157 = arith.constant 320 : index
    %175 = vector.load %arg11[%c0_156, %c320_157] : memref<392x576xf32, #tpu.memory_space<vmem>>, vector<392x64xf32>
    tpu.vector_store %arg11[%c0_156, %c320_157], %174 {strides = array<i32>} : memref<392x576xf32, #tpu.memory_space<vmem>>, vector<392x64xf32>,
    %c112_158 = arith.constant 112 : index
    %c0_159 = arith.constant 0 : index
    %176 = vector.load %arg10[%c112_158, %c0_159] : memref<520x64xf32, #tpu.memory_space<vmem>>, vector<392x64xf32>
    %177 = vector.broadcast %33 : vector<392x1xf32> to vector<392x64xf32>
    %178 = arith.mulf %176, %177 : vector<392x64xf32>
    %c0_160 = arith.constant 0 : index
    %c384_161 = arith.constant 384 : index
    %179 = vector.load %arg11[%c0_160, %c384_161] : memref<392x576xf32, #tpu.memory_space<vmem>>, vector<392x64xf32>
    tpu.vector_store %arg11[%c0_160, %c384_161], %178 {strides = array<i32>} : memref<392x576xf32, #tpu.memory_space<vmem>>, vector<392x64xf32>,
    %c120_162 = arith.constant 120 : index
    %c0_163 = arith.constant 0 : index
    %180 = vector.load %arg10[%c120_162, %c0_163] : memref<520x64xf32, #tpu.memory_space<vmem>>, vector<392x64xf32>
    %181 = vector.broadcast %20 : vector<392x1xf32> to vector<392x64xf32>
    %182 = arith.mulf %180, %181 : vector<392x64xf32>
    %c0_164 = arith.constant 0 : index
    %c448_165 = arith.constant 448 : index
    %183 = vector.load %arg11[%c0_164, %c448_165] : memref<392x576xf32, #tpu.memory_space<vmem>>, vector<392x64xf32>
    tpu.vector_store %arg11[%c0_164, %c448_165], %182 {strides = array<i32>} : memref<392x576xf32, #tpu.memory_space<vmem>>, vector<392x64xf32>,
    %c128_166 = arith.constant 128 : index
    %c0_167 = arith.constant 0 : index
    %184 = vector.load %arg10[%c128_166, %c0_167] : memref<520x64xf32, #tpu.memory_space<vmem>>, vector<392x64xf32>
    %185 = vector.broadcast %34 : vector<392x1xf32> to vector<392x64xf32>
    %186 = arith.mulf %184, %185 : vector<392x64xf32>
    %c0_168 = arith.constant 0 : index
    %c512_169 = arith.constant 512 : index
    %187 = vector.load %arg11[%c0_168, %c512_169] : memref<392x576xf32, #tpu.memory_space<vmem>>, vector<392x64xf32>
    tpu.vector_store %arg11[%c0_168, %c512_169], %186 {strides = array<i32>} : memref<392x576xf32, #tpu.memory_space<vmem>>, vector<392x64xf32>,
    %c0_170 = arith.constant 0 : index
    %c0_171 = arith.constant 0 : index
    %188 = vector.load %arg11[%c0_170, %c0_171] : memref<392x576xf32, #tpu.memory_space<vmem>>, vector<392x576xf32>
    %c0_172 = arith.constant 0 : index
    %c0_173 = arith.constant 0 : index
    %189 = vector.load %arg4[%c0_172, %c0_173] : memref<576x128xf32, #tpu.memory_space<vmem>>, vector<576x128xf32>
    %cst_174 = arith.constant dense<0.000000e+00> : vector<392x128xf32>
    %190 = tpu.matmul %188, %189, %cst_174 {dimension_numbers = #tpu.dot_dimension_numbers<[1], [0], [0], [1], [0, 0, 1, 1], [], []>} : vector<392x576xf32>, vector<576x128xf32>, vector<392x128xf32> -> vector<392x128xf32>
    %c0_175 = arith.constant 0 : index
    %c0_176 = arith.constant 0 : index
    %191 = vector.load %arg5[%c0_175, %c0_176] : memref<1x128xf32, #tpu.memory_space<vmem>>, vector<1x128xf32>
    %192 = vector.broadcast %191 : vector<1x128xf32> to vector<392x128xf32>
    %193 = arith.addf %190, %192 : vector<392x128xf32>
    %cst_177 = arith.constant 0.000000e+00 : f32
    %194 = vector.broadcast %cst_177 : f32 to vector<392x128xf32>
    %195 = arith.cmpf oge, %193, %194 : vector<392x128xf32>
    %cst_178 = arith.constant 2.000000e-01 : f32
    %196 = vector.broadcast %cst_178 : f32 to vector<392x128xf32>
    %197 = arith.mulf %196, %193 : vector<392x128xf32>
    %198 = arith.select %195, %193, %197 : vector<392x128xi1>, vector<392x128xf32>
    %cst_179 = arith.constant 0.000000e+00 : f32
    %199 = vector.broadcast %cst_179 : f32 to vector<64x144xf32>
    %c0_180 = arith.constant 0 : index
    %c0_181 = arith.constant 0 : index
    %200 = vector.load %arg12[%c0_180, %c0_181] : memref<520x144xf32, #tpu.memory_space<vmem>>, vector<64x144xf32>
    tpu.vector_store %arg12[%c0_180, %c0_181], %199 {strides = array<i32>} : memref<520x144xf32, #tpu.memory_space<vmem>>, vector<64x144xf32>,
    %cst_182 = arith.constant 0.000000e+00 : f32
    %201 = vector.broadcast %cst_182 : f32 to vector<64x144xf32>
    %c456_183 = arith.constant 456 : index
    %c0_184 = arith.constant 0 : index
    %202 = vector.load %arg12[%c456_183, %c0_184] : memref<520x144xf32, #tpu.memory_space<vmem>>, vector<64x144xf32>
    tpu.vector_store %arg12[%c456_183, %c0_184], %201 {strides = array<i32>} : memref<520x144xf32, #tpu.memory_space<vmem>>, vector<64x144xf32>,
    %c0_185 = arith.constant 0 : index
    %c0_186 = arith.constant 0 : index
    %203 = vector.load %arg6[%c0_185, %c0_186] : memref<128x144xf32, #tpu.memory_space<vmem>>, vector<128x144xf32>
    %cst_187 = arith.constant dense<0.000000e+00> : vector<392x144xf32>
    %204 = tpu.matmul %198, %203, %cst_187 {dimension_numbers = #tpu.dot_dimension_numbers<[1], [0], [0], [1], [0, 0, 1, 1], [], []>} : vector<392x128xf32>, vector<128x144xf32>, vector<392x144xf32> -> vector<392x144xf32>
    %c64_188 = arith.constant 64 : index
    %c0_189 = arith.constant 0 : index
    %205 = vector.load %arg12[%c64_188, %c0_189] : memref<520x144xf32, #tpu.memory_space<vmem>>, vector<392x144xf32>
    tpu.vector_store %arg12[%c64_188, %c0_189], %204 {strides = array<i32>} : memref<520x144xf32, #tpu.memory_space<vmem>>, vector<392x144xf32>,
    %cst_190 = arith.constant 0.000000e+00 : f32
    %206 = vector.broadcast %cst_190 : f32 to vector<392x16xf32>
    %c0_191 = arith.constant 0 : index
    %c0_192 = arith.constant 0 : index
    %207 = vector.load %arg7[%c0_191, %c0_192] : memref<1x16xf32, #tpu.memory_space<vmem>>, vector<1x16xf32>
    %208 = vector.broadcast %207 : vector<1x16xf32> to vector<392x16xf32>
    %209 = arith.addf %206, %208 : vector<392x16xf32>
    %c0_193 = arith.constant 0 : index
    %c0_194 = arith.constant 0 : index
    %210 = vector.load %arg12[%c0_193, %c0_194] : memref<520x144xf32, #tpu.memory_space<vmem>>, vector<392x16xf32>
    %211 = vector.broadcast %31 : vector<392x1xf32> to vector<392x16xf32>
    %212 = arith.mulf %210, %211 : vector<392x16xf32>
    %213 = arith.addf %209, %212 : vector<392x16xf32>
    %c8_195 = arith.constant 8 : index
    %c16_196 = arith.constant 16 : index
    %214 = vector.load %arg12[%c8_195, %c16_196] : memref<520x144xf32, #tpu.memory_space<vmem>>, vector<392x16xf32>
    %215 = vector.broadcast %15 : vector<392x1xf32> to vector<392x16xf32>
    %216 = arith.mulf %214, %215 : vector<392x16xf32>
    %217 = arith.addf %213, %216 : vector<392x16xf32>
    %c16_197 = arith.constant 16 : index
    %c32 = arith.constant 32 : index
    %218 = vector.load %arg12[%c16_197, %c32] : memref<520x144xf32, #tpu.memory_space<vmem>>, vector<392x16xf32>
    %219 = vector.broadcast %32 : vector<392x1xf32> to vector<392x16xf32>
    %220 = arith.mulf %218, %219 : vector<392x16xf32>
    %221 = arith.addf %217, %220 : vector<392x16xf32>
    %c56_198 = arith.constant 56 : index
    %c48 = arith.constant 48 : index
    %222 = vector.load %arg12[%c56_198, %c48] : memref<520x144xf32, #tpu.memory_space<vmem>>, vector<392x16xf32>
    %223 = vector.broadcast %25 : vector<392x1xf32> to vector<392x16xf32>
    %224 = arith.mulf %222, %223 : vector<392x16xf32>
    %225 = arith.addf %221, %224 : vector<392x16xf32>
    %c64_199 = arith.constant 64 : index
    %c64_200 = arith.constant 64 : index
    %226 = vector.load %arg12[%c64_199, %c64_200] : memref<520x144xf32, #tpu.memory_space<vmem>>, vector<392x16xf32>
    %227 = arith.addf %225, %226 : vector<392x16xf32>
    %c72_201 = arith.constant 72 : index
    %c80_202 = arith.constant 80 : index
    %228 = vector.load %arg12[%c72_201, %c80_202] : memref<520x144xf32, #tpu.memory_space<vmem>>, vector<392x16xf32>
    %229 = vector.broadcast %30 : vector<392x1xf32> to vector<392x16xf32>
    %230 = arith.mulf %228, %229 : vector<392x16xf32>
    %231 = arith.addf %227, %230 : vector<392x16xf32>
    %c112_203 = arith.constant 112 : index
    %c96_204 = arith.constant 96 : index
    %232 = vector.load %arg12[%c112_203, %c96_204] : memref<520x144xf32, #tpu.memory_space<vmem>>, vector<392x16xf32>
    %233 = vector.broadcast %33 : vector<392x1xf32> to vector<392x16xf32>
    %234 = arith.mulf %232, %233 : vector<392x16xf32>
    %235 = arith.addf %231, %234 : vector<392x16xf32>
    %c120_205 = arith.constant 120 : index
    %c112_206 = arith.constant 112 : index
    %236 = vector.load %arg12[%c120_205, %c112_206] : memref<520x144xf32, #tpu.memory_space<vmem>>, vector<392x16xf32>
    %237 = vector.broadcast %20 : vector<392x1xf32> to vector<392x16xf32>
    %238 = arith.mulf %236, %237 : vector<392x16xf32>
    %239 = arith.addf %235, %238 : vector<392x16xf32>
    %c128_207 = arith.constant 128 : index
    %c128_208 = arith.constant 128 : index
    %240 = vector.load %arg12[%c128_207, %c128_208] : memref<520x144xf32, #tpu.memory_space<vmem>>, vector<392x16xf32>
    %241 = vector.broadcast %34 : vector<392x1xf32> to vector<392x16xf32>
    %242 = arith.mulf %240, %241 : vector<392x16xf32>
    %243 = arith.addf %239, %242 : vector<392x16xf32>
    %244 = arith.negf %243 : vector<392x16xf32>
    %245 = math.exp %244 : vector<392x16xf32>
    %cst_209 = arith.constant 1.000000e+00 : f32
    %246 = vector.broadcast %cst_209 : f32 to vector<392x16xf32>
    %247 = arith.addf %246, %245 : vector<392x16xf32>
    %248 = arith.divf %246, %247 : vector<392x16xf32>
    %c0_210 = arith.constant 0 : index
    %c0_211 = arith.constant 0 : index
    %249 = vector.load %arg8[%c0_210, %c0_211] : memref<392x16xf32, #tpu.memory_space<vmem>>, vector<392x16xf32>
    tpu.vector_store %arg8[%c0_210, %c0_211], %248 {strides = array<i32>} : memref<392x16xf32, #tpu.memory_space<vmem>>, vector<392x16xf32>,
    return
  }
  func.func @transform_0(%arg0: i32) -> (i32, i32) {
    %c0_i32 = arith.constant 0 : i32
    %c0_i32_0 = arith.constant 0 : i32
    return %arg0, %c0_i32 : i32, i32
  }
  func.func @transform_1(%arg0: i32) -> (i32, i32) {
    %c0_i32 = arith.constant 0 : i32
    %c0_i32_0 = arith.constant 0 : i32
    %c0_i32_1 = arith.constant 0 : i32
    return %c0_i32, %c0_i32_0 : i32, i32
  }
  func.func @transform_2(%arg0: i32) -> (i32, i32) {
    %c0_i32 = arith.constant 0 : i32
    %c0_i32_0 = arith.constant 0 : i32
    %c0_i32_1 = arith.constant 0 : i32
    return %c0_i32, %c0_i32_0 : i32, i32
  }
  func.func @transform_3(%arg0: i32) -> (i32, i32) {
    %c0_i32 = arith.constant 0 : i32
    %c0_i32_0 = arith.constant 0 : i32
    %c0_i32_1 = arith.constant 0 : i32
    return %c0_i32, %c0_i32_0 : i32, i32
  }
  func.func @transform_4(%arg0: i32) -> (i32, i32) {
    %c0_i32 = arith.constant 0 : i32
    %c0_i32_0 = arith.constant 0 : i32
    %c0_i32_1 = arith.constant 0 : i32
    return %c0_i32, %c0_i32_0 : i32, i32
  }
  func.func @transform_5(%arg0: i32) -> (i32, i32) {
    %c0_i32 = arith.constant 0 : i32
    %c0_i32_0 = arith.constant 0 : i32
    %c0_i32_1 = arith.constant 0 : i32
    return %c0_i32, %c0_i32_0 : i32, i32
  }
  func.func @transform_6(%arg0: i32) -> (i32, i32) {
    %c0_i32 = arith.constant 0 : i32
    %c0_i32_0 = arith.constant 0 : i32
    %c0_i32_1 = arith.constant 0 : i32
    return %c0_i32, %c0_i32_0 : i32, i32
  }
  func.func @transform_7(%arg0: i32) -> (i32, i32) {
    %c0_i32 = arith.constant 0 : i32
    %c0_i32_0 = arith.constant 0 : i32
    return %arg0, %c0_i32 : i32, i32
  }
}

</mosaic_0001>

<llo_original>
// kernel: net3_forward.1
$region0: #{net3_forward.1}
  #allocation0 [shape = 'u32[]', space=smem, size = 0x4, offset = 0x4, fixed_abs, tag = 'smem constant byte address 0x4 - core index']
  #allocation1 [shape = 'u32[144,128]{1,0:T(1,128)}', space=vmem, size = 0x12000, scoped, tag = 'internal scratch']
  #allocation2 [shape = 'f32[8,3136]{1,0:T(8,128)}', space=vmem, size = 0x19000, scoped, tag = 'scratch operand']
  #allocation3 [shape = 'f32[520,64]{1,0:T(8,128)}', space=vmem, size = 0x41000, scoped, tag = 'scratch operand']
  #allocation4 [shape = 'f32[392,576]{1,0:T(8,128)}', space=vmem, size = 0xf5000, scoped, tag = 'scratch operand']
  #allocation5 [shape = 'f32[520,144]{1,0:T(8,128)}', space=vmem, size = 0x82000, scoped, tag = 'scratch operand']
  %s0 = inlined_call_operand.vmem [shape: f32[8,128], index: 0, kind: input, shape index: {}]
  %s1 = inlined_call_operand.vmem [shape: f32[128,3136], index: 1, kind: input, shape index: {}]
  %s2 = inlined_call_operand.vmem [shape: f32[1,3136], index: 2, kind: input, shape index: {}]
  %s3 = inlined_call_operand.vmem [shape: f32[576,128], index: 3, kind: input, shape index: {}]
  %s4 = inlined_call_operand.vmem [shape: f32[1,128], index: 4, kind: input, shape index: {}]
  %s5 = inlined_call_operand.vmem [shape: f32[128,144], index: 5, kind: input, shape index: {}]
  %s6 = inlined_call_operand.vmem [shape: f32[1,16], index: 6, kind: input, shape index: {}]
  %s7 = inlined_call_operand.vmem [shape: f32[392,16], index: 7, kind: output, shape index: {}]
  %s8 = sld [smem:[#allocation0]]
  $region38: #{net3_forward.1} parent=0
    _
  %s10 = ssub.s32 1, %s8
  %s11 = scalar_select 0, %s10, %s8
  // Predicated region
  $region2: #{net3_forward.1} parent=0 // pred_check
    _
  $region3: #{net3_forward.1} parent=0 // pred_check_branch
    %13 = sbr.rel (0) target = $region5
  $region4: #{net3_forward.1} parent=0 // pred_region
    _
  $region5: #{net3_forward.1} parent=0 // pred_fallthru
    _
  // Predicated region
  $region6: #{net3_forward.1} parent=0 // pred_check
    _
  $region7: #{net3_forward.1} parent=0 // pred_check_branch
    %15 = sbr.rel (0) target = $region9
  $region8: #{net3_forward.1} parent=0 // pred_region
    _
  $region9: #{net3_forward.1} parent=0 // pred_fallthru
    _
  // Predicated region
  $region10: #{net3_forward.1} parent=0 // pred_check
    _
  $region11: #{net3_forward.1} parent=0 // pred_check_branch
    %17 = sbr.rel (0) target = $region13
  $region12: #{net3_forward.1} parent=0 // pred_region
    _
  $region13: #{net3_forward.1} parent=0 // pred_fallthru
    _
  // Predicated region
  $region14: #{net3_forward.1} parent=0 // pred_check
    _
  $region15: #{net3_forward.1} parent=0 // pred_check_branch
    %19 = sbr.rel (0) target = $region17
  $region16: #{net3_forward.1} parent=0 // pred_region
    _
  $region17: #{net3_forward.1} parent=0 // pred_fallthru
    _
  // Predicated region
  $region18: #{net3_forward.1} parent=0 // pred_check
    _
  $region19: #{net3_forward.1} parent=0 // pred_check_branch
    %21 = sbr.rel (0) target = $region21
  $region20: #{net3_forward.1} parent=0 // pred_region
    _
  $region21: #{net3_forward.1} parent=0 // pred_fallthru
    _
  // Predicated region
  $region22: #{net3_forward.1} parent=0 // pred_check
    _
  $region23: #{net3_forward.1} parent=0 // pred_check_branch
    %23 = sbr.rel (0) target = $region25
  $region24: #{net3_forward.1} parent=0 // pred_region
    _
  $region25: #{net3_forward.1} parent=0 // pred_fallthru
    _
  // Predicated region
  $region26: #{net3_forward.1} parent=0 // pred_check
    _
  $region27: #{net3_forward.1} parent=0 // pred_check_branch
    %25 = sbr.rel (0) target = $region29
  $region28: #{net3_forward.1} parent=0 // pred_region
    _
  $region29: #{net3_forward.1} parent=0 // pred_fallthru
    _
  %v26 = vlaneseq
  %v27 = vshrl.u32 %v26, 7
  %v28 = vadd.s32 %v27, 8
  %v29 = vadd.s32 %v27, 16
  %v30 = vadd.s32 %v27, 24
  %v31 = vadd.s32 %v27, 32
  %v32 = vadd.s32 %v27, 40
  %v33 = vadd.s32 %v27, 48
  %v34 = vadd.s32 %v27, 56
  %v35 = vadd.s32 %v27, 64
  %v36 = vadd.s32 %v27, 72
  %v37 = vadd.s32 %v27, 80
  %v38 = vadd.s32 %v27, 88
  %v39 = vadd.s32 %v27, 96
  %v40 = vadd.s32 %v27, 104
  %v41 = vadd.s32 %v27, 112
  %v42 = vadd.s32 %v27, 120
  %v43 = vadd.s32 %v27, 128
  %v44 = vadd.s32 %v27, 136
  %v45 = vadd.s32 %v27, 144
  %v46 = vadd.s32 %v27, 152
  %v47 = vadd.s32 %v27, 160
  %v48 = vadd.s32 %v27, 168
  %v49 = vadd.s32 %v27, 176
  %v50 = vadd.s32 %v27, 184
  %v51 = vadd.s32 %v27, 192
  %v52 = vadd.s32 %v27, 200
  %v53 = vadd.s32 %v27, 208
  %v54 = vadd.s32 %v27, 216
  %v55 = vadd.s32 %v27, 224
  %v56 = vadd.s32 %v27, 232
  %v57 = vadd.s32 %v27, 240
  %v58 = vadd.s32 %v27, 248
  %v59 = vadd.s32 %v27, 256
  %v60 = vadd.s32 %v27, 264
  %v61 = vadd.s32 %v27, 272
  %v62 = vadd.s32 %v27, 280
  %v63 = vadd.s32 %v27, 288
  %v64 = vadd.s32 %v27, 296
  %v65 = vadd.s32 %v27, 304
  %v66 = vadd.s32 %v27, 312
  %v67 = vadd.s32 %v27, 320
  %v68 = vadd.s32 %v27, 328
  %v69 = vadd.s32 %v27, 336
  %v70 = vadd.s32 %v27, 344
  %v71 = vadd.s32 %v27, 352
  %v72 = vadd.s32 %v27, 360
  %v73 = vadd.s32 %v27, 368
  %v74 = vadd.s32 %v27, 376
  %v75 = vadd.s32 %v27, 384
  %v76 = vcvt.s32.f32 %v27
  %v77 = vcvt.s32.f32 %v28
  %v78 = vcvt.s32.f32 %v29
  %v79 = vcvt.s32.f32 %v30
  %v80 = vcvt.s32.f32 %v31
  %v81 = vcvt.s32.f32 %v32
  %v82 = vcvt.s32.f32 %v33
  %v83 = vcvt.s32.f32 %v34
  %v84 = vcvt.s32.f32 %v35
  %v85 = vcvt.s32.f32 %v36
  %v86 = vcvt.s32.f32 %v37
  %v87 = vcvt.s32.f32 %v38
  %v88 = vcvt.s32.f32 %v39
  %v89 = vcvt.s32.f32 %v40
  %v90 = vcvt.s32.f32 %v41
  %v91 = vcvt.s32.f32 %v42
  %v92 = vcvt.s32.f32 %v43
  %v93 = vcvt.s32.f32 %v44
  %v94 = vcvt.s32.f32 %v45
  %v95 = vcvt.s32.f32 %v46
  %v96 = vcvt.s32.f32 %v47
  %v97 = vcvt.s32.f32 %v48
  %v98 = vcvt.s32.f32 %v49
  %v99 = vcvt.s32.f32 %v50
  %v100 = vcvt.s32.f32 %v51
  %v101 = vcvt.s32.f32 %v52
  %v102 = vcvt.s32.f32 %v53
  %v103 = vcvt.s32.f32 %v54
  %v104 = vcvt.s32.f32 %v55
  %v105 = vcvt.s32.f32 %v56
  %v106 = vcvt.s32.f32 %v57
  %v107 = vcvt.s32.f32 %v58
  %v108 = vcvt.s32.f32 %v59
  %v109 = vcvt.s32.f32 %v60
  %v110 = vcvt.s32.f32 %v61
  %v111 = vcvt.s32.f32 %v62
  %v112 = vcvt.s32.f32 %v63
  %v113 = vcvt.s32.f32 %v64
  %v114 = vcvt.s32.f32 %v65
  %v115 = vcvt.s32.f32 %v66
  %v116 = vcvt.s32.f32 %v67
  %v117 = vcvt.s32.f32 %v68
  %v118 = vcvt.s32.f32 %v69
  %v119 = vcvt.s32.f32 %v70
  %v120 = vcvt.s32.f32 %v71
  %v121 = vcvt.s32.f32 %v72
  %v122 = vcvt.s32.f32 %v73
  %v123 = vcvt.s32.f32 %v74
  %v124 = vcvt.s32.f32 %v75
  %v125 = vmul.f32 %v76, 0.125
  %v126 = vmul.f32 %v77, 0.125
  %v127 = vmul.f32 %v78, 0.125
  %v128 = vmul.f32 %v79, 0.125
  %v129 = vmul.f32 %v80, 0.125
  %v130 = vmul.f32 %v81, 0.125
  %v131 = vmul.f32 %v82, 0.125
  %v132 = vmul.f32 %v83, 0.125
  %v133 = vmul.f32 %v84, 0.125
  %v134 = vmul.f32 %v85, 0.125
  %v135 = vmul.f32 %v86, 0.125
  %v136 = vmul.f32 %v87, 0.125
  %v137 = vmul.f32 %v88, 0.125
  %v138 = vmul.f32 %v89, 0.125
  %v139 = vmul.f32 %v90, 0.125
  %v140 = vmul.f32 %v91, 0.125
  %v141 = vmul.f32 %v92, 0.125
  %v142 = vmul.f32 %v93, 0.125
  %v143 = vmul.f32 %v94, 0.125
  %v144 = vmul.f32 %v95, 0.125
  %v145 = vmul.f32 %v96, 0.125
  %v146 = vmul.f32 %v97, 0.125
  %v147 = vmul.f32 %v98, 0.125
  %v148 = vmul.f32 %v99, 0.125
  %v149 = vmul.f32 %v100, 0.125
  %v150 = vmul.f32 %v101, 0.125
  %v151 = vmul.f32 %v102, 0.125
  %v152 = vmul.f32 %v103, 0.125
  %v153 = vmul.f32 %v104, 0.125
  %v154 = vmul.f32 %v105, 0.125
  %v155 = vmul.f32 %v106, 0.125
  %v156 = vmul.f32 %v107, 0.125
  %v157 = vmul.f32 %v108, 0.125
  %v158 = vmul.f32 %v109, 0.125
  %v159 = vmul.f32 %v110, 0.125
  %v160 = vmul.f32 %v111, 0.125
  %v161 = vmul.f32 %v112, 0.125
  %v162 = vmul.f32 %v113, 0.125
  %v163 = vmul.f32 %v114, 0.125
  %v164 = vmul.f32 %v115, 0.125
  %v165 = vmul.f32 %v116, 0.125
  %v166 = vmul.f32 %v117, 0.125
  %v167 = vmul.f32 %v118, 0.125
  %v168 = vmul.f32 %v119, 0.125
  %v169 = vmul.f32 %v120, 0.125
  %v170 = vmul.f32 %v121, 0.125
  %v171 = vmul.f32 %v122, 0.125
  %v172 = vmul.f32 %v123, 0.125
  %v173 = vmul.f32 %v124, 0.125
  %v174 = vfloor.f32 %v125
  %v175 = vfloor.f32 %v126
  %v176 = vfloor.f32 %v127
  %v177 = vfloor.f32 %v128
  %v178 = vfloor.f32 %v129
  %v179 = vfloor.f32 %v130
  %v180 = vfloor.f32 %v131
  %v181 = vfloor.f32 %v132
  %v182 = vfloor.f32 %v133
  %v183 = vfloor.f32 %v134
  %v184 = vfloor.f32 %v135
  %v185 = vfloor.f32 %v136
  %v186 = vfloor.f32 %v137
  %v187 = vfloor.f32 %v138
  %v188 = vfloor.f32 %v139
  %v189 = vfloor.f32 %v140
  %v190 = vfloor.f32 %v141
  %v191 = vfloor.f32 %v142
  %v192 = vfloor.f32 %v143
  %v193 = vfloor.f32 %v144
  %v194 = vfloor.f32 %v145
  %v195 = vfloor.f32 %v146
  %v196 = vfloor.f32 %v147
  %v197 = vfloor.f32 %v148
  %v198 = vfloor.f32 %v149
  %v199 = vfloor.f32 %v150
  %v200 = vfloor.f32 %v151
  %v201 = vfloor.f32 %v152
  %v202 = vfloor.f32 %v153
  %v203 = vfloor.f32 %v154
  %v204 = vfloor.f32 %v155
  %v205 = vfloor.f32 %v156
  %v206 = vfloor.f32 %v157
  %v207 = vfloor.f32 %v158
  %v208 = vfloor.f32 %v159
  %v209 = vfloor.f32 %v160
  %v210 = vfloor.f32 %v161
  %v211 = vfloor.f32 %v162
  %v212 = vfloor.f32 %v163
  %v213 = vfloor.f32 %v164
  %v214 = vfloor.f32 %v165
  %v215 = vfloor.f32 %v166
  %v216 = vfloor.f32 %v167
  %v217 = vfloor.f32 %v168
  %v218 = vfloor.f32 %v169
  %v219 = vfloor.f32 %v170
  %v220 = vfloor.f32 %v171
  %v221 = vfloor.f32 %v172
  %v222 = vfloor.f32 %v173
  %v223 = vmul.f32 %v174, 0.14285715
  %v224 = vmul.f32 %v175, 0.14285715
  %v225 = vmul.f32 %v176, 0.14285715
  %v226 = vmul.f32 %v177, 0.14285715
  %v227 = vmul.f32 %v178, 0.14285715
  %v228 = vmul.f32 %v179, 0.14285715
  %v229 = vmul.f32 %v180, 0.14285715
  %v230 = vmul.f32 %v181, 0.14285715
  %v231 = vmul.f32 %v182, 0.14285715
  %v232 = vmul.f32 %v183, 0.14285715
  %v233 = vmul.f32 %v184, 0.14285715
  %v234 = vmul.f32 %v185, 0.14285715
  %v235 = vmul.f32 %v186, 0.14285715
  %v236 = vmul.f32 %v187, 0.14285715
  %v237 = vmul.f32 %v188, 0.14285715
  %v238 = vmul.f32 %v189, 0.14285715
  %v239 = vmul.f32 %v190, 0.14285715
  %v240 = vmul.f32 %v191, 0.14285715
  %v241 = vmul.f32 %v192, 0.14285715
  %v242 = vmul.f32 %v193, 0.14285715
  %v243 = vmul.f32 %v194, 0.14285715
  %v244 = vmul.f32 %v195, 0.14285715
  %v245 = vmul.f32 %v196, 0.14285715
  %v246 = vmul.f32 %v197, 0.14285715
  %v247 = vmul.f32 %v198, 0.14285715
  %v248 = vmul.f32 %v199, 0.14285715
  %v249 = vmul.f32 %v200, 0.14285715
  %v250 = vmul.f32 %v201, 0.14285715
  %v251 = vmul.f32 %v202, 0.14285715
  %v252 = vmul.f32 %v203, 0.14285715
  %v253 = vmul.f32 %v204, 0.14285715
  %v254 = vmul.f32 %v205, 0.14285715
  %v255 = vmul.f32 %v206, 0.14285715
  %v256 = vmul.f32 %v207, 0.14285715
  %v257 = vmul.f32 %v208, 0.14285715
  %v258 = vmul.f32 %v209, 0.14285715
  %v259 = vmul.f32 %v210, 0.14285715
  %v260 = vmul.f32 %v211, 0.14285715
  %v261 = vmul.f32 %v212, 0.14285715
  %v262 = vmul.f32 %v213, 0.14285715
  %v263 = vmul.f32 %v214, 0.14285715
  %v264 = vmul.f32 %v215, 0.14285715
  %v265 = vmul.f32 %v216, 0.14285715
  %v266 = vmul.f32 %v217, 0.14285715
  %v267 = vmul.f32 %v218, 0.14285715
  %v268 = vmul.f32 %v219, 0.14285715
  %v269 = vmul.f32 %v220, 0.14285715
  %v270 = vmul.f32 %v221, 0.14285715
  %v271 = vmul.f32 %v222, 0.14285715
  %v272 = vfloor.f32 %v223
  %v273 = vfloor.f32 %v224
  %v274 = vfloor.f32 %v225
  %v275 = vfloor.f32 %v226
  %v276 = vfloor.f32 %v227
  %v277 = vfloor.f32 %v228
  %v278 = vfloor.f32 %v229
  %v279 = vfloor.f32 %v230
  %v280 = vfloor.f32 %v231
  %v281 = vfloor.f32 %v232
  %v282 = vfloor.f32 %v233
  %v283 = vfloor.f32 %v234
  %v284 = vfloor.f32 %v235
  %v285 = vfloor.f32 %v236
  %v286 = vfloor.f32 %v237
  %v287 = vfloor.f32 %v238
  %v288 = vfloor.f32 %v239
  %v289 = vfloor.f32 %v240
  %v290 = vfloor.f32 %v241
  %v291 = vfloor.f32 %v242
  %v292 = vfloor.f32 %v243
  %v293 = vfloor.f32 %v244
  %v294 = vfloor.f32 %v245
  %v295 = vfloor.f32 %v246
  %v296 = vfloor.f32 %v247
  %v297 = vfloor.f32 %v248
  %v298 = vfloor.f32 %v249
  %v299 = vfloor.f32 %v250
  %v300 = vfloor.f32 %v251
  %v301 = vfloor.f32 %v252
  %v302 = vfloor.f32 %v253
  %v303 = vfloor.f32 %v254
  %v304 = vfloor.f32 %v255
  %v305 = vfloor.f32 %v256
  %v306 = vfloor.f32 %v257
  %v307 = vfloor.f32 %v258
  %v308 = vfloor.f32 %v259
  %v309 = vfloor.f32 %v260
  %v310 = vfloor.f32 %v261
  %v311 = vfloor.f32 %v262
  %v312 = vfloor.f32 %v263
  %v313 = vfloor.f32 %v264
  %v314 = vfloor.f32 %v265
  %v315 = vfloor.f32 %v266
  %v316 = vfloor.f32 %v267
  %v317 = vfloor.f32 %v268
  %v318 = vfloor.f32 %v269
  %v319 = vfloor.f32 %v270
  %v320 = vfloor.f32 %v271
  %v321 = vmul.f32 %v272, 7.0
  %v322 = vmul.f32 %v273, 7.0
  %v323 = vmul.f32 %v274, 7.0
  %v324 = vmul.f32 %v275, 7.0
  %v325 = vmul.f32 %v276, 7.0
  %v326 = vmul.f32 %v277, 7.0
  %v327 = vmul.f32 %v278, 7.0
  %v328 = vmul.f32 %v279, 7.0
  %v329 = vmul.f32 %v280, 7.0
  %v330 = vmul.f32 %v281, 7.0
  %v331 = vmul.f32 %v282, 7.0
  %v332 = vmul.f32 %v283, 7.0
  %v333 = vmul.f32 %v284, 7.0
  %v334 = vmul.f32 %v285, 7.0
  %v335 = vmul.f32 %v286, 7.0
  %v336 = vmul.f32 %v287, 7.0
  %v337 = vmul.f32 %v288, 7.0
  %v338 = vmul.f32 %v289, 7.0
  %v339 = vmul.f32 %v290, 7.0
  %v340 = vmul.f32 %v291, 7.0
  %v341 = vmul.f32 %v292, 7.0
  %v342 = vmul.f32 %v293, 7.0
  %v343 = vmul.f32 %v294, 7.0
  %v344 = vmul.f32 %v295, 7.0
  %v345 = vmul.f32 %v296, 7.0
  %v346 = vmul.f32 %v297, 7.0
  %v347 = vmul.f32 %v298, 7.0
  %v348 = vmul.f32 %v299, 7.0
  %v349 = vmul.f32 %v300, 7.0
  %v350 = vmul.f32 %v301, 7.0
  %v351 = vmul.f32 %v302, 7.0
  %v352 = vmul.f32 %v303, 7.0
  %v353 = vmul.f32 %v304, 7.0
  %v354 = vmul.f32 %v305, 7.0
  %v355 = vmul.f32 %v306, 7.0
  %v356 = vmul.f32 %v307, 7.0
  %v357 = vmul.f32 %v308, 7.0
  %v358 = vmul.f32 %v309, 7.0
  %v359 = vmul.f32 %v310, 7.0
  %v360 = vmul.f32 %v311, 7.0
  %v361 = vmul.f32 %v312, 7.0
  %v362 = vmul.f32 %v313, 7.0
  %v363 = vmul.f32 %v314, 7.0
  %v364 = vmul.f32 %v315, 7.0
  %v365 = vmul.f32 %v316, 7.0
  %v366 = vmul.f32 %v317, 7.0
  %v367 = vmul.f32 %v318, 7.0
  %v368 = vmul.f32 %v319, 7.0
  %v369 = vmul.f32 %v320, 7.0
  %v370 = vsub.f32 %v174, %v321
  %v371 = vsub.f32 %v175, %v322
  %v372 = vsub.f32 %v176, %v323
  %v373 = vsub.f32 %v177, %v324
  %v374 = vsub.f32 %v178, %v325
  %v375 = vsub.f32 %v179, %v326
  %v376 = vsub.f32 %v180, %v327
  %v377 = vsub.f32 %v181, %v328
  %v378 = vsub.f32 %v182, %v329
  %v379 = vsub.f32 %v183, %v330
  %v380 = vsub.f32 %v184, %v331
  %v381 = vsub.f32 %v185, %v332
  %v382 = vsub.f32 %v186, %v333
  %v383 = vsub.f32 %v187, %v334
  %v384 = vsub.f32 %v188, %v335
  %v385 = vsub.f32 %v189, %v336
  %v386 = vsub.f32 %v190, %v337
  %v387 = vsub.f32 %v191, %v338
  %v388 = vsub.f32 %v192, %v339
  %v389 = vsub.f32 %v193, %v340
  %v390 = vsub.f32 %v194, %v341
  %v391 = vsub.f32 %v195, %v342
  %v392 = vsub.f32 %v196, %v343
  %v393 = vsub.f32 %v197, %v344
  %v394 = vsub.f32 %v198, %v345
  %v395 = vsub.f32 %v199, %v346
  %v396 = vsub.f32 %v200, %v347
  %v397 = vsub.f32 %v201, %v348
  %v398 = vsub.f32 %v202, %v349
  %v399 = vsub.f32 %v203, %v350
  %v400 = vsub.f32 %v204, %v351
  %v401 = vsub.f32 %v205, %v352
  %v402 = vsub.f32 %v206, %v353
  %v403 = vsub.f32 %v207, %v354
  %v404 = vsub.f32 %v208, %v355
  %v405 = vsub.f32 %v209, %v356
  %v406 = vsub.f32 %v210, %v357
  %v407 = vsub.f32 %v211, %v358
  %v408 = vsub.f32 %v212, %v359
  %v409 = vsub.f32 %v213, %v360
  %v410 = vsub.f32 %v214, %v361
  %v411 = vsub.f32 %v215, %v362
  %v412 = vsub.f32 %v216, %v363
  %v413 = vsub.f32 %v217, %v364
  %v414 = vsub.f32 %v218, %v365
  %v415 = vsub.f32 %v219, %v366
  %v416 = vsub.f32 %v220, %v367
  %v417 = vsub.f32 %v221, %v368
  %v418 = vsub.f32 %v222, %v369
  %vm419 = vcmp.ge.f32.partialorder %v174, 7.0
  %vm420 = vcmp.ge.f32.partialorder %v175, 7.0
  %vm421 = vcmp.ge.f32.partialorder %v176, 7.0
  %vm422 = vcmp.ge.f32.partialorder %v177, 7.0
  %vm423 = vcmp.ge.f32.partialorder %v178, 7.0
  %vm424 = vcmp.ge.f32.partialorder %v179, 7.0
  %vm425 = vcmp.ge.f32.partialorder %v180, 7.0
  %vm426 = vcmp.ge.f32.partialorder %v181, 7.0
  %vm427 = vcmp.ge.f32.partialorder %v182, 7.0
  %vm428 = vcmp.ge.f32.partialorder %v183, 7.0
  %vm429 = vcmp.ge.f32.partialorder %v184, 7.0
  %vm430 = vcmp.ge.f32.partialorder %v185, 7.0
  %vm431 = vcmp.ge.f32.partialorder %v186, 7.0
  %vm432 = vcmp.ge.f32.partialorder %v187, 7.0
  %vm433 = vcmp.ge.f32.partialorder %v188, 7.0
  %vm434 = vcmp.ge.f32.partialorder %v189, 7.0
  %vm435 = vcmp.ge.f32.partialorder %v190, 7.0
  %vm436 = vcmp.ge.f32.partialorder %v191, 7.0
  %vm437 = vcmp.ge.f32.partialorder %v192, 7.0
  %vm438 = vcmp.ge.f32.partialorder %v193, 7.0
  %vm439 = vcmp.ge.f32.partialorder %v194, 7.0
  %vm440 = vcmp.ge.f32.partialorder %v195, 7.0
  %vm441 = vcmp.ge.f32.partialorder %v196, 7.0
  %vm442 = vcmp.ge.f32.partialorder %v197, 7.0
  %vm443 = vcmp.ge.f32.partialorder %v198, 7.0
  %vm444 = vcmp.ge.f32.partialorder %v199, 7.0
  %vm445 = vcmp.ge.f32.partialorder %v200, 7.0
  %vm446 = vcmp.ge.f32.partialorder %v201, 7.0
  %vm447 = vcmp.ge.f32.partialorder %v202, 7.0
  %vm448 = vcmp.ge.f32.partialorder %v203, 7.0
  %vm449 = vcmp.ge.f32.partialorder %v204, 7.0
  %vm450 = vcmp.ge.f32.partialorder %v205, 7.0
  %vm451 = vcmp.ge.f32.partialorder %v206, 7.0
  %vm452 = vcmp.ge.f32.partialorder %v207, 7.0
  %vm453 = vcmp.ge.f32.partialorder %v208, 7.0
  %vm454 = vcmp.ge.f32.partialorder %v209, 7.0
  %vm455 = vcmp.ge.f32.partialorder %v210, 7.0
  %vm456 = vcmp.ge.f32.partialorder %v211, 7.0
  %vm457 = vcmp.ge.f32.partialorder %v212, 7.0
  %vm458 = vcmp.ge.f32.partialorder %v213, 7.0
  %vm459 = vcmp.ge.f32.partialorder %v214, 7.0
  %vm460 = vcmp.ge.f32.partialorder %v215, 7.0
  %vm461 = vcmp.ge.f32.partialorder %v216, 7.0
  %vm462 = vcmp.ge.f32.partialorder %v217, 7.0
  %vm463 = vcmp.ge.f32.partialorder %v218, 7.0
  %vm464 = vcmp.ge.f32.partialorder %v219, 7.0
  %vm465 = vcmp.ge.f32.partialorder %v220, 7.0
  %vm466 = vcmp.ge.f32.partialorder %v221, 7.0
  %vm467 = vcmp.ge.f32.partialorder %v222, 7.0
  %v468 = vsel %vm419, 1.0, 0.0
  %v469 = vsel %vm420, 1.0, 0.0
  %v470 = vsel %vm421, 1.0, 0.0
  %v471 = vsel %vm422, 1.0, 0.0
  %v472 = vsel %vm423, 1.0, 0.0
  %v473 = vsel %vm424, 1.0, 0.0
  %v474 = vsel %vm425, 1.0, 0.0
  %v475 = vsel %vm426, 1.0, 0.0
  %v476 = vsel %vm427, 1.0, 0.0
  %v477 = vsel %vm428, 1.0, 0.0
  %v478 = vsel %vm429, 1.0, 0.0
  %v479 = vsel %vm430, 1.0, 0.0
  %v480 = vsel %vm431, 1.0, 0.0
  %v481 = vsel %vm432, 1.0, 0.0
  %v482 = vsel %vm433, 1.0, 0.0
  %v483 = vsel %vm434, 1.0, 0.0
  %v484 = vsel %vm435, 1.0, 0.0
  %v485 = vsel %vm436, 1.0, 0.0
  %v486 = vsel %vm437, 1.0, 0.0
  %v487 = vsel %vm438, 1.0, 0.0
  %v488 = vsel %vm439, 1.0, 0.0
  %v489 = vsel %vm440, 1.0, 0.0
  %v490 = vsel %vm441, 1.0, 0.0
  %v491 = vsel %vm442, 1.0, 0.0
  %v492 = vsel %vm443, 1.0, 0.0
  %v493 = vsel %vm444, 1.0, 0.0
  %v494 = vsel %vm445, 1.0, 0.0
  %v495 = vsel %vm446, 1.0, 0.0
  %v496 = vsel %vm447, 1.0, 0.0
  %v497 = vsel %vm448, 1.0, 0.0
  %v498 = vsel %vm449, 1.0, 0.0
  %v499 = vsel %vm450, 1.0, 0.0
  %v500 = vsel %vm451, 1.0, 0.0
  %v501 = vsel %vm452, 1.0, 0.0
  %v502 = vsel %vm453, 1.0, 0.0
  %v503 = vsel %vm454, 1.0, 0.0
  %v504 = vsel %vm455, 1.0, 0.0
  %v505 = vsel %vm456, 1.0, 0.0
  %v506 = vsel %vm457, 1.0, 0.0
  %v507 = vsel %vm458, 1.0, 0.0
  %v508 = vsel %vm459, 1.0, 0.0
  %v509 = vsel %vm460, 1.0, 0.0
  %v510 = vsel %vm461, 1.0, 0.0
  %v511 = vsel %vm462, 1.0, 0.0
  %v512 = vsel %vm463, 1.0, 0.0
  %v513 = vsel %vm464, 1.0, 0.0
  %v514 = vsel %vm465, 1.0, 0.0
  %v515 = vsel %vm466, 1.0, 0.0
  %v516 = vsel %vm467, 1.0, 0.0
  %vm517 = vcmp.le.f32.partialorder %v174, 41.0
  %vm518 = vcmp.le.f32.partialorder %v175, 41.0
  %vm519 = vcmp.le.f32.partialorder %v176, 41.0
  %vm520 = vcmp.le.f32.partialorder %v177, 41.0
  %vm521 = vcmp.le.f32.partialorder %v178, 41.0
  %vm522 = vcmp.le.f32.partialorder %v179, 41.0
  %vm523 = vcmp.le.f32.partialorder %v180, 41.0
  %vm524 = vcmp.le.f32.partialorder %v181, 41.0
  %vm525 = vcmp.le.f32.partialorder %v182, 41.0
  %vm526 = vcmp.le.f32.partialorder %v183, 41.0
  %vm527 = vcmp.le.f32.partialorder %v184, 41.0
  %vm528 = vcmp.le.f32.partialorder %v185, 41.0
  %vm529 = vcmp.le.f32.partialorder %v186, 41.0
  %vm530 = vcmp.le.f32.partialorder %v187, 41.0
  %vm531 = vcmp.le.f32.partialorder %v188, 41.0
  %vm532 = vcmp.le.f32.partialorder %v189, 41.0
  %vm533 = vcmp.le.f32.partialorder %v190, 41.0
  %vm534 = vcmp.le.f32.partialorder %v191, 41.0
  %vm535 = vcmp.le.f32.partialorder %v192, 41.0
  %vm536 = vcmp.le.f32.partialorder %v193, 41.0
  %vm537 = vcmp.le.f32.partialorder %v194, 41.0
  %vm538 = vcmp.le.f32.partialorder %v195, 41.0
  %vm539 = vcmp.le.f32.partialorder %v196, 41.0
  %vm540 = vcmp.le.f32.partialorder %v197, 41.0
  %vm541 = vcmp.le.f32.partialorder %v198, 41.0
  %vm542 = vcmp.le.f32.partialorder %v199, 41.0
  %vm543 = vcmp.le.f32.partialorder %v200, 41.0
  %vm544 = vcmp.le.f32.partialorder %v201, 41.0
  %vm545 = vcmp.le.f32.partialorder %v202, 41.0
  %vm546 = vcmp.le.f32.partialorder %v203, 41.0
  %vm547 = vcmp.le.f32.partialorder %v204, 41.0
  %vm548 = vcmp.le.f32.partialorder %v205, 41.0
  %vm549 = vcmp.le.f32.partialorder %v206, 41.0
  %vm550 = vcmp.le.f32.partialorder %v207, 41.0
  %vm551 = vcmp.le.f32.partialorder %v208, 41.0
  %vm552 = vcmp.le.f32.partialorder %v209, 41.0
  %vm553 = vcmp.le.f32.partialorder %v210, 41.0
  %vm554 = vcmp.le.f32.partialorder %v211, 41.0
  %vm555 = vcmp.le.f32.partialorder %v212, 41.0
  %vm556 = vcmp.le.f32.partialorder %v213, 41.0
  %vm557 = vcmp.le.f32.partialorder %v214, 41.0
  %vm558 = vcmp.le.f32.partialorder %v215, 41.0
  %vm559 = vcmp.le.f32.partialorder %v216, 41.0
  %vm560 = vcmp.le.f32.partialorder %v217, 41.0
  %vm561 = vcmp.le.f32.partialorder %v218, 41.0
  %vm562 = vcmp.le.f32.partialorder %v219, 41.0
  %vm563 = vcmp.le.f32.partialorder %v220, 41.0
  %vm564 = vcmp.le.f32.partialorder %v221, 41.0
  %vm565 = vcmp.le.f32.partialorder %v222, 41.0
  %v566 = vsel %vm517, 1.0, 0.0
  %v567 = vsel %vm518, 1.0, 0.0
  %v568 = vsel %vm519, 1.0, 0.0
  %v569 = vsel %vm520, 1.0, 0.0
  %v570 = vsel %vm521, 1.0, 0.0
  %v571 = vsel %vm522, 1.0, 0.0
  %v572 = vsel %vm523, 1.0, 0.0
  %v573 = vsel %vm524, 1.0, 0.0
  %v574 = vsel %vm525, 1.0, 0.0
  %v575 = vsel %vm526, 1.0, 0.0
  %v576 = vsel %vm527, 1.0, 0.0
  %v577 = vsel %vm528, 1.0, 0.0
  %v578 = vsel %vm529, 1.0, 0.0
  %v579 = vsel %vm530, 1.0, 0.0
  %v580 = vsel %vm531, 1.0, 0.0
  %v581 = vsel %vm532, 1.0, 0.0
  %v582 = vsel %vm533, 1.0, 0.0
  %v583 = vsel %vm534, 1.0, 0.0
  %v584 = vsel %vm535, 1.0, 0.0
  %v585 = vsel %vm536, 1.0, 0.0
  %v586 = vsel %vm537, 1.0, 0.0
  %v587 = vsel %vm538, 1.0, 0.0
  %v588 = vsel %vm539, 1.0, 0.0
  %v589 = vsel %vm540, 1.0, 0.0
  %v590 = vsel %vm541, 1.0, 0.0
  %v591 = vsel %vm542, 1.0, 0.0
  %v592 = vsel %vm543, 1.0, 0.0
  %v593 = vsel %vm544, 1.0, 0.0
  %v594 = vsel %vm545, 1.0, 0.0
  %v595 = vsel %vm546, 1.0, 0.0
  %v596 = vsel %vm547, 1.0, 0.0
  %v597 = vsel %vm548, 1.0, 0.0
  %v598 = vsel %vm549, 1.0, 0.0
  %v599 = vsel %vm550, 1.0, 0.0
  %v600 = vsel %vm551, 1.0, 0.0
  %v601 = vsel %vm552, 1.0, 0.0
  %v602 = vsel %vm553, 1.0, 0.0
  %v603 = vsel %vm554, 1.0, 0.0
  %v604 = vsel %vm555, 1.0, 0.0
  %v605 = vsel %vm556, 1.0, 0.0
  %v606 = vsel %vm557, 1.0, 0.0
  %v607 = vsel %vm558, 1.0, 0.0
  %v608 = vsel %vm559, 1.0, 0.0
  %v609 = vsel %vm560, 1.0, 0.0
  %v610 = vsel %vm561, 1.0, 0.0
  %v611 = vsel %vm562, 1.0, 0.0
  %v612 = vsel %vm563, 1.0, 0.0
  %v613 = vsel %vm564, 1.0, 0.0
  %v614 = vsel %vm565, 1.0, 0.0
  %vm615 = vcmp.ge.f32.partialorder %v370, 0.5
  %vm616 = vcmp.ge.f32.partialorder %v371, 0.5
  %vm617 = vcmp.ge.f32.partialorder %v372, 0.5
  %vm618 = vcmp.ge.f32.partialorder %v373, 0.5
  %vm619 = vcmp.ge.f32.partialorder %v374, 0.5
  %vm620 = vcmp.ge.f32.partialorder %v375, 0.5
  %vm621 = vcmp.ge.f32.partialorder %v376, 0.5
  %vm622 = vcmp.ge.f32.partialorder %v377, 0.5
  %vm623 = vcmp.ge.f32.partialorder %v378, 0.5
  %vm624 = vcmp.ge.f32.partialorder %v379, 0.5
  %vm625 = vcmp.ge.f32.partialorder %v380, 0.5
  %vm626 = vcmp.ge.f32.partialorder %v381, 0.5
  %vm627 = vcmp.ge.f32.partialorder %v382, 0.5
  %vm628 = vcmp.ge.f32.partialorder %v383, 0.5
  %vm629 = vcmp.ge.f32.partialorder %v384, 0.5
  %vm630 = vcmp.ge.f32.partialorder %v385, 0.5
  %vm631 = vcmp.ge.f32.partialorder %v386, 0.5
  %vm632 = vcmp.ge.f32.partialorder %v387, 0.5
  %vm633 = vcmp.ge.f32.partialorder %v388, 0.5
  %vm634 = vcmp.ge.f32.partialorder %v389, 0.5
  %vm635 = vcmp.ge.f32.partialorder %v390, 0.5
  %vm636 = vcmp.ge.f32.partialorder %v391, 0.5
  %vm637 = vcmp.ge.f32.partialorder %v392, 0.5
  %vm638 = vcmp.ge.f32.partialorder %v393, 0.5
  %vm639 = vcmp.ge.f32.partialorder %v394, 0.5
  %vm640 = vcmp.ge.f32.partialorder %v395, 0.5
  %vm641 = vcmp.ge.f32.partialorder %v396, 0.5
  %vm642 = vcmp.ge.f32.partialorder %v397, 0.5
  %vm643 = vcmp.ge.f32.partialorder %v398, 0.5
  %vm644 = vcmp.ge.f32.partialorder %v399, 0.5
  %vm645 = vcmp.ge.f32.partialorder %v400, 0.5
  %vm646 = vcmp.ge.f32.partialorder %v401, 0.5
  %vm647 = vcmp.ge.f32.partialorder %v402, 0.5
  %vm648 = vcmp.ge.f32.partialorder %v403, 0.5
  %vm649 = vcmp.ge.f32.partialorder %v404, 0.5
  %vm650 = vcmp.ge.f32.partialorder %v405, 0.5
  %vm651 = vcmp.ge.f32.partialorder %v406, 0.5
  %vm652 = vcmp.ge.f32.partialorder %v407, 0.5
  %vm653 = vcmp.ge.f32.partialorder %v408, 0.5
  %vm654 = vcmp.ge.f32.partialorder %v409, 0.5
  %vm655 = vcmp.ge.f32.partialorder %v410, 0.5
  %vm656 = vcmp.ge.f32.partialorder %v411, 0.5
  %vm657 = vcmp.ge.f32.partialorder %v412, 0.5
  %vm658 = vcmp.ge.f32.partialorder %v413, 0.5
  %vm659 = vcmp.ge.f32.partialorder %v414, 0.5
  %vm660 = vcmp.ge.f32.partialorder %v415, 0.5
  %vm661 = vcmp.ge.f32.partialorder %v416, 0.5
  %vm662 = vcmp.ge.f32.partialorder %v417, 0.5
  %vm663 = vcmp.ge.f32.partialorder %v418, 0.5
  %v664 = vsel %vm615, 1.0, 0.0
  %v665 = vsel %vm616, 1.0, 0.0
  %v666 = vsel %vm617, 1.0, 0.0
  %v667 = vsel %vm618, 1.0, 0.0
  %v668 = vsel %vm619, 1.0, 0.0
  %v669 = vsel %vm620, 1.0, 0.0
  %v670 = vsel %vm621, 1.0, 0.0
  %v671 = vsel %vm622, 1.0, 0.0
  %v672 = vsel %vm623, 1.0, 0.0
  %v673 = vsel %vm624, 1.0, 0.0
  %v674 = vsel %vm625, 1.0, 0.0
  %v675 = vsel %vm626, 1.0, 0.0
  %v676 = vsel %vm627, 1.0, 0.0
  %v677 = vsel %vm628, 1.0, 0.0
  %v678 = vsel %vm629, 1.0, 0.0
  %v679 = vsel %vm630, 1.0, 0.0
  %v680 = vsel %vm631, 1.0, 0.0
  %v681 = vsel %vm632, 1.0, 0.0
  %v682 = vsel %vm633, 1.0, 0.0
  %v683 = vsel %vm634, 1.0, 0.0
  %v684 = vsel %vm635, 1.0, 0.0
  %v685 = vsel %vm636, 1.0, 0.0
  %v686 = vsel %vm637, 1.0, 0.0
  %v687 = vsel %vm638, 1.0, 0.0
  %v688 = vsel %vm639, 1.0, 0.0
  %v689 = vsel %vm640, 1.0, 0.0
  %v690 = vsel %vm641, 1.0, 0.0
  %v691 = vsel %vm642, 1.0, 0.0
  %v692 = vsel %vm643, 1.0, 0.0
  %v693 = vsel %vm644, 1.0, 0.0
  %v694 = vsel %vm645, 1.0, 0.0
  %v695 = vsel %vm646, 1.0, 0.0
  %v696 = vsel %vm647, 1.0, 0.0
  %v697 = vsel %vm648, 1.0, 0.0
  %v698 = vsel %vm649, 1.0, 0.0
  %v699 = vsel %vm650, 1.0, 0.0
  %v700 = vsel %vm651, 1.0, 0.0
  %v701 = vsel %vm652, 1.0, 0.0
  %v702 = vsel %vm653, 1.0, 0.0
  %v703 = vsel %vm654, 1.0, 0.0
  %v704 = vsel %vm655, 1.0, 0.0
  %v705 = vsel %vm656, 1.0, 0.0
  %v706 = vsel %vm657, 1.0, 0.0
  %v707 = vsel %vm658, 1.0, 0.0
  %v708 = vsel %vm659, 1.0, 0.0
  %v709 = vsel %vm660, 1.0, 0.0
  %v710 = vsel %vm661, 1.0, 0.0
  %v711 = vsel %vm662, 1.0, 0.0
  %v712 = vsel %vm663, 1.0, 0.0
  %vm713 = vcmp.le.f32.partialorder %v370, 5.5
  %vm714 = vcmp.le.f32.partialorder %v371, 5.5
  %vm715 = vcmp.le.f32.partialorder %v372, 5.5
  %vm716 = vcmp.le.f32.partialorder %v373, 5.5
  %vm717 = vcmp.le.f32.partialorder %v374, 5.5
  %vm718 = vcmp.le.f32.partialorder %v375, 5.5
  %vm719 = vcmp.le.f32.partialorder %v376, 5.5
  %vm720 = vcmp.le.f32.partialorder %v377, 5.5
  %vm721 = vcmp.le.f32.partialorder %v378, 5.5
  %vm722 = vcmp.le.f32.partialorder %v379, 5.5
  %vm723 = vcmp.le.f32.partialorder %v380, 5.5
  %vm724 = vcmp.le.f32.partialorder %v381, 5.5
  %vm725 = vcmp.le.f32.partialorder %v382, 5.5
  %vm726 = vcmp.le.f32.partialorder %v383, 5.5
  %vm727 = vcmp.le.f32.partialorder %v384, 5.5
  %vm728 = vcmp.le.f32.partialorder %v385, 5.5
  %vm729 = vcmp.le.f32.partialorder %v386, 5.5
  %vm730 = vcmp.le.f32.partialorder %v387, 5.5
  %vm731 = vcmp.le.f32.partialorder %v388, 5.5
  %vm732 = vcmp.le.f32.partialorder %v389, 5.5
  %vm733 = vcmp.le.f32.partialorder %v390, 5.5
  %vm734 = vcmp.le.f32.partialorder %v391, 5.5
  %vm735 = vcmp.le.f32.partialorder %v392, 5.5
  %vm736 = vcmp.le.f32.partialorder %v393, 5.5
  %vm737 = vcmp.le.f32.partialorder %v394, 5.5
  %vm738 = vcmp.le.f32.partialorder %v395, 5.5
  %vm739 = vcmp.le.f32.partialorder %v396, 5.5
  %vm740 = vcmp.le.f32.partialorder %v397, 5.5
  %vm741 = vcmp.le.f32.partialorder %v398, 5.5
  %vm742 = vcmp.le.f32.partialorder %v399, 5.5
  %vm743 = vcmp.le.f32.partialorder %v400, 5.5
  %vm744 = vcmp.le.f32.partialorder %v401, 5.5
  %vm745 = vcmp.le.f32.partialorder %v402, 5.5
  %vm746 = vcmp.le.f32.partialorder %v403, 5.5
  %vm747 = vcmp.le.f32.partialorder %v404, 5.5
  %vm748 = vcmp.le.f32.partialorder %v405, 5.5
  %vm749 = vcmp.le.f32.partialorder %v406, 5.5
  %vm750 = vcmp.le.f32.partialorder %v407, 5.5
  %vm751 = vcmp.le.f32.partialorder %v408, 5.5
  %vm752 = vcmp.le.f32.partialorder %v409, 5.5
  %vm753 = vcmp.le.f32.partialorder %v410, 5.5
  %vm754 = vcmp.le.f32.partialorder %v411, 5.5
  %vm755 = vcmp.le.f32.partialorder %v412, 5.5
  %vm756 = vcmp.le.f32.partialorder %v413, 5.5
  %vm757 = vcmp.le.f32.partialorder %v414, 5.5
  %vm758 = vcmp.le.f32.partialorder %v415, 5.5
  %vm759 = vcmp.le.f32.partialorder %v416, 5.5
  %vm760 = vcmp.le.f32.partialorder %v417, 5.5
  %vm761 = vcmp.le.f32.partialorder %v418, 5.5
  %v762 = vsel %vm713, 1.0, 0.0
  %v763 = vsel %vm714, 1.0, 0.0
  %v764 = vsel %vm715, 1.0, 0.0
  %v765 = vsel %vm716, 1.0, 0.0
  %v766 = vsel %vm717, 1.0, 0.0
  %v767 = vsel %vm718, 1.0, 0.0
  %v768 = vsel %vm719, 1.0, 0.0
  %v769 = vsel %vm720, 1.0, 0.0
  %v770 = vsel %vm721, 1.0, 0.0
  %v771 = vsel %vm722, 1.0, 0.0
  %v772 = vsel %vm723, 1.0, 0.0
  %v773 = vsel %vm724, 1.0, 0.0
  %v774 = vsel %vm725, 1.0, 0.0
  %v775 = vsel %vm726, 1.0, 0.0
  %v776 = vsel %vm727, 1.0, 0.0
  %v777 = vsel %vm728, 1.0, 0.0
  %v778 = vsel %vm729, 1.0, 0.0
  %v779 = vsel %vm730, 1.0, 0.0
  %v780 = vsel %vm731, 1.0, 0.0
  %v781 = vsel %vm732, 1.0, 0.0
  %v782 = vsel %vm733, 1.0, 0.0
  %v783 = vsel %vm734, 1.0, 0.0
  %v784 = vsel %vm735, 1.0, 0.0
  %v785 = vsel %vm736, 1.0, 0.0
  %v786 = vsel %vm737, 1.0, 0.0
  %v787 = vsel %vm738, 1.0, 0.0
  %v788 = vsel %vm739, 1.0, 0.0
  %v789 = vsel %vm740, 1.0, 0.0
  %v790 = vsel %vm741, 1.0, 0.0
  %v791 = vsel %vm742, 1.0, 0.0
  %v792 = vsel %vm743, 1.0, 0.0
  %v793 = vsel %vm744, 1.0, 0.0
  %v794 = vsel %vm745, 1.0, 0.0
  %v795 = vsel %vm746, 1.0, 0.0
  %v796 = vsel %vm747, 1.0, 0.0
  %v797 = vsel %vm748, 1.0, 0.0
  %v798 = vsel %vm749, 1.0, 0.0
  %v799 = vsel %vm750, 1.0, 0.0
  %v800 = vsel %vm751, 1.0, 0.0
  %v801 = vsel %vm752, 1.0, 0.0
  %v802 = vsel %vm753, 1.0, 0.0
  %v803 = vsel %vm754, 1.0, 0.0
  %v804 = vsel %vm755, 1.0, 0.0
  %v805 = vsel %vm756, 1.0, 0.0
  %v806 = vsel %vm757, 1.0, 0.0
  %v807 = vsel %vm758, 1.0, 0.0
  %v808 = vsel %vm759, 1.0, 0.0
  %v809 = vsel %vm760, 1.0, 0.0
  %v810 = vsel %vm761, 1.0, 0.0
  %v811 = vmul.f32 %v468, %v664
  %v812 = vmul.f32 %v469, %v665
  %v813 = vmul.f32 %v470, %v666
  %v814 = vmul.f32 %v471, %v667
  %v815 = vmul.f32 %v472, %v668
  %v816 = vmul.f32 %v473, %v669
  %v817 = vmul.f32 %v474, %v670
  %v818 = vmul.f32 %v475, %v671
  %v819 = vmul.f32 %v476, %v672
  %v820 = vmul.f32 %v477, %v673
  %v821 = vmul.f32 %v478, %v674
  %v822 = vmul.f32 %v479, %v675
  %v823 = vmul.f32 %v480, %v676
  %v824 = vmul.f32 %v481, %v677
  %v825 = vmul.f32 %v482, %v678
  %v826 = vmul.f32 %v483, %v679
  %v827 = vmul.f32 %v484, %v680
  %v828 = vmul.f32 %v485, %v681
  %v829 = vmul.f32 %v486, %v682
  %v830 = vmul.f32 %v487, %v683
  %v831 = vmul.f32 %v488, %v684
  %v832 = vmul.f32 %v489, %v685
  %v833 = vmul.f32 %v490, %v686
  %v834 = vmul.f32 %v491, %v687
  %v835 = vmul.f32 %v492, %v688
  %v836 = vmul.f32 %v493, %v689
  %v837 = vmul.f32 %v494, %v690
  %v838 = vmul.f32 %v495, %v691
  %v839 = vmul.f32 %v496, %v692
  %v840 = vmul.f32 %v497, %v693
  %v841 = vmul.f32 %v498, %v694
  %v842 = vmul.f32 %v499, %v695
  %v843 = vmul.f32 %v500, %v696
  %v844 = vmul.f32 %v501, %v697
  %v845 = vmul.f32 %v502, %v698
  %v846 = vmul.f32 %v503, %v699
  %v847 = vmul.f32 %v504, %v700
  %v848 = vmul.f32 %v505, %v701
  %v849 = vmul.f32 %v506, %v702
  %v850 = vmul.f32 %v507, %v703
  %v851 = vmul.f32 %v508, %v704
  %v852 = vmul.f32 %v509, %v705
  %v853 = vmul.f32 %v510, %v706
  %v854 = vmul.f32 %v511, %v707
  %v855 = vmul.f32 %v512, %v708
  %v856 = vmul.f32 %v513, %v709
  %v857 = vmul.f32 %v514, %v710
  %v858 = vmul.f32 %v515, %v711
  %v859 = vmul.f32 %v516, %v712
  %v860 = vmul.f32 %v468, %v762
  %v861 = vmul.f32 %v469, %v763
  %v862 = vmul.f32 %v470, %v764
  %v863 = vmul.f32 %v471, %v765
  %v864 = vmul.f32 %v472, %v766
  %v865 = vmul.f32 %v473, %v767
  %v866 = vmul.f32 %v474, %v768
  %v867 = vmul.f32 %v475, %v769
  %v868 = vmul.f32 %v476, %v770
  %v869 = vmul.f32 %v477, %v771
  %v870 = vmul.f32 %v478, %v772
  %v871 = vmul.f32 %v479, %v773
  %v872 = vmul.f32 %v480, %v774
  %v873 = vmul.f32 %v481, %v775
  %v874 = vmul.f32 %v482, %v776
  %v875 = vmul.f32 %v483, %v777
  %v876 = vmul.f32 %v484, %v778
  %v877 = vmul.f32 %v485, %v779
  %v878 = vmul.f32 %v486, %v780
  %v879 = vmul.f32 %v487, %v781
  %v880 = vmul.f32 %v488, %v782
  %v881 = vmul.f32 %v489, %v783
  %v882 = vmul.f32 %v490, %v784
  %v883 = vmul.f32 %v491, %v785
  %v884 = vmul.f32 %v492, %v786
  %v885 = vmul.f32 %v493, %v787
  %v886 = vmul.f32 %v494, %v788
  %v887 = vmul.f32 %v495, %v789
  %v888 = vmul.f32 %v496, %v790
  %v889 = vmul.f32 %v497, %v791
  %v890 = vmul.f32 %v498, %v792
  %v891 = vmul.f32 %v499, %v793
  %v892 = vmul.f32 %v500, %v794
  %v893 = vmul.f32 %v501, %v795
  %v894 = vmul.f32 %v502, %v796
  %v895 = vmul.f32 %v503, %v797
  %v896 = vmul.f32 %v504, %v798
  %v897 = vmul.f32 %v505, %v799
  %v898 = vmul.f32 %v506, %v800
  %v899 = vmul.f32 %v507, %v801
  %v900 = vmul.f32 %v508, %v802
  %v901 = vmul.f32 %v509, %v803
  %v902 = vmul.f32 %v510, %v804
  %v903 = vmul.f32 %v511, %v805
  %v904 = vmul.f32 %v512, %v806
  %v905 = vmul.f32 %v513, %v807
  %v906 = vmul.f32 %v514, %v808
  %v907 = vmul.f32 %v515, %v809
  %v908 = vmul.f32 %v516, %v810
  %v909 = vmul.f32 %v566, %v664
  %v910 = vmul.f32 %v567, %v665
  %v911 = vmul.f32 %v568, %v666
  %v912 = vmul.f32 %v569, %v667
  %v913 = vmul.f32 %v570, %v668
  %v914 = vmul.f32 %v571, %v669
  %v915 = vmul.f32 %v572, %v670
  %v916 = vmul.f32 %v573, %v671
  %v917 = vmul.f32 %v574, %v672
  %v918 = vmul.f32 %v575, %v673
  %v919 = vmul.f32 %v576, %v674
  %v920 = vmul.f32 %v577, %v675
  %v921 = vmul.f32 %v578, %v676
  %v922 = vmul.f32 %v579, %v677
  %v923 = vmul.f32 %v580, %v678
  %v924 = vmul.f32 %v581, %v679
  %v925 = vmul.f32 %v582, %v680
  %v926 = vmul.f32 %v583, %v681
  %v927 = vmul.f32 %v584, %v682
  %v928 = vmul.f32 %v585, %v683
  %v929 = vmul.f32 %v586, %v684
  %v930 = vmul.f32 %v587, %v685
  %v931 = vmul.f32 %v588, %v686
  %v932 = vmul.f32 %v589, %v687
  %v933 = vmul.f32 %v590, %v688
  %v934 = vmul.f32 %v591, %v689
  %v935 = vmul.f32 %v592, %v690
  %v936 = vmul.f32 %v593, %v691
  %v937 = vmul.f32 %v594, %v692
  %v938 = vmul.f32 %v595, %v693
  %v939 = vmul.f32 %v596, %v694
  %v940 = vmul.f32 %v597, %v695
  %v941 = vmul.f32 %v598, %v696
  %v942 = vmul.f32 %v599, %v697
  %v943 = vmul.f32 %v600, %v698
  %v944 = vmul.f32 %v601, %v699
  %v945 = vmul.f32 %v602, %v700
  %v946 = vmul.f32 %v603, %v701
  %v947 = vmul.f32 %v604, %v702
  %v948 = vmul.f32 %v605, %v703
  %v949 = vmul.f32 %v606, %v704
  %v950 = vmul.f32 %v607, %v705
  %v951 = vmul.f32 %v608, %v706
  %v952 = vmul.f32 %v609, %v707
  %v953 = vmul.f32 %v610, %v708
  %v954 = vmul.f32 %v611, %v709
  %v955 = vmul.f32 %v612, %v710
  %v956 = vmul.f32 %v613, %v711
  %v957 = vmul.f32 %v614, %v712
  %v958 = vmul.f32 %v566, %v762
  %v959 = vmul.f32 %v567, %v763
  %v960 = vmul.f32 %v568, %v764
  %v961 = vmul.f32 %v569, %v765
  %v962 = vmul.f32 %v570, %v766
  %v963 = vmul.f32 %v571, %v767
  %v964 = vmul.f32 %v572, %v768
  %v965 = vmul.f32 %v573, %v769
  %v966 = vmul.f32 %v574, %v770
  %v967 = vmul.f32 %v575, %v771
  %v968 = vmul.f32 %v576, %v772
  %v969 = vmul.f32 %v577, %v773
  %v970 = vmul.f32 %v578, %v774
  %v971 = vmul.f32 %v579, %v775
  %v972 = vmul.f32 %v580, %v776
  %v973 = vmul.f32 %v581, %v777
  %v974 = vmul.f32 %v582, %v778
  %v975 = vmul.f32 %v583, %v779
  %v976 = vmul.f32 %v584, %v780
  %v977 = vmul.f32 %v585, %v781
  %v978 = vmul.f32 %v586, %v782
  %v979 = vmul.f32 %v587, %v783
  %v980 = vmul.f32 %v588, %v784
  %v981 = vmul.f32 %v589, %v785
  %v982 = vmul.f32 %v590, %v786
  %v983 = vmul.f32 %v591, %v787
  %v984 = vmul.f32 %v592, %v788
  %v985 = vmul.f32 %v593, %v789
  %v986 = vmul.f32 %v594, %v790
  %v987 = vmul.f32 %v595, %v791
  %v988 = vmul.f32 %v596, %v792
  %v989 = vmul.f32 %v597, %v793
  %v990 = vmul.f32 %v598, %v794
  %v991 = vmul.f32 %v599, %v795
  %v992 = vmul.f32 %v600, %v796
  %v993 = vmul.f32 %v601, %v797
  %v994 = vmul.f32 %v602, %v798
  %v995 = vmul.f32 %v603, %v799
  %v996 = vmul.f32 %v604, %v800
  %v997 = vmul.f32 %v605, %v801
  %v998 = vmul.f32 %v606, %v802
  %v999 = vmul.f32 %v607, %v803
  %v1000 = vmul.f32 %v608, %v804
  %v1001 = vmul.f32 %v609, %v805
  %v1002 = vmul.f32 %v610, %v806
  %v1003 = vmul.f32 %v611, %v807
  %v1004 = vmul.f32 %v612, %v808
  %v1005 = vmul.f32 %v613, %v809
  %v1006 = vmul.f32 %v614, %v810
  %v1007 = vld [vmem:[%s0] sm:$0xff]
  %vm1008 = vcmp.ge.f32.partialorder %v1007, 0.0
  %v1009 = vmul.f32 %v1007, 0.2
  %v1010 = vsel %vm1008, %v1007, %v1009
  %v1011 = vld [vmem:[%s1] sm:$0xff]
  %v1012 = vld [vmem:[%s1 + $0x8] sm:$0xff]
  %v1013 = vld [vmem:[%s1 + $0x10] sm:$0xff]
  %v1014 = vld [vmem:[%s1 + $0x18] sm:$0xff]
  %v1015 = vld [vmem:[%s1 + $0x20] sm:$0xff]
  %v1016 = vld [vmem:[%s1 + $0x28] sm:$0xff]
  %v1017 = vld [vmem:[%s1 + $0x30] sm:$0xff]
  %v1018 = vld [vmem:[%s1 + $0x38] sm:$0xff]
  %v1019 = vld [vmem:[%s1 + $0x40] sm:$0xff]
  %v1020 = vld [vmem:[%s1 + $0x48] sm:$0xff]
  %v1021 = vld [vmem:[%s1 + $0x50] sm:$0xff]
  %v1022 = vld [vmem:[%s1 + $0x58] sm:$0xff]
  %v1023 = vld [vmem:[%s1 + $0x60] sm:$0xff]
  %v1024 = vld [vmem:[%s1 + $0x68] sm:$0xff]
  %v1025 = vld [vmem:[%s1 + $0x70] sm:$0xff]
  %v1026 = vld [vmem:[%s1 + $0x78] sm:$0xff]
  %v1027 = vld [vmem:[%s1 + $0x80] sm:$0xff]
  %v1028 = vld [vmem:[%s1 + $0x88] sm:$0xff]
  %v1029 = vld [vmem:[%s1 + $0x90] sm:$0xff]
  %v1030 = vld [vmem:[%s1 + $0x98] sm:$0xff]
  %v1031 = vld [vmem:[%s1 + $0xa0] sm:$0xff]
  %v1032 = vld [vmem:[%s1 + $0xa8] sm:$0xff]
  %v1033 = vld [vmem:[%s1 + $0xb0] sm:$0xff]
  %v1034 = vld [vmem:[%s1 + $0xb8] sm:$0xff]
  %v1035 = vld [vmem:[%s1 + $0xc0] sm:$0xff]
  %v1036 = vld [vmem:[%s1 + $0xc8] sm:$0xff]
  %v1037 = vld [vmem:[%s1 + $0xd0] sm:$0xff]
  %v1038 = vld [vmem:[%s1 + $0xd8] sm:$0xff]
  %v1039 = vld [vmem:[%s1 + $0xe0] sm:$0xff]
  %v1040 = vld [vmem:[%s1 + $0xe8] sm:$0xff]
  %v1041 = vld [vmem:[%s1 + $0xf0] sm:$0xff]
  %v1042 = vld [vmem:[%s1 + $0xf8] sm:$0xff]
  %v1043 = vld [vmem:[%s1 + $0x100] sm:$0xff]
  %v1044 = vld [vmem:[%s1 + $0x108] sm:$0xff]
  %v1045 = vld [vmem:[%s1 + $0x110] sm:$0xff]
  %v1046 = vld [vmem:[%s1 + $0x118] sm:$0xff]
  %v1047 = vld [vmem:[%s1 + $0x120] sm:$0xff]
  %v1048 = vld [vmem:[%s1 + $0x128] sm:$0xff]
  %v1049 = vld [vmem:[%s1 + $0x130] sm:$0xff]
  %v1050 = vld [vmem:[%s1 + $0x138] sm:$0xff]
  %v1051 = vld [vmem:[%s1 + $0x140] sm:$0xff]
  %v1052 = vld [vmem:[%s1 + $0x148] sm:$0xff]
  %v1053 = vld [vmem:[%s1 + $0x150] sm:$0xff]
  %v1054 = vld [vmem:[%s1 + $0x158] sm:$0xff]
  %v1055 = vld [vmem:[%s1 + $0x160] sm:$0xff]
  %v1056 = vld [vmem:[%s1 + $0x168] sm:$0xff]
  %v1057 = vld [vmem:[%s1 + $0x170] sm:$0xff]
  %v1058 = vld [vmem:[%s1 + $0x178] sm:$0xff]
  %v1059 = vld [vmem:[%s1 + $0x180] sm:$0xff]
  %v1060 = vld [vmem:[%s1 + $0x188] sm:$0xff]
  %v1061 = vld [vmem:[%s1 + $0x190] sm:$0xff]
  %v1062 = vld [vmem:[%s1 + $0x198] sm:$0xff]
  %v1063 = vld [vmem:[%s1 + $0x1a0] sm:$0xff]
  %v1064 = vld [vmem:[%s1 + $0x1a8] sm:$0xff]
  %v1065 = vld [vmem:[%s1 + $0x1b0] sm:$0xff]
  %v1066 = vld [vmem:[%s1 + $0x1b8] sm:$0xff]
  %v1067 = vld [vmem:[%s1 + $0x1c0] sm:$0xff]
  %v1068 = vld [vmem:[%s1 + $0x1c8] sm:$0xff]
  %v1069 = vld [vmem:[%s1 + $0x1d0] sm:$0xff]
  %v1070 = vld [vmem:[%s1 + $0x1d8] sm:$0xff]
  %v1071 = vld [vmem:[%s1 + $0x1e0] sm:$0xff]
  %v1072 = vld [vmem:[%s1 + $0x1e8] sm:$0xff]
  %v1073 = vld [vmem:[%s1 + $0x1f0] sm:$0xff]
  %v1074 = vld [vmem:[%s1 + $0x1f8] sm:$0xff]
  %v1075 = vld [vmem:[%s1 + $0x200] sm:$0xff]
  %v1076 = vld [vmem:[%s1 + $0x208] sm:$0xff]
  %v1077 = vld [vmem:[%s1 + $0x210] sm:$0xff]
  %v1078 = vld [vmem:[%s1 + $0x218] sm:$0xff]
  %v1079 = vld [vmem:[%s1 + $0x220] sm:$0xff]
  %v1080 = vld [vmem:[%s1 + $0x228] sm:$0xff]
  %v1081 = vld [vmem:[%s1 + $0x230] sm:$0xff]
  %v1082 = vld [vmem:[%s1 + $0x238] sm:$0xff]
  %v1083 = vld [vmem:[%s1 + $0x240] sm:$0xff]
  %v1084 = vld [vmem:[%s1 + $0x248] sm:$0xff]
  %v1085 = vld [vmem:[%s1 + $0x250] sm:$0xff]
  %v1086 = vld [vmem:[%s1 + $0x258] sm:$0xff]
  %v1087 = vld [vmem:[%s1 + $0x260] sm:$0xff]
  %v1088 = vld [vmem:[%s1 + $0x268] sm:$0xff]
  %v1089 = vld [vmem:[%s1 + $0x270] sm:$0xff]
  %v1090 = vld [vmem:[%s1 + $0x278] sm:$0xff]
  %v1091 = vld [vmem:[%s1 + $0x280] sm:$0xff]
  %v1092 = vld [vmem:[%s1 + $0x288] sm:$0xff]
  %v1093 = vld [vmem:[%s1 + $0x290] sm:$0xff]
  %v1094 = vld [vmem:[%s1 + $0x298] sm:$0xff]
  %v1095 = vld [vmem:[%s1 + $0x2a0] sm:$0xff]
  %v1096 = vld [vmem:[%s1 + $0x2a8] sm:$0xff]
  %v1097 = vld [vmem:[%s1 + $0x2b0] sm:$0xff]
  %v1098 = vld [vmem:[%s1 + $0x2b8] sm:$0xff]
  %v1099 = vld [vmem:[%s1 + $0x2c0] sm:$0xff]
  %v1100 = vld [vmem:[%s1 + $0x2c8] sm:$0xff]
  %v1101 = vld [vmem:[%s1 + $0x2d0] sm:$0xff]
  %v1102 = vld [vmem:[%s1 + $0x2d8] sm:$0xff]
  %v1103 = vld [vmem:[%s1 + $0x2e0] sm:$0xff]
  %v1104 = vld [vmem:[%s1 + $0x2e8] sm:$0xff]
  %v1105 = vld [vmem:[%s1 + $0x2f0] sm:$0xff]
  %v1106 = vld [vmem:[%s1 + $0x2f8] sm:$0xff]
  %v1107 = vld [vmem:[%s1 + $0x300] sm:$0xff]
  %v1108 = vld [vmem:[%s1 + $0x308] sm:$0xff]
  %v1109 = vld [vmem:[%s1 + $0x310] sm:$0xff]
  %v1110 = vld [vmem:[%s1 + $0x318] sm:$0xff]
  %v1111 = vld [vmem:[%s1 + $0x320] sm:$0xff]
  %v1112 = vld [vmem:[%s1 + $0x328] sm:$0xff]
  %v1113 = vld [vmem:[%s1 + $0x330] sm:$0xff]
  %v1114 = vld [vmem:[%s1 + $0x338] sm:$0xff]
  %v1115 = vld [vmem:[%s1 + $0x340] sm:$0xff]
  %v1116 = vld [vmem:[%s1 + $0x348] sm:$0xff]
  %v1117 = vld [vmem:[%s1 + $0x350] sm:$0xff]
  %v1118 = vld [vmem:[%s1 + $0x358] sm:$0xff]
  %v1119 = vld [vmem:[%s1 + $0x360] sm:$0xff]
  %v1120 = vld [vmem:[%s1 + $0x368] sm:$0xff]
  %v1121 = vld [vmem:[%s1 + $0x370] sm:$0xff]
  %v1122 = vld [vmem:[%s1 + $0x378] sm:$0xff]
  %v1123 = vld [vmem:[%s1 + $0x380] sm:$0xff]
  %v1124 = vld [vmem:[%s1 + $0x388] sm:$0xff]
  %v1125 = vld [vmem:[%s1 + $0x390] sm:$0xff]
  %v1126 = vld [vmem:[%s1 + $0x398] sm:$0xff]
  %v1127 = vld [vmem:[%s1 + $0x3a0] sm:$0xff]
  %v1128 = vld [vmem:[%s1 + $0x3a8] sm:$0xff]
  %v1129 = vld [vmem:[%s1 + $0x3b0] sm:$0xff]
  %v1130 = vld [vmem:[%s1 + $0x3b8] sm:$0xff]
  %v1131 = vld [vmem:[%s1 + $0x3c0] sm:$0xff]
  %v1132 = vld [vmem:[%s1 + $0x3c8] sm:$0xff]
  %v1133 = vld [vmem:[%s1 + $0x3d0] sm:$0xff]
  %v1134 = vld [vmem:[%s1 + $0x3d8] sm:$0xff]
  %v1135 = vld [vmem:[%s1 + $0x3e0] sm:$0xff]
  %v1136 = vld [vmem:[%s1 + $0x3e8] sm:$0xff]
  %v1137 = vld [vmem:[%s1 + $0x3f0] sm:$0xff]
  %v1138 = vld [vmem:[%s1 + $0x3f8] sm:$0xff]
  %v1139 = vld [vmem:[%s1 + $0x400] sm:$0xff]
  %v1140 = vld [vmem:[%s1 + $0x408] sm:$0xff]
  %v1141 = vld [vmem:[%s1 + $0x410] sm:$0xff]
  %v1142 = vld [vmem:[%s1 + $0x418] sm:$0xff]
  %v1143 = vld [vmem:[%s1 + $0x420] sm:$0xff]
  %v1144 = vld [vmem:[%s1 + $0x428] sm:$0xff]
  %v1145 = vld [vmem:[%s1 + $0x430] sm:$0xff]
  %v1146 = vld [vmem:[%s1 + $0x438] sm:$0xff]
  %v1147 = vld [vmem:[%s1 + $0x440] sm:$0xff]
  %v1148 = vld [vmem:[%s1 + $0x448] sm:$0xff]
  %v1149 = vld [vmem:[%s1 + $0x450] sm:$0xff]
  %v1150 = vld [vmem:[%s1 + $0x458] sm:$0xff]
  %v1151 = vld [vmem:[%s1 + $0x460] sm:$0xff]
  %v1152 = vld [vmem:[%s1 + $0x468] sm:$0xff]
  %v1153 = vld [vmem:[%s1 + $0x470] sm:$0xff]
  %v1154 = vld [vmem:[%s1 + $0x478] sm:$0xff]
  %v1155 = vld [vmem:[%s1 + $0x480] sm:$0xff]
  %v1156 = vld [vmem:[%s1 + $0x488] sm:$0xff]
  %v1157 = vld [vmem:[%s1 + $0x490] sm:$0xff]
  %v1158 = vld [vmem:[%s1 + $0x498] sm:$0xff]
  %v1159 = vld [vmem:[%s1 + $0x4a0] sm:$0xff]
  %v1160 = vld [vmem:[%s1 + $0x4a8] sm:$0xff]
  %v1161 = vld [vmem:[%s1 + $0x4b0] sm:$0xff]
  %v1162 = vld [vmem:[%s1 + $0x4b8] sm:$0xff]
  %v1163 = vld [vmem:[%s1 + $0x4c0] sm:$0xff]
  %v1164 = vld [vmem:[%s1 + $0x4c8] sm:$0xff]
  %v1165 = vld [vmem:[%s1 + $0x4d0] sm:$0xff]
  %v1166 = vld [vmem:[%s1 + $0x4d8] sm:$0xff]
  %v1167 = vld [vmem:[%s1 + $0x4e0] sm:$0xff]
  %v1168 = vld [vmem:[%s1 + $0x4e8] sm:$0xff]
  %v1169 = vld [vmem:[%s1 + $0x4f0] sm:$0xff]
  %v1170 = vld [vmem:[%s1 + $0x4f8] sm:$0xff]
  %v1171 = vld [vmem:[%s1 + $0x500] sm:$0xff]
  %v1172 = vld [vmem:[%s1 + $0x508] sm:$0xff]
  %v1173 = vld [vmem:[%s1 + $0x510] sm:$0xff]
  %v1174 = vld [vmem:[%s1 + $0x518] sm:$0xff]
  %v1175 = vld [vmem:[%s1 + $0x520] sm:$0xff]
  %v1176 = vld [vmem:[%s1 + $0x528] sm:$0xff]
  %v1177 = vld [vmem:[%s1 + $0x530] sm:$0xff]
  %v1178 = vld [vmem:[%s1 + $0x538] sm:$0xff]
  %v1179 = vld [vmem:[%s1 + $0x540] sm:$0xff]
  %v1180 = vld [vmem:[%s1 + $0x548] sm:$0xff]
  %v1181 = vld [vmem:[%s1 + $0x550] sm:$0xff]
  %v1182 = vld [vmem:[%s1 + $0x558] sm:$0xff]
  %v1183 = vld [vmem:[%s1 + $0x560] sm:$0xff]
  %v1184 = vld [vmem:[%s1 + $0x568] sm:$0xff]
  %v1185 = vld [vmem:[%s1 + $0x570] sm:$0xff]
  %v1186 = vld [vmem:[%s1 + $0x578] sm:$0xff]
  %v1187 = vld [vmem:[%s1 + $0x580] sm:$0xff]
  %v1188 = vld [vmem:[%s1 + $0x588] sm:$0xff]
  %v1189 = vld [vmem:[%s1 + $0x590] sm:$0xff]
  %v1190 = vld [vmem:[%s1 + $0x598] sm:$0xff]
  %v1191 = vld [vmem:[%s1 + $0x5a0] sm:$0xff]
  %v1192 = vld [vmem:[%s1 + $0x5a8] sm:$0xff]
  %v1193 = vld [vmem:[%s1 + $0x5b0] sm:$0xff]
  %v1194 = vld [vmem:[%s1 + $0x5b8] sm:$0xff]
  %v1195 = vld [vmem:[%s1 + $0x5c0] sm:$0xff]
  %v1196 = vld [vmem:[%s1 + $0x5c8] sm:$0xff]
  %v1197 = vld [vmem:[%s1 + $0x5d0] sm:$0xff]
  %v1198 = vld [vmem:[%s1 + $0x5d8] sm:$0xff]
  %v1199 = vld [vmem:[%s1 + $0x5e0] sm:$0xff]
  %v1200 = vld [vmem:[%s1 + $0x5e8] sm:$0xff]
  %v1201 = vld [vmem:[%s1 + $0x5f0] sm:$0xff]
  %v1202 = vld [vmem:[%s1 + $0x5f8] sm:$0xff]
  %v1203 = vld [vmem:[%s1 + $0x600] sm:$0xff]
  %v1204 = vld [vmem:[%s1 + $0x608] sm:$0xff]
  %v1205 = vld [vmem:[%s1 + $0x610] sm:$0xff]
  %v1206 = vld [vmem:[%s1 + $0x618] sm:$0xff]
  %v1207 = vld [vmem:[%s1 + $0x620] sm:$0xff]
  %v1208 = vld [vmem:[%s1 + $0x628] sm:$0xff]
  %v1209 = vld [vmem:[%s1 + $0x630] sm:$0xff]
  %v1210 = vld [vmem:[%s1 + $0x638] sm:$0xff]
  %v1211 = vld [vmem:[%s1 + $0x640] sm:$0xff]
  %v1212 = vld [vmem:[%s1 + $0x648] sm:$0xff]
  %v1213 = vld [vmem:[%s1 + $0x650] sm:$0xff]
  %v1214 = vld [vmem:[%s1 + $0x658] sm:$0xff]
  %v1215 = vld [vmem:[%s1 + $0x660] sm:$0xff]
  %v1216 = vld [vmem:[%s1 + $0x668] sm:$0xff]
  %v1217 = vld [vmem:[%s1 + $0x670] sm:$0xff]
  %v1218 = vld [vmem:[%s1 + $0x678] sm:$0xff]
  %v1219 = vld [vmem:[%s1 + $0x680] sm:$0xff]
  %v1220 = vld [vmem:[%s1 + $0x688] sm:$0xff]
  %v1221 = vld [vmem:[%s1 + $0x690] sm:$0xff]
  %v1222 = vld [vmem:[%s1 + $0x698] sm:$0xff]
  %v1223 = vld [vmem:[%s1 + $0x6a0] sm:$0xff]
  %v1224 = vld [vmem:[%s1 + $0x6a8] sm:$0xff]
  %v1225 = vld [vmem:[%s1 + $0x6b0] sm:$0xff]
  %v1226 = vld [vmem:[%s1 + $0x6b8] sm:$0xff]
  %v1227 = vld [vmem:[%s1 + $0x6c0] sm:$0xff]
  %v1228 = vld [vmem:[%s1 + $0x6c8] sm:$0xff]
  %v1229 = vld [vmem:[%s1 + $0x6d0] sm:$0xff]
  %v1230 = vld [vmem:[%s1 + $0x6d8] sm:$0xff]
  %v1231 = vld [vmem:[%s1 + $0x6e0] sm:$0xff]
  %v1232 = vld [vmem:[%s1 + $0x6e8] sm:$0xff]
  %v1233 = vld [vmem:[%s1 + $0x6f0] sm:$0xff]
  %v1234 = vld [vmem:[%s1 + $0x6f8] sm:$0xff]
  %v1235 = vld [vmem:[%s1 + $0x700] sm:$0xff]
  %v1236 = vld [vmem:[%s1 + $0x708] sm:$0xff]
  %v1237 = vld [vmem:[%s1 + $0x710] sm:$0xff]
  %v1238 = vld [vmem:[%s1 + $0x718] sm:$0xff]
  %v1239 = vld [vmem:[%s1 + $0x720] sm:$0xff]
  %v1240 = vld [vmem:[%s1 + $0x728] sm:$0xff]
  %v1241 = vld [vmem:[%s1 + $0x730] sm:$0xff]
  %v1242 = vld [vmem:[%s1 + $0x738] sm:$0xff]
  %v1243 = vld [vmem:[%s1 + $0x740] sm:$0xff]
  %v1244 = vld [vmem:[%s1 + $0x748] sm:$0xff]
  %v1245 = vld [vmem:[%s1 + $0x750] sm:$0xff]
  %v1246 = vld [vmem:[%s1 + $0x758] sm:$0xff]
  %v1247 = vld [vmem:[%s1 + $0x760] sm:$0xff]
  %v1248 = vld [vmem:[%s1 + $0x768] sm:$0xff]
  %v1249 = vld [vmem:[%s1 + $0x770] sm:$0xff]
  %v1250 = vld [vmem:[%s1 + $0x778] sm:$0xff]
  %v1251 = vld [vmem:[%s1 + $0x780] sm:$0xff]
  %v1252 = vld [vmem:[%s1 + $0x788] sm:$0xff]
  %v1253 = vld [vmem:[%s1 + $0x790] sm:$0xff]
  %v1254 = vld [vmem:[%s1 + $0x798] sm:$0xff]
  %v1255 = vld [vmem:[%s1 + $0x7a0] sm:$0xff]
  %v1256 = vld [vmem:[%s1 + $0x7a8] sm:$0xff]
  %v1257 = vld [vmem:[%s1 + $0x7b0] sm:$0xff]
  %v1258 = vld [vmem:[%s1 + $0x7b8] sm:$0xff]
  %v1259 = vld [vmem:[%s1 + $0x7c0] sm:$0xff]
  %v1260 = vld [vmem:[%s1 + $0x7c8] sm:$0xff]
  %v1261 = vld [vmem:[%s1 + $0x7d0] sm:$0xff]
  %v1262 = vld [vmem:[%s1 + $0x7d8] sm:$0xff]
  %v1263 = vld [vmem:[%s1 + $0x7e0] sm:$0xff]
  %v1264 = vld [vmem:[%s1 + $0x7e8] sm:$0xff]
  %v1265 = vld [vmem:[%s1 + $0x7f0] sm:$0xff]
  %v1266 = vld [vmem:[%s1 + $0x7f8] sm:$0xff]
  %v1267 = vld [vmem:[%s1 + $0x800] sm:$0xff]
  %v1268 = vld [vmem:[%s1 + $0x808] sm:$0xff]
  %v1269 = vld [vmem:[%s1 + $0x810] sm:$0xff]
  %v1270 = vld [vmem:[%s1 + $0x818] sm:$0xff]
  %v1271 = vld [vmem:[%s1 + $0x820] sm:$0xff]
  %v1272 = vld [vmem:[%s1 + $0x828] sm:$0xff]
  %v1273 = vld [vmem:[%s1 + $0x830] sm:$0xff]
  %v1274 = vld [vmem:[%s1 + $0x838] sm:$0xff]
  %v1275 = vld [vmem:[%s1 + $0x840] sm:$0xff]
  %v1276 = vld [vmem:[%s1 + $0x848] sm:$0xff]
  %v1277 = vld [vmem:[%s1 + $0x850] sm:$0xff]
  %v1278 = vld [vmem:[%s1 + $0x858] sm:$0xff]
  %v1279 = vld [vmem:[%s1 + $0x860] sm:$0xff]
  %v1280 = vld [vmem:[%s1 + $0x868] sm:$0xff]
  %v1281 = vld [vmem:[%s1 + $0x870] sm:$0xff]
  %v1282 = vld [vmem:[%s1 + $0x878] sm:$0xff]
  %v1283 = vld [vmem:[%s1 + $0x880] sm:$0xff]
  %v1284 = vld [vmem:[%s1 + $0x888] sm:$0xff]
  %v1285 = vld [vmem:[%s1 + $0x890] sm:$0xff]
  %v1286 = vld [vmem:[%s1 + $0x898] sm:$0xff]
  %v1287 = vld [vmem:[%s1 + $0x8a0] sm:$0xff]
  %v1288 = vld [vmem:[%s1 + $0x8a8] sm:$0xff]
  %v1289 = vld [vmem:[%s1 + $0x8b0] sm:$0xff]
  %v1290 = vld [vmem:[%s1 + $0x8b8] sm:$0xff]
  %v1291 = vld [vmem:[%s1 + $0x8c0] sm:$0xff]
  %v1292 = vld [vmem:[%s1 + $0x8c8] sm:$0xff]
  %v1293 = vld [vmem:[%s1 + $0x8d0] sm:$0xff]
  %v1294 = vld [vmem:[%s1 + $0x8d8] sm:$0xff]
  %v1295 = vld [vmem:[%s1 + $0x8e0] sm:$0xff]
  %v1296 = vld [vmem:[%s1 + $0x8e8] sm:$0xff]
  %v1297 = vld [vmem:[%s1 + $0x8f0] sm:$0xff]
  %v1298 = vld [vmem:[%s1 + $0x8f8] sm:$0xff]
  %v1299 = vld [vmem:[%s1 + $0x900] sm:$0xff]
  %v1300 = vld [vmem:[%s1 + $0x908] sm:$0xff]
  %v1301 = vld [vmem:[%s1 + $0x910] sm:$0xff]
  %v1302 = vld [vmem:[%s1 + $0x918] sm:$0xff]
  %v1303 = vld [vmem:[%s1 + $0x920] sm:$0xff]
  %v1304 = vld [vmem:[%s1 + $0x928] sm:$0xff]
  %v1305 = vld [vmem:[%s1 + $0x930] sm:$0xff]
  %v1306 = vld [vmem:[%s1 + $0x938] sm:$0xff]
  %v1307 = vld [vmem:[%s1 + $0x940] sm:$0xff]
  %v1308 = vld [vmem:[%s1 + $0x948] sm:$0xff]
  %v1309 = vld [vmem:[%s1 + $0x950] sm:$0xff]
  %v1310 = vld [vmem:[%s1 + $0x958] sm:$0xff]
  %v1311 = vld [vmem:[%s1 + $0x960] sm:$0xff]
  %v1312 = vld [vmem:[%s1 + $0x968] sm:$0xff]
  %v1313 = vld [vmem:[%s1 + $0x970] sm:$0xff]
  %v1314 = vld [vmem:[%s1 + $0x978] sm:$0xff]
  %v1315 = vld [vmem:[%s1 + $0x980] sm:$0xff]
  %v1316 = vld [vmem:[%s1 + $0x988] sm:$0xff]
  %v1317 = vld [vmem:[%s1 + $0x990] sm:$0xff]
  %v1318 = vld [vmem:[%s1 + $0x998] sm:$0xff]
  %v1319 = vld [vmem:[%s1 + $0x9a0] sm:$0xff]
  %v1320 = vld [vmem:[%s1 + $0x9a8] sm:$0xff]
  %v1321 = vld [vmem:[%s1 + $0x9b0] sm:$0xff]
  %v1322 = vld [vmem:[%s1 + $0x9b8] sm:$0xff]
  %v1323 = vld [vmem:[%s1 + $0x9c0] sm:$0xff]
  %v1324 = vld [vmem:[%s1 + $0x9c8] sm:$0xff]
  %v1325 = vld [vmem:[%s1 + $0x9d0] sm:$0xff]
  %v1326 = vld [vmem:[%s1 + $0x9d8] sm:$0xff]
  %v1327 = vld [vmem:[%s1 + $0x9e0] sm:$0xff]
  %v1328 = vld [vmem:[%s1 + $0x9e8] sm:$0xff]
  %v1329 = vld [vmem:[%s1 + $0x9f0] sm:$0xff]
  %v1330 = vld [vmem:[%s1 + $0x9f8] sm:$0xff]
  %v1331 = vld [vmem:[%s1 + $0xa00] sm:$0xff]
  %v1332 = vld [vmem:[%s1 + $0xa08] sm:$0xff]
  %v1333 = vld [vmem:[%s1 + $0xa10] sm:$0xff]
  %v1334 = vld [vmem:[%s1 + $0xa18] sm:$0xff]
  %v1335 = vld [vmem:[%s1 + $0xa20] sm:$0xff]
  %v1336 = vld [vmem:[%s1 + $0xa28] sm:$0xff]
  %v1337 = vld [vmem:[%s1 + $0xa30] sm:$0xff]
  %v1338 = vld [vmem:[%s1 + $0xa38] sm:$0xff]
  %v1339 = vld [vmem:[%s1 + $0xa40] sm:$0xff]
  %v1340 = vld [vmem:[%s1 + $0xa48] sm:$0xff]
  %v1341 = vld [vmem:[%s1 + $0xa50] sm:$0xff]
  %v1342 = vld [vmem:[%s1 + $0xa58] sm:$0xff]
  %v1343 = vld [vmem:[%s1 + $0xa60] sm:$0xff]
  %v1344 = vld [vmem:[%s1 + $0xa68] sm:$0xff]
  %v1345 = vld [vmem:[%s1 + $0xa70] sm:$0xff]
  %v1346 = vld [vmem:[%s1 + $0xa78] sm:$0xff]
  %v1347 = vld [vmem:[%s1 + $0xa80] sm:$0xff]
  %v1348 = vld [vmem:[%s1 + $0xa88] sm:$0xff]
  %v1349 = vld [vmem:[%s1 + $0xa90] sm:$0xff]
  %v1350 = vld [vmem:[%s1 + $0xa98] sm:$0xff]
  %v1351 = vld [vmem:[%s1 + $0xaa0] sm:$0xff]
  %v1352 = vld [vmem:[%s1 + $0xaa8] sm:$0xff]
  %v1353 = vld [vmem:[%s1 + $0xab0] sm:$0xff]
  %v1354 = vld [vmem:[%s1 + $0xab8] sm:$0xff]
  %v1355 = vld [vmem:[%s1 + $0xac0] sm:$0xff]
  %v1356 = vld [vmem:[%s1 + $0xac8] sm:$0xff]
  %v1357 = vld [vmem:[%s1 + $0xad0] sm:$0xff]
  %v1358 = vld [vmem:[%s1 + $0xad8] sm:$0xff]
  %v1359 = vld [vmem:[%s1 + $0xae0] sm:$0xff]
  %v1360 = vld [vmem:[%s1 + $0xae8] sm:$0xff]
  %v1361 = vld [vmem:[%s1 + $0xaf0] sm:$0xff]
  %v1362 = vld [vmem:[%s1 + $0xaf8] sm:$0xff]
  %v1363 = vld [vmem:[%s1 + $0xb00] sm:$0xff]
  %v1364 = vld [vmem:[%s1 + $0xb08] sm:$0xff]
  %v1365 = vld [vmem:[%s1 + $0xb10] sm:$0xff]
  %v1366 = vld [vmem:[%s1 + $0xb18] sm:$0xff]
  %v1367 = vld [vmem:[%s1 + $0xb20] sm:$0xff]
  %v1368 = vld [vmem:[%s1 + $0xb28] sm:$0xff]
  %v1369 = vld [vmem:[%s1 + $0xb30] sm:$0xff]
  %v1370 = vld [vmem:[%s1 + $0xb38] sm:$0xff]
  %v1371 = vld [vmem:[%s1 + $0xb40] sm:$0xff]
  %v1372 = vld [vmem:[%s1 + $0xb48] sm:$0xff]
  %v1373 = vld [vmem:[%s1 + $0xb50] sm:$0xff]
  %v1374 = vld [vmem:[%s1 + $0xb58] sm:$0xff]
  %v1375 = vld [vmem:[%s1 + $0xb60] sm:$0xff]
  %v1376 = vld [vmem:[%s1 + $0xb68] sm:$0xff]
  %v1377 = vld [vmem:[%s1 + $0xb70] sm:$0xff]
  %v1378 = vld [vmem:[%s1 + $0xb78] sm:$0xff]
  %v1379 = vld [vmem:[%s1 + $0xb80] sm:$0xff]
  %v1380 = vld [vmem:[%s1 + $0xb88] sm:$0xff]
  %v1381 = vld [vmem:[%s1 + $0xb90] sm:$0xff]
  %v1382 = vld [vmem:[%s1 + $0xb98] sm:$0xff]
  %v1383 = vld [vmem:[%s1 + $0xba0] sm:$0xff]
  %v1384 = vld [vmem:[%s1 + $0xba8] sm:$0xff]
  %v1385 = vld [vmem:[%s1 + $0xbb0] sm:$0xff]
  %v1386 = vld [vmem:[%s1 + $0xbb8] sm:$0xff]
  %v1387 = vld [vmem:[%s1 + $0xbc0] sm:$0xff]
  %v1388 = vld [vmem:[%s1 + $0xbc8] sm:$0xff]
  %v1389 = vld [vmem:[%s1 + $0xbd0] sm:$0xff]
  %v1390 = vld [vmem:[%s1 + $0xbd8] sm:$0xff]
  %v1391 = vld [vmem:[%s1 + $0xbe0] sm:$0xff]
  %v1392 = vld [vmem:[%s1 + $0xbe8] sm:$0xff]
  %v1393 = vld [vmem:[%s1 + $0xbf0] sm:$0xff]
  %v1394 = vld [vmem:[%s1 + $0xbf8] sm:$0xff]
  %v1395 = vld [vmem:[%s1 + $0xc00] sm:$0xff]
  %v1396 = vld [vmem:[%s1 + $0xc08] sm:$0xff]
  %v1397 = vld [vmem:[%s1 + $0xc10] sm:$0xff]
  %v1398 = vld [vmem:[%s1 + $0xc18] sm:$0xff]
  %v1399 = vld [vmem:[%s1 + $0xc20] sm:$0xff]
  %v1400 = vld [vmem:[%s1 + $0xc28] sm:$0xff]
  %v1401 = vld [vmem:[%s1 + $0xc30] sm:$0xff]
  %v1402 = vld [vmem:[%s1 + $0xc38] sm:$0xff]
  %v1403 = vld [vmem:[%s1 + $0xc40] sm:$0xff]
  %v1404 = vld [vmem:[%s1 + $0xc48] sm:$0xff]
  %v1405 = vld [vmem:[%s1 + $0xc50] sm:$0xff]
  %v1406 = vld [vmem:[%s1 + $0xc58] sm:$0xff]
  %v1407 = vld [vmem:[%s1 + $0xc60] sm:$0xff]
  %v1408 = vld [vmem:[%s1 + $0xc68] sm:$0xff]
  %v1409 = vld [vmem:[%s1 + $0xc70] sm:$0xff]
  %v1410 = vld [vmem:[%s1 + $0xc78] sm:$0xff]
  %v1411 = vld [vmem:[%s2] sm:$0xff]
  %v1412 = vld [vmem:[%s2 + $0x8] sm:$0xff]
  %v1413 = vld [vmem:[%s2 + $0x10] sm:$0xff]
  %v1414 = vld [vmem:[%s2 + $0x18] sm:$0x1]
  %v1419 = vlaneseq
  %v1420 = vshrl.u32 %v1419, 7
  %v1421 = vsub.s32 0, %v1420
  %v1422 = vrot.slane %v1411, %v1421
  %v1423 = vlaneseq
  %v1424 = vshrl.u32 %v1423, 7
  %v1425 = vsub.s32 1, %v1424
  %v1426 = vrot.slane %v1411, %v1425
  %v1427 = vlaneseq
  %v1428 = vshrl.u32 %v1427, 7
  %v1429 = vsub.s32 2, %v1428
  %v1430 = vrot.slane %v1411, %v1429
  %v1431 = vlaneseq
  %v1432 = vshrl.u32 %v1431, 7
  %v1433 = vsub.s32 3, %v1432
  %v1434 = vrot.slane %v1411, %v1433
  %v1435 = vlaneseq
  %v1436 = vshrl.u32 %v1435, 7
  %v1437 = vsub.s32 4, %v1436
  %v1438 = vrot.slane %v1411, %v1437
  %v1439 = vlaneseq
  %v1440 = vshrl.u32 %v1439, 7
  %v1441 = vsub.s32 5, %v1440
  %v1442 = vrot.slane %v1411, %v1441
  %v1443 = vlaneseq
  %v1444 = vshrl.u32 %v1443, 7
  %v1445 = vsub.s32 6, %v1444
  %v1446 = vrot.slane %v1411, %v1445
  %v1447 = vlaneseq
  %v1448 = vshrl.u32 %v1447, 7
  %v1449 = vsub.s32 7, %v1448
  %v1450 = vrot.slane %v1411, %v1449
  %v1451 = vlaneseq
  %v1452 = vshrl.u32 %v1451, 7
  %v1453 = vsub.s32 0, %v1452
  %v1454 = vrot.slane %v1412, %v1453
  %v1455 = vlaneseq
  %v1456 = vshrl.u32 %v1455, 7
  %v1457 = vsub.s32 1, %v1456
  %v1458 = vrot.slane %v1412, %v1457
  %v1459 = vlaneseq
  %v1460 = vshrl.u32 %v1459, 7
  %v1461 = vsub.s32 2, %v1460
  %v1462 = vrot.slane %v1412, %v1461
  %v1463 = vlaneseq
  %v1464 = vshrl.u32 %v1463, 7
  %v1465 = vsub.s32 3, %v1464
  %v1466 = vrot.slane %v1412, %v1465
  %v1467 = vlaneseq
  %v1468 = vshrl.u32 %v1467, 7
  %v1469 = vsub.s32 4, %v1468
  %v1470 = vrot.slane %v1412, %v1469
  %v1471 = vlaneseq
  %v1472 = vshrl.u32 %v1471, 7
  %v1473 = vsub.s32 5, %v1472
  %v1474 = vrot.slane %v1412, %v1473
  %v1475 = vlaneseq
  %v1476 = vshrl.u32 %v1475, 7
  %v1477 = vsub.s32 6, %v1476
  %v1478 = vrot.slane %v1412, %v1477
  %v1479 = vlaneseq
  %v1480 = vshrl.u32 %v1479, 7
  %v1481 = vsub.s32 7, %v1480
  %v1482 = vrot.slane %v1412, %v1481
  %v1483 = vlaneseq
  %v1484 = vshrl.u32 %v1483, 7
  %v1485 = vsub.s32 0, %v1484
  %v1486 = vrot.slane %v1413, %v1485
  %v1487 = vlaneseq
  %v1488 = vshrl.u32 %v1487, 7
  %v1489 = vsub.s32 1, %v1488
  %v1490 = vrot.slane %v1413, %v1489
  %v1491 = vlaneseq
  %v1492 = vshrl.u32 %v1491, 7
  %v1493 = vsub.s32 2, %v1492
  %v1494 = vrot.slane %v1413, %v1493
  %v1495 = vlaneseq
  %v1496 = vshrl.u32 %v1495, 7
  %v1497 = vsub.s32 3, %v1496
  %v1498 = vrot.slane %v1413, %v1497
  %v1499 = vlaneseq
  %v1500 = vshrl.u32 %v1499, 7
  %v1501 = vsub.s32 4, %v1500
  %v1502 = vrot.slane %v1413, %v1501
  %v1503 = vlaneseq
  %v1504 = vshrl.u32 %v1503, 7
  %v1505 = vsub.s32 5, %v1504
  %v1506 = vrot.slane %v1413, %v1505
  %v1507 = vlaneseq
  %v1508 = vshrl.u32 %v1507, 7
  %v1509 = vsub.s32 6, %v1508
  %v1510 = vrot.slane %v1413, %v1509
  %v1511 = vlaneseq
  %v1512 = vshrl.u32 %v1511, 7
  %v1513 = vsub.s32 7, %v1512
  %v1514 = vrot.slane %v1413, %v1513
  %v1515 = vlaneseq
  %v1516 = vshrl.u32 %v1515, 7
  %v1517 = vsub.s32 0, %v1516
  %v1518 = vrot.slane %v1414, %v1517
  %1544 = vmatprep.subr.mxu0 %v1012
  %1545 = vmatpush1.msra.mxu0 %v1011
  %1546 = vmatprep.subr.mxu0 %v1037
  %1547 = vmatpush1.msra.mxu0 %v1036
  %1548 = vmatprep.subr.mxu0 %v1062
  %1549 = vmatpush1.msra.mxu0 %v1061
  %1550 = vmatprep.subr.mxu0 %v1087
  %1551 = vmatpush1.msra.mxu0 %v1086
  %1552 = vmatprep.subr.mxu0 %v1112
  %1553 = vmatpush1.msra.mxu0 %v1111
  %1554 = vmatprep.subr.mxu0 %v1137
  %1555 = vmatpush1.msra.mxu0 %v1136
  %1556 = vmatprep.subr.mxu0 %v1162
  %1557 = vmatpush1.msra.mxu0 %v1161
  %1558 = vmatprep.subr.mxu0 %v1187
  %1559 = vmatpush1.msra.mxu0 %v1186
  %1560 = vmatprep.subr.mxu0 %v1212
  %1561 = vmatpush1.msra.mxu0 %v1211
  %1562 = vmatprep.subr.mxu0 %v1237
  %1563 = vmatpush1.msra.mxu0 %v1236
  %1564 = vmatprep.subr.mxu0 %v1262
  %1565 = vmatpush1.msra.mxu0 %v1261
  %1566 = vmatprep.subr.mxu0 %v1287
  %1567 = vmatpush1.msra.mxu0 %v1286
  %1568 = vmatprep.subr.mxu0 %v1312
  %1569 = vmatpush1.msra.mxu0 %v1311
  %1570 = vmatprep.subr.mxu0 %v1337
  %1571 = vmatpush1.msra.mxu0 %v1336
  %1572 = vmatprep.subr.mxu0 %v1362
  %1573 = vmatpush1.msra.mxu0 %v1361
  %1574 = vmatprep.subr.mxu0 %v1387
  %1575 = vmatpush1.msra.mxu0 %v1386
  %1576 = vmatprep.subr.mxu0 0.0
  %1577 = vmatpush1.msra.mxu0 0.0
  %1578 = vmatprep.subr.mxu0 0.0
  %1579 = vmatpush1.msra.mxu0 0.0
  %1580 = vmatprep.subr.mxu0 0.0
  %1581 = vmatpush1.msra.mxu0 0.0
  %1582 = vmatprep.subr.mxu0 0.0
  %1583 = vmatpush1.msra.mxu0 0.0
  %1584 = vmatprep.subr.mxu0 0.0
  %1585 = vmatpush1.msra.mxu0 0.0
  %1586 = vmatprep.subr.mxu0 0.0
  %1587 = vmatpush1.msra.mxu0 0.0
  %1588 = vmatprep.subr.mxu0 0.0
  %1589 = vmatpush1.msra.mxu0 0.0
  %1590 = vmatprep.subr.mxu0 0.0
  %1591 = vmatpush1.msra.mxu0 0.0
  %1592 = vmatprep.subr.mxu0 0.0
  %1593 = vmatpush1.msra.mxu0 0.0
  %1594 = vmatprep.subr.mxu0 0.0
  %1595 = vmatpush1.msra.mxu0 0.0
  %1596 = vmatprep.subr.mxu0 0.0
  %1597 = vmatpush1.msra.mxu0 0.0
  %1598 = vmatprep.subr.mxu0 0.0
  %1599 = vmatpush1.msra.mxu0 0.0
  %1600 = vmatprep.subr.mxu0 0.0
  %1601 = vmatpush1.msra.mxu0 0.0
  %1602 = vmatprep.subr.mxu0 0.0
  %1603 = vmatpush1.msra.mxu0 0.0
  %1604 = vmatprep.subr.mxu0 0.0
  %1605 = vmatpush1.msra.mxu0 0.0
  %1606 = vmatprep.subr.mxu0 0.0
  %1607 = vmatpush1.msra.mxu0 0.0
  %1608 = vmatprep.mubr.f32.mxu0 0.0
  %1609 = vmatmul.mubr.f32.gmra.mrb[0].mxu0 %v1010
  %v1610 = vpop.f32.mrb[0].mxu0
  %v1611 = vadd.f32 %v1422, %v1610
  %v1612 = vpop.f32.mrb[0].mxu0
  %v1613 = vadd.f32 %v1426, %v1612
  %1614 = vdwg.mxu0
  %1615 = vmatprep.subr.mxu0 %v1014
  %1616 = vmatpush1.msra.mxu0 %v1013
  %1617 = vmatprep.subr.mxu0 %v1039
  %1618 = vmatpush1.msra.mxu0 %v1038
  %1619 = vmatprep.subr.mxu0 %v1064
  %1620 = vmatpush1.msra.mxu0 %v1063
  %1621 = vmatprep.subr.mxu0 %v1089
  %1622 = vmatpush1.msra.mxu0 %v1088
  %1623 = vmatprep.subr.mxu0 %v1114
  %1624 = vmatpush1.msra.mxu0 %v1113
  %1625 = vmatprep.subr.mxu0 %v1139
  %1626 = vmatpush1.msra.mxu0 %v1138
  %1627 = vmatprep.subr.mxu0 %v1164
  %1628 = vmatpush1.msra.mxu0 %v1163
  %1629 = vmatprep.subr.mxu0 %v1189
  %1630 = vmatpush1.msra.mxu0 %v1188
  %1631 = vmatprep.subr.mxu0 %v1214
  %1632 = vmatpush1.msra.mxu0 %v1213
  %1633 = vmatprep.subr.mxu0 %v1239
  %1634 = vmatpush1.msra.mxu0 %v1238
  %1635 = vmatprep.subr.mxu0 %v1264
  %1636 = vmatpush1.msra.mxu0 %v1263
  %1637 = vmatprep.subr.mxu0 %v1289
  %1638 = vmatpush1.msra.mxu0 %v1288
  %1639 = vmatprep.subr.mxu0 %v1314
  %1640 = vmatpush1.msra.mxu0 %v1313
  %1641 = vmatprep.subr.mxu0 %v1339
  %1642 = vmatpush1.msra.mxu0 %v1338
  %1643 = vmatprep.subr.mxu0 %v1364
  %1644 = vmatpush1.msra.mxu0 %v1363
  %1645 = vmatprep.subr.mxu0 %v1389
  %1646 = vmatpush1.msra.mxu0 %v1388
  %1647 = vmatprep.subr.mxu0 0.0
  %1648 = vmatpush1.msra.mxu0 0.0
  %1649 = vmatprep.subr.mxu0 0.0
  %1650 = vmatpush1.msra.mxu0 0.0
  %1651 = vmatprep.subr.mxu0 0.0
  %1652 = vmatpush1.msra.mxu0 0.0
  %1653 = vmatprep.subr.mxu0 0.0
  %1654 = vmatpush1.msra.mxu0 0.0
  %1655 = vmatprep.subr.mxu0 0.0
  %1656 = vmatpush1.msra.mxu0 0.0
  %1657 = vmatprep.subr.mxu0 0.0
  %1658 = vmatpush1.msra.mxu0 0.0
  %1659 = vmatprep.subr.mxu0 0.0
  %1660 = vmatpush1.msra.mxu0 0.0
  %1661 = vmatprep.subr.mxu0 0.0
  %1662 = vmatpush1.msra.mxu0 0.0
  %1663 = vmatprep.subr.mxu0 0.0
  %1664 = vmatpush1.msra.mxu0 0.0
  %1665 = vmatprep.subr.mxu0 0.0
  %1666 = vmatpush1.msra.mxu0 0.0
  %1667 = vmatprep.subr.mxu0 0.0
  %1668 = vmatpush1.msra.mxu0 0.0
  %1669 = vmatprep.subr.mxu0 0.0
  %1670 = vmatpush1.msra.mxu0 0.0
  %1671 = vmatprep.subr.mxu0 0.0
  %1672 = vmatpush1.msra.mxu0 0.0
  %1673 = vmatprep.subr.mxu0 0.0
  %1674 = vmatpush1.msra.mxu0 0.0
  %1675 = vmatprep.subr.mxu0 0.0
  %1676 = vmatpush1.msra.mxu0 0.0
  %1677 = vmatprep.subr.mxu0 0.0
  %1678 = vmatpush1.msra.mxu0 0.0
  %1679 = vmatprep.mubr.f32.mxu0 0.0
  %1680 = vmatmul.mubr.f32.gmra.mrb[0].mxu0 %v1010
  %v1681 = vpop.f32.mrb[0].mxu0
  %v1682 = vadd.f32 %v1430, %v1681
  %v1683 = vpop.f32.mrb[0].mxu0
  %v1684 = vadd.f32 %v1434, %v1683
  %1685 = vdwg.mxu0
  %1686 = vmatprep.subr.mxu0 %v1016
  %1687 = vmatpush1.msra.mxu0 %v1015
  %1688 = vmatprep.subr.mxu0 %v1041
  %1689 = vmatpush1.msra.mxu0 %v1040
  %1690 = vmatprep.subr.mxu0 %v1066
  %1691 = vmatpush1.msra.mxu0 %v1065
  %1692 = vmatprep.subr.mxu0 %v1091
  %1693 = vmatpush1.msra.mxu0 %v1090
  %1694 = vmatprep.subr.mxu0 %v1116
  %1695 = vmatpush1.msra.mxu0 %v1115
  %1696 = vmatprep.subr.mxu0 %v1141
  %1697 = vmatpush1.msra.mxu0 %v1140
  %1698 = vmatprep.subr.mxu0 %v1166
  %1699 = vmatpush1.msra.mxu0 %v1165
  %1700 = vmatprep.subr.mxu0 %v1191
  %1701 = vmatpush1.msra.mxu0 %v1190
  %1702 = vmatprep.subr.mxu0 %v1216
  %1703 = vmatpush1.msra.mxu0 %v1215
  %1704 = vmatprep.subr.mxu0 %v1241
  %1705 = vmatpush1.msra.mxu0 %v1240
  %1706 = vmatprep.subr.mxu0 %v1266
  %1707 = vmatpush1.msra.mxu0 %v1265
  %1708 = vmatprep.subr.mxu0 %v1291
  %1709 = vmatpush1.msra.mxu0 %v1290
  %1710 = vmatprep.subr.mxu0 %v1316
  %1711 = vmatpush1.msra.mxu0 %v1315
  %1712 = vmatprep.subr.mxu0 %v1341
  %1713 = vmatpush1.msra.mxu0 %v1340
  %1714 = vmatprep.subr.mxu0 %v1366
  %1715 = vmatpush1.msra.mxu0 %v1365
  %1716 = vmatprep.subr.mxu0 %v1391
  %1717 = vmatpush1.msra.mxu0 %v1390
  %1718 = vmatprep.subr.mxu0 0.0
  %1719 = vmatpush1.msra.mxu0 0.0
  %1720 = vmatprep.subr.mxu0 0.0
  %1721 = vmatpush1.msra.mxu0 0.0
  %1722 = vmatprep.subr.mxu0 0.0
  %1723 = vmatpush1.msra.mxu0 0.0
  %1724 = vmatprep.subr.mxu0 0.0
  %1725 = vmatpush1.msra.mxu0 0.0
  %1726 = vmatprep.subr.mxu0 0.0
  %1727 = vmatpush1.msra.mxu0 0.0
  %1728 = vmatprep.subr.mxu0 0.0
  %1729 = vmatpush1.msra.mxu0 0.0
  %1730 = vmatprep.subr.mxu0 0.0
  %1731 = vmatpush1.msra.mxu0 0.0
  %1732 = vmatprep.subr.mxu0 0.0
  %1733 = vmatpush1.msra.mxu0 0.0
  %1734 = vmatprep.subr.mxu0 0.0
  %1735 = vmatpush1.msra.mxu0 0.0
  %1736 = vmatprep.subr.mxu0 0.0
  %1737 = vmatpush1.msra.mxu0 0.0
  %1738 = vmatprep.subr.mxu0 0.0
  %1739 = vmatpush1.msra.mxu0 0.0
  %1740 = vmatprep.subr.mxu0 0.0
  %1741 = vmatpush1.msra.mxu0 0.0
  %1742 = vmatprep.subr.mxu0 0.0
  %1743 = vmatpush1.msra.mxu0 0.0
  %1744 = vmatprep.subr.mxu0 0.0
  %1745 = vmatpush1.msra.mxu0 0.0
  %1746 = vmatprep.subr.mxu0 0.0
  %1747 = vmatpush1.msra.mxu0 0.0
  %1748 = vmatprep.subr.mxu0 0.0
  %1749 = vmatpush1.msra.mxu0 0.0
  %1750 = vmatprep.mubr.f32.mxu0 0.0
  %1751 = vmatmul.mubr.f32.gmra.mrb[0].mxu0 %v1010
  %v1752 = vpop.f32.mrb[0].mxu0
  %v1753 = vadd.f32 %v1438, %v1752
  %v1754 = vpop.f32.mrb[0].mxu0
  %v1755 = vadd.f32 %v1442, %v1754
  %1756 = vdwg.mxu0
  %1757 = vmatprep.subr.mxu0 %v1018
  %1758 = vmatpush1.msra.mxu0 %v1017
  %1759 = vmatprep.subr.mxu0 %v1043
  %1760 = vmatpush1.msra.mxu0 %v1042
  %1761 = vmatprep.subr.mxu0 %v1068
  %1762 = vmatpush1.msra.mxu0 %v1067
  %1763 = vmatprep.subr.mxu0 %v1093
  %1764 = vmatpush1.msra.mxu0 %v1092
  %1765 = vmatprep.subr.mxu0 %v1118
  %1766 = vmatpush1.msra.mxu0 %v1117
  %1767 = vmatprep.subr.mxu0 %v1143
  %1768 = vmatpush1.msra.mxu0 %v1142
  %1769 = vmatprep.subr.mxu0 %v1168
  %1770 = vmatpush1.msra.mxu0 %v1167
  %1771 = vmatprep.subr.mxu0 %v1193
  %1772 = vmatpush1.msra.mxu0 %v1192
  %1773 = vmatprep.subr.mxu0 %v1218
  %1774 = vmatpush1.msra.mxu0 %v1217
  %1775 = vmatprep.subr.mxu0 %v1243
  %1776 = vmatpush1.msra.mxu0 %v1242
  %1777 = vmatprep.subr.mxu0 %v1268
  %1778 = vmatpush1.msra.mxu0 %v1267
  %1779 = vmatprep.subr.mxu0 %v1293
  %1780 = vmatpush1.msra.mxu0 %v1292
  %1781 = vmatprep.subr.mxu0 %v1318
  %1782 = vmatpush1.msra.mxu0 %v1317
  %1783 = vmatprep.subr.mxu0 %v1343
  %1784 = vmatpush1.msra.mxu0 %v1342
  %1785 = vmatprep.subr.mxu0 %v1368
  %1786 = vmatpush1.msra.mxu0 %v1367
  %1787 = vmatprep.subr.mxu0 %v1393
  %1788 = vmatpush1.msra.mxu0 %v1392
  %1789 = vmatprep.subr.mxu0 0.0
  %1790 = vmatpush1.msra.mxu0 0.0
  %1791 = vmatprep.subr.mxu0 0.0
  %1792 = vmatpush1.msra.mxu0 0.0
  %1793 = vmatprep.subr.mxu0 0.0
  %1794 = vmatpush1.msra.mxu0 0.0
  %1795 = vmatprep.subr.mxu0 0.0
  %1796 = vmatpush1.msra.mxu0 0.0
  %1797 = vmatprep.subr.mxu0 0.0
  %1798 = vmatpush1.msra.mxu0 0.0
  %1799 = vmatprep.subr.mxu0 0.0
  %1800 = vmatpush1.msra.mxu0 0.0
  %1801 = vmatprep.subr.mxu0 0.0
  %1802 = vmatpush1.msra.mxu0 0.0
  %1803 = vmatprep.subr.mxu0 0.0
  %1804 = vmatpush1.msra.mxu0 0.0
  %1805 = vmatprep.subr.mxu0 0.0
  %1806 = vmatpush1.msra.mxu0 0.0
  %1807 = vmatprep.subr.mxu0 0.0
  %1808 = vmatpush1.msra.mxu0 0.0
  %1809 = vmatprep.subr.mxu0 0.0
  %1810 = vmatpush1.msra.mxu0 0.0
  %1811 = vmatprep.subr.mxu0 0.0
  %1812 = vmatpush1.msra.mxu0 0.0
  %1813 = vmatprep.subr.mxu0 0.0
  %1814 = vmatpush1.msra.mxu0 0.0
  %1815 = vmatprep.subr.mxu0 0.0
  %1816 = vmatpush1.msra.mxu0 0.0
  %1817 = vmatprep.subr.mxu0 0.0
  %1818 = vmatpush1.msra.mxu0 0.0
  %1819 = vmatprep.subr.mxu0 0.0
  %1820 = vmatpush1.msra.mxu0 0.0
  %1821 = vmatprep.mubr.f32.mxu0 0.0
  %1822 = vmatmul.mubr.f32.gmra.mrb[0].mxu0 %v1010
  %v1823 = vpop.f32.mrb[0].mxu0
  %v1824 = vadd.f32 %v1446, %v1823
  %v1825 = vpop.f32.mrb[0].mxu0
  %v1826 = vadd.f32 %v1450, %v1825
  %1827 = vdwg.mxu0
  %1828 = vmatprep.subr.mxu0 %v1020
  %1829 = vmatpush1.msra.mxu0 %v1019
  %1830 = vmatprep.subr.mxu0 %v1045
  %1831 = vmatpush1.msra.mxu0 %v1044
  %1832 = vmatprep.subr.mxu0 %v1070
  %1833 = vmatpush1.msra.mxu0 %v1069
  %1834 = vmatprep.subr.mxu0 %v1095
  %1835 = vmatpush1.msra.mxu0 %v1094
  %1836 = vmatprep.subr.mxu0 %v1120
  %1837 = vmatpush1.msra.mxu0 %v1119
  %1838 = vmatprep.subr.mxu0 %v1145
  %1839 = vmatpush1.msra.mxu0 %v1144
  %1840 = vmatprep.subr.mxu0 %v1170
  %1841 = vmatpush1.msra.mxu0 %v1169
  %1842 = vmatprep.subr.mxu0 %v1195
  %1843 = vmatpush1.msra.mxu0 %v1194
  %1844 = vmatprep.subr.mxu0 %v1220
  %1845 = vmatpush1.msra.mxu0 %v1219
  %1846 = vmatprep.subr.mxu0 %v1245
  %1847 = vmatpush1.msra.mxu0 %v1244
  %1848 = vmatprep.subr.mxu0 %v1270
  %1849 = vmatpush1.msra.mxu0 %v1269
  %1850 = vmatprep.subr.mxu0 %v1295
  %1851 = vmatpush1.msra.mxu0 %v1294
  %1852 = vmatprep.subr.mxu0 %v1320
  %1853 = vmatpush1.msra.mxu0 %v1319
  %1854 = vmatprep.subr.mxu0 %v1345
  %1855 = vmatpush1.msra.mxu0 %v1344
  %1856 = vmatprep.subr.mxu0 %v1370
  %1857 = vmatpush1.msra.mxu0 %v1369
  %1858 = vmatprep.subr.mxu0 %v1395
  %1859 = vmatpush1.msra.mxu0 %v1394
  %1860 = vmatprep.subr.mxu0 0.0
  %1861 = vmatpush1.msra.mxu0 0.0
  %1862 = vmatprep.subr.mxu0 0.0
  %1863 = vmatpush1.msra.mxu0 0.0
  %1864 = vmatprep.subr.mxu0 0.0
  %1865 = vmatpush1.msra.mxu0 0.0
  %1866 = vmatprep.subr.mxu0 0.0
  %1867 = vmatpush1.msra.mxu0 0.0
  %1868 = vmatprep.subr.mxu0 0.0
  %1869 = vmatpush1.msra.mxu0 0.0
  %1870 = vmatprep.subr.mxu0 0.0
  %1871 = vmatpush1.msra.mxu0 0.0
  %1872 = vmatprep.subr.mxu0 0.0
  %1873 = vmatpush1.msra.mxu0 0.0
  %1874 = vmatprep.subr.mxu0 0.0
  %1875 = vmatpush1.msra.mxu0 0.0
  %1876 = vmatprep.subr.mxu0 0.0
  %1877 = vmatpush1.msra.mxu0 0.0
  %1878 = vmatprep.subr.mxu0 0.0
  %1879 = vmatpush1.msra.mxu0 0.0
  %1880 = vmatprep.subr.mxu0 0.0
  %1881 = vmatpush1.msra.mxu0 0.0
  %1882 = vmatprep.subr.mxu0 0.0
  %1883 = vmatpush1.msra.mxu0 0.0
  %1884 = vmatprep.subr.mxu0 0.0
  %1885 = vmatpush1.msra.mxu0 0.0
  %1886 = vmatprep.subr.mxu0 0.0
  %1887 = vmatpush1.msra.mxu0 0.0
  %1888 = vmatprep.subr.mxu0 0.0
  %1889 = vmatpush1.msra.mxu0 0.0
  %1890 = vmatprep.subr.mxu0 0.0
  %1891 = vmatpush1.msra.mxu0 0.0
  %1892 = vmatprep.mubr.f32.mxu0 0.0
  %1893 = vmatmul.mubr.f32.gmra.mrb[0].mxu0 %v1010
  %v1894 = vpop.f32.mrb[0].mxu0
  %v1895 = vadd.f32 %v1454, %v1894
  %v1896 = vpop.f32.mrb[0].mxu0
  %v1897 = vadd.f32 %v1458, %v1896
  %1898 = vdwg.mxu0
  %1899 = vmatprep.subr.mxu0 %v1022
  %1900 = vmatpush1.msra.mxu0 %v1021
  %1901 = vmatprep.subr.mxu0 %v1047
  %1902 = vmatpush1.msra.mxu0 %v1046
  %1903 = vmatprep.subr.mxu0 %v1072
  %1904 = vmatpush1.msra.mxu0 %v1071
  %1905 = vmatprep.subr.mxu0 %v1097
  %1906 = vmatpush1.msra.mxu0 %v1096
  %1907 = vmatprep.subr.mxu0 %v1122
  %1908 = vmatpush1.msra.mxu0 %v1121
  %1909 = vmatprep.subr.mxu0 %v1147
  %1910 = vmatpush1.msra.mxu0 %v1146
  %1911 = vmatprep.subr.mxu0 %v1172
  %1912 = vmatpush1.msra.mxu0 %v1171
  %1913 = vmatprep.subr.mxu0 %v1197
  %1914 = vmatpush1.msra.mxu0 %v1196
  %1915 = vmatprep.subr.mxu0 %v1222
  %1916 = vmatpush1.msra.mxu0 %v1221
  %1917 = vmatprep.subr.mxu0 %v1247
  %1918 = vmatpush1.msra.mxu0 %v1246
  %1919 = vmatprep.subr.mxu0 %v1272
  %1920 = vmatpush1.msra.mxu0 %v1271
  %1921 = vmatprep.subr.mxu0 %v1297
  %1922 = vmatpush1.msra.mxu0 %v1296
  %1923 = vmatprep.subr.mxu0 %v1322
  %1924 = vmatpush1.msra.mxu0 %v1321
  %1925 = vmatprep.subr.mxu0 %v1347
  %1926 = vmatpush1.msra.mxu0 %v1346
  %1927 = vmatprep.subr.mxu0 %v1372
  %1928 = vmatpush1.msra.mxu0 %v1371
  %1929 = vmatprep.subr.mxu0 %v1397
  %1930 = vmatpush1.msra.mxu0 %v1396
  %1931 = vmatprep.subr.mxu0 0.0
  %1932 = vmatpush1.msra.mxu0 0.0
  %1933 = vmatprep.subr.mxu0 0.0
  %1934 = vmatpush1.msra.mxu0 0.0
  %1935 = vmatprep.subr.mxu0 0.0
  %1936 = vmatpush1.msra.mxu0 0.0
  %1937 = vmatprep.subr.mxu0 0.0
  %1938 = vmatpush1.msra.mxu0 0.0
  %1939 = vmatprep.subr.mxu0 0.0
  %1940 = vmatpush1.msra.mxu0 0.0
  %1941 = vmatprep.subr.mxu0 0.0
  %1942 = vmatpush1.msra.mxu0 0.0
  %1943 = vmatprep.subr.mxu0 0.0
  %1944 = vmatpush1.msra.mxu0 0.0
  %1945 = vmatprep.subr.mxu0 0.0
  %1946 = vmatpush1.msra.mxu0 0.0
  %1947 = vmatprep.subr.mxu0 0.0
  %1948 = vmatpush1.msra.mxu0 0.0
  %1949 = vmatprep.subr.mxu0 0.0
  %1950 = vmatpush1.msra.mxu0 0.0
  %1951 = vmatprep.subr.mxu0 0.0
  %1952 = vmatpush1.msra.mxu0 0.0
  %1953 = vmatprep.subr.mxu0 0.0
  %1954 = vmatpush1.msra.mxu0 0.0
  %1955 = vmatprep.subr.mxu0 0.0
  %1956 = vmatpush1.msra.mxu0 0.0
  %1957 = vmatprep.subr.mxu0 0.0
  %1958 = vmatpush1.msra.mxu0 0.0
  %1959 = vmatprep.subr.mxu0 0.0
  %1960 = vmatpush1.msra.mxu0 0.0
  %1961 = vmatprep.subr.mxu0 0.0
  %1962 = vmatpush1.msra.mxu0 0.0
  %1963 = vmatprep.mubr.f32.mxu0 0.0
  %1964 = vmatmul.mubr.f32.gmra.mrb[0].mxu0 %v1010
  %v1965 = vpop.f32.mrb[0].mxu0
  %v1966 = vadd.f32 %v1462, %v1965
  %v1967 = vpop.f32.mrb[0].mxu0
  %v1968 = vadd.f32 %v1466, %v1967
  %1969 = vdwg.mxu0
  %1970 = vmatprep.subr.mxu0 %v1024
  %1971 = vmatpush1.msra.mxu0 %v1023
  %1972 = vmatprep.subr.mxu0 %v1049
  %1973 = vmatpush1.msra.mxu0 %v1048
  %1974 = vmatprep.subr.mxu0 %v1074
  %1975 = vmatpush1.msra.mxu0 %v1073
  %1976 = vmatprep.subr.mxu0 %v1099
  %1977 = vmatpush1.msra.mxu0 %v1098
  %1978 = vmatprep.subr.mxu0 %v1124
  %1979 = vmatpush1.msra.mxu0 %v1123
  %1980 = vmatprep.subr.mxu0 %v1149
  %1981 = vmatpush1.msra.mxu0 %v1148
  %1982 = vmatprep.subr.mxu0 %v1174
  %1983 = vmatpush1.msra.mxu0 %v1173
  %1984 = vmatprep.subr.mxu0 %v1199
  %1985 = vmatpush1.msra.mxu0 %v1198
  %1986 = vmatprep.subr.mxu0 %v1224
  %1987 = vmatpush1.msra.mxu0 %v1223
  %1988 = vmatprep.subr.mxu0 %v1249
  %1989 = vmatpush1.msra.mxu0 %v1248
  %1990 = vmatprep.subr.mxu0 %v1274
  %1991 = vmatpush1.msra.mxu0 %v1273
  %1992 = vmatprep.subr.mxu0 %v1299
  %1993 = vmatpush1.msra.mxu0 %v1298
  %1994 = vmatprep.subr.mxu0 %v1324
  %1995 = vmatpush1.msra.mxu0 %v1323
  %1996 = vmatprep.subr.mxu0 %v1349
  %1997 = vmatpush1.msra.mxu0 %v1348
  %1998 = vmatprep.subr.mxu0 %v1374
  %1999 = vmatpush1.msra.mxu0 %v1373
  %2000 = vmatprep.subr.mxu0 %v1399
  %2001 = vmatpush1.msra.mxu0 %v1398
  %2002 = vmatprep.subr.mxu0 0.0
  %2003 = vmatpush1.msra.mxu0 0.0
  %2004 = vmatprep.subr.mxu0 0.0
  %2005 = vmatpush1.msra.mxu0 0.0
  %2006 = vmatprep.subr.mxu0 0.0
  %2007 = vmatpush1.msra.mxu0 0.0
  %2008 = vmatprep.subr.mxu0 0.0
  %2009 = vmatpush1.msra.mxu0 0.0
  %2010 = vmatprep.subr.mxu0 0.0
  %2011 = vmatpush1.msra.mxu0 0.0
  %2012 = vmatprep.subr.mxu0 0.0
  %2013 = vmatpush1.msra.mxu0 0.0
  %2014 = vmatprep.subr.mxu0 0.0
  %2015 = vmatpush1.msra.mxu0 0.0
  %2016 = vmatprep.subr.mxu0 0.0
  %2017 = vmatpush1.msra.mxu0 0.0
  %2018 = vmatprep.subr.mxu0 0.0
  %2019 = vmatpush1.msra.mxu0 0.0
  %2020 = vmatprep.subr.mxu0 0.0
  %2021 = vmatpush1.msra.mxu0 0.0
  %2022 = vmatprep.subr.mxu0 0.0
  %2023 = vmatpush1.msra.mxu0 0.0
  %2024 = vmatprep.subr.mxu0 0.0
  %2025 = vmatpush1.msra.mxu0 0.0
  %2026 = vmatprep.subr.mxu0 0.0
  %2027 = vmatpush1.msra.mxu0 0.0
  %2028 = vmatprep.subr.mxu0 0.0
  %2029 = vmatpush1.msra.mxu0 0.0
  %2030 = vmatprep.subr.mxu0 0.0
  %2031 = vmatpush1.msra.mxu0 0.0
  %2032 = vmatprep.subr.mxu0 0.0
  %2033 = vmatpush1.msra.mxu0 0.0
  %2034 = vmatprep.mubr.f32.mxu0 0.0
  %2035 = vmatmul.mubr.f32.gmra.mrb[0].mxu0 %v1010
  %v2036 = vpop.f32.mrb[0].mxu0
  %v2037 = vadd.f32 %v1470, %v2036
  %v2038 = vpop.f32.mrb[0].mxu0
  %v2039 = vadd.f32 %v1474, %v2038
  %2040 = vdwg.mxu0
  %2041 = vmatprep.subr.mxu0 %v1026
  %2042 = vmatpush1.msra.mxu0 %v1025
  %2043 = vmatprep.subr.mxu0 %v1051
  %2044 = vmatpush1.msra.mxu0 %v1050
  %2045 = vmatprep.subr.mxu0 %v1076
  %2046 = vmatpush1.msra.mxu0 %v1075
  %2047 = vmatprep.subr.mxu0 %v1101
  %2048 = vmatpush1.msra.mxu0 %v1100
  %2049 = vmatprep.subr.mxu0 %v1126
  %2050 = vmatpush1.msra.mxu0 %v1125
  %2051 = vmatprep.subr.mxu0 %v1151
  %2052 = vmatpush1.msra.mxu0 %v1150
  %2053 = vmatprep.subr.mxu0 %v1176
  %2054 = vmatpush1.msra.mxu0 %v1175
  %2055 = vmatprep.subr.mxu0 %v1201
  %2056 = vmatpush1.msra.mxu0 %v1200
  %2057 = vmatprep.subr.mxu0 %v1226
  %2058 = vmatpush1.msra.mxu0 %v1225
  %2059 = vmatprep.subr.mxu0 %v1251
  %2060 = vmatpush1.msra.mxu0 %v1250
  %2061 = vmatprep.subr.mxu0 %v1276
  %2062 = vmatpush1.msra.mxu0 %v1275
  %2063 = vmatprep.subr.mxu0 %v1301
  %2064 = vmatpush1.msra.mxu0 %v1300
  %2065 = vmatprep.subr.mxu0 %v1326
  %2066 = vmatpush1.msra.mxu0 %v1325
  %2067 = vmatprep.subr.mxu0 %v1351
  %2068 = vmatpush1.msra.mxu0 %v1350
  %2069 = vmatprep.subr.mxu0 %v1376
  %2070 = vmatpush1.msra.mxu0 %v1375
  %2071 = vmatprep.subr.mxu0 %v1401
  %2072 = vmatpush1.msra.mxu0 %v1400
  %2073 = vmatprep.subr.mxu0 0.0
  %2074 = vmatpush1.msra.mxu0 0.0
  %2075 = vmatprep.subr.mxu0 0.0
  %2076 = vmatpush1.msra.mxu0 0.0
  %2077 = vmatprep.subr.mxu0 0.0
  %2078 = vmatpush1.msra.mxu0 0.0
  %2079 = vmatprep.subr.mxu0 0.0
  %2080 = vmatpush1.msra.mxu0 0.0
  %2081 = vmatprep.subr.mxu0 0.0
  %2082 = vmatpush1.msra.mxu0 0.0
  %2083 = vmatprep.subr.mxu0 0.0
  %2084 = vmatpush1.msra.mxu0 0.0
  %2085 = vmatprep.subr.mxu0 0.0
  %2086 = vmatpush1.msra.mxu0 0.0
  %2087 = vmatprep.subr.mxu0 0.0
  %2088 = vmatpush1.msra.mxu0 0.0
  %2089 = vmatprep.subr.mxu0 0.0
  %2090 = vmatpush1.msra.mxu0 0.0
  %2091 = vmatprep.subr.mxu0 0.0
  %2092 = vmatpush1.msra.mxu0 0.0
  %2093 = vmatprep.subr.mxu0 0.0
  %2094 = vmatpush1.msra.mxu0 0.0
  %2095 = vmatprep.subr.mxu0 0.0
  %2096 = vmatpush1.msra.mxu0 0.0
  %2097 = vmatprep.subr.mxu0 0.0
  %2098 = vmatpush1.msra.mxu0 0.0
  %2099 = vmatprep.subr.mxu0 0.0
  %2100 = vmatpush1.msra.mxu0 0.0
  %2101 = vmatprep.subr.mxu0 0.0
  %2102 = vmatpush1.msra.mxu0 0.0
  %2103 = vmatprep.subr.mxu0 0.0
  %2104 = vmatpush1.msra.mxu0 0.0
  %2105 = vmatprep.mubr.f32.mxu0 0.0
  %2106 = vmatmul.mubr.f32.gmra.mrb[0].mxu0 %v1010
  %v2107 = vpop.f32.mrb[0].mxu0
  %v2108 = vadd.f32 %v1478, %v2107
  %v2109 = vpop.f32.mrb[0].mxu0
  %v2110 = vadd.f32 %v1482, %v2109
  %2111 = vdwg.mxu0
  %2112 = vmatprep.subr.mxu0 %v1028
  %2113 = vmatpush1.msra.mxu0 %v1027
  %2114 = vmatprep.subr.mxu0 %v1053
  %2115 = vmatpush1.msra.mxu0 %v1052
  %2116 = vmatprep.subr.mxu0 %v1078
  %2117 = vmatpush1.msra.mxu0 %v1077
  %2118 = vmatprep.subr.mxu0 %v1103
  %2119 = vmatpush1.msra.mxu0 %v1102
  %2120 = vmatprep.subr.mxu0 %v1128
  %2121 = vmatpush1.msra.mxu0 %v1127
  %2122 = vmatprep.subr.mxu0 %v1153
  %2123 = vmatpush1.msra.mxu0 %v1152
  %2124 = vmatprep.subr.mxu0 %v1178
  %2125 = vmatpush1.msra.mxu0 %v1177
  %2126 = vmatprep.subr.mxu0 %v1203
  %2127 = vmatpush1.msra.mxu0 %v1202
  %2128 = vmatprep.subr.mxu0 %v1228
  %2129 = vmatpush1.msra.mxu0 %v1227
  %2130 = vmatprep.subr.mxu0 %v1253
  %2131 = vmatpush1.msra.mxu0 %v1252
  %2132 = vmatprep.subr.mxu0 %v1278
  %2133 = vmatpush1.msra.mxu0 %v1277
  %2134 = vmatprep.subr.mxu0 %v1303
  %2135 = vmatpush1.msra.mxu0 %v1302
  %2136 = vmatprep.subr.mxu0 %v1328
  %2137 = vmatpush1.msra.mxu0 %v1327
  %2138 = vmatprep.subr.mxu0 %v1353
  %2139 = vmatpush1.msra.mxu0 %v1352
  %2140 = vmatprep.subr.mxu0 %v1378
  %2141 = vmatpush1.msra.mxu0 %v1377
  %2142 = vmatprep.subr.mxu0 %v1403
  %2143 = vmatpush1.msra.mxu0 %v1402
  %2144 = vmatprep.subr.mxu0 0.0
  %2145 = vmatpush1.msra.mxu0 0.0
  %2146 = vmatprep.subr.mxu0 0.0
  %2147 = vmatpush1.msra.mxu0 0.0
  %2148 = vmatprep.subr.mxu0 0.0
  %2149 = vmatpush1.msra.mxu0 0.0
  %2150 = vmatprep.subr.mxu0 0.0
  %2151 = vmatpush1.msra.mxu0 0.0
  %2152 = vmatprep.subr.mxu0 0.0
  %2153 = vmatpush1.msra.mxu0 0.0
  %2154 = vmatprep.subr.mxu0 0.0
  %2155 = vmatpush1.msra.mxu0 0.0
  %2156 = vmatprep.subr.mxu0 0.0
  %2157 = vmatpush1.msra.mxu0 0.0
  %2158 = vmatprep.subr.mxu0 0.0
  %2159 = vmatpush1.msra.mxu0 0.0
  %2160 = vmatprep.subr.mxu0 0.0
  %2161 = vmatpush1.msra.mxu0 0.0
  %2162 = vmatprep.subr.mxu0 0.0
  %2163 = vmatpush1.msra.mxu0 0.0
  %2164 = vmatprep.subr.mxu0 0.0
  %2165 = vmatpush1.msra.mxu0 0.0
  %2166 = vmatprep.subr.mxu0 0.0
  %2167 = vmatpush1.msra.mxu0 0.0
  %2168 = vmatprep.subr.mxu0 0.0
  %2169 = vmatpush1.msra.mxu0 0.0
  %2170 = vmatprep.subr.mxu0 0.0
  %2171 = vmatpush1.msra.mxu0 0.0
  %2172 = vmatprep.subr.mxu0 0.0
  %2173 = vmatpush1.msra.mxu0 0.0
  %2174 = vmatprep.subr.mxu0 0.0
  %2175 = vmatpush1.msra.mxu0 0.0
  %2176 = vmatprep.mubr.f32.mxu0 0.0
  %2177 = vmatmul.mubr.f32.gmra.mrb[0].mxu0 %v1010
  %v2178 = vpop.f32.mrb[0].mxu0
  %v2179 = vadd.f32 %v1486, %v2178
  %v2180 = vpop.f32.mrb[0].mxu0
  %v2181 = vadd.f32 %v1490, %v2180
  %2182 = vdwg.mxu0
  %2183 = vmatprep.subr.mxu0 %v1030
  %2184 = vmatpush1.msra.mxu0 %v1029
  %2185 = vmatprep.subr.mxu0 %v1055
  %2186 = vmatpush1.msra.mxu0 %v1054
  %2187 = vmatprep.subr.mxu0 %v1080
  %2188 = vmatpush1.msra.mxu0 %v1079
  %2189 = vmatprep.subr.mxu0 %v1105
  %2190 = vmatpush1.msra.mxu0 %v1104
  %2191 = vmatprep.subr.mxu0 %v1130
  %2192 = vmatpush1.msra.mxu0 %v1129
  %2193 = vmatprep.subr.mxu0 %v1155
  %2194 = vmatpush1.msra.mxu0 %v1154
  %2195 = vmatprep.subr.mxu0 %v1180
  %2196 = vmatpush1.msra.mxu0 %v1179
  %2197 = vmatprep.subr.mxu0 %v1205
  %2198 = vmatpush1.msra.mxu0 %v1204
  %2199 = vmatprep.subr.mxu0 %v1230
  %2200 = vmatpush1.msra.mxu0 %v1229
  %2201 = vmatprep.subr.mxu0 %v1255
  %2202 = vmatpush1.msra.mxu0 %v1254
  %2203 = vmatprep.subr.mxu0 %v1280
  %2204 = vmatpush1.msra.mxu0 %v1279
  %2205 = vmatprep.subr.mxu0 %v1305
  %2206 = vmatpush1.msra.mxu0 %v1304
  %2207 = vmatprep.subr.mxu0 %v1330
  %2208 = vmatpush1.msra.mxu0 %v1329
  %2209 = vmatprep.subr.mxu0 %v1355
  %2210 = vmatpush1.msra.mxu0 %v1354
  %2211 = vmatprep.subr.mxu0 %v1380
  %2212 = vmatpush1.msra.mxu0 %v1379
  %2213 = vmatprep.subr.mxu0 %v1405
  %2214 = vmatpush1.msra.mxu0 %v1404
  %2215 = vmatprep.subr.mxu0 0.0
  %2216 = vmatpush1.msra.mxu0 0.0
  %2217 = vmatprep.subr.mxu0 0.0
  %2218 = vmatpush1.msra.mxu0 0.0
  %2219 = vmatprep.subr.mxu0 0.0
  %2220 = vmatpush1.msra.mxu0 0.0
  %2221 = vmatprep.subr.mxu0 0.0
  %2222 = vmatpush1.msra.mxu0 0.0
  %2223 = vmatprep.subr.mxu0 0.0
  %2224 = vmatpush1.msra.mxu0 0.0
  %2225 = vmatprep.subr.mxu0 0.0
  %2226 = vmatpush1.msra.mxu0 0.0
  %2227 = vmatprep.subr.mxu0 0.0
  %2228 = vmatpush1.msra.mxu0 0.0
  %2229 = vmatprep.subr.mxu0 0.0
  %2230 = vmatpush1.msra.mxu0 0.0
  %2231 = vmatprep.subr.mxu0 0.0
  %2232 = vmatpush1.msra.mxu0 0.0
  %2233 = vmatprep.subr.mxu0 0.0
  %2234 = vmatpush1.msra.mxu0 0.0
  %2235 = vmatprep.subr.mxu0 0.0
  %2236 = vmatpush1.msra.mxu0 0.0
  %2237 = vmatprep.subr.mxu0 0.0
  %2238 = vmatpush1.msra.mxu0 0.0
  %2239 = vmatprep.subr.mxu0 0.0
  %2240 = vmatpush1.msra.mxu0 0.0
  %2241 = vmatprep.subr.mxu0 0.0
  %2242 = vmatpush1.msra.mxu0 0.0
  %2243 = vmatprep.subr.mxu0 0.0
  %2244 = vmatpush1.msra.mxu0 0.0
  %2245 = vmatprep.subr.mxu0 0.0
  %2246 = vmatpush1.msra.mxu0 0.0
  %2247 = vmatprep.mubr.f32.mxu0 0.0
  %2248 = vmatmul.mubr.f32.gmra.mrb[0].mxu0 %v1010
  %v2249 = vpop.f32.mrb[0].mxu0
  %v2250 = vadd.f32 %v1494, %v2249
  %v2251 = vpop.f32.mrb[0].mxu0
  %v2252 = vadd.f32 %v1498, %v2251
  %2253 = vdwg.mxu0
  %2254 = vmatprep.subr.mxu0 %v1032
  %2255 = vmatpush1.msra.mxu0 %v1031
  %2256 = vmatprep.subr.mxu0 %v1057
  %2257 = vmatpush1.msra.mxu0 %v1056
  %2258 = vmatprep.subr.mxu0 %v1082
  %2259 = vmatpush1.msra.mxu0 %v1081
  %2260 = vmatprep.subr.mxu0 %v1107
  %2261 = vmatpush1.msra.mxu0 %v1106
  %2262 = vmatprep.subr.mxu0 %v1132
  %2263 = vmatpush1.msra.mxu0 %v1131
  %2264 = vmatprep.subr.mxu0 %v1157
  %2265 = vmatpush1.msra.mxu0 %v1156
  %2266 = vmatprep.subr.mxu0 %v1182
  %2267 = vmatpush1.msra.mxu0 %v1181
  %2268 = vmatprep.subr.mxu0 %v1207
  %2269 = vmatpush1.msra.mxu0 %v1206
  %2270 = vmatprep.subr.mxu0 %v1232
  %2271 = vmatpush1.msra.mxu0 %v1231
  %2272 = vmatprep.subr.mxu0 %v1257
  %2273 = vmatpush1.msra.mxu0 %v1256
  %2274 = vmatprep.subr.mxu0 %v1282
  %2275 = vmatpush1.msra.mxu0 %v1281
  %2276 = vmatprep.subr.mxu0 %v1307
  %2277 = vmatpush1.msra.mxu0 %v1306
  %2278 = vmatprep.subr.mxu0 %v1332
  %2279 = vmatpush1.msra.mxu0 %v1331
  %2280 = vmatprep.subr.mxu0 %v1357
  %2281 = vmatpush1.msra.mxu0 %v1356
  %2282 = vmatprep.subr.mxu0 %v1382
  %2283 = vmatpush1.msra.mxu0 %v1381
  %2284 = vmatprep.subr.mxu0 %v1407
  %2285 = vmatpush1.msra.mxu0 %v1406
  %2286 = vmatprep.subr.mxu0 0.0
  %2287 = vmatpush1.msra.mxu0 0.0
  %2288 = vmatprep.subr.mxu0 0.0
  %2289 = vmatpush1.msra.mxu0 0.0
  %2290 = vmatprep.subr.mxu0 0.0
  %2291 = vmatpush1.msra.mxu0 0.0
  %2292 = vmatprep.subr.mxu0 0.0
  %2293 = vmatpush1.msra.mxu0 0.0
  %2294 = vmatprep.subr.mxu0 0.0
  %2295 = vmatpush1.msra.mxu0 0.0
  %2296 = vmatprep.subr.mxu0 0.0
  %2297 = vmatpush1.msra.mxu0 0.0
  %2298 = vmatprep.subr.mxu0 0.0
  %2299 = vmatpush1.msra.mxu0 0.0
  %2300 = vmatprep.subr.mxu0 0.0
  %2301 = vmatpush1.msra.mxu0 0.0
  %2302 = vmatprep.subr.mxu0 0.0
  %2303 = vmatpush1.msra.mxu0 0.0
  %2304 = vmatprep.subr.mxu0 0.0
  %2305 = vmatpush1.msra.mxu0 0.0
  %2306 = vmatprep.subr.mxu0 0.0
  %2307 = vmatpush1.msra.mxu0 0.0
  %2308 = vmatprep.subr.mxu0 0.0
  %2309 = vmatpush1.msra.mxu0 0.0
  %2310 = vmatprep.subr.mxu0 0.0
  %2311 = vmatpush1.msra.mxu0 0.0
  %2312 = vmatprep.subr.mxu0 0.0
  %2313 = vmatpush1.msra.mxu0 0.0
  %2314 = vmatprep.subr.mxu0 0.0
  %2315 = vmatpush1.msra.mxu0 0.0
  %2316 = vmatprep.subr.mxu0 0.0
  %2317 = vmatpush1.msra.mxu0 0.0
  %2318 = vmatprep.mubr.f32.mxu0 0.0
  %2319 = vmatmul.mubr.f32.gmra.mrb[0].mxu0 %v1010
  %v2320 = vpop.f32.mrb[0].mxu0
  %v2321 = vadd.f32 %v1502, %v2320
  %v2322 = vpop.f32.mrb[0].mxu0
  %v2323 = vadd.f32 %v1506, %v2322
  %2324 = vdwg.mxu0
  %2325 = vmatprep.subr.mxu0 %v1034
  %2326 = vmatpush1.msra.mxu0 %v1033
  %2327 = vmatprep.subr.mxu0 %v1059
  %2328 = vmatpush1.msra.mxu0 %v1058
  %2329 = vmatprep.subr.mxu0 %v1084
  %2330 = vmatpush1.msra.mxu0 %v1083
  %2331 = vmatprep.subr.mxu0 %v1109
  %2332 = vmatpush1.msra.mxu0 %v1108
  %2333 = vmatprep.subr.mxu0 %v1134
  %2334 = vmatpush1.msra.mxu0 %v1133
  %2335 = vmatprep.subr.mxu0 %v1159
  %2336 = vmatpush1.msra.mxu0 %v1158
  %2337 = vmatprep.subr.mxu0 %v1184
  %2338 = vmatpush1.msra.mxu0 %v1183
  %2339 = vmatprep.subr.mxu0 %v1209
  %2340 = vmatpush1.msra.mxu0 %v1208
  %2341 = vmatprep.subr.mxu0 %v1234
  %2342 = vmatpush1.msra.mxu0 %v1233
  %2343 = vmatprep.subr.mxu0 %v1259
  %2344 = vmatpush1.msra.mxu0 %v1258
  %2345 = vmatprep.subr.mxu0 %v1284
  %2346 = vmatpush1.msra.mxu0 %v1283
  %2347 = vmatprep.subr.mxu0 %v1309
  %2348 = vmatpush1.msra.mxu0 %v1308
  %2349 = vmatprep.subr.mxu0 %v1334
  %2350 = vmatpush1.msra.mxu0 %v1333
  %2351 = vmatprep.subr.mxu0 %v1359
  %2352 = vmatpush1.msra.mxu0 %v1358
  %2353 = vmatprep.subr.mxu0 %v1384
  %2354 = vmatpush1.msra.mxu0 %v1383
  %2355 = vmatprep.subr.mxu0 %v1409
  %2356 = vmatpush1.msra.mxu0 %v1408
  %2357 = vmatprep.subr.mxu0 0.0
  %2358 = vmatpush1.msra.mxu0 0.0
  %2359 = vmatprep.subr.mxu0 0.0
  %2360 = vmatpush1.msra.mxu0 0.0
  %2361 = vmatprep.subr.mxu0 0.0
  %2362 = vmatpush1.msra.mxu0 0.0
  %2363 = vmatprep.subr.mxu0 0.0
  %2364 = vmatpush1.msra.mxu0 0.0
  %2365 = vmatprep.subr.mxu0 0.0
  %2366 = vmatpush1.msra.mxu0 0.0
  %2367 = vmatprep.subr.mxu0 0.0
  %2368 = vmatpush1.msra.mxu0 0.0
  %2369 = vmatprep.subr.mxu0 0.0
  %2370 = vmatpush1.msra.mxu0 0.0
  %2371 = vmatprep.subr.mxu0 0.0
  %2372 = vmatpush1.msra.mxu0 0.0
  %2373 = vmatprep.subr.mxu0 0.0
  %2374 = vmatpush1.msra.mxu0 0.0
  %2375 = vmatprep.subr.mxu0 0.0
  %2376 = vmatpush1.msra.mxu0 0.0
  %2377 = vmatprep.subr.mxu0 0.0
  %2378 = vmatpush1.msra.mxu0 0.0
  %2379 = vmatprep.subr.mxu0 0.0
  %2380 = vmatpush1.msra.mxu0 0.0
  %2381 = vmatprep.subr.mxu0 0.0
  %2382 = vmatpush1.msra.mxu0 0.0
  %2383 = vmatprep.subr.mxu0 0.0
  %2384 = vmatpush1.msra.mxu0 0.0
  %2385 = vmatprep.subr.mxu0 0.0
  %2386 = vmatpush1.msra.mxu0 0.0
  %2387 = vmatprep.subr.mxu0 0.0
  %2388 = vmatpush1.msra.mxu0 0.0
  %2389 = vmatprep.mubr.f32.mxu0 0.0
  %2390 = vmatmul.mubr.f32.gmra.mrb[0].mxu0 %v1010
  %v2391 = vpop.f32.mrb[0].mxu0
  %v2392 = vadd.f32 %v1510, %v2391
  %v2393 = vpop.f32.mrb[0].mxu0
  %v2394 = vadd.f32 %v1514, %v2393
  %2395 = vdwg.mxu0
  %2396 = vmatprep.subr.mxu0 0.0
  %2397 = vmatpush1.msra.mxu0 %v1035
  %2398 = vmatprep.subr.mxu0 0.0
  %2399 = vmatpush1.msra.mxu0 %v1060
  %2400 = vmatprep.subr.mxu0 0.0
  %2401 = vmatpush1.msra.mxu0 %v1085
  %2402 = vmatprep.subr.mxu0 0.0
  %2403 = vmatpush1.msra.mxu0 %v1110
  %2404 = vmatprep.subr.mxu0 0.0
  %2405 = vmatpush1.msra.mxu0 %v1135
  %2406 = vmatprep.subr.mxu0 0.0
  %2407 = vmatpush1.msra.mxu0 %v1160
  %2408 = vmatprep.subr.mxu0 0.0
  %2409 = vmatpush1.msra.mxu0 %v1185
  %2410 = vmatprep.subr.mxu0 0.0
  %2411 = vmatpush1.msra.mxu0 %v1210
  %2412 = vmatprep.subr.mxu0 0.0
  %2413 = vmatpush1.msra.mxu0 %v1235
  %2414 = vmatprep.subr.mxu0 0.0
  %2415 = vmatpush1.msra.mxu0 %v1260
  %2416 = vmatprep.subr.mxu0 0.0
  %2417 = vmatpush1.msra.mxu0 %v1285
  %2418 = vmatprep.subr.mxu0 0.0
  %2419 = vmatpush1.msra.mxu0 %v1310
  %2420 = vmatprep.subr.mxu0 0.0
  %2421 = vmatpush1.msra.mxu0 %v1335
  %2422 = vmatprep.subr.mxu0 0.0
  %2423 = vmatpush1.msra.mxu0 %v1360
  %2424 = vmatprep.subr.mxu0 0.0
  %2425 = vmatpush1.msra.mxu0 %v1385
  %2426 = vmatprep.subr.mxu0 0.0
  %2427 = vmatpush1.msra.mxu0 %v1410
  %2428 = vmatprep.subr.mxu0 0.0
  %2429 = vmatpush1.msra.mxu0 0.0
  %2430 = vmatprep.subr.mxu0 0.0
  %2431 = vmatpush1.msra.mxu0 0.0
  %2432 = vmatprep.subr.mxu0 0.0
  %2433 = vmatpush1.msra.mxu0 0.0
  %2434 = vmatprep.subr.mxu0 0.0
  %2435 = vmatpush1.msra.mxu0 0.0
  %2436 = vmatprep.subr.mxu0 0.0
  %2437 = vmatpush1.msra.mxu0 0.0
  %2438 = vmatprep.subr.mxu0 0.0
  %2439 = vmatpush1.msra.mxu0 0.0
  %2440 = vmatprep.subr.mxu0 0.0
  %2441 = vmatpush1.msra.mxu0 0.0
  %2442 = vmatprep.subr.mxu0 0.0
  %2443 = vmatpush1.msra.mxu0 0.0
  %2444 = vmatprep.subr.mxu0 0.0
  %2445 = vmatpush1.msra.mxu0 0.0
  %2446 = vmatprep.subr.mxu0 0.0
  %2447 = vmatpush1.msra.mxu0 0.0
  %2448 = vmatprep.subr.mxu0 0.0
  %2449 = vmatpush1.msra.mxu0 0.0
  %2450 = vmatprep.subr.mxu0 0.0
  %2451 = vmatpush1.msra.mxu0 0.0
  %2452 = vmatprep.subr.mxu0 0.0
  %2453 = vmatpush1.msra.mxu0 0.0
  %2454 = vmatprep.subr.mxu0 0.0
  %2455 = vmatpush1.msra.mxu0 0.0
  %2456 = vmatprep.subr.mxu0 0.0
  %2457 = vmatpush1.msra.mxu0 0.0
  %2458 = vmatprep.subr.mxu0 0.0
  %2459 = vmatpush1.msra.mxu0 0.0
  %2460 = vmatprep.mubr.f32.mxu0 0.0
  %2461 = vmatmul.mubr.f32.gmra.mrb[0].mxu0 %v1010
  %v2462 = vpop.f32.mrb[0].mxu0
  %v2463 = vadd.f32 %v1518, %v2462
  %v2464 = vpop.f32.mrb[0].mxu0
  %2465 = vdwg.mxu0
  %vm2466 = vcmp.ge.f32.partialorder %v1611, 0.0
  %vm2467 = vcmp.ge.f32.partialorder %v1613, 0.0
  %vm2468 = vcmp.ge.f32.partialorder %v1682, 0.0
  %vm2469 = vcmp.ge.f32.partialorder %v1684, 0.0
  %vm2470 = vcmp.ge.f32.partialorder %v1753, 0.0
  %vm2471 = vcmp.ge.f32.partialorder %v1755, 0.0
  %vm2472 = vcmp.ge.f32.partialorder %v1824, 0.0
  %vm2473 = vcmp.ge.f32.partialorder %v1826, 0.0
  %vm2474 = vcmp.ge.f32.partialorder %v1895, 0.0
  %vm2475 = vcmp.ge.f32.partialorder %v1897, 0.0
  %vm2476 = vcmp.ge.f32.partialorder %v1966, 0.0
  %vm2477 = vcmp.ge.f32.partialorder %v1968, 0.0
  %vm2478 = vcmp.ge.f32.partialorder %v2037, 0.0
  %vm2479 = vcmp.ge.f32.partialorder %v2039, 0.0
  %vm2480 = vcmp.ge.f32.partialorder %v2108, 0.0
  %vm2481 = vcmp.ge.f32.partialorder %v2110, 0.0
  %vm2482 = vcmp.ge.f32.partialorder %v2179, 0.0
  %vm2483 = vcmp.ge.f32.partialorder %v2181, 0.0
  %vm2484 = vcmp.ge.f32.partialorder %v2250, 0.0
  %vm2485 = vcmp.ge.f32.partialorder %v2252, 0.0
  %vm2486 = vcmp.ge.f32.partialorder %v2321, 0.0
  %vm2487 = vcmp.ge.f32.partialorder %v2323, 0.0
  %vm2488 = vcmp.ge.f32.partialorder %v2392, 0.0
  %vm2489 = vcmp.ge.f32.partialorder %v2394, 0.0
  %vm2490 = vcmp.ge.f32.partialorder %v2463, 0.0
  %v2491 = vmul.f32 %v1611, 0.2
  %v2492 = vmul.f32 %v1613, 0.2
  %v2493 = vmul.f32 %v1682, 0.2
  %v2494 = vmul.f32 %v1684, 0.2
  %v2495 = vmul.f32 %v1753, 0.2
  %v2496 = vmul.f32 %v1755, 0.2
  %v2497 = vmul.f32 %v1824, 0.2
  %v2498 = vmul.f32 %v1826, 0.2
  %v2499 = vmul.f32 %v1895, 0.2
  %v2500 = vmul.f32 %v1897, 0.2
  %v2501 = vmul.f32 %v1966, 0.2
  %v2502 = vmul.f32 %v1968, 0.2
  %v2503 = vmul.f32 %v2037, 0.2
  %v2504 = vmul.f32 %v2039, 0.2
  %v2505 = vmul.f32 %v2108, 0.2
  %v2506 = vmul.f32 %v2110, 0.2
  %v2507 = vmul.f32 %v2179, 0.2
  %v2508 = vmul.f32 %v2181, 0.2
  %v2509 = vmul.f32 %v2250, 0.2
  %v2510 = vmul.f32 %v2252, 0.2
  %v2511 = vmul.f32 %v2321, 0.2
  %v2512 = vmul.f32 %v2323, 0.2
  %v2513 = vmul.f32 %v2392, 0.2
  %v2514 = vmul.f32 %v2394, 0.2
  %v2515 = vmul.f32 %v2463, 0.2
  %v2516 = vsel %vm2466, %v1611, %v2491
  %v2517 = vsel %vm2467, %v1613, %v2492
  %v2518 = vsel %vm2468, %v1682, %v2493
  %v2519 = vsel %vm2469, %v1684, %v2494
  %v2520 = vsel %vm2470, %v1753, %v2495
  %v2521 = vsel %vm2471, %v1755, %v2496
  %v2522 = vsel %vm2472, %v1824, %v2497
  %v2523 = vsel %vm2473, %v1826, %v2498
  %v2524 = vsel %vm2474, %v1895, %v2499
  %v2525 = vsel %vm2475, %v1897, %v2500
  %v2526 = vsel %vm2476, %v1966, %v2501
  %v2527 = vsel %vm2477, %v1968, %v2502
  %v2528 = vsel %vm2478, %v2037, %v2503
  %v2529 = vsel %vm2479, %v2039, %v2504
  %v2530 = vsel %vm2480, %v2108, %v2505
  %v2531 = vsel %vm2481, %v2110, %v2506
  %v2532 = vsel %vm2482, %v2179, %v2507
  %v2533 = vsel %vm2483, %v2181, %v2508
  %v2534 = vsel %vm2484, %v2250, %v2509
  %v2535 = vsel %vm2485, %v2252, %v2510
  %v2536 = vsel %vm2486, %v2321, %v2511
  %v2537 = vsel %vm2487, %v2323, %v2512
  %v2538 = vsel %vm2488, %v2392, %v2513
  %v2539 = vsel %vm2489, %v2394, %v2514
  %v2540 = vsel %vm2490, %v2463, %v2515
  %2541 = vst [vmem:[#allocation2] sm:$0xff] %v2516
  %2542 = vst [vmem:[#allocation2 + $0x8] sm:$0xff] %v2517
  %2543 = vst [vmem:[#allocation2 + $0x10] sm:$0xff] %v2518
  %2544 = vst [vmem:[#allocation2 + $0x18] sm:$0xff] %v2519
  %2545 = vst [vmem:[#allocation2 + $0x20] sm:$0xff] %v2520
  %2546 = vst [vmem:[#allocation2 + $0x28] sm:$0xff] %v2521
  %2547 = vst [vmem:[#allocation2 + $0x30] sm:$0xff] %v2522
  %2548 = vst [vmem:[#allocation2 + $0x38] sm:$0xff] %v2523
  %2549 = vst [vmem:[#allocation2 + $0x40] sm:$0xff] %v2524
  %2550 = vst [vmem:[#allocation2 + $0x48] sm:$0xff] %v2525
  %2551 = vst [vmem:[#allocation2 + $0x50] sm:$0xff] %v2526
  %2552 = vst [vmem:[#allocation2 + $0x58] sm:$0xff] %v2527
  %2553 = vst [vmem:[#allocation2 + $0x60] sm:$0xff] %v2528
  %2554 = vst [vmem:[#allocation2 + $0x68] sm:$0xff] %v2529
  %2555 = vst [vmem:[#allocation2 + $0x70] sm:$0xff] %v2530
  %2556 = vst [vmem:[#allocation2 + $0x78] sm:$0xff] %v2531
  %2557 = vst [vmem:[#allocation2 + $0x80] sm:$0xff] %v2532
  %2558 = vst [vmem:[#allocation2 + $0x88] sm:$0xff] %v2533
  %2559 = vst [vmem:[#allocation2 + $0x90] sm:$0xff] %v2534
  %2560 = vst [vmem:[#allocation2 + $0x98] sm:$0xff] %v2535
  %2561 = vst [vmem:[#allocation2 + $0xa0] sm:$0xff] %v2536
  %2562 = vst [vmem:[#allocation2 + $0xa8] sm:$0xff] %v2537
  %2563 = vst [vmem:[#allocation2 + $0xb0] sm:$0xff] %v2538
  %2564 = vst [vmem:[#allocation2 + $0xb8] sm:$0xff] %v2539
  %vm2565 = vcmask 523264
  %2566 = vst.msk [vmem:[#allocation2 + $0xc0] sm:$0xff] %vm2565, %v2540
  %2567 = vst.msk [vmem:[#allocation3] sm:$0xff] %vm2565, 0.0
  %2568 = vst.msk [vmem:[#allocation3 + $0x8] sm:$0xff] %vm2565, 0.0
  %2569 = vst.msk [vmem:[#allocation3 + $0x10] sm:$0xff] %vm2565, 0.0
  %2570 = vst.msk [vmem:[#allocation3 + $0x18] sm:$0xff] %vm2565, 0.0
  %2571 = vst.msk [vmem:[#allocation3 + $0x20] sm:$0xff] %vm2565, 0.0
  %2572 = vst.msk [vmem:[#allocation3 + $0x28] sm:$0xff] %vm2565, 0.0
  %2573 = vst.msk [vmem:[#allocation3 + $0x30] sm:$0xff] %vm2565, 0.0
  %2574 = vst.msk [vmem:[#allocation3 + $0x38] sm:$0xff] %vm2565, 0.0
  %2575 = vst.msk [vmem:[#allocation3 + $0x1c8] sm:$0xff] %vm2565, 0.0
  %2576 = vst.msk [vmem:[#allocation3 + $0x1d0] sm:$0xff] %vm2565, 0.0
  %2577 = vst.msk [vmem:[#allocation3 + $0x1d8] sm:$0xff] %vm2565, 0.0
  %2578 = vst.msk [vmem:[#allocation3 + $0x1e0] sm:$0xff] %vm2565, 0.0
  %2579 = vst.msk [vmem:[#allocation3 + $0x1e8] sm:$0xff] %vm2565, 0.0
  %2580 = vst.msk [vmem:[#allocation3 + $0x1f0] sm:$0xff] %vm2565, 0.0
  %2581 = vst.msk [vmem:[#allocation3 + $0x1f8] sm:$0xff] %vm2565, 0.0
  %2582 = vst.msk [vmem:[#allocation3 + $0x200] sm:$0xff] %vm2565, 0.0
  %v2583 = vld [vmem:[#allocation2] sm:$0xff]
  %2584 = vst.msk [vmem:[#allocation3 + $0x40] sm:$0xff] %vm2565, %v2583
  %v2585 = vld [vmem:[#allocation2] sm:$0xff]
  %2587 = vrot.lane.b32.xlu0 %v2585, 64
  %v2588 = vpop.permute.xlu0 %2587
  %2590 = vst.msk [vmem:[#allocation3 + $0x48] sm:$0xff] %vm2565, %v2588
  %v2591 = vld [vmem:[#allocation2 + $0x8] sm:$0xff]
  %2592 = vst.msk [vmem:[#allocation3 + $0x50] sm:$0xff] %vm2565, %v2591
  %v2593 = vld [vmem:[#allocation2 + $0x8] sm:$0xff]
  %2595 = vrot.lane.b32.xlu0 %v2593, 64
  %v2596 = vpop.permute.xlu0 %2595
  %2598 = vst.msk [vmem:[#allocation3 + $0x58] sm:$0xff] %vm2565, %v2596
  %v2599 = vld [vmem:[#allocation2 + $0x10] sm:$0xff]
  %2600 = vst.msk [vmem:[#allocation3 + $0x60] sm:$0xff] %vm2565, %v2599
  %v2601 = vld [vmem:[#allocation2 + $0x10] sm:$0xff]
  %2603 = vrot.lane.b32.xlu0 %v2601, 64
  %v2604 = vpop.permute.xlu0 %2603
  %2606 = vst.msk [vmem:[#allocation3 + $0x68] sm:$0xff] %vm2565, %v2604
  %v2607 = vld [vmem:[#allocation2 + $0x18] sm:$0xff]
  %2608 = vst.msk [vmem:[#allocation3 + $0x70] sm:$0xff] %vm2565, %v2607
  %v2609 = vld [vmem:[#allocation2 + $0x18] sm:$0xff]
  %2611 = vrot.lane.b32.xlu0 %v2609, 64
  %v2612 = vpop.permute.xlu0 %2611
  %2614 = vst.msk [vmem:[#allocation3 + $0x78] sm:$0xff] %vm2565, %v2612
  %v2615 = vld [vmem:[#allocation2 + $0x20] sm:$0xff]
  %2616 = vst.msk [vmem:[#allocation3 + $0x80] sm:$0xff] %vm2565, %v2615
  %v2617 = vld [vmem:[#allocation2 + $0x20] sm:$0xff]
  %2619 = vrot.lane.b32.xlu0 %v2617, 64
  %v2620 = vpop.permute.xlu0 %2619
  %2622 = vst.msk [vmem:[#allocation3 + $0x88] sm:$0xff] %vm2565, %v2620
  %v2623 = vld [vmem:[#allocation2 + $0x28] sm:$0xff]
  %2624 = vst.msk [vmem:[#allocation3 + $0x90] sm:$0xff] %vm2565, %v2623
  %v2625 = vld [vmem:[#allocation2 + $0x28] sm:$0xff]
  %2627 = vrot.lane.b32.xlu0 %v2625, 64
  %v2628 = vpop.permute.xlu0 %2627
  %2630 = vst.msk [vmem:[#allocation3 + $0x98] sm:$0xff] %vm2565, %v2628
  %v2631 = vld [vmem:[#allocation2 + $0x30] sm:$0xff]
  %2632 = vst.msk [vmem:[#allocation3 + $0xa0] sm:$0xff] %vm2565, %v2631
  %v2633 = vld [vmem:[#allocation2 + $0x30] sm:$0xff]
  %2635 = vrot.lane.b32.xlu0 %v2633, 64
  %v2636 = vpop.permute.xlu0 %2635
  %2638 = vst.msk [vmem:[#allocation3 + $0xa8] sm:$0xff] %vm2565, %v2636
  %v2639 = vld [vmem:[#allocation2 + $0x38] sm:$0xff]
  %2640 = vst.msk [vmem:[#allocation3 + $0xb0] sm:$0xff] %vm2565, %v2639
  %v2641 = vld [vmem:[#allocation2 + $0x38] sm:$0xff]
  %2643 = vrot.lane.b32.xlu0 %v2641, 64
  %v2644 = vpop.permute.xlu0 %2643
  %2646 = vst.msk [vmem:[#allocation3 + $0xb8] sm:$0xff] %vm2565, %v2644
  %v2647 = vld [vmem:[#allocation2 + $0x40] sm:$0xff]
  %2648 = vst.msk [vmem:[#allocation3 + $0xc0] sm:$0xff] %vm2565, %v2647
  %v2649 = vld [vmem:[#allocation2 + $0x40] sm:$0xff]
  %2651 = vrot.lane.b32.xlu0 %v2649, 64
  %v2652 = vpop.permute.xlu0 %2651
  %2654 = vst.msk [vmem:[#allocation3 + $0xc8] sm:$0xff] %vm2565, %v2652
  %v2655 = vld [vmem:[#allocation2 + $0x48] sm:$0xff]
  %2656 = vst.msk [vmem:[#allocation3 + $0xd0] sm:$0xff] %vm2565, %v2655
  %v2657 = vld [vmem:[#allocation2 + $0x48] sm:$0xff]
  %2659 = vrot.lane.b32.xlu0 %v2657, 64
  %v2660 = vpop.permute.xlu0 %2659
  %2662 = vst.msk [vmem:[#allocation3 + $0xd8] sm:$0xff] %vm2565, %v2660
  %v2663 = vld [vmem:[#allocation2 + $0x50] sm:$0xff]
  %2664 = vst.msk [vmem:[#allocation3 + $0xe0] sm:$0xff] %vm2565, %v2663
  %v2665 = vld [vmem:[#allocation2 + $0x50] sm:$0xff]
  %2667 = vrot.lane.b32.xlu0 %v2665, 64
  %v2668 = vpop.permute.xlu0 %2667
  %2670 = vst.msk [vmem:[#allocation3 + $0xe8] sm:$0xff] %vm2565, %v2668
  %v2671 = vld [vmem:[#allocation2 + $0x58] sm:$0xff]
  %2672 = vst.msk [vmem:[#allocation3 + $0xf0] sm:$0xff] %vm2565, %v2671
  %v2673 = vld [vmem:[#allocation2 + $0x58] sm:$0xff]
  %2675 = vrot.lane.b32.xlu0 %v2673, 64
  %v2676 = vpop.permute.xlu0 %2675
  %2678 = vst.msk [vmem:[#allocation3 + $0xf8] sm:$0xff] %vm2565, %v2676
  %v2679 = vld [vmem:[#allocation2 + $0x60] sm:$0xff]
  %2680 = vst.msk [vmem:[#allocation3 + $0x100] sm:$0xff] %vm2565, %v2679
  %v2681 = vld [vmem:[#allocation2 + $0x60] sm:$0xff]
  %2683 = vrot.lane.b32.xlu0 %v2681, 64
  %v2684 = vpop.permute.xlu0 %2683
  %2686 = vst.msk [vmem:[#allocation3 + $0x108] sm:$0xff] %vm2565, %v2684
  %v2687 = vld [vmem:[#allocation2 + $0x68] sm:$0xff]
  %2688 = vst.msk [vmem:[#allocation3 + $0x110] sm:$0xff] %vm2565, %v2687
  %v2689 = vld [vmem:[#allocation2 + $0x68] sm:$0xff]
  %2691 = vrot.lane.b32.xlu0 %v2689, 64
  %v2692 = vpop.permute.xlu0 %2691
  %2694 = vst.msk [vmem:[#allocation3 + $0x118] sm:$0xff] %vm2565, %v2692
  %v2695 = vld [vmem:[#allocation2 + $0x70] sm:$0xff]
  %2696 = vst.msk [vmem:[#allocation3 + $0x120] sm:$0xff] %vm2565, %v2695
  %v2697 = vld [vmem:[#allocation2 + $0x70] sm:$0xff]
  %2699 = vrot.lane.b32.xlu0 %v2697, 64
  %v2700 = vpop.permute.xlu0 %2699
  %2702 = vst.msk [vmem:[#allocation3 + $0x128] sm:$0xff] %vm2565, %v2700
  %v2703 = vld [vmem:[#allocation2 + $0x78] sm:$0xff]
  %2704 = vst.msk [vmem:[#allocation3 + $0x130] sm:$0xff] %vm2565, %v2703
  %v2705 = vld [vmem:[#allocation2 + $0x78] sm:$0xff]
  %2707 = vrot.lane.b32.xlu0 %v2705, 64
  %v2708 = vpop.permute.xlu0 %2707
  %2710 = vst.msk [vmem:[#allocation3 + $0x138] sm:$0xff] %vm2565, %v2708
  %v2711 = vld [vmem:[#allocation2 + $0x80] sm:$0xff]
  %2712 = vst.msk [vmem:[#allocation3 + $0x140] sm:$0xff] %vm2565, %v2711
  %v2713 = vld [vmem:[#allocation2 + $0x80] sm:$0xff]
  %2715 = vrot.lane.b32.xlu0 %v2713, 64
  %v2716 = vpop.permute.xlu0 %2715
  %2718 = vst.msk [vmem:[#allocation3 + $0x148] sm:$0xff] %vm2565, %v2716
  %v2719 = vld [vmem:[#allocation2 + $0x88] sm:$0xff]
  %2720 = vst.msk [vmem:[#allocation3 + $0x150] sm:$0xff] %vm2565, %v2719
  %v2721 = vld [vmem:[#allocation2 + $0x88] sm:$0xff]
  %2723 = vrot.lane.b32.xlu0 %v2721, 64
  %v2724 = vpop.permute.xlu0 %2723
  %2726 = vst.msk [vmem:[#allocation3 + $0x158] sm:$0xff] %vm2565, %v2724
  %v2727 = vld [vmem:[#allocation2 + $0x90] sm:$0xff]
  %2728 = vst.msk [vmem:[#allocation3 + $0x160] sm:$0xff] %vm2565, %v2727
  %v2729 = vld [vmem:[#allocation2 + $0x90] sm:$0xff]
  %2731 = vrot.lane.b32.xlu0 %v2729, 64
  %v2732 = vpop.permute.xlu0 %2731
  %2734 = vst.msk [vmem:[#allocation3 + $0x168] sm:$0xff] %vm2565, %v2732
  %v2735 = vld [vmem:[#allocation2 + $0x98] sm:$0xff]
  %2736 = vst.msk [vmem:[#allocation3 + $0x170] sm:$0xff] %vm2565, %v2735
  %v2737 = vld [vmem:[#allocation2 + $0x98] sm:$0xff]
  %2739 = vrot.lane.b32.xlu0 %v2737, 64
  %v2740 = vpop.permute.xlu0 %2739
  %2742 = vst.msk [vmem:[#allocation3 + $0x178] sm:$0xff] %vm2565, %v2740
  %v2743 = vld [vmem:[#allocation2 + $0xa0] sm:$0xff]
  %2744 = vst.msk [vmem:[#allocation3 + $0x180] sm:$0xff] %vm2565, %v2743
  %v2745 = vld [vmem:[#allocation2 + $0xa0] sm:$0xff]
  %2747 = vrot.lane.b32.xlu0 %v2745, 64
  %v2748 = vpop.permute.xlu0 %2747
  %2750 = vst.msk [vmem:[#allocation3 + $0x188] sm:$0xff] %vm2565, %v2748
  %v2751 = vld [vmem:[#allocation2 + $0xa8] sm:$0xff]
  %2752 = vst.msk [vmem:[#allocation3 + $0x190] sm:$0xff] %vm2565, %v2751
  %v2753 = vld [vmem:[#allocation2 + $0xa8] sm:$0xff]
  %2755 = vrot.lane.b32.xlu0 %v2753, 64
  %v2756 = vpop.permute.xlu0 %2755
  %2758 = vst.msk [vmem:[#allocation3 + $0x198] sm:$0xff] %vm2565, %v2756
  %v2759 = vld [vmem:[#allocation2 + $0xb0] sm:$0xff]
  %2760 = vst.msk [vmem:[#allocation3 + $0x1a0] sm:$0xff] %vm2565, %v2759
  %v2761 = vld [vmem:[#allocation2 + $0xb0] sm:$0xff]
  %2763 = vrot.lane.b32.xlu0 %v2761, 64
  %v2764 = vpop.permute.xlu0 %2763
  %2766 = vst.msk [vmem:[#allocation3 + $0x1a8] sm:$0xff] %vm2565, %v2764
  %v2767 = vld [vmem:[#allocation2 + $0xb8] sm:$0xff]
  %2768 = vst.msk [vmem:[#allocation3 + $0x1b0] sm:$0xff] %vm2565, %v2767
  %v2769 = vld [vmem:[#allocation2 + $0xb8] sm:$0xff]
  %2771 = vrot.lane.b32.xlu0 %v2769, 64
  %v2772 = vpop.permute.xlu0 %2771
  %2774 = vst.msk [vmem:[#allocation3 + $0x1b8] sm:$0xff] %vm2565, %v2772
  %v2775 = vld [vmem:[#allocation2 + $0xc0] sm:$0xff]
  %2776 = vst.msk [vmem:[#allocation3 + $0x1c0] sm:$0xff] %vm2565, %v2775
  %v2777 = vld [vmem:[#allocation3] sm:$0xff]
  %v2778 = vld [vmem:[#allocation3 + $0x8] sm:$0xff]
  %v2779 = vld [vmem:[#allocation3 + $0x10] sm:$0xff]
  %v2780 = vld [vmem:[#allocation3 + $0x18] sm:$0xff]
  %v2781 = vld [vmem:[#allocation3 + $0x20] sm:$0xff]
  %v2782 = vld [vmem:[#allocation3 + $0x28] sm:$0xff]
  %v2783 = vld [vmem:[#allocation3 + $0x30] sm:$0xff]
  %v2784 = vld [vmem:[#allocation3 + $0x38] sm:$0xff]
  %v2785 = vld [vmem:[#allocation3 + $0x40] sm:$0xff]
  %v2786 = vld [vmem:[#allocation3 + $0x48] sm:$0xff]
  %v2787 = vld [vmem:[#allocation3 + $0x50] sm:$0xff]
  %v2788 = vld [vmem:[#allocation3 + $0x58] sm:$0xff]
  %v2789 = vld [vmem:[#allocation3 + $0x60] sm:$0xff]
  %v2790 = vld [vmem:[#allocation3 + $0x68] sm:$0xff]
  %v2791 = vld [vmem:[#allocation3 + $0x70] sm:$0xff]
  %v2792 = vld [vmem:[#allocation3 + $0x78] sm:$0xff]
  %v2793 = vld [vmem:[#allocation3 + $0x80] sm:$0xff]
  %v2794 = vld [vmem:[#allocation3 + $0x88] sm:$0xff]
  %v2795 = vld [vmem:[#allocation3 + $0x90] sm:$0xff]
  %v2796 = vld [vmem:[#allocation3 + $0x98] sm:$0xff]
  %v2797 = vld [vmem:[#allocation3 + $0xa0] sm:$0xff]
  %v2798 = vld [vmem:[#allocation3 + $0xa8] sm:$0xff]
  %v2799 = vld [vmem:[#allocation3 + $0xb0] sm:$0xff]
  %v2800 = vld [vmem:[#allocation3 + $0xb8] sm:$0xff]
  %v2801 = vld [vmem:[#allocation3 + $0xc0] sm:$0xff]
  %v2802 = vld [vmem:[#allocation3 + $0xc8] sm:$0xff]
  %v2803 = vld [vmem:[#allocation3 + $0xd0] sm:$0xff]
  %v2804 = vld [vmem:[#allocation3 + $0xd8] sm:$0xff]
  %v2805 = vld [vmem:[#allocation3 + $0xe0] sm:$0xff]
  %v2806 = vld [vmem:[#allocation3 + $0xe8] sm:$0xff]
  %v2807 = vld [vmem:[#allocation3 + $0xf0] sm:$0xff]
  %v2808 = vld [vmem:[#allocation3 + $0xf8] sm:$0xff]
  %v2809 = vld [vmem:[#allocation3 + $0x100] sm:$0xff]
  %v2810 = vld [vmem:[#allocation3 + $0x108] sm:$0xff]
  %v2811 = vld [vmem:[#allocation3 + $0x110] sm:$0xff]
  %v2812 = vld [vmem:[#allocation3 + $0x118] sm:$0xff]
  %v2813 = vld [vmem:[#allocation3 + $0x120] sm:$0xff]
  %v2814 = vld [vmem:[#allocation3 + $0x128] sm:$0xff]
  %v2815 = vld [vmem:[#allocation3 + $0x130] sm:$0xff]
  %v2816 = vld [vmem:[#allocation3 + $0x138] sm:$0xff]
  %v2817 = vld [vmem:[#allocation3 + $0x140] sm:$0xff]
  %v2818 = vld [vmem:[#allocation3 + $0x148] sm:$0xff]
  %v2819 = vld [vmem:[#allocation3 + $0x150] sm:$0xff]
  %v2820 = vld [vmem:[#allocation3 + $0x158] sm:$0xff]
  %v2821 = vld [vmem:[#allocation3 + $0x160] sm:$0xff]
  %v2822 = vld [vmem:[#allocation3 + $0x168] sm:$0xff]
  %v2823 = vld [vmem:[#allocation3 + $0x170] sm:$0xff]
  %v2824 = vld [vmem:[#allocation3 + $0x178] sm:$0xff]
  %v2825 = vld [vmem:[#allocation3 + $0x180] sm:$0xff]
  %v2826 = vmul.f32 %v2777, %v811
  %v2827 = vmul.f32 %v2778, %v812
  %v2828 = vmul.f32 %v2779, %v813
  %v2829 = vmul.f32 %v2780, %v814
  %v2830 = vmul.f32 %v2781, %v815
  %v2831 = vmul.f32 %v2782, %v816
  %v2832 = vmul.f32 %v2783, %v817
  %v2833 = vmul.f32 %v2784, %v818
  %v2834 = vmul.f32 %v2785, %v819
  %v2835 = vmul.f32 %v2786, %v820
  %v2836 = vmul.f32 %v2787, %v821
  %v2837 = vmul.f32 %v2788, %v822
  %v2838 = vmul.f32 %v2789, %v823
  %v2839 = vmul.f32 %v2790, %v824
  %v2840 = vmul.f32 %v2791, %v825
  %v2841 = vmul.f32 %v2792, %v826
  %v2842 = vmul.f32 %v2793, %v827
  %v2843 = vmul.f32 %v2794, %v828
  %v2844 = vmul.f32 %v2795, %v829
  %v2845 = vmul.f32 %v2796, %v830
  %v2846 = vmul.f32 %v2797, %v831
  %v2847 = vmul.f32 %v2798, %v832
  %v2848 = vmul.f32 %v2799, %v833
  %v2849 = vmul.f32 %v2800, %v834
  %v2850 = vmul.f32 %v2801, %v835
  %v2851 = vmul.f32 %v2802, %v836
  %v2852 = vmul.f32 %v2803, %v837
  %v2853 = vmul.f32 %v2804, %v838
  %v2854 = vmul.f32 %v2805, %v839
  %v2855 = vmul.f32 %v2806, %v840
  %v2856 = vmul.f32 %v2807, %v841
  %v2857 = vmul.f32 %v2808, %v842
  %v2858 = vmul.f32 %v2809, %v843
  %v2859 = vmul.f32 %v2810, %v844
  %v2860 = vmul.f32 %v2811, %v845
  %v2861 = vmul.f32 %v2812, %v846
  %v2862 = vmul.f32 %v2813, %v847
  %v2863 = vmul.f32 %v2814, %v848
  %v2864 = vmul.f32 %v2815, %v849
  %v2865 = vmul.f32 %v2816, %v850
  %v2866 = vmul.f32 %v2817, %v851
  %v2867 = vmul.f32 %v2818, %v852
  %v2868 = vmul.f32 %v2819, %v853
  %v2869 = vmul.f32 %v2820, %v854
  %v2870 = vmul.f32 %v2821, %v855
  %v2871 = vmul.f32 %v2822, %v856
  %v2872 = vmul.f32 %v2823, %v857
  %v2873 = vmul.f32 %v2824, %v858
  %v2874 = vmul.f32 %v2825, %v859
  %2875 = vst.msk [vmem:[#allocation4] sm:$0xff] %vm2565, %v2826
  %2876 = vst.msk [vmem:[#allocation4 + $0x28] sm:$0xff] %vm2565, %v2827
  %2877 = vst.msk [vmem:[#allocation4 + $0x50] sm:$0xff] %vm2565, %v2828
  %2878 = vst.msk [vmem:[#allocation4 + $0x78] sm:$0xff] %vm2565, %v2829
  %2879 = vst.msk [vmem:[#allocation4 + $0xa0] sm:$0xff] %vm2565, %v2830
  %2880 = vst.msk [vmem:[#allocation4 + $0xc8] sm:$0xff] %vm2565, %v2831
  %2881 = vst.msk [vmem:[#allocation4 + $0xf0] sm:$0xff] %vm2565, %v2832
  %2882 = vst.msk [vmem:[#allocation4 + $0x118] sm:$0xff] %vm2565, %v2833
  %2883 = vst.msk [vmem:[#allocation4 + $0x140] sm:$0xff] %vm2565, %v2834
  %2884 = vst.msk [vmem:[#allocation4 + $0x168] sm:$0xff] %vm2565, %v2835
  %2885 = vst.msk [vmem:[#allocation4 + $0x190] sm:$0xff] %vm2565, %v2836
  %2886 = vst.msk [vmem:[#allocation4 + $0x1b8] sm:$0xff] %vm2565, %v2837
  %2887 = vst.msk [vmem:[#allocation4 + $0x1e0] sm:$0xff] %vm2565, %v2838
  %2888 = vst.msk [vmem:[#allocation4 + $0x208] sm:$0xff] %vm2565, %v2839
  %2889 = vst.msk [vmem:[#allocation4 + $0x230] sm:$0xff] %vm2565, %v2840
  %2890 = vst.msk [vmem:[#allocation4 + $0x258] sm:$0xff] %vm2565, %v2841
  %2891 = vst.msk [vmem:[#allocation4 + $0x280] sm:$0xff] %vm2565, %v2842
  %2892 = vst.msk [vmem:[#allocation4 + $0x2a8] sm:$0xff] %vm2565, %v2843
  %2893 = vst.msk [vmem:[#allocation4 + $0x2d0] sm:$0xff] %vm2565, %v2844
  %2894 = vst.msk [vmem:[#allocation4 + $0x2f8] sm:$0xff] %vm2565, %v2845
  %2895 = vst.msk [vmem:[#allocation4 + $0x320] sm:$0xff] %vm2565, %v2846
  %2896 = vst.msk [vmem:[#allocation4 + $0x348] sm:$0xff] %vm2565, %v2847
  %2897 = vst.msk [vmem:[#allocation4 + $0x370] sm:$0xff] %vm2565, %v2848
  %2898 = vst.msk [vmem:[#allocation4 + $0x398] sm:$0xff] %vm2565, %v2849
  %2899 = vst.msk [vmem:[#allocation4 + $0x3c0] sm:$0xff] %vm2565, %v2850
  %2900 = vst.msk [vmem:[#allocation4 + $0x3e8] sm:$0xff] %vm2565, %v2851
  %2901 = vst.msk [vmem:[#allocation4 + $0x410] sm:$0xff] %vm2565, %v2852
  %2902 = vst.msk [vmem:[#allocation4 + $0x438] sm:$0xff] %vm2565, %v2853
  %2903 = vst.msk [vmem:[#allocation4 + $0x460] sm:$0xff] %vm2565, %v2854
  %2904 = vst.msk [vmem:[#allocation4 + $0x488] sm:$0xff] %vm2565, %v2855
  %2905 = vst.msk [vmem:[#allocation4 + $0x4b0] sm:$0xff] %vm2565, %v2856
  %2906 = vst.msk [vmem:[#allocation4 + $0x4d8] sm:$0xff] %vm2565, %v2857
  %2907 = vst.msk [vmem:[#allocation4 + $0x500] sm:$0xff] %vm2565, %v2858
  %2908 = vst.msk [vmem:[#allocation4 + $0x528] sm:$0xff] %vm2565, %v2859
  %2909 = vst.msk [vmem:[#allocation4 + $0x550] sm:$0xff] %vm2565, %v2860
  %2910 = vst.msk [vmem:[#allocation4 + $0x578] sm:$0xff] %vm2565, %v2861
  %2911 = vst.msk [vmem:[#allocation4 + $0x5a0] sm:$0xff] %vm2565, %v2862
  %2912 = vst.msk [vmem:[#allocation4 + $0x5c8] sm:$0xff] %vm2565, %v2863
  %2913 = vst.msk [vmem:[#allocation4 + $0x5f0] sm:$0xff] %vm2565, %v2864
  %2914 = vst.msk [vmem:[#allocation4 + $0x618] sm:$0xff] %vm2565, %v2865
  %2915 = vst.msk [vmem:[#allocation4 + $0x640] sm:$0xff] %vm2565, %v2866
  %2916 = vst.msk [vmem:[#allocation4 + $0x668] sm:$0xff] %vm2565, %v2867
  %2917 = vst.msk [vmem:[#allocation4 + $0x690] sm:$0xff] %vm2565, %v2868
  %2918 = vst.msk [vmem:[#allocation4 + $0x6b8] sm:$0xff] %vm2565, %v2869
  %2919 = vst.msk [vmem:[#allocation4 + $0x6e0] sm:$0xff] %vm2565, %v2870
  %2920 = vst.msk [vmem:[#allocation4 + $0x708] sm:$0xff] %vm2565, %v2871
  %2921 = vst.msk [vmem:[#allocation4 + $0x730] sm:$0xff] %vm2565, %v2872
  %2922 = vst.msk [vmem:[#allocation4 + $0x758] sm:$0xff] %vm2565, %v2873
  %2923 = vst.msk [vmem:[#allocation4 + $0x780] sm:$0xff] %vm2565, %v2874
  %v2924 = vld [vmem:[#allocation3 + $0x8] sm:$0xff]
  %v2925 = vld [vmem:[#allocation3 + $0x10] sm:$0xff]
  %v2926 = vld [vmem:[#allocation3 + $0x18] sm:$0xff]
  %v2927 = vld [vmem:[#allocation3 + $0x20] sm:$0xff]
  %v2928 = vld [vmem:[#allocation3 + $0x28] sm:$0xff]
  %v2929 = vld [vmem:[#allocation3 + $0x30] sm:$0xff]
  %v2930 = vld [vmem:[#allocation3 + $0x38] sm:$0xff]
  %v2931 = vld [vmem:[#allocation3 + $0x40] sm:$0xff]
  %v2932 = vld [vmem:[#allocation3 + $0x48] sm:$0xff]
  %v2933 = vld [vmem:[#allocation3 + $0x50] sm:$0xff]
  %v2934 = vld [vmem:[#allocation3 + $0x58] sm:$0xff]
  %v2935 = vld [vmem:[#allocation3 + $0x60] sm:$0xff]
  %v2936 = vld [vmem:[#allocation3 + $0x68] sm:$0xff]
  %v2937 = vld [vmem:[#allocation3 + $0x70] sm:$0xff]
  %v2938 = vld [vmem:[#allocation3 + $0x78] sm:$0xff]
  %v2939 = vld [vmem:[#allocation3 + $0x80] sm:$0xff]
  %v2940 = vld [vmem:[#allocation3 + $0x88] sm:$0xff]
  %v2941 = vld [vmem:[#allocation3 + $0x90] sm:$0xff]
  %v2942 = vld [vmem:[#allocation3 + $0x98] sm:$0xff]
  %v2943 = vld [vmem:[#allocation3 + $0xa0] sm:$0xff]
  %v2944 = vld [vmem:[#allocation3 + $0xa8] sm:$0xff]
  %v2945 = vld [vmem:[#allocation3 + $0xb0] sm:$0xff]
  %v2946 = vld [vmem:[#allocation3 + $0xb8] sm:$0xff]
  %v2947 = vld [vmem:[#allocation3 + $0xc0] sm:$0xff]
  %v2948 = vld [vmem:[#allocation3 + $0xc8] sm:$0xff]
  %v2949 = vld [vmem:[#allocation3 + $0xd0] sm:$0xff]
  %v2950 = vld [vmem:[#allocation3 + $0xd8] sm:$0xff]
  %v2951 = vld [vmem:[#allocation3 + $0xe0] sm:$0xff]
  %v2952 = vld [vmem:[#allocation3 + $0xe8] sm:$0xff]
  %v2953 = vld [vmem:[#allocation3 + $0xf0] sm:$0xff]
  %v2954 = vld [vmem:[#allocation3 + $0xf8] sm:$0xff]
  %v2955 = vld [vmem:[#allocation3 + $0x100] sm:$0xff]
  %v2956 = vld [vmem:[#allocation3 + $0x108] sm:$0xff]
  %v2957 = vld [vmem:[#allocation3 + $0x110] sm:$0xff]
  %v2958 = vld [vmem:[#allocation3 + $0x118] sm:$0xff]
  %v2959 = vld [vmem:[#allocation3 + $0x120] sm:$0xff]
  %v2960 = vld [vmem:[#allocation3 + $0x128] sm:$0xff]
  %v2961 = vld [vmem:[#allocation3 + $0x130] sm:$0xff]
  %v2962 = vld [vmem:[#allocation3 + $0x138] sm:$0xff]
  %v2963 = vld [vmem:[#allocation3 + $0x140] sm:$0xff]
  %v2964 = vld [vmem:[#allocation3 + $0x148] sm:$0xff]
  %v2965 = vld [vmem:[#allocation3 + $0x150] sm:$0xff]
  %v2966 = vld [vmem:[#allocation3 + $0x158] sm:$0xff]
  %v2967 = vld [vmem:[#allocation3 + $0x160] sm:$0xff]
  %v2968 = vld [vmem:[#allocation3 + $0x168] sm:$0xff]
  %v2969 = vld [vmem:[#allocation3 + $0x170] sm:$0xff]
  %v2970 = vld [vmem:[#allocation3 + $0x178] sm:$0xff]
  %v2971 = vld [vmem:[#allocation3 + $0x180] sm:$0xff]
  %v2972 = vld [vmem:[#allocation3 + $0x188] sm:$0xff]
  %v2973 = vmul.f32 %v2924, %v468
  %v2974 = vmul.f32 %v2925, %v469
  %v2975 = vmul.f32 %v2926, %v470
  %v2976 = vmul.f32 %v2927, %v471
  %v2977 = vmul.f32 %v2928, %v472
  %v2978 = vmul.f32 %v2929, %v473
  %v2979 = vmul.f32 %v2930, %v474
  %v2980 = vmul.f32 %v2931, %v475
  %v2981 = vmul.f32 %v2932, %v476
  %v2982 = vmul.f32 %v2933, %v477
  %v2983 = vmul.f32 %v2934, %v478
  %v2984 = vmul.f32 %v2935, %v479
  %v2985 = vmul.f32 %v2936, %v480
  %v2986 = vmul.f32 %v2937, %v481
  %v2987 = vmul.f32 %v2938, %v482
  %v2988 = vmul.f32 %v2939, %v483
  %v2989 = vmul.f32 %v2940, %v484
  %v2990 = vmul.f32 %v2941, %v485
  %v2991 = vmul.f32 %v2942, %v486
  %v2992 = vmul.f32 %v2943, %v487
  %v2993 = vmul.f32 %v2944, %v488
  %v2994 = vmul.f32 %v2945, %v489
  %v2995 = vmul.f32 %v2946, %v490
  %v2996 = vmul.f32 %v2947, %v491
  %v2997 = vmul.f32 %v2948, %v492
  %v2998 = vmul.f32 %v2949, %v493
  %v2999 = vmul.f32 %v2950, %v494
  %v3000 = vmul.f32 %v2951, %v495
  %v3001 = vmul.f32 %v2952, %v496
  %v3002 = vmul.f32 %v2953, %v497
  %v3003 = vmul.f32 %v2954, %v498
  %v3004 = vmul.f32 %v2955, %v499
  %v3005 = vmul.f32 %v2956, %v500
  %v3006 = vmul.f32 %v2957, %v501
  %v3007 = vmul.f32 %v2958, %v502
  %v3008 = vmul.f32 %v2959, %v503
  %v3009 = vmul.f32 %v2960, %v504
  %v3010 = vmul.f32 %v2961, %v505
  %v3011 = vmul.f32 %v2962, %v506
  %v3012 = vmul.f32 %v2963, %v507
  %v3013 = vmul.f32 %v2964, %v508
  %v3014 = vmul.f32 %v2965, %v509
  %v3015 = vmul.f32 %v2966, %v510
  %v3016 = vmul.f32 %v2967, %v511
  %v3017 = vmul.f32 %v2968, %v512
  %v3018 = vmul.f32 %v2969, %v513
  %v3019 = vmul.f32 %v2970, %v514
  %v3020 = vmul.f32 %v2971, %v515
  %v3021 = vmul.f32 %v2972, %v516
  %3071 = vrot.lane.b32.xlu0 %v2973, 64
  %v3072 = vpop.permute.xlu0 %3071
  %3073 = vrot.lane.b32.xlu0 %v2974, 64
  %v3074 = vpop.permute.xlu0 %3073
  %3075 = vrot.lane.b32.xlu0 %v2975, 64
  %v3076 = vpop.permute.xlu0 %3075
  %3077 = vrot.lane.b32.xlu0 %v2976, 64
  %v3078 = vpop.permute.xlu0 %3077
  %3079 = vrot.lane.b32.xlu0 %v2977, 64
  %v3080 = vpop.permute.xlu0 %3079
  %3081 = vrot.lane.b32.xlu0 %v2978, 64
  %v3082 = vpop.permute.xlu0 %3081
  %3083 = vrot.lane.b32.xlu0 %v2979, 64
  %v3084 = vpop.permute.xlu0 %3083
  %3085 = vrot.lane.b32.xlu0 %v2980, 64
  %v3086 = vpop.permute.xlu0 %3085
  %3087 = vrot.lane.b32.xlu0 %v2981, 64
  %v3088 = vpop.permute.xlu0 %3087
  %3089 = vrot.lane.b32.xlu0 %v2982, 64
  %v3090 = vpop.permute.xlu0 %3089
  %3091 = vrot.lane.b32.xlu0 %v2983, 64
  %v3092 = vpop.permute.xlu0 %3091
  %3093 = vrot.lane.b32.xlu0 %v2984, 64
  %v3094 = vpop.permute.xlu0 %3093
  %3095 = vrot.lane.b32.xlu0 %v2985, 64
  %v3096 = vpop.permute.xlu0 %3095
  %3097 = vrot.lane.b32.xlu0 %v2986, 64
  %v3098 = vpop.permute.xlu0 %3097
  %3099 = vrot.lane.b32.xlu0 %v2987, 64
  %v3100 = vpop.permute.xlu0 %3099
  %3101 = vrot.lane.b32.xlu0 %v2988, 64
  %v3102 = vpop.permute.xlu0 %3101
  %3103 = vrot.lane.b32.xlu0 %v2989, 64
  %v3104 = vpop.permute.xlu0 %3103
  %3105 = vrot.lane.b32.xlu0 %v2990, 64
  %v3106 = vpop.permute.xlu0 %3105
  %3107 = vrot.lane.b32.xlu0 %v2991, 64
  %v3108 = vpop.permute.xlu0 %3107
  %3109 = vrot.lane.b32.xlu0 %v2992, 64
  %v3110 = vpop.permute.xlu0 %3109
  %3111 = vrot.lane.b32.xlu0 %v2993, 64
  %v3112 = vpop.permute.xlu0 %3111
  %3113 = vrot.lane.b32.xlu0 %v2994, 64
  %v3114 = vpop.permute.xlu0 %3113
  %3115 = vrot.lane.b32.xlu0 %v2995, 64
  %v3116 = vpop.permute.xlu0 %3115
  %3117 = vrot.lane.b32.xlu0 %v2996, 64
  %v3118 = vpop.permute.xlu0 %3117
  %3119 = vrot.lane.b32.xlu0 %v2997, 64
  %v3120 = vpop.permute.xlu0 %3119
  %3121 = vrot.lane.b32.xlu0 %v2998, 64
  %v3122 = vpop.permute.xlu0 %3121
  %3123 = vrot.lane.b32.xlu0 %v2999, 64
  %v3124 = vpop.permute.xlu0 %3123
  %3125 = vrot.lane.b32.xlu0 %v3000, 64
  %v3126 = vpop.permute.xlu0 %3125
  %3127 = vrot.lane.b32.xlu0 %v3001, 64
  %v3128 = vpop.permute.xlu0 %3127
  %3129 = vrot.lane.b32.xlu0 %v3002, 64
  %v3130 = vpop.permute.xlu0 %3129
  %3131 = vrot.lane.b32.xlu0 %v3003, 64
  %v3132 = vpop.permute.xlu0 %3131
  %3133 = vrot.lane.b32.xlu0 %v3004, 64
  %v3134 = vpop.permute.xlu0 %3133
  %3135 = vrot.lane.b32.xlu0 %v3005, 64
  %v3136 = vpop.permute.xlu0 %3135
  %3137 = vrot.lane.b32.xlu0 %v3006, 64
  %v3138 = vpop.permute.xlu0 %3137
  %3139 = vrot.lane.b32.xlu0 %v3007, 64
  %v3140 = vpop.permute.xlu0 %3139
  %3141 = vrot.lane.b32.xlu0 %v3008, 64
  %v3142 = vpop.permute.xlu0 %3141
  %3143 = vrot.lane.b32.xlu0 %v3009, 64
  %v3144 = vpop.permute.xlu0 %3143
  %3145 = vrot.lane.b32.xlu0 %v3010, 64
  %v3146 = vpop.permute.xlu0 %3145
  %3147 = vrot.lane.b32.xlu0 %v3011, 64
  %v3148 = vpop.permute.xlu0 %3147
  %3149 = vrot.lane.b32.xlu0 %v3012, 64
  %v3150 = vpop.permute.xlu0 %3149
  %3151 = vrot.lane.b32.xlu0 %v3013, 64
  %v3152 = vpop.permute.xlu0 %3151
  %3153 = vrot.lane.b32.xlu0 %v3014, 64
  %v3154 = vpop.permute.xlu0 %3153
  %3155 = vrot.lane.b32.xlu0 %v3015, 64
  %v3156 = vpop.permute.xlu0 %3155
  %3157 = vrot.lane.b32.xlu0 %v3016, 64
  %v3158 = vpop.permute.xlu0 %3157
  %3159 = vrot.lane.b32.xlu0 %v3017, 64
  %v3160 = vpop.permute.xlu0 %3159
  %3161 = vrot.lane.b32.xlu0 %v3018, 64
  %v3162 = vpop.permute.xlu0 %3161
  %3163 = vrot.lane.b32.xlu0 %v3019, 64
  %v3164 = vpop.permute.xlu0 %3163
  %3165 = vrot.lane.b32.xlu0 %v3020, 64
  %v3166 = vpop.permute.xlu0 %3165
  %3167 = vrot.lane.b32.xlu0 %v3021, 64
  %v3168 = vpop.permute.xlu0 %3167
  %vm3218 = vcmask 1048064
  %3219 = vst.msk [vmem:[#allocation4] sm:$0xff] %vm3218, %v3072
  %3220 = vst.msk [vmem:[#allocation4 + $0x28] sm:$0xff] %vm3218, %v3074
  %3221 = vst.msk [vmem:[#allocation4 + $0x50] sm:$0xff] %vm3218, %v3076
  %3222 = vst.msk [vmem:[#allocation4 + $0x78] sm:$0xff] %vm3218, %v3078
  %3223 = vst.msk [vmem:[#allocation4 + $0xa0] sm:$0xff] %vm3218, %v3080
  %3224 = vst.msk [vmem:[#allocation4 + $0xc8] sm:$0xff] %vm3218, %v3082
  %3225 = vst.msk [vmem:[#allocation4 + $0xf0] sm:$0xff] %vm3218, %v3084
  %3226 = vst.msk [vmem:[#allocation4 + $0x118] sm:$0xff] %vm3218, %v3086
  %3227 = vst.msk [vmem:[#allocation4 + $0x140] sm:$0xff] %vm3218, %v3088
  %3228 = vst.msk [vmem:[#allocation4 + $0x168] sm:$0xff] %vm3218, %v3090
  %3229 = vst.msk [vmem:[#allocation4 + $0x190] sm:$0xff] %vm3218, %v3092
  %3230 = vst.msk [vmem:[#allocation4 + $0x1b8] sm:$0xff] %vm3218, %v3094
  %3231 = vst.msk [vmem:[#allocation4 + $0x1e0] sm:$0xff] %vm3218, %v3096
  %3232 = vst.msk [vmem:[#allocation4 + $0x208] sm:$0xff] %vm3218, %v3098
  %3233 = vst.msk [vmem:[#allocation4 + $0x230] sm:$0xff] %vm3218, %v3100
  %3234 = vst.msk [vmem:[#allocation4 + $0x258] sm:$0xff] %vm3218, %v3102
  %3235 = vst.msk [vmem:[#allocation4 + $0x280] sm:$0xff] %vm3218, %v3104
  %3236 = vst.msk [vmem:[#allocation4 + $0x2a8] sm:$0xff] %vm3218, %v3106
  %3237 = vst.msk [vmem:[#allocation4 + $0x2d0] sm:$0xff] %vm3218, %v3108
  %3238 = vst.msk [vmem:[#allocation4 + $0x2f8] sm:$0xff] %vm3218, %v3110
  %3239 = vst.msk [vmem:[#allocation4 + $0x320] sm:$0xff] %vm3218, %v3112
  %3240 = vst.msk [vmem:[#allocation4 + $0x348] sm:$0xff] %vm3218, %v3114
  %3241 = vst.msk [vmem:[#allocation4 + $0x370] sm:$0xff] %vm3218, %v3116
  %3242 = vst.msk [vmem:[#allocation4 + $0x398] sm:$0xff] %vm3218, %v3118
  %3243 = vst.msk [vmem:[#allocation4 + $0x3c0] sm:$0xff] %vm3218, %v3120
  %3244 = vst.msk [vmem:[#allocation4 + $0x3e8] sm:$0xff] %vm3218, %v3122
  %3245 = vst.msk [vmem:[#allocation4 + $0x410] sm:$0xff] %vm3218, %v3124
  %3246 = vst.msk [vmem:[#allocation4 + $0x438] sm:$0xff] %vm3218, %v3126
  %3247 = vst.msk [vmem:[#allocation4 + $0x460] sm:$0xff] %vm3218, %v3128
  %3248 = vst.msk [vmem:[#allocation4 + $0x488] sm:$0xff] %vm3218, %v3130
  %3249 = vst.msk [vmem:[#allocation4 + $0x4b0] sm:$0xff] %vm3218, %v3132
  %3250 = vst.msk [vmem:[#allocation4 + $0x4d8] sm:$0xff] %vm3218, %v3134
  %3251 = vst.msk [vmem:[#allocation4 + $0x500] sm:$0xff] %vm3218, %v3136
  %3252 = vst.msk [vmem:[#allocation4 + $0x528] sm:$0xff] %vm3218, %v3138
  %3253 = vst.msk [vmem:[#allocation4 + $0x550] sm:$0xff] %vm3218, %v3140
  %3254 = vst.msk [vmem:[#allocation4 + $0x578] sm:$0xff] %vm3218, %v3142
  %3255 = vst.msk [vmem:[#allocation4 + $0x5a0] sm:$0xff] %vm3218, %v3144
  %3256 = vst.msk [vmem:[#allocation4 + $0x5c8] sm:$0xff] %vm3218, %v3146
  %3257 = vst.msk [vmem:[#allocation4 + $0x5f0] sm:$0xff] %vm3218, %v3148
  %3258 = vst.msk [vmem:[#allocation4 + $0x618] sm:$0xff] %vm3218, %v3150
  %3259 = vst.msk [vmem:[#allocation4 + $0x640] sm:$0xff] %vm3218, %v3152
  %3260 = vst.msk [vmem:[#allocation4 + $0x668] sm:$0xff] %vm3218, %v3154
  %3261 = vst.msk [vmem:[#allocation4 + $0x690] sm:$0xff] %vm3218, %v3156
  %3262 = vst.msk [vmem:[#allocation4 + $0x6b8] sm:$0xff] %vm3218, %v3158
  %3263 = vst.msk [vmem:[#allocation4 + $0x6e0] sm:$0xff] %vm3218, %v3160
  %3264 = vst.msk [vmem:[#allocation4 + $0x708] sm:$0xff] %vm3218, %v3162
  %3265 = vst.msk [vmem:[#allocation4 + $0x730] sm:$0xff] %vm3218, %v3164
  %3266 = vst.msk [vmem:[#allocation4 + $0x758] sm:$0xff] %vm3218, %v3166
  %3267 = vst.msk [vmem:[#allocation4 + $0x780] sm:$0xff] %vm3218, %v3168
  %v3268 = vld [vmem:[#allocation3 + $0x10] sm:$0xff]
  %v3269 = vld [vmem:[#allocation3 + $0x18] sm:$0xff]
  %v3270 = vld [vmem:[#allocation3 + $0x20] sm:$0xff]
  %v3271 = vld [vmem:[#allocation3 + $0x28] sm:$0xff]
  %v3272 = vld [vmem:[#allocation3 + $0x30] sm:$0xff]
  %v3273 = vld [vmem:[#allocation3 + $0x38] sm:$0xff]
  %v3274 = vld [vmem:[#allocation3 + $0x40] sm:$0xff]
  %v3275 = vld [vmem:[#allocation3 + $0x48] sm:$0xff]
  %v3276 = vld [vmem:[#allocation3 + $0x50] sm:$0xff]
  %v3277 = vld [vmem:[#allocation3 + $0x58] sm:$0xff]
  %v3278 = vld [vmem:[#allocation3 + $0x60] sm:$0xff]
  %v3279 = vld [vmem:[#allocation3 + $0x68] sm:$0xff]
  %v3280 = vld [vmem:[#allocation3 + $0x70] sm:$0xff]
  %v3281 = vld [vmem:[#allocation3 + $0x78] sm:$0xff]
  %v3282 = vld [vmem:[#allocation3 + $0x80] sm:$0xff]
  %v3283 = vld [vmem:[#allocation3 + $0x88] sm:$0xff]
  %v3284 = vld [vmem:[#allocation3 + $0x90] sm:$0xff]
  %v3285 = vld [vmem:[#allocation3 + $0x98] sm:$0xff]
  %v3286 = vld [vmem:[#allocation3 + $0xa0] sm:$0xff]
  %v3287 = vld [vmem:[#allocation3 + $0xa8] sm:$0xff]
  %v3288 = vld [vmem:[#allocation3 + $0xb0] sm:$0xff]
  %v3289 = vld [vmem:[#allocation3 + $0xb8] sm:$0xff]
  %v3290 = vld [vmem:[#allocation3 + $0xc0] sm:$0xff]
  %v3291 = vld [vmem:[#allocation3 + $0xc8] sm:$0xff]
  %v3292 = vld [vmem:[#allocation3 + $0xd0] sm:$0xff]
  %v3293 = vld [vmem:[#allocation3 + $0xd8] sm:$0xff]
  %v3294 = vld [vmem:[#allocation3 + $0xe0] sm:$0xff]
  %v3295 = vld [vmem:[#allocation3 + $0xe8] sm:$0xff]
  %v3296 = vld [vmem:[#allocation3 + $0xf0] sm:$0xff]
  %v3297 = vld [vmem:[#allocation3 + $0xf8] sm:$0xff]
  %v3298 = vld [vmem:[#allocation3 + $0x100] sm:$0xff]
  %v3299 = vld [vmem:[#allocation3 + $0x108] sm:$0xff]
  %v3300 = vld [vmem:[#allocation3 + $0x110] sm:$0xff]
  %v3301 = vld [vmem:[#allocation3 + $0x118] sm:$0xff]
  %v3302 = vld [vmem:[#allocation3 + $0x120] sm:$0xff]
  %v3303 = vld [vmem:[#allocation3 + $0x128] sm:$0xff]
  %v3304 = vld [vmem:[#allocation3 + $0x130] sm:$0xff]
  %v3305 = vld [vmem:[#allocation3 + $0x138] sm:$0xff]
  %v3306 = vld [vmem:[#allocation3 + $0x140] sm:$0xff]
  %v3307 = vld [vmem:[#allocation3 + $0x148] sm:$0xff]
  %v3308 = vld [vmem:[#allocation3 + $0x150] sm:$0xff]
  %v3309 = vld [vmem:[#allocation3 + $0x158] sm:$0xff]
  %v3310 = vld [vmem:[#allocation3 + $0x160] sm:$0xff]
  %v3311 = vld [vmem:[#allocation3 + $0x168] sm:$0xff]
  %v3312 = vld [vmem:[#allocation3 + $0x170] sm:$0xff]
  %v3313 = vld [vmem:[#allocation3 + $0x178] sm:$0xff]
  %v3314 = vld [vmem:[#allocation3 + $0x180] sm:$0xff]
  %v3315 = vld [vmem:[#allocation3 + $0x188] sm:$0xff]
  %v3316 = vld [vmem:[#allocation3 + $0x190] sm:$0xff]
  %v3317 = vmul.f32 %v3268, %v860
  %v3318 = vmul.f32 %v3269, %v861
  %v3319 = vmul.f32 %v3270, %v862
  %v3320 = vmul.f32 %v3271, %v863
  %v3321 = vmul.f32 %v3272, %v864
  %v3322 = vmul.f32 %v3273, %v865
  %v3323 = vmul.f32 %v3274, %v866
  %v3324 = vmul.f32 %v3275, %v867
  %v3325 = vmul.f32 %v3276, %v868
  %v3326 = vmul.f32 %v3277, %v869
  %v3327 = vmul.f32 %v3278, %v870
  %v3328 = vmul.f32 %v3279, %v871
  %v3329 = vmul.f32 %v3280, %v872
  %v3330 = vmul.f32 %v3281, %v873
  %v3331 = vmul.f32 %v3282, %v874
  %v3332 = vmul.f32 %v3283, %v875
  %v3333 = vmul.f32 %v3284, %v876
  %v3334 = vmul.f32 %v3285, %v877
  %v3335 = vmul.f32 %v3286, %v878
  %v3336 = vmul.f32 %v3287, %v879
  %v3337 = vmul.f32 %v3288, %v880
  %v3338 = vmul.f32 %v3289, %v881
  %v3339 = vmul.f32 %v3290, %v882
  %v3340 = vmul.f32 %v3291, %v883
  %v3341 = vmul.f32 %v3292, %v884
  %v3342 = vmul.f32 %v3293, %v885
  %v3343 = vmul.f32 %v3294, %v886
  %v3344 = vmul.f32 %v3295, %v887
  %v3345 = vmul.f32 %v3296, %v888
  %v3346 = vmul.f32 %v3297, %v889
  %v3347 = vmul.f32 %v3298, %v890
  %v3348 = vmul.f32 %v3299, %v891
  %v3349 = vmul.f32 %v3300, %v892
  %v3350 = vmul.f32 %v3301, %v893
  %v3351 = vmul.f32 %v3302, %v894
  %v3352 = vmul.f32 %v3303, %v895
  %v3353 = vmul.f32 %v3304, %v896
  %v3354 = vmul.f32 %v3305, %v897
  %v3355 = vmul.f32 %v3306, %v898
  %v3356 = vmul.f32 %v3307, %v899
  %v3357 = vmul.f32 %v3308, %v900
  %v3358 = vmul.f32 %v3309, %v901
  %v3359 = vmul.f32 %v3310, %v902
  %v3360 = vmul.f32 %v3311, %v903
  %v3361 = vmul.f32 %v3312, %v904
  %v3362 = vmul.f32 %v3313, %v905
  %v3363 = vmul.f32 %v3314, %v906
  %v3364 = vmul.f32 %v3315, %v907
  %v3365 = vmul.f32 %v3316, %v908
  %3366 = vst.msk [vmem:[#allocation4 + $0x8] sm:$0xff] %vm2565, %v3317
  %3367 = vst.msk [vmem:[#allocation4 + $0x30] sm:$0xff] %vm2565, %v3318
  %3368 = vst.msk [vmem:[#allocation4 + $0x58] sm:$0xff] %vm2565, %v3319
  %3369 = vst.msk [vmem:[#allocation4 + $0x80] sm:$0xff] %vm2565, %v3320
  %3370 = vst.msk [vmem:[#allocation4 + $0xa8] sm:$0xff] %vm2565, %v3321
  %3371 = vst.msk [vmem:[#allocation4 + $0xd0] sm:$0xff] %vm2565, %v3322
  %3372 = vst.msk [vmem:[#allocation4 + $0xf8] sm:$0xff] %vm2565, %v3323
  %3373 = vst.msk [vmem:[#allocation4 + $0x120] sm:$0xff] %vm2565, %v3324
  %3374 = vst.msk [vmem:[#allocation4 + $0x148] sm:$0xff] %vm2565, %v3325
  %3375 = vst.msk [vmem:[#allocation4 + $0x170] sm:$0xff] %vm2565, %v3326
  %3376 = vst.msk [vmem:[#allocation4 + $0x198] sm:$0xff] %vm2565, %v3327
  %3377 = vst.msk [vmem:[#allocation4 + $0x1c0] sm:$0xff] %vm2565, %v3328
  %3378 = vst.msk [vmem:[#allocation4 + $0x1e8] sm:$0xff] %vm2565, %v3329
  %3379 = vst.msk [vmem:[#allocation4 + $0x210] sm:$0xff] %vm2565, %v3330
  %3380 = vst.msk [vmem:[#allocation4 + $0x238] sm:$0xff] %vm2565, %v3331
  %3381 = vst.msk [vmem:[#allocation4 + $0x260] sm:$0xff] %vm2565, %v3332
  %3382 = vst.msk [vmem:[#allocation4 + $0x288] sm:$0xff] %vm2565, %v3333
  %3383 = vst.msk [vmem:[#allocation4 + $0x2b0] sm:$0xff] %vm2565, %v3334
  %3384 = vst.msk [vmem:[#allocation4 + $0x2d8] sm:$0xff] %vm2565, %v3335
  %3385 = vst.msk [vmem:[#allocation4 + $0x300] sm:$0xff] %vm2565, %v3336
  %3386 = vst.msk [vmem:[#allocation4 + $0x328] sm:$0xff] %vm2565, %v3337
  %3387 = vst.msk [vmem:[#allocation4 + $0x350] sm:$0xff] %vm2565, %v3338
  %3388 = vst.msk [vmem:[#allocation4 + $0x378] sm:$0xff] %vm2565, %v3339
  %3389 = vst.msk [vmem:[#allocation4 + $0x3a0] sm:$0xff] %vm2565, %v3340
  %3390 = vst.msk [vmem:[#allocation4 + $0x3c8] sm:$0xff] %vm2565, %v3341
  %3391 = vst.msk [vmem:[#allocation4 + $0x3f0] sm:$0xff] %vm2565, %v3342
  %3392 = vst.msk [vmem:[#allocation4 + $0x418] sm:$0xff] %vm2565, %v3343
  %3393 = vst.msk [vmem:[#allocation4 + $0x440] sm:$0xff] %vm2565, %v3344
  %3394 = vst.msk [vmem:[#allocation4 + $0x468] sm:$0xff] %vm2565, %v3345
  %3395 = vst.msk [vmem:[#allocation4 + $0x490] sm:$0xff] %vm2565, %v3346
  %3396 = vst.msk [vmem:[#allocation4 + $0x4b8] sm:$0xff] %vm2565, %v3347
  %3397 = vst.msk [vmem:[#allocation4 + $0x4e0] sm:$0xff] %vm2565, %v3348
  %3398 = vst.msk [vmem:[#allocation4 + $0x508] sm:$0xff] %vm2565, %v3349
  %3399 = vst.msk [vmem:[#allocation4 + $0x530] sm:$0xff] %vm2565, %v3350
  %3400 = vst.msk [vmem:[#allocation4 + $0x558] sm:$0xff] %vm2565, %v3351
  %3401 = vst.msk [vmem:[#allocation4 + $0x580] sm:$0xff] %vm2565, %v3352
  %3402 = vst.msk [vmem:[#allocation4 + $0x5a8] sm:$0xff] %vm2565, %v3353
  %3403 = vst.msk [vmem:[#allocation4 + $0x5d0] sm:$0xff] %vm2565, %v3354
  %3404 = vst.msk [vmem:[#allocation4 + $0x5f8] sm:$0xff] %vm2565, %v3355
  %3405 = vst.msk [vmem:[#allocation4 + $0x620] sm:$0xff] %vm2565, %v3356
  %3406 = vst.msk [vmem:[#allocation4 + $0x648] sm:$0xff] %vm2565, %v3357
  %3407 = vst.msk [vmem:[#allocation4 + $0x670] sm:$0xff] %vm2565, %v3358
  %3408 = vst.msk [vmem:[#allocation4 + $0x698] sm:$0xff] %vm2565, %v3359
  %3409 = vst.msk [vmem:[#allocation4 + $0x6c0] sm:$0xff] %vm2565, %v3360
  %3410 = vst.msk [vmem:[#allocation4 + $0x6e8] sm:$0xff] %vm2565, %v3361
  %3411 = vst.msk [vmem:[#allocation4 + $0x710] sm:$0xff] %vm2565, %v3362
  %3412 = vst.msk [vmem:[#allocation4 + $0x738] sm:$0xff] %vm2565, %v3363
  %3413 = vst.msk [vmem:[#allocation4 + $0x760] sm:$0xff] %vm2565, %v3364
  %3414 = vst.msk [vmem:[#allocation4 + $0x788] sm:$0xff] %vm2565, %v3365
  %v3415 = vld [vmem:[#allocation3 + $0x38] sm:$0xff]
  %v3416 = vld [vmem:[#allocation3 + $0x40] sm:$0xff]
  %v3417 = vld [vmem:[#allocation3 + $0x48] sm:$0xff]
  %v3418 = vld [vmem:[#allocation3 + $0x50] sm:$0xff]
  %v3419 = vld [vmem:[#allocation3 + $0x58] sm:$0xff]
  %v3420 = vld [vmem:[#allocation3 + $0x60] sm:$0xff]
  %v3421 = vld [vmem:[#allocation3 + $0x68] sm:$0xff]
  %v3422 = vld [vmem:[#allocation3 + $0x70] sm:$0xff]
  %v3423 = vld [vmem:[#allocation3 + $0x78] sm:$0xff]
  %v3424 = vld [vmem:[#allocation3 + $0x80] sm:$0xff]
  %v3425 = vld [vmem:[#allocation3 + $0x88] sm:$0xff]
  %v3426 = vld [vmem:[#allocation3 + $0x90] sm:$0xff]
  %v3427 = vld [vmem:[#allocation3 + $0x98] sm:$0xff]
  %v3428 = vld [vmem:[#allocation3 + $0xa0] sm:$0xff]
  %v3429 = vld [vmem:[#allocation3 + $0xa8] sm:$0xff]
  %v3430 = vld [vmem:[#allocation3 + $0xb0] sm:$0xff]
  %v3431 = vld [vmem:[#allocation3 + $0xb8] sm:$0xff]
  %v3432 = vld [vmem:[#allocation3 + $0xc0] sm:$0xff]
  %v3433 = vld [vmem:[#allocation3 + $0xc8] sm:$0xff]
  %v3434 = vld [vmem:[#allocation3 + $0xd0] sm:$0xff]
  %v3435 = vld [vmem:[#allocation3 + $0xd8] sm:$0xff]
  %v3436 = vld [vmem:[#allocation3 + $0xe0] sm:$0xff]
  %v3437 = vld [vmem:[#allocation3 + $0xe8] sm:$0xff]
  %v3438 = vld [vmem:[#allocation3 + $0xf0] sm:$0xff]
  %v3439 = vld [vmem:[#allocation3 + $0xf8] sm:$0xff]
  %v3440 = vld [vmem:[#allocation3 + $0x100] sm:$0xff]
  %v3441 = vld [vmem:[#allocation3 + $0x108] sm:$0xff]
  %v3442 = vld [vmem:[#allocation3 + $0x110] sm:$0xff]
  %v3443 = vld [vmem:[#allocation3 + $0x118] sm:$0xff]
  %v3444 = vld [vmem:[#allocation3 + $0x120] sm:$0xff]
  %v3445 = vld [vmem:[#allocation3 + $0x128] sm:$0xff]
  %v3446 = vld [vmem:[#allocation3 + $0x130] sm:$0xff]
  %v3447 = vld [vmem:[#allocation3 + $0x138] sm:$0xff]
  %v3448 = vld [vmem:[#allocation3 + $0x140] sm:$0xff]
  %v3449 = vld [vmem:[#allocation3 + $0x148] sm:$0xff]
  %v3450 = vld [vmem:[#allocation3 + $0x150] sm:$0xff]
  %v3451 = vld [vmem:[#allocation3 + $0x158] sm:$0xff]
  %v3452 = vld [vmem:[#allocation3 + $0x160] sm:$0xff]
  %v3453 = vld [vmem:[#allocation3 + $0x168] sm:$0xff]
  %v3454 = vld [vmem:[#allocation3 + $0x170] sm:$0xff]
  %v3455 = vld [vmem:[#allocation3 + $0x178] sm:$0xff]
  %v3456 = vld [vmem:[#allocation3 + $0x180] sm:$0xff]
  %v3457 = vld [vmem:[#allocation3 + $0x188] sm:$0xff]
  %v3458 = vld [vmem:[#allocation3 + $0x190] sm:$0xff]
  %v3459 = vld [vmem:[#allocation3 + $0x198] sm:$0xff]
  %v3460 = vld [vmem:[#allocation3 + $0x1a0] sm:$0xff]
  %v3461 = vld [vmem:[#allocation3 + $0x1a8] sm:$0xff]
  %v3462 = vld [vmem:[#allocation3 + $0x1b0] sm:$0xff]
  %v3463 = vld [vmem:[#allocation3 + $0x1b8] sm:$0xff]
  %v3464 = vmul.f32 %v3415, %v664
  %v3465 = vmul.f32 %v3416, %v665
  %v3466 = vmul.f32 %v3417, %v666
  %v3467 = vmul.f32 %v3418, %v667
  %v3468 = vmul.f32 %v3419, %v668
  %v3469 = vmul.f32 %v3420, %v669
  %v3470 = vmul.f32 %v3421, %v670
  %v3471 = vmul.f32 %v3422, %v671
  %v3472 = vmul.f32 %v3423, %v672
  %v3473 = vmul.f32 %v3424, %v673
  %v3474 = vmul.f32 %v3425, %v674
  %v3475 = vmul.f32 %v3426, %v675
  %v3476 = vmul.f32 %v3427, %v676
  %v3477 = vmul.f32 %v3428, %v677
  %v3478 = vmul.f32 %v3429, %v678
  %v3479 = vmul.f32 %v3430, %v679
  %v3480 = vmul.f32 %v3431, %v680
  %v3481 = vmul.f32 %v3432, %v681
  %v3482 = vmul.f32 %v3433, %v682
  %v3483 = vmul.f32 %v3434, %v683
  %v3484 = vmul.f32 %v3435, %v684
  %v3485 = vmul.f32 %v3436, %v685
  %v3486 = vmul.f32 %v3437, %v686
  %v3487 = vmul.f32 %v3438, %v687
  %v3488 = vmul.f32 %v3439, %v688
  %v3489 = vmul.f32 %v3440, %v689
  %v3490 = vmul.f32 %v3441, %v690
  %v3491 = vmul.f32 %v3442, %v691
  %v3492 = vmul.f32 %v3443, %v692
  %v3493 = vmul.f32 %v3444, %v693
  %v3494 = vmul.f32 %v3445, %v694
  %v3495 = vmul.f32 %v3446, %v695
  %v3496 = vmul.f32 %v3447, %v696
  %v3497 = vmul.f32 %v3448, %v697
  %v3498 = vmul.f32 %v3449, %v698
  %v3499 = vmul.f32 %v3450, %v699
  %v3500 = vmul.f32 %v3451, %v700
  %v3501 = vmul.f32 %v3452, %v701
  %v3502 = vmul.f32 %v3453, %v702
  %v3503 = vmul.f32 %v3454, %v703
  %v3504 = vmul.f32 %v3455, %v704
  %v3505 = vmul.f32 %v3456, %v705
  %v3506 = vmul.f32 %v3457, %v706
  %v3507 = vmul.f32 %v3458, %v707
  %v3508 = vmul.f32 %v3459, %v708
  %v3509 = vmul.f32 %v3460, %v709
  %v3510 = vmul.f32 %v3461, %v710
  %v3511 = vmul.f32 %v3462, %v711
  %v3512 = vmul.f32 %v3463, %v712
  %3562 = vrot.lane.b32.xlu0 %v3464, 64
  %v3563 = vpop.permute.xlu0 %3562
  %3564 = vrot.lane.b32.xlu0 %v3465, 64
  %v3565 = vpop.permute.xlu0 %3564
  %3566 = vrot.lane.b32.xlu0 %v3466, 64
  %v3567 = vpop.permute.xlu0 %3566
  %3568 = vrot.lane.b32.xlu0 %v3467, 64
  %v3569 = vpop.permute.xlu0 %3568
  %3570 = vrot.lane.b32.xlu0 %v3468, 64
  %v3571 = vpop.permute.xlu0 %3570
  %3572 = vrot.lane.b32.xlu0 %v3469, 64
  %v3573 = vpop.permute.xlu0 %3572
  %3574 = vrot.lane.b32.xlu0 %v3470, 64
  %v3575 = vpop.permute.xlu0 %3574
  %3576 = vrot.lane.b32.xlu0 %v3471, 64
  %v3577 = vpop.permute.xlu0 %3576
  %3578 = vrot.lane.b32.xlu0 %v3472, 64
  %v3579 = vpop.permute.xlu0 %3578
  %3580 = vrot.lane.b32.xlu0 %v3473, 64
  %v3581 = vpop.permute.xlu0 %3580
  %3582 = vrot.lane.b32.xlu0 %v3474, 64
  %v3583 = vpop.permute.xlu0 %3582
  %3584 = vrot.lane.b32.xlu0 %v3475, 64
  %v3585 = vpop.permute.xlu0 %3584
  %3586 = vrot.lane.b32.xlu0 %v3476, 64
  %v3587 = vpop.permute.xlu0 %3586
  %3588 = vrot.lane.b32.xlu0 %v3477, 64
  %v3589 = vpop.permute.xlu0 %3588
  %3590 = vrot.lane.b32.xlu0 %v3478, 64
  %v3591 = vpop.permute.xlu0 %3590
  %3592 = vrot.lane.b32.xlu0 %v3479, 64
  %v3593 = vpop.permute.xlu0 %3592
  %3594 = vrot.lane.b32.xlu0 %v3480, 64
  %v3595 = vpop.permute.xlu0 %3594
  %3596 = vrot.lane.b32.xlu0 %v3481, 64
  %v3597 = vpop.permute.xlu0 %3596
  %3598 = vrot.lane.b32.xlu0 %v3482, 64
  %v3599 = vpop.permute.xlu0 %3598
  %3600 = vrot.lane.b32.xlu0 %v3483, 64
  %v3601 = vpop.permute.xlu0 %3600
  %3602 = vrot.lane.b32.xlu0 %v3484, 64
  %v3603 = vpop.permute.xlu0 %3602
  %3604 = vrot.lane.b32.xlu0 %v3485, 64
  %v3605 = vpop.permute.xlu0 %3604
  %3606 = vrot.lane.b32.xlu0 %v3486, 64
  %v3607 = vpop.permute.xlu0 %3606
  %3608 = vrot.lane.b32.xlu0 %v3487, 64
  %v3609 = vpop.permute.xlu0 %3608
  %3610 = vrot.lane.b32.xlu0 %v3488, 64
  %v3611 = vpop.permute.xlu0 %3610
  %3612 = vrot.lane.b32.xlu0 %v3489, 64
  %v3613 = vpop.permute.xlu0 %3612
  %3614 = vrot.lane.b32.xlu0 %v3490, 64
  %v3615 = vpop.permute.xlu0 %3614
  %3616 = vrot.lane.b32.xlu0 %v3491, 64
  %v3617 = vpop.permute.xlu0 %3616
  %3618 = vrot.lane.b32.xlu0 %v3492, 64
  %v3619 = vpop.permute.xlu0 %3618
  %3620 = vrot.lane.b32.xlu0 %v3493, 64
  %v3621 = vpop.permute.xlu0 %3620
  %3622 = vrot.lane.b32.xlu0 %v3494, 64
  %v3623 = vpop.permute.xlu0 %3622
  %3624 = vrot.lane.b32.xlu0 %v3495, 64
  %v3625 = vpop.permute.xlu0 %3624
  %3626 = vrot.lane.b32.xlu0 %v3496, 64
  %v3627 = vpop.permute.xlu0 %3626
  %3628 = vrot.lane.b32.xlu0 %v3497, 64
  %v3629 = vpop.permute.xlu0 %3628
  %3630 = vrot.lane.b32.xlu0 %v3498, 64
  %v3631 = vpop.permute.xlu0 %3630
  %3632 = vrot.lane.b32.xlu0 %v3499, 64
  %v3633 = vpop.permute.xlu0 %3632
  %3634 = vrot.lane.b32.xlu0 %v3500, 64
  %v3635 = vpop.permute.xlu0 %3634
  %3636 = vrot.lane.b32.xlu0 %v3501, 64
  %v3637 = vpop.permute.xlu0 %3636
  %3638 = vrot.lane.b32.xlu0 %v3502, 64
  %v3639 = vpop.permute.xlu0 %3638
  %3640 = vrot.lane.b32.xlu0 %v3503, 64
  %v3641 = vpop.permute.xlu0 %3640
  %3642 = vrot.lane.b32.xlu0 %v3504, 64
  %v3643 = vpop.permute.xlu0 %3642
  %3644 = vrot.lane.b32.xlu0 %v3505, 64
  %v3645 = vpop.permute.xlu0 %3644
  %3646 = vrot.lane.b32.xlu0 %v3506, 64
  %v3647 = vpop.permute.xlu0 %3646
  %3648 = vrot.lane.b32.xlu0 %v3507, 64
  %v3649 = vpop.permute.xlu0 %3648
  %3650 = vrot.lane.b32.xlu0 %v3508, 64
  %v3651 = vpop.permute.xlu0 %3650
  %3652 = vrot.lane.b32.xlu0 %v3509, 64
  %v3653 = vpop.permute.xlu0 %3652
  %3654 = vrot.lane.b32.xlu0 %v3510, 64
  %v3655 = vpop.permute.xlu0 %3654
  %3656 = vrot.lane.b32.xlu0 %v3511, 64
  %v3657 = vpop.permute.xlu0 %3656
  %3658 = vrot.lane.b32.xlu0 %v3512, 64
  %v3659 = vpop.permute.xlu0 %3658
  %3709 = vst.msk [vmem:[#allocation4 + $0x8] sm:$0xff] %vm3218, %v3563
  %3710 = vst.msk [vmem:[#allocation4 + $0x30] sm:$0xff] %vm3218, %v3565
  %3711 = vst.msk [vmem:[#allocation4 + $0x58] sm:$0xff] %vm3218, %v3567
  %3712 = vst.msk [vmem:[#allocation4 + $0x80] sm:$0xff] %vm3218, %v3569
  %3713 = vst.msk [vmem:[#allocation4 + $0xa8] sm:$0xff] %vm3218, %v3571
  %3714 = vst.msk [vmem:[#allocation4 + $0xd0] sm:$0xff] %vm3218, %v3573
  %3715 = vst.msk [vmem:[#allocation4 + $0xf8] sm:$0xff] %vm3218, %v3575
  %3716 = vst.msk [vmem:[#allocation4 + $0x120] sm:$0xff] %vm3218, %v3577
  %3717 = vst.msk [vmem:[#allocation4 + $0x148] sm:$0xff] %vm3218, %v3579
  %3718 = vst.msk [vmem:[#allocation4 + $0x170] sm:$0xff] %vm3218, %v3581
  %3719 = vst.msk [vmem:[#allocation4 + $0x198] sm:$0xff] %vm3218, %v3583
  %3720 = vst.msk [vmem:[#allocation4 + $0x1c0] sm:$0xff] %vm3218, %v3585
  %3721 = vst.msk [vmem:[#allocation4 + $0x1e8] sm:$0xff] %vm3218, %v3587
  %3722 = vst.msk [vmem:[#allocation4 + $0x210] sm:$0xff] %vm3218, %v3589
  %3723 = vst.msk [vmem:[#allocation4 + $0x238] sm:$0xff] %vm3218, %v3591
  %3724 = vst.msk [vmem:[#allocation4 + $0x260] sm:$0xff] %vm3218, %v3593
  %3725 = vst.msk [vmem:[#allocation4 + $0x288] sm:$0xff] %vm3218, %v3595
  %3726 = vst.msk [vmem:[#allocation4 + $0x2b0] sm:$0xff] %vm3218, %v3597
  %3727 = vst.msk [vmem:[#allocation4 + $0x2d8] sm:$0xff] %vm3218, %v3599
  %3728 = vst.msk [vmem:[#allocation4 + $0x300] sm:$0xff] %vm3218, %v3601
  %3729 = vst.msk [vmem:[#allocation4 + $0x328] sm:$0xff] %vm3218, %v3603
  %3730 = vst.msk [vmem:[#allocation4 + $0x350] sm:$0xff] %vm3218, %v3605
  %3731 = vst.msk [vmem:[#allocation4 + $0x378] sm:$0xff] %vm3218, %v3607
  %3732 = vst.msk [vmem:[#allocation4 + $0x3a0] sm:$0xff] %vm3218, %v3609
  %3733 = vst.msk [vmem:[#allocation4 + $0x3c8] sm:$0xff] %vm3218, %v3611
  %3734 = vst.msk [vmem:[#allocation4 + $0x3f0] sm:$0xff] %vm3218, %v3613
  %3735 = vst.msk [vmem:[#allocation4 + $0x418] sm:$0xff] %vm3218, %v3615
  %3736 = vst.msk [vmem:[#allocation4 + $0x440] sm:$0xff] %vm3218, %v3617
  %3737 = vst.msk [vmem:[#allocation4 + $0x468] sm:$0xff] %vm3218, %v3619
  %3738 = vst.msk [vmem:[#allocation4 + $0x490] sm:$0xff] %vm3218, %v3621
  %3739 = vst.msk [vmem:[#allocation4 + $0x4b8] sm:$0xff] %vm3218, %v3623
  %3740 = vst.msk [vmem:[#allocation4 + $0x4e0] sm:$0xff] %vm3218, %v3625
  %3741 = vst.msk [vmem:[#allocation4 + $0x508] sm:$0xff] %vm3218, %v3627
  %3742 = vst.msk [vmem:[#allocation4 + $0x530] sm:$0xff] %vm3218, %v3629
  %3743 = vst.msk [vmem:[#allocation4 + $0x558] sm:$0xff] %vm3218, %v3631
  %3744 = vst.msk [vmem:[#allocation4 + $0x580] sm:$0xff] %vm3218, %v3633
  %3745 = vst.msk [vmem:[#allocation4 + $0x5a8] sm:$0xff] %vm3218, %v3635
  %3746 = vst.msk [vmem:[#allocation4 + $0x5d0] sm:$0xff] %vm3218, %v3637
  %3747 = vst.msk [vmem:[#allocation4 + $0x5f8] sm:$0xff] %vm3218, %v3639
  %3748 = vst.msk [vmem:[#allocation4 + $0x620] sm:$0xff] %vm3218, %v3641
  %3749 = vst.msk [vmem:[#allocation4 + $0x648] sm:$0xff] %vm3218, %v3643
  %3750 = vst.msk [vmem:[#allocation4 + $0x670] sm:$0xff] %vm3218, %v3645
  %3751 = vst.msk [vmem:[#allocation4 + $0x698] sm:$0xff] %vm3218, %v3647
  %3752 = vst.msk [vmem:[#allocation4 + $0x6c0] sm:$0xff] %vm3218, %v3649
  %3753 = vst.msk [vmem:[#allocation4 + $0x6e8] sm:$0xff] %vm3218, %v3651
  %3754 = vst.msk [vmem:[#allocation4 + $0x710] sm:$0xff] %vm3218, %v3653
  %3755 = vst.msk [vmem:[#allocation4 + $0x738] sm:$0xff] %vm3218, %v3655
  %3756 = vst.msk [vmem:[#allocation4 + $0x760] sm:$0xff] %vm3218, %v3657
  %3757 = vst.msk [vmem:[#allocation4 + $0x788] sm:$0xff] %vm3218, %v3659
  %v3758 = vld [vmem:[#allocation3 + $0x40] sm:$0xff]
  %v3759 = vld [vmem:[#allocation3 + $0x48] sm:$0xff]
  %v3760 = vld [vmem:[#allocation3 + $0x50] sm:$0xff]
  %v3761 = vld [vmem:[#allocation3 + $0x58] sm:$0xff]
  %v3762 = vld [vmem:[#allocation3 + $0x60] sm:$0xff]
  %v3763 = vld [vmem:[#allocation3 + $0x68] sm:$0xff]
  %v3764 = vld [vmem:[#allocation3 + $0x70] sm:$0xff]
  %v3765 = vld [vmem:[#allocation3 + $0x78] sm:$0xff]
  %v3766 = vld [vmem:[#allocation3 + $0x80] sm:$0xff]
  %v3767 = vld [vmem:[#allocation3 + $0x88] sm:$0xff]
  %v3768 = vld [vmem:[#allocation3 + $0x90] sm:$0xff]
  %v3769 = vld [vmem:[#allocation3 + $0x98] sm:$0xff]
  %v3770 = vld [vmem:[#allocation3 + $0xa0] sm:$0xff]
  %v3771 = vld [vmem:[#allocation3 + $0xa8] sm:$0xff]
  %v3772 = vld [vmem:[#allocation3 + $0xb0] sm:$0xff]
  %v3773 = vld [vmem:[#allocation3 + $0xb8] sm:$0xff]
  %v3774 = vld [vmem:[#allocation3 + $0xc0] sm:$0xff]
  %v3775 = vld [vmem:[#allocation3 + $0xc8] sm:$0xff]
  %v3776 = vld [vmem:[#allocation3 + $0xd0] sm:$0xff]
  %v3777 = vld [vmem:[#allocation3 + $0xd8] sm:$0xff]
  %v3778 = vld [vmem:[#allocation3 + $0xe0] sm:$0xff]
  %v3779 = vld [vmem:[#allocation3 + $0xe8] sm:$0xff]
  %v3780 = vld [vmem:[#allocation3 + $0xf0] sm:$0xff]
  %v3781 = vld [vmem:[#allocation3 + $0xf8] sm:$0xff]
  %v3782 = vld [vmem:[#allocation3 + $0x100] sm:$0xff]
  %v3783 = vld [vmem:[#allocation3 + $0x108] sm:$0xff]
  %v3784 = vld [vmem:[#allocation3 + $0x110] sm:$0xff]
  %v3785 = vld [vmem:[#allocation3 + $0x118] sm:$0xff]
  %v3786 = vld [vmem:[#allocation3 + $0x120] sm:$0xff]
  %v3787 = vld [vmem:[#allocation3 + $0x128] sm:$0xff]
  %v3788 = vld [vmem:[#allocation3 + $0x130] sm:$0xff]
  %v3789 = vld [vmem:[#allocation3 + $0x138] sm:$0xff]
  %v3790 = vld [vmem:[#allocation3 + $0x140] sm:$0xff]
  %v3791 = vld [vmem:[#allocation3 + $0x148] sm:$0xff]
  %v3792 = vld [vmem:[#allocation3 + $0x150] sm:$0xff]
  %v3793 = vld [vmem:[#allocation3 + $0x158] sm:$0xff]
  %v3794 = vld [vmem:[#allocation3 + $0x160] sm:$0xff]
  %v3795 = vld [vmem:[#allocation3 + $0x168] sm:$0xff]
  %v3796 = vld [vmem:[#allocation3 + $0x170] sm:$0xff]
  %v3797 = vld [vmem:[#allocation3 + $0x178] sm:$0xff]
  %v3798 = vld [vmem:[#allocation3 + $0x180] sm:$0xff]
  %v3799 = vld [vmem:[#allocation3 + $0x188] sm:$0xff]
  %v3800 = vld [vmem:[#allocation3 + $0x190] sm:$0xff]
  %v3801 = vld [vmem:[#allocation3 + $0x198] sm:$0xff]
  %v3802 = vld [vmem:[#allocation3 + $0x1a0] sm:$0xff]
  %v3803 = vld [vmem:[#allocation3 + $0x1a8] sm:$0xff]
  %v3804 = vld [vmem:[#allocation3 + $0x1b0] sm:$0xff]
  %v3805 = vld [vmem:[#allocation3 + $0x1b8] sm:$0xff]
  %v3806 = vld [vmem:[#allocation3 + $0x1c0] sm:$0xff]
  %3807 = vst.msk [vmem:[#allocation4 + $0x10] sm:$0xff] %vm2565, %v3758
  %3808 = vst.msk [vmem:[#allocation4 + $0x38] sm:$0xff] %vm2565, %v3759
  %3809 = vst.msk [vmem:[#allocation4 + $0x60] sm:$0xff] %vm2565, %v3760
  %3810 = vst.msk [vmem:[#allocation4 + $0x88] sm:$0xff] %vm2565, %v3761
  %3811 = vst.msk [vmem:[#allocation4 + $0xb0] sm:$0xff] %vm2565, %v3762
  %3812 = vst.msk [vmem:[#allocation4 + $0xd8] sm:$0xff] %vm2565, %v3763
  %3813 = vst.msk [vmem:[#allocation4 + $0x100] sm:$0xff] %vm2565, %v3764
  %3814 = vst.msk [vmem:[#allocation4 + $0x128] sm:$0xff] %vm2565, %v3765
  %3815 = vst.msk [vmem:[#allocation4 + $0x150] sm:$0xff] %vm2565, %v3766
  %3816 = vst.msk [vmem:[#allocation4 + $0x178] sm:$0xff] %vm2565, %v3767
  %3817 = vst.msk [vmem:[#allocation4 + $0x1a0] sm:$0xff] %vm2565, %v3768
  %3818 = vst.msk [vmem:[#allocation4 + $0x1c8] sm:$0xff] %vm2565, %v3769
  %3819 = vst.msk [vmem:[#allocation4 + $0x1f0] sm:$0xff] %vm2565, %v3770
  %3820 = vst.msk [vmem:[#allocation4 + $0x218] sm:$0xff] %vm2565, %v3771
  %3821 = vst.msk [vmem:[#allocation4 + $0x240] sm:$0xff] %vm2565, %v3772
  %3822 = vst.msk [vmem:[#allocation4 + $0x268] sm:$0xff] %vm2565, %v3773
  %3823 = vst.msk [vmem:[#allocation4 + $0x290] sm:$0xff] %vm2565, %v3774
  %3824 = vst.msk [vmem:[#allocation4 + $0x2b8] sm:$0xff] %vm2565, %v3775
  %3825 = vst.msk [vmem:[#allocation4 + $0x2e0] sm:$0xff] %vm2565, %v3776
  %3826 = vst.msk [vmem:[#allocation4 + $0x308] sm:$0xff] %vm2565, %v3777
  %3827 = vst.msk [vmem:[#allocation4 + $0x330] sm:$0xff] %vm2565, %v3778
  %3828 = vst.msk [vmem:[#allocation4 + $0x358] sm:$0xff] %vm2565, %v3779
  %3829 = vst.msk [vmem:[#allocation4 + $0x380] sm:$0xff] %vm2565, %v3780
  %3830 = vst.msk [vmem:[#allocation4 + $0x3a8] sm:$0xff] %vm2565, %v3781
  %3831 = vst.msk [vmem:[#allocation4 + $0x3d0] sm:$0xff] %vm2565, %v3782
  %3832 = vst.msk [vmem:[#allocation4 + $0x3f8] sm:$0xff] %vm2565, %v3783
  %3833 = vst.msk [vmem:[#allocation4 + $0x420] sm:$0xff] %vm2565, %v3784
  %3834 = vst.msk [vmem:[#allocation4 + $0x448] sm:$0xff] %vm2565, %v3785
  %3835 = vst.msk [vmem:[#allocation4 + $0x470] sm:$0xff] %vm2565, %v3786
  %3836 = vst.msk [vmem:[#allocation4 + $0x498] sm:$0xff] %vm2565, %v3787
  %3837 = vst.msk [vmem:[#allocation4 + $0x4c0] sm:$0xff] %vm2565, %v3788
  %3838 = vst.msk [vmem:[#allocation4 + $0x4e8] sm:$0xff] %vm2565, %v3789
  %3839 = vst.msk [vmem:[#allocation4 + $0x510] sm:$0xff] %vm2565, %v3790
  %3840 = vst.msk [vmem:[#allocation4 + $0x538] sm:$0xff] %vm2565, %v3791
  %3841 = vst.msk [vmem:[#allocation4 + $0x560] sm:$0xff] %vm2565, %v3792
  %3842 = vst.msk [vmem:[#allocation4 + $0x588] sm:$0xff] %vm2565, %v3793
  %3843 = vst.msk [vmem:[#allocation4 + $0x5b0] sm:$0xff] %vm2565, %v3794
  %3844 = vst.msk [vmem:[#allocation4 + $0x5d8] sm:$0xff] %vm2565, %v3795
  %3845 = vst.msk [vmem:[#allocation4 + $0x600] sm:$0xff] %vm2565, %v3796
  %3846 = vst.msk [vmem:[#allocation4 + $0x628] sm:$0xff] %vm2565, %v3797
  %3847 = vst.msk [vmem:[#allocation4 + $0x650] sm:$0xff] %vm2565, %v3798
  %3848 = vst.msk [vmem:[#allocation4 + $0x678] sm:$0xff] %vm2565, %v3799
  %3849 = vst.msk [vmem:[#allocation4 + $0x6a0] sm:$0xff] %vm2565, %v3800
  %3850 = vst.msk [vmem:[#allocation4 + $0x6c8] sm:$0xff] %vm2565, %v3801
  %3851 = vst.msk [vmem:[#allocation4 + $0x6f0] sm:$0xff] %vm2565, %v3802
  %3852 = vst.msk [vmem:[#allocation4 + $0x718] sm:$0xff] %vm2565, %v3803
  %3853 = vst.msk [vmem:[#allocation4 + $0x740] sm:$0xff] %vm2565, %v3804
  %3854 = vst.msk [vmem:[#allocation4 + $0x768] sm:$0xff] %vm2565, %v3805
  %3855 = vst.msk [vmem:[#allocation4 + $0x790] sm:$0xff] %vm2565, %v3806
  %v3856 = vld [vmem:[#allocation3 + $0x48] sm:$0xff]
  %v3857 = vld [vmem:[#allocation3 + $0x50] sm:$0xff]
  %v3858 = vld [vmem:[#allocation3 + $0x58] sm:$0xff]
  %v3859 = vld [vmem:[#allocation3 + $0x60] sm:$0xff]
  %v3860 = vld [vmem:[#allocation3 + $0x68] sm:$0xff]
  %v3861 = vld [vmem:[#allocation3 + $0x70] sm:$0xff]
  %v3862 = vld [vmem:[#allocation3 + $0x78] sm:$0xff]
  %v3863 = vld [vmem:[#allocation3 + $0x80] sm:$0xff]
  %v3864 = vld [vmem:[#allocation3 + $0x88] sm:$0xff]
  %v3865 = vld [vmem:[#allocation3 + $0x90] sm:$0xff]
  %v3866 = vld [vmem:[#allocation3 + $0x98] sm:$0xff]
  %v3867 = vld [vmem:[#allocation3 + $0xa0] sm:$0xff]
  %v3868 = vld [vmem:[#allocation3 + $0xa8] sm:$0xff]
  %v3869 = vld [vmem:[#allocation3 + $0xb0] sm:$0xff]
  %v3870 = vld [vmem:[#allocation3 + $0xb8] sm:$0xff]
  %v3871 = vld [vmem:[#allocation3 + $0xc0] sm:$0xff]
  %v3872 = vld [vmem:[#allocation3 + $0xc8] sm:$0xff]
  %v3873 = vld [vmem:[#allocation3 + $0xd0] sm:$0xff]
  %v3874 = vld [vmem:[#allocation3 + $0xd8] sm:$0xff]
  %v3875 = vld [vmem:[#allocation3 + $0xe0] sm:$0xff]
  %v3876 = vld [vmem:[#allocation3 + $0xe8] sm:$0xff]
  %v3877 = vld [vmem:[#allocation3 + $0xf0] sm:$0xff]
  %v3878 = vld [vmem:[#allocation3 + $0xf8] sm:$0xff]
  %v3879 = vld [vmem:[#allocation3 + $0x100] sm:$0xff]
  %v3880 = vld [vmem:[#allocation3 + $0x108] sm:$0xff]
  %v3881 = vld [vmem:[#allocation3 + $0x110] sm:$0xff]
  %v3882 = vld [vmem:[#allocation3 + $0x118] sm:$0xff]
  %v3883 = vld [vmem:[#allocation3 + $0x120] sm:$0xff]
  %v3884 = vld [vmem:[#allocation3 + $0x128] sm:$0xff]
  %v3885 = vld [vmem:[#allocation3 + $0x130] sm:$0xff]
  %v3886 = vld [vmem:[#allocation3 + $0x138] sm:$0xff]
  %v3887 = vld [vmem:[#allocation3 + $0x140] sm:$0xff]
  %v3888 = vld [vmem:[#allocation3 + $0x148] sm:$0xff]
  %v3889 = vld [vmem:[#allocation3 + $0x150] sm:$0xff]
  %v3890 = vld [vmem:[#allocation3 + $0x158] sm:$0xff]
  %v3891 = vld [vmem:[#allocation3 + $0x160] sm:$0xff]
  %v3892 = vld [vmem:[#allocation3 + $0x168] sm:$0xff]
  %v3893 = vld [vmem:[#allocation3 + $0x170] sm:$0xff]
  %v3894 = vld [vmem:[#allocation3 + $0x178] sm:$0xff]
  %v3895 = vld [vmem:[#allocation3 + $0x180] sm:$0xff]
  %v3896 = vld [vmem:[#allocation3 + $0x188] sm:$0xff]
  %v3897 = vld [vmem:[#allocation3 + $0x190] sm:$0xff]
  %v3898 = vld [vmem:[#allocation3 + $0x198] sm:$0xff]
  %v3899 = vld [vmem:[#allocation3 + $0x1a0] sm:$0xff]
  %v3900 = vld [vmem:[#allocation3 + $0x1a8] sm:$0xff]
  %v3901 = vld [vmem:[#allocation3 + $0x1b0] sm:$0xff]
  %v3902 = vld [vmem:[#allocation3 + $0x1b8] sm:$0xff]
  %v3903 = vld [vmem:[#allocation3 + $0x1c0] sm:$0xff]
  %v3904 = vld [vmem:[#allocation3 + $0x1c8] sm:$0xff]
  %v3905 = vmul.f32 %v3856, %v762
  %v3906 = vmul.f32 %v3857, %v763
  %v3907 = vmul.f32 %v3858, %v764
  %v3908 = vmul.f32 %v3859, %v765
  %v3909 = vmul.f32 %v3860, %v766
  %v3910 = vmul.f32 %v3861, %v767
  %v3911 = vmul.f32 %v3862, %v768
  %v3912 = vmul.f32 %v3863, %v769
  %v3913 = vmul.f32 %v3864, %v770
  %v3914 = vmul.f32 %v3865, %v771
  %v3915 = vmul.f32 %v3866, %v772
  %v3916 = vmul.f32 %v3867, %v773
  %v3917 = vmul.f32 %v3868, %v774
  %v3918 = vmul.f32 %v3869, %v775
  %v3919 = vmul.f32 %v3870, %v776
  %v3920 = vmul.f32 %v3871, %v777
  %v3921 = vmul.f32 %v3872, %v778
  %v3922 = vmul.f32 %v3873, %v779
  %v3923 = vmul.f32 %v3874, %v780
  %v3924 = vmul.f32 %v3875, %v781
  %v3925 = vmul.f32 %v3876, %v782
  %v3926 = vmul.f32 %v3877, %v783
  %v3927 = vmul.f32 %v3878, %v784
  %v3928 = vmul.f32 %v3879, %v785
  %v3929 = vmul.f32 %v3880, %v786
  %v3930 = vmul.f32 %v3881, %v787
  %v3931 = vmul.f32 %v3882, %v788
  %v3932 = vmul.f32 %v3883, %v789
  %v3933 = vmul.f32 %v3884, %v790
  %v3934 = vmul.f32 %v3885, %v791
  %v3935 = vmul.f32 %v3886, %v792
  %v3936 = vmul.f32 %v3887, %v793
  %v3937 = vmul.f32 %v3888, %v794
  %v3938 = vmul.f32 %v3889, %v795
  %v3939 = vmul.f32 %v3890, %v796
  %v3940 = vmul.f32 %v3891, %v797
  %v3941 = vmul.f32 %v3892, %v798
  %v3942 = vmul.f32 %v3893, %v799
  %v3943 = vmul.f32 %v3894, %v800
  %v3944 = vmul.f32 %v3895, %v801
  %v3945 = vmul.f32 %v3896, %v802
  %v3946 = vmul.f32 %v3897, %v803
  %v3947 = vmul.f32 %v3898, %v804
  %v3948 = vmul.f32 %v3899, %v805
  %v3949 = vmul.f32 %v3900, %v806
  %v3950 = vmul.f32 %v3901, %v807
  %v3951 = vmul.f32 %v3902, %v808
  %v3952 = vmul.f32 %v3903, %v809
  %v3953 = vmul.f32 %v3904, %v810
  %4003 = vrot.lane.b32.xlu0 %v3905, 64
  %v4004 = vpop.permute.xlu0 %4003
  %4005 = vrot.lane.b32.xlu0 %v3906, 64
  %v4006 = vpop.permute.xlu0 %4005
  %4007 = vrot.lane.b32.xlu0 %v3907, 64
  %v4008 = vpop.permute.xlu0 %4007
  %4009 = vrot.lane.b32.xlu0 %v3908, 64
  %v4010 = vpop.permute.xlu0 %4009
  %4011 = vrot.lane.b32.xlu0 %v3909, 64
  %v4012 = vpop.permute.xlu0 %4011
  %4013 = vrot.lane.b32.xlu0 %v3910, 64
  %v4014 = vpop.permute.xlu0 %4013
  %4015 = vrot.lane.b32.xlu0 %v3911, 64
  %v4016 = vpop.permute.xlu0 %4015
  %4017 = vrot.lane.b32.xlu0 %v3912, 64
  %v4018 = vpop.permute.xlu0 %4017
  %4019 = vrot.lane.b32.xlu0 %v3913, 64
  %v4020 = vpop.permute.xlu0 %4019
  %4021 = vrot.lane.b32.xlu0 %v3914, 64
  %v4022 = vpop.permute.xlu0 %4021
  %4023 = vrot.lane.b32.xlu0 %v3915, 64
  %v4024 = vpop.permute.xlu0 %4023
  %4025 = vrot.lane.b32.xlu0 %v3916, 64
  %v4026 = vpop.permute.xlu0 %4025
  %4027 = vrot.lane.b32.xlu0 %v3917, 64
  %v4028 = vpop.permute.xlu0 %4027
  %4029 = vrot.lane.b32.xlu0 %v3918, 64
  %v4030 = vpop.permute.xlu0 %4029
  %4031 = vrot.lane.b32.xlu0 %v3919, 64
  %v4032 = vpop.permute.xlu0 %4031
  %4033 = vrot.lane.b32.xlu0 %v3920, 64
  %v4034 = vpop.permute.xlu0 %4033
  %4035 = vrot.lane.b32.xlu0 %v3921, 64
  %v4036 = vpop.permute.xlu0 %4035
  %4037 = vrot.lane.b32.xlu0 %v3922, 64
  %v4038 = vpop.permute.xlu0 %4037
  %4039 = vrot.lane.b32.xlu0 %v3923, 64
  %v4040 = vpop.permute.xlu0 %4039
  %4041 = vrot.lane.b32.xlu0 %v3924, 64
  %v4042 = vpop.permute.xlu0 %4041
  %4043 = vrot.lane.b32.xlu0 %v3925, 64
  %v4044 = vpop.permute.xlu0 %4043
  %4045 = vrot.lane.b32.xlu0 %v3926, 64
  %v4046 = vpop.permute.xlu0 %4045
  %4047 = vrot.lane.b32.xlu0 %v3927, 64
  %v4048 = vpop.permute.xlu0 %4047
  %4049 = vrot.lane.b32.xlu0 %v3928, 64
  %v4050 = vpop.permute.xlu0 %4049
  %4051 = vrot.lane.b32.xlu0 %v3929, 64
  %v4052 = vpop.permute.xlu0 %4051
  %4053 = vrot.lane.b32.xlu0 %v3930, 64
  %v4054 = vpop.permute.xlu0 %4053
  %4055 = vrot.lane.b32.xlu0 %v3931, 64
  %v4056 = vpop.permute.xlu0 %4055
  %4057 = vrot.lane.b32.xlu0 %v3932, 64
  %v4058 = vpop.permute.xlu0 %4057
  %4059 = vrot.lane.b32.xlu0 %v3933, 64
  %v4060 = vpop.permute.xlu0 %4059
  %4061 = vrot.lane.b32.xlu0 %v3934, 64
  %v4062 = vpop.permute.xlu0 %4061
  %4063 = vrot.lane.b32.xlu0 %v3935, 64
  %v4064 = vpop.permute.xlu0 %4063
  %4065 = vrot.lane.b32.xlu0 %v3936, 64
  %v4066 = vpop.permute.xlu0 %4065
  %4067 = vrot.lane.b32.xlu0 %v3937, 64
  %v4068 = vpop.permute.xlu0 %4067
  %4069 = vrot.lane.b32.xlu0 %v3938, 64
  %v4070 = vpop.permute.xlu0 %4069
  %4071 = vrot.lane.b32.xlu0 %v3939, 64
  %v4072 = vpop.permute.xlu0 %4071
  %4073 = vrot.lane.b32.xlu0 %v3940, 64
  %v4074 = vpop.permute.xlu0 %4073
  %4075 = vrot.lane.b32.xlu0 %v3941, 64
  %v4076 = vpop.permute.xlu0 %4075
  %4077 = vrot.lane.b32.xlu0 %v3942, 64
  %v4078 = vpop.permute.xlu0 %4077
  %4079 = vrot.lane.b32.xlu0 %v3943, 64
  %v4080 = vpop.permute.xlu0 %4079
  %4081 = vrot.lane.b32.xlu0 %v3944, 64
  %v4082 = vpop.permute.xlu0 %4081
  %4083 = vrot.lane.b32.xlu0 %v3945, 64
  %v4084 = vpop.permute.xlu0 %4083
  %4085 = vrot.lane.b32.xlu0 %v3946, 64
  %v4086 = vpop.permute.xlu0 %4085
  %4087 = vrot.lane.b32.xlu0 %v3947, 64
  %v4088 = vpop.permute.xlu0 %4087
  %4089 = vrot.lane.b32.xlu0 %v3948, 64
  %v4090 = vpop.permute.xlu0 %4089
  %4091 = vrot.lane.b32.xlu0 %v3949, 64
  %v4092 = vpop.permute.xlu0 %4091
  %4093 = vrot.lane.b32.xlu0 %v3950, 64
  %v4094 = vpop.permute.xlu0 %4093
  %4095 = vrot.lane.b32.xlu0 %v3951, 64
  %v4096 = vpop.permute.xlu0 %4095
  %4097 = vrot.lane.b32.xlu0 %v3952, 64
  %v4098 = vpop.permute.xlu0 %4097
  %4099 = vrot.lane.b32.xlu0 %v3953, 64
  %v4100 = vpop.permute.xlu0 %4099
  %4150 = vst.msk [vmem:[#allocation4 + $0x10] sm:$0xff] %vm3218, %v4004
  %4151 = vst.msk [vmem:[#allocation4 + $0x38] sm:$0xff] %vm3218, %v4006
  %4152 = vst.msk [vmem:[#allocation4 + $0x60] sm:$0xff] %vm3218, %v4008
  %4153 = vst.msk [vmem:[#allocation4 + $0x88] sm:$0xff] %vm3218, %v4010
  %4154 = vst.msk [vmem:[#allocation4 + $0xb0] sm:$0xff] %vm3218, %v4012
  %4155 = vst.msk [vmem:[#allocation4 + $0xd8] sm:$0xff] %vm3218, %v4014
  %4156 = vst.msk [vmem:[#allocation4 + $0x100] sm:$0xff] %vm3218, %v4016
  %4157 = vst.msk [vmem:[#allocation4 + $0x128] sm:$0xff] %vm3218, %v4018
  %4158 = vst.msk [vmem:[#allocation4 + $0x150] sm:$0xff] %vm3218, %v4020
  %4159 = vst.msk [vmem:[#allocation4 + $0x178] sm:$0xff] %vm3218, %v4022
  %4160 = vst.msk [vmem:[#allocation4 + $0x1a0] sm:$0xff] %vm3218, %v4024
  %4161 = vst.msk [vmem:[#allocation4 + $0x1c8] sm:$0xff] %vm3218, %v4026
  %4162 = vst.msk [vmem:[#allocation4 + $0x1f0] sm:$0xff] %vm3218, %v4028
  %4163 = vst.msk [vmem:[#allocation4 + $0x218] sm:$0xff] %vm3218, %v4030
  %4164 = vst.msk [vmem:[#allocation4 + $0x240] sm:$0xff] %vm3218, %v4032
  %4165 = vst.msk [vmem:[#allocation4 + $0x268] sm:$0xff] %vm3218, %v4034
  %4166 = vst.msk [vmem:[#allocation4 + $0x290] sm:$0xff] %vm3218, %v4036
  %4167 = vst.msk [vmem:[#allocation4 + $0x2b8] sm:$0xff] %vm3218, %v4038
  %4168 = vst.msk [vmem:[#allocation4 + $0x2e0] sm:$0xff] %vm3218, %v4040
  %4169 = vst.msk [vmem:[#allocation4 + $0x308] sm:$0xff] %vm3218, %v4042
  %4170 = vst.msk [vmem:[#allocation4 + $0x330] sm:$0xff] %vm3218, %v4044
  %4171 = vst.msk [vmem:[#allocation4 + $0x358] sm:$0xff] %vm3218, %v4046
  %4172 = vst.msk [vmem:[#allocation4 + $0x380] sm:$0xff] %vm3218, %v4048
  %4173 = vst.msk [vmem:[#allocation4 + $0x3a8] sm:$0xff] %vm3218, %v4050
  %4174 = vst.msk [vmem:[#allocation4 + $0x3d0] sm:$0xff] %vm3218, %v4052
  %4175 = vst.msk [vmem:[#allocation4 + $0x3f8] sm:$0xff] %vm3218, %v4054
  %4176 = vst.msk [vmem:[#allocation4 + $0x420] sm:$0xff] %vm3218, %v4056
  %4177 = vst.msk [vmem:[#allocation4 + $0x448] sm:$0xff] %vm3218, %v4058
  %4178 = vst.msk [vmem:[#allocation4 + $0x470] sm:$0xff] %vm3218, %v4060
  %4179 = vst.msk [vmem:[#allocation4 + $0x498] sm:$0xff] %vm3218, %v4062
  %4180 = vst.msk [vmem:[#allocation4 + $0x4c0] sm:$0xff] %vm3218, %v4064
  %4181 = vst.msk [vmem:[#allocation4 + $0x4e8] sm:$0xff] %vm3218, %v4066
  %4182 = vst.msk [vmem:[#allocation4 + $0x510] sm:$0xff] %vm3218, %v4068
  %4183 = vst.msk [vmem:[#allocation4 + $0x538] sm:$0xff] %vm3218, %v4070
  %4184 = vst.msk [vmem:[#allocation4 + $0x560] sm:$0xff] %vm3218, %v4072
  %4185 = vst.msk [vmem:[#allocation4 + $0x588] sm:$0xff] %vm3218, %v4074
  %4186 = vst.msk [vmem:[#allocation4 + $0x5b0] sm:$0xff] %vm3218, %v4076
  %4187 = vst.msk [vmem:[#allocation4 + $0x5d8] sm:$0xff] %vm3218, %v4078
  %4188 = vst.msk [vmem:[#allocation4 + $0x600] sm:$0xff] %vm3218, %v4080
  %4189 = vst.msk [vmem:[#allocation4 + $0x628] sm:$0xff] %vm3218, %v4082
  %4190 = vst.msk [vmem:[#allocation4 + $0x650] sm:$0xff] %vm3218, %v4084
  %4191 = vst.msk [vmem:[#allocation4 + $0x678] sm:$0xff] %vm3218, %v4086
  %4192 = vst.msk [vmem:[#allocation4 + $0x6a0] sm:$0xff] %vm3218, %v4088
  %4193 = vst.msk [vmem:[#allocation4 + $0x6c8] sm:$0xff] %vm3218, %v4090
  %4194 = vst.msk [vmem:[#allocation4 + $0x6f0] sm:$0xff] %vm3218, %v4092
  %4195 = vst.msk [vmem:[#allocation4 + $0x718] sm:$0xff] %vm3218, %v4094
  %4196 = vst.msk [vmem:[#allocation4 + $0x740] sm:$0xff] %vm3218, %v4096
  %4197 = vst.msk [vmem:[#allocation4 + $0x768] sm:$0xff] %vm3218, %v4098
  %4198 = vst.msk [vmem:[#allocation4 + $0x790] sm:$0xff] %vm3218, %v4100
  %v4199 = vld [vmem:[#allocation3 + $0x70] sm:$0xff]
  %v4200 = vld [vmem:[#allocation3 + $0x78] sm:$0xff]
  %v4201 = vld [vmem:[#allocation3 + $0x80] sm:$0xff]
  %v4202 = vld [vmem:[#allocation3 + $0x88] sm:$0xff]
  %v4203 = vld [vmem:[#allocation3 + $0x90] sm:$0xff]
  %v4204 = vld [vmem:[#allocation3 + $0x98] sm:$0xff]
  %v4205 = vld [vmem:[#allocation3 + $0xa0] sm:$0xff]
  %v4206 = vld [vmem:[#allocation3 + $0xa8] sm:$0xff]
  %v4207 = vld [vmem:[#allocation3 + $0xb0] sm:$0xff]
  %v4208 = vld [vmem:[#allocation3 + $0xb8] sm:$0xff]
  %v4209 = vld [vmem:[#allocation3 + $0xc0] sm:$0xff]
  %v4210 = vld [vmem:[#allocation3 + $0xc8] sm:$0xff]
  %v4211 = vld [vmem:[#allocation3 + $0xd0] sm:$0xff]
  %v4212 = vld [vmem:[#allocation3 + $0xd8] sm:$0xff]
  %v4213 = vld [vmem:[#allocation3 + $0xe0] sm:$0xff]
  %v4214 = vld [vmem:[#allocation3 + $0xe8] sm:$0xff]
  %v4215 = vld [vmem:[#allocation3 + $0xf0] sm:$0xff]
  %v4216 = vld [vmem:[#allocation3 + $0xf8] sm:$0xff]
  %v4217 = vld [vmem:[#allocation3 + $0x100] sm:$0xff]
  %v4218 = vld [vmem:[#allocation3 + $0x108] sm:$0xff]
  %v4219 = vld [vmem:[#allocation3 + $0x110] sm:$0xff]
  %v4220 = vld [vmem:[#allocation3 + $0x118] sm:$0xff]
  %v4221 = vld [vmem:[#allocation3 + $0x120] sm:$0xff]
  %v4222 = vld [vmem:[#allocation3 + $0x128] sm:$0xff]
  %v4223 = vld [vmem:[#allocation3 + $0x130] sm:$0xff]
  %v4224 = vld [vmem:[#allocation3 + $0x138] sm:$0xff]
  %v4225 = vld [vmem:[#allocation3 + $0x140] sm:$0xff]
  %v4226 = vld [vmem:[#allocation3 + $0x148] sm:$0xff]
  %v4227 = vld [vmem:[#allocation3 + $0x150] sm:$0xff]
  %v4228 = vld [vmem:[#allocation3 + $0x158] sm:$0xff]
  %v4229 = vld [vmem:[#allocation3 + $0x160] sm:$0xff]
  %v4230 = vld [vmem:[#allocation3 + $0x168] sm:$0xff]
  %v4231 = vld [vmem:[#allocation3 + $0x170] sm:$0xff]
  %v4232 = vld [vmem:[#allocation3 + $0x178] sm:$0xff]
  %v4233 = vld [vmem:[#allocation3 + $0x180] sm:$0xff]
  %v4234 = vld [vmem:[#allocation3 + $0x188] sm:$0xff]
  %v4235 = vld [vmem:[#allocation3 + $0x190] sm:$0xff]
  %v4236 = vld [vmem:[#allocation3 + $0x198] sm:$0xff]
  %v4237 = vld [vmem:[#allocation3 + $0x1a0] sm:$0xff]
  %v4238 = vld [vmem:[#allocation3 + $0x1a8] sm:$0xff]
  %v4239 = vld [vmem:[#allocation3 + $0x1b0] sm:$0xff]
  %v4240 = vld [vmem:[#allocation3 + $0x1b8] sm:$0xff]
  %v4241 = vld [vmem:[#allocation3 + $0x1c0] sm:$0xff]
  %v4242 = vld [vmem:[#allocation3 + $0x1c8] sm:$0xff]
  %v4243 = vld [vmem:[#allocation3 + $0x1d0] sm:$0xff]
  %v4244 = vld [vmem:[#allocation3 + $0x1d8] sm:$0xff]
  %v4245 = vld [vmem:[#allocation3 + $0x1e0] sm:$0xff]
  %v4246 = vld [vmem:[#allocation3 + $0x1e8] sm:$0xff]
  %v4247 = vld [vmem:[#allocation3 + $0x1f0] sm:$0xff]
  %v4248 = vmul.f32 %v4199, %v909
  %v4249 = vmul.f32 %v4200, %v910
  %v4250 = vmul.f32 %v4201, %v911
  %v4251 = vmul.f32 %v4202, %v912
  %v4252 = vmul.f32 %v4203, %v913
  %v4253 = vmul.f32 %v4204, %v914
  %v4254 = vmul.f32 %v4205, %v915
  %v4255 = vmul.f32 %v4206, %v916
  %v4256 = vmul.f32 %v4207, %v917
  %v4257 = vmul.f32 %v4208, %v918
  %v4258 = vmul.f32 %v4209, %v919
  %v4259 = vmul.f32 %v4210, %v920
  %v4260 = vmul.f32 %v4211, %v921
  %v4261 = vmul.f32 %v4212, %v922
  %v4262 = vmul.f32 %v4213, %v923
  %v4263 = vmul.f32 %v4214, %v924
  %v4264 = vmul.f32 %v4215, %v925
  %v4265 = vmul.f32 %v4216, %v926
  %v4266 = vmul.f32 %v4217, %v927
  %v4267 = vmul.f32 %v4218, %v928
  %v4268 = vmul.f32 %v4219, %v929
  %v4269 = vmul.f32 %v4220, %v930
  %v4270 = vmul.f32 %v4221, %v931
  %v4271 = vmul.f32 %v4222, %v932
  %v4272 = vmul.f32 %v4223, %v933
  %v4273 = vmul.f32 %v4224, %v934
  %v4274 = vmul.f32 %v4225, %v935
  %v4275 = vmul.f32 %v4226, %v936
  %v4276 = vmul.f32 %v4227, %v937
  %v4277 = vmul.f32 %v4228, %v938
  %v4278 = vmul.f32 %v4229, %v939
  %v4279 = vmul.f32 %v4230, %v940
  %v4280 = vmul.f32 %v4231, %v941
  %v4281 = vmul.f32 %v4232, %v942
  %v4282 = vmul.f32 %v4233, %v943
  %v4283 = vmul.f32 %v4234, %v944
  %v4284 = vmul.f32 %v4235, %v945
  %v4285 = vmul.f32 %v4236, %v946
  %v4286 = vmul.f32 %v4237, %v947
  %v4287 = vmul.f32 %v4238, %v948
  %v4288 = vmul.f32 %v4239, %v949
  %v4289 = vmul.f32 %v4240, %v950
  %v4290 = vmul.f32 %v4241, %v951
  %v4291 = vmul.f32 %v4242, %v952
  %v4292 = vmul.f32 %v4243, %v953
  %v4293 = vmul.f32 %v4244, %v954
  %v4294 = vmul.f32 %v4245, %v955
  %v4295 = vmul.f32 %v4246, %v956
  %v4296 = vmul.f32 %v4247, %v957
  %4297 = vst.msk [vmem:[#allocation4 + $0x18] sm:$0xff] %vm2565, %v4248
  %4298 = vst.msk [vmem:[#allocation4 + $0x40] sm:$0xff] %vm2565, %v4249
  %4299 = vst.msk [vmem:[#allocation4 + $0x68] sm:$0xff] %vm2565, %v4250
  %4300 = vst.msk [vmem:[#allocation4 + $0x90] sm:$0xff] %vm2565, %v4251
  %4301 = vst.msk [vmem:[#allocation4 + $0xb8] sm:$0xff] %vm2565, %v4252
  %4302 = vst.msk [vmem:[#allocation4 + $0xe0] sm:$0xff] %vm2565, %v4253
  %4303 = vst.msk [vmem:[#allocation4 + $0x108] sm:$0xff] %vm2565, %v4254
  %4304 = vst.msk [vmem:[#allocation4 + $0x130] sm:$0xff] %vm2565, %v4255
  %4305 = vst.msk [vmem:[#allocation4 + $0x158] sm:$0xff] %vm2565, %v4256
  %4306 = vst.msk [vmem:[#allocation4 + $0x180] sm:$0xff] %vm2565, %v4257
  %4307 = vst.msk [vmem:[#allocation4 + $0x1a8] sm:$0xff] %vm2565, %v4258
  %4308 = vst.msk [vmem:[#allocation4 + $0x1d0] sm:$0xff] %vm2565, %v4259
  %4309 = vst.msk [vmem:[#allocation4 + $0x1f8] sm:$0xff] %vm2565, %v4260
  %4310 = vst.msk [vmem:[#allocation4 + $0x220] sm:$0xff] %vm2565, %v4261
  %4311 = vst.msk [vmem:[#allocation4 + $0x248] sm:$0xff] %vm2565, %v4262
  %4312 = vst.msk [vmem:[#allocation4 + $0x270] sm:$0xff] %vm2565, %v4263
  %4313 = vst.msk [vmem:[#allocation4 + $0x298] sm:$0xff] %vm2565, %v4264
  %4314 = vst.msk [vmem:[#allocation4 + $0x2c0] sm:$0xff] %vm2565, %v4265
  %4315 = vst.msk [vmem:[#allocation4 + $0x2e8] sm:$0xff] %vm2565, %v4266
  %4316 = vst.msk [vmem:[#allocation4 + $0x310] sm:$0xff] %vm2565, %v4267
  %4317 = vst.msk [vmem:[#allocation4 + $0x338] sm:$0xff] %vm2565, %v4268
  %4318 = vst.msk [vmem:[#allocation4 + $0x360] sm:$0xff] %vm2565, %v4269
  %4319 = vst.msk [vmem:[#allocation4 + $0x388] sm:$0xff] %vm2565, %v4270
  %4320 = vst.msk [vmem:[#allocation4 + $0x3b0] sm:$0xff] %vm2565, %v4271
  %4321 = vst.msk [vmem:[#allocation4 + $0x3d8] sm:$0xff] %vm2565, %v4272
  %4322 = vst.msk [vmem:[#allocation4 + $0x400] sm:$0xff] %vm2565, %v4273
  %4323 = vst.msk [vmem:[#allocation4 + $0x428] sm:$0xff] %vm2565, %v4274
  %4324 = vst.msk [vmem:[#allocation4 + $0x450] sm:$0xff] %vm2565, %v4275
  %4325 = vst.msk [vmem:[#allocation4 + $0x478] sm:$0xff] %vm2565, %v4276
  %4326 = vst.msk [vmem:[#allocation4 + $0x4a0] sm:$0xff] %vm2565, %v4277
  %4327 = vst.msk [vmem:[#allocation4 + $0x4c8] sm:$0xff] %vm2565, %v4278
  %4328 = vst.msk [vmem:[#allocation4 + $0x4f0] sm:$0xff] %vm2565, %v4279
  %4329 = vst.msk [vmem:[#allocation4 + $0x518] sm:$0xff] %vm2565, %v4280
  %4330 = vst.msk [vmem:[#allocation4 + $0x540] sm:$0xff] %vm2565, %v4281
  %4331 = vst.msk [vmem:[#allocation4 + $0x568] sm:$0xff] %vm2565, %v4282
  %4332 = vst.msk [vmem:[#allocation4 + $0x590] sm:$0xff] %vm2565, %v4283
  %4333 = vst.msk [vmem:[#allocation4 + $0x5b8] sm:$0xff] %vm2565, %v4284
  %4334 = vst.msk [vmem:[#allocation4 + $0x5e0] sm:$0xff] %vm2565, %v4285
  %4335 = vst.msk [vmem:[#allocation4 + $0x608] sm:$0xff] %vm2565, %v4286
  %4336 = vst.msk [vmem:[#allocation4 + $0x630] sm:$0xff] %vm2565, %v4287
  %4337 = vst.msk [vmem:[#allocation4 + $0x658] sm:$0xff] %vm2565, %v4288
  %4338 = vst.msk [vmem:[#allocation4 + $0x680] sm:$0xff] %vm2565, %v4289
  %4339 = vst.msk [vmem:[#allocation4 + $0x6a8] sm:$0xff] %vm2565, %v4290
  %4340 = vst.msk [vmem:[#allocation4 + $0x6d0] sm:$0xff] %vm2565, %v4291
  %4341 = vst.msk [vmem:[#allocation4 + $0x6f8] sm:$0xff] %vm2565, %v4292
  %4342 = vst.msk [vmem:[#allocation4 + $0x720] sm:$0xff] %vm2565, %v4293
  %4343 = vst.msk [vmem:[#allocation4 + $0x748] sm:$0xff] %vm2565, %v4294
  %4344 = vst.msk [vmem:[#allocation4 + $0x770] sm:$0xff] %vm2565, %v4295
  %4345 = vst.msk [vmem:[#allocation4 + $0x798] sm:$0xff] %vm2565, %v4296
  %v4346 = vld [vmem:[#allocation3 + $0x78] sm:$0xff]
  %v4347 = vld [vmem:[#allocation3 + $0x80] sm:$0xff]
  %v4348 = vld [vmem:[#allocation3 + $0x88] sm:$0xff]
  %v4349 = vld [vmem:[#allocation3 + $0x90] sm:$0xff]
  %v4350 = vld [vmem:[#allocation3 + $0x98] sm:$0xff]
  %v4351 = vld [vmem:[#allocation3 + $0xa0] sm:$0xff]
  %v4352 = vld [vmem:[#allocation3 + $0xa8] sm:$0xff]
  %v4353 = vld [vmem:[#allocation3 + $0xb0] sm:$0xff]
  %v4354 = vld [vmem:[#allocation3 + $0xb8] sm:$0xff]
  %v4355 = vld [vmem:[#allocation3 + $0xc0] sm:$0xff]
  %v4356 = vld [vmem:[#allocation3 + $0xc8] sm:$0xff]
  %v4357 = vld [vmem:[#allocation3 + $0xd0] sm:$0xff]
  %v4358 = vld [vmem:[#allocation3 + $0xd8] sm:$0xff]
  %v4359 = vld [vmem:[#allocation3 + $0xe0] sm:$0xff]
  %v4360 = vld [vmem:[#allocation3 + $0xe8] sm:$0xff]
  %v4361 = vld [vmem:[#allocation3 + $0xf0] sm:$0xff]
  %v4362 = vld [vmem:[#allocation3 + $0xf8] sm:$0xff]
  %v4363 = vld [vmem:[#allocation3 + $0x100] sm:$0xff]
  %v4364 = vld [vmem:[#allocation3 + $0x108] sm:$0xff]
  %v4365 = vld [vmem:[#allocation3 + $0x110] sm:$0xff]
  %v4366 = vld [vmem:[#allocation3 + $0x118] sm:$0xff]
  %v4367 = vld [vmem:[#allocation3 + $0x120] sm:$0xff]
  %v4368 = vld [vmem:[#allocation3 + $0x128] sm:$0xff]
  %v4369 = vld [vmem:[#allocation3 + $0x130] sm:$0xff]
  %v4370 = vld [vmem:[#allocation3 + $0x138] sm:$0xff]
  %v4371 = vld [vmem:[#allocation3 + $0x140] sm:$0xff]
  %v4372 = vld [vmem:[#allocation3 + $0x148] sm:$0xff]
  %v4373 = vld [vmem:[#allocation3 + $0x150] sm:$0xff]
  %v4374 = vld [vmem:[#allocation3 + $0x158] sm:$0xff]
  %v4375 = vld [vmem:[#allocation3 + $0x160] sm:$0xff]
  %v4376 = vld [vmem:[#allocation3 + $0x168] sm:$0xff]
  %v4377 = vld [vmem:[#allocation3 + $0x170] sm:$0xff]
  %v4378 = vld [vmem:[#allocation3 + $0x178] sm:$0xff]
  %v4379 = vld [vmem:[#allocation3 + $0x180] sm:$0xff]
  %v4380 = vld [vmem:[#allocation3 + $0x188] sm:$0xff]
  %v4381 = vld [vmem:[#allocation3 + $0x190] sm:$0xff]
  %v4382 = vld [vmem:[#allocation3 + $0x198] sm:$0xff]
  %v4383 = vld [vmem:[#allocation3 + $0x1a0] sm:$0xff]
  %v4384 = vld [vmem:[#allocation3 + $0x1a8] sm:$0xff]
  %v4385 = vld [vmem:[#allocation3 + $0x1b0] sm:$0xff]
  %v4386 = vld [vmem:[#allocation3 + $0x1b8] sm:$0xff]
  %v4387 = vld [vmem:[#allocation3 + $0x1c0] sm:$0xff]
  %v4388 = vld [vmem:[#allocation3 + $0x1c8] sm:$0xff]
  %v4389 = vld [vmem:[#allocation3 + $0x1d0] sm:$0xff]
  %v4390 = vld [vmem:[#allocation3 + $0x1d8] sm:$0xff]
  %v4391 = vld [vmem:[#allocation3 + $0x1e0] sm:$0xff]
  %v4392 = vld [vmem:[#allocation3 + $0x1e8] sm:$0xff]
  %v4393 = vld [vmem:[#allocation3 + $0x1f0] sm:$0xff]
  %v4394 = vld [vmem:[#allocation3 + $0x1f8] sm:$0xff]
  %v4395 = vmul.f32 %v4346, %v566
  %v4396 = vmul.f32 %v4347, %v567
  %v4397 = vmul.f32 %v4348, %v568
  %v4398 = vmul.f32 %v4349, %v569
  %v4399 = vmul.f32 %v4350, %v570
  %v4400 = vmul.f32 %v4351, %v571
  %v4401 = vmul.f32 %v4352, %v572
  %v4402 = vmul.f32 %v4353, %v573
  %v4403 = vmul.f32 %v4354, %v574
  %v4404 = vmul.f32 %v4355, %v575
  %v4405 = vmul.f32 %v4356, %v576
  %v4406 = vmul.f32 %v4357, %v577
  %v4407 = vmul.f32 %v4358, %v578
  %v4408 = vmul.f32 %v4359, %v579
  %v4409 = vmul.f32 %v4360, %v580
  %v4410 = vmul.f32 %v4361, %v581
  %v4411 = vmul.f32 %v4362, %v582
  %v4412 = vmul.f32 %v4363, %v583
  %v4413 = vmul.f32 %v4364, %v584
  %v4414 = vmul.f32 %v4365, %v585
  %v4415 = vmul.f32 %v4366, %v586
  %v4416 = vmul.f32 %v4367, %v587
  %v4417 = vmul.f32 %v4368, %v588
  %v4418 = vmul.f32 %v4369, %v589
  %v4419 = vmul.f32 %v4370, %v590
  %v4420 = vmul.f32 %v4371, %v591
  %v4421 = vmul.f32 %v4372, %v592
  %v4422 = vmul.f32 %v4373, %v593
  %v4423 = vmul.f32 %v4374, %v594
  %v4424 = vmul.f32 %v4375, %v595
  %v4425 = vmul.f32 %v4376, %v596
  %v4426 = vmul.f32 %v4377, %v597
  %v4427 = vmul.f32 %v4378, %v598
  %v4428 = vmul.f32 %v4379, %v599
  %v4429 = vmul.f32 %v4380, %v600
  %v4430 = vmul.f32 %v4381, %v601
  %v4431 = vmul.f32 %v4382, %v602
  %v4432 = vmul.f32 %v4383, %v603
  %v4433 = vmul.f32 %v4384, %v604
  %v4434 = vmul.f32 %v4385, %v605
  %v4435 = vmul.f32 %v4386, %v606
  %v4436 = vmul.f32 %v4387, %v607
  %v4437 = vmul.f32 %v4388, %v608
  %v4438 = vmul.f32 %v4389, %v609
  %v4439 = vmul.f32 %v4390, %v610
  %v4440 = vmul.f32 %v4391, %v611
  %v4441 = vmul.f32 %v4392, %v612
  %v4442 = vmul.f32 %v4393, %v613
  %v4443 = vmul.f32 %v4394, %v614
  %4493 = vrot.lane.b32.xlu0 %v4395, 64
  %v4494 = vpop.permute.xlu0 %4493
  %4495 = vrot.lane.b32.xlu0 %v4396, 64
  %v4496 = vpop.permute.xlu0 %4495
  %4497 = vrot.lane.b32.xlu0 %v4397, 64
  %v4498 = vpop.permute.xlu0 %4497
  %4499 = vrot.lane.b32.xlu0 %v4398, 64
  %v4500 = vpop.permute.xlu0 %4499
  %4501 = vrot.lane.b32.xlu0 %v4399, 64
  %v4502 = vpop.permute.xlu0 %4501
  %4503 = vrot.lane.b32.xlu0 %v4400, 64
  %v4504 = vpop.permute.xlu0 %4503
  %4505 = vrot.lane.b32.xlu0 %v4401, 64
  %v4506 = vpop.permute.xlu0 %4505
  %4507 = vrot.lane.b32.xlu0 %v4402, 64
  %v4508 = vpop.permute.xlu0 %4507
  %4509 = vrot.lane.b32.xlu0 %v4403, 64
  %v4510 = vpop.permute.xlu0 %4509
  %4511 = vrot.lane.b32.xlu0 %v4404, 64
  %v4512 = vpop.permute.xlu0 %4511
  %4513 = vrot.lane.b32.xlu0 %v4405, 64
  %v4514 = vpop.permute.xlu0 %4513
  %4515 = vrot.lane.b32.xlu0 %v4406, 64
  %v4516 = vpop.permute.xlu0 %4515
  %4517 = vrot.lane.b32.xlu0 %v4407, 64
  %v4518 = vpop.permute.xlu0 %4517
  %4519 = vrot.lane.b32.xlu0 %v4408, 64
  %v4520 = vpop.permute.xlu0 %4519
  %4521 = vrot.lane.b32.xlu0 %v4409, 64
  %v4522 = vpop.permute.xlu0 %4521
  %4523 = vrot.lane.b32.xlu0 %v4410, 64
  %v4524 = vpop.permute.xlu0 %4523
  %4525 = vrot.lane.b32.xlu0 %v4411, 64
  %v4526 = vpop.permute.xlu0 %4525
  %4527 = vrot.lane.b32.xlu0 %v4412, 64
  %v4528 = vpop.permute.xlu0 %4527
  %4529 = vrot.lane.b32.xlu0 %v4413, 64
  %v4530 = vpop.permute.xlu0 %4529
  %4531 = vrot.lane.b32.xlu0 %v4414, 64
  %v4532 = vpop.permute.xlu0 %4531
  %4533 = vrot.lane.b32.xlu0 %v4415, 64
  %v4534 = vpop.permute.xlu0 %4533
  %4535 = vrot.lane.b32.xlu0 %v4416, 64
  %v4536 = vpop.permute.xlu0 %4535
  %4537 = vrot.lane.b32.xlu0 %v4417, 64
  %v4538 = vpop.permute.xlu0 %4537
  %4539 = vrot.lane.b32.xlu0 %v4418, 64
  %v4540 = vpop.permute.xlu0 %4539
  %4541 = vrot.lane.b32.xlu0 %v4419, 64
  %v4542 = vpop.permute.xlu0 %4541
  %4543 = vrot.lane.b32.xlu0 %v4420, 64
  %v4544 = vpop.permute.xlu0 %4543
  %4545 = vrot.lane.b32.xlu0 %v4421, 64
  %v4546 = vpop.permute.xlu0 %4545
  %4547 = vrot.lane.b32.xlu0 %v4422, 64
  %v4548 = vpop.permute.xlu0 %4547
  %4549 = vrot.lane.b32.xlu0 %v4423, 64
  %v4550 = vpop.permute.xlu0 %4549
  %4551 = vrot.lane.b32.xlu0 %v4424, 64
  %v4552 = vpop.permute.xlu0 %4551
  %4553 = vrot.lane.b32.xlu0 %v4425, 64
  %v4554 = vpop.permute.xlu0 %4553
  %4555 = vrot.lane.b32.xlu0 %v4426, 64
  %v4556 = vpop.permute.xlu0 %4555
  %4557 = vrot.lane.b32.xlu0 %v4427, 64
  %v4558 = vpop.permute.xlu0 %4557
  %4559 = vrot.lane.b32.xlu0 %v4428, 64
  %v4560 = vpop.permute.xlu0 %4559
  %4561 = vrot.lane.b32.xlu0 %v4429, 64
  %v4562 = vpop.permute.xlu0 %4561
  %4563 = vrot.lane.b32.xlu0 %v4430, 64
  %v4564 = vpop.permute.xlu0 %4563
  %4565 = vrot.lane.b32.xlu0 %v4431, 64
  %v4566 = vpop.permute.xlu0 %4565
  %4567 = vrot.lane.b32.xlu0 %v4432, 64
  %v4568 = vpop.permute.xlu0 %4567
  %4569 = vrot.lane.b32.xlu0 %v4433, 64
  %v4570 = vpop.permute.xlu0 %4569
  %4571 = vrot.lane.b32.xlu0 %v4434, 64
  %v4572 = vpop.permute.xlu0 %4571
  %4573 = vrot.lane.b32.xlu0 %v4435, 64
  %v4574 = vpop.permute.xlu0 %4573
  %4575 = vrot.lane.b32.xlu0 %v4436, 64
  %v4576 = vpop.permute.xlu0 %4575
  %4577 = vrot.lane.b32.xlu0 %v4437, 64
  %v4578 = vpop.permute.xlu0 %4577
  %4579 = vrot.lane.b32.xlu0 %v4438, 64
  %v4580 = vpop.permute.xlu0 %4579
  %4581 = vrot.lane.b32.xlu0 %v4439, 64
  %v4582 = vpop.permute.xlu0 %4581
  %4583 = vrot.lane.b32.xlu0 %v4440, 64
  %v4584 = vpop.permute.xlu0 %4583
  %4585 = vrot.lane.b32.xlu0 %v4441, 64
  %v4586 = vpop.permute.xlu0 %4585
  %4587 = vrot.lane.b32.xlu0 %v4442, 64
  %v4588 = vpop.permute.xlu0 %4587
  %4589 = vrot.lane.b32.xlu0 %v4443, 64
  %v4590 = vpop.permute.xlu0 %4589
  %4640 = vst.msk [vmem:[#allocation4 + $0x18] sm:$0xff] %vm3218, %v4494
  %4641 = vst.msk [vmem:[#allocation4 + $0x40] sm:$0xff] %vm3218, %v4496
  %4642 = vst.msk [vmem:[#allocation4 + $0x68] sm:$0xff] %vm3218, %v4498
  %4643 = vst.msk [vmem:[#allocation4 + $0x90] sm:$0xff] %vm3218, %v4500
  %4644 = vst.msk [vmem:[#allocation4 + $0xb8] sm:$0xff] %vm3218, %v4502
  %4645 = vst.msk [vmem:[#allocation4 + $0xe0] sm:$0xff] %vm3218, %v4504
  %4646 = vst.msk [vmem:[#allocation4 + $0x108] sm:$0xff] %vm3218, %v4506
  %4647 = vst.msk [vmem:[#allocation4 + $0x130] sm:$0xff] %vm3218, %v4508
  %4648 = vst.msk [vmem:[#allocation4 + $0x158] sm:$0xff] %vm3218, %v4510
  %4649 = vst.msk [vmem:[#allocation4 + $0x180] sm:$0xff] %vm3218, %v4512
  %4650 = vst.msk [vmem:[#allocation4 + $0x1a8] sm:$0xff] %vm3218, %v4514
  %4651 = vst.msk [vmem:[#allocation4 + $0x1d0] sm:$0xff] %vm3218, %v4516
  %4652 = vst.msk [vmem:[#allocation4 + $0x1f8] sm:$0xff] %vm3218, %v4518
  %4653 = vst.msk [vmem:[#allocation4 + $0x220] sm:$0xff] %vm3218, %v4520
  %4654 = vst.msk [vmem:[#allocation4 + $0x248] sm:$0xff] %vm3218, %v4522
  %4655 = vst.msk [vmem:[#allocation4 + $0x270] sm:$0xff] %vm3218, %v4524
  %4656 = vst.msk [vmem:[#allocation4 + $0x298] sm:$0xff] %vm3218, %v4526
  %4657 = vst.msk [vmem:[#allocation4 + $0x2c0] sm:$0xff] %vm3218, %v4528
  %4658 = vst.msk [vmem:[#allocation4 + $0x2e8] sm:$0xff] %vm3218, %v4530
  %4659 = vst.msk [vmem:[#allocation4 + $0x310] sm:$0xff] %vm3218, %v4532
  %4660 = vst.msk [vmem:[#allocation4 + $0x338] sm:$0xff] %vm3218, %v4534
  %4661 = vst.msk [vmem:[#allocation4 + $0x360] sm:$0xff] %vm3218, %v4536
  %4662 = vst.msk [vmem:[#allocation4 + $0x388] sm:$0xff] %vm3218, %v4538
  %4663 = vst.msk [vmem:[#allocation4 + $0x3b0] sm:$0xff] %vm3218, %v4540
  %4664 = vst.msk [vmem:[#allocation4 + $0x3d8] sm:$0xff] %vm3218, %v4542
  %4665 = vst.msk [vmem:[#allocation4 + $0x400] sm:$0xff] %vm3218, %v4544
  %4666 = vst.msk [vmem:[#allocation4 + $0x428] sm:$0xff] %vm3218, %v4546
  %4667 = vst.msk [vmem:[#allocation4 + $0x450] sm:$0xff] %vm3218, %v4548
  %4668 = vst.msk [vmem:[#allocation4 + $0x478] sm:$0xff] %vm3218, %v4550
  %4669 = vst.msk [vmem:[#allocation4 + $0x4a0] sm:$0xff] %vm3218, %v4552
  %4670 = vst.msk [vmem:[#allocation4 + $0x4c8] sm:$0xff] %vm3218, %v4554
  %4671 = vst.msk [vmem:[#allocation4 + $0x4f0] sm:$0xff] %vm3218, %v4556
  %4672 = vst.msk [vmem:[#allocation4 + $0x518] sm:$0xff] %vm3218, %v4558
  %4673 = vst.msk [vmem:[#allocation4 + $0x540] sm:$0xff] %vm3218, %v4560
  %4674 = vst.msk [vmem:[#allocation4 + $0x568] sm:$0xff] %vm3218, %v4562
  %4675 = vst.msk [vmem:[#allocation4 + $0x590] sm:$0xff] %vm3218, %v4564
  %4676 = vst.msk [vmem:[#allocation4 + $0x5b8] sm:$0xff] %vm3218, %v4566
  %4677 = vst.msk [vmem:[#allocation4 + $0x5e0] sm:$0xff] %vm3218, %v4568
  %4678 = vst.msk [vmem:[#allocation4 + $0x608] sm:$0xff] %vm3218, %v4570
  %4679 = vst.msk [vmem:[#allocation4 + $0x630] sm:$0xff] %vm3218, %v4572
  %4680 = vst.msk [vmem:[#allocation4 + $0x658] sm:$0xff] %vm3218, %v4574
  %4681 = vst.msk [vmem:[#allocation4 + $0x680] sm:$0xff] %vm3218, %v4576
  %4682 = vst.msk [vmem:[#allocation4 + $0x6a8] sm:$0xff] %vm3218, %v4578
  %4683 = vst.msk [vmem:[#allocation4 + $0x6d0] sm:$0xff] %vm3218, %v4580
  %4684 = vst.msk [vmem:[#allocation4 + $0x6f8] sm:$0xff] %vm3218, %v4582
  %4685 = vst.msk [vmem:[#allocation4 + $0x720] sm:$0xff] %vm3218, %v4584
  %4686 = vst.msk [vmem:[#allocation4 + $0x748] sm:$0xff] %vm3218, %v4586
  %4687 = vst.msk [vmem:[#allocation4 + $0x770] sm:$0xff] %vm3218, %v4588
  %4688 = vst.msk [vmem:[#allocation4 + $0x798] sm:$0xff] %vm3218, %v4590
  %v4689 = vld [vmem:[#allocation3 + $0x80] sm:$0xff]
  %v4690 = vld [vmem:[#allocation3 + $0x88] sm:$0xff]
  %v4691 = vld [vmem:[#allocation3 + $0x90] sm:$0xff]
  %v4692 = vld [vmem:[#allocation3 + $0x98] sm:$0xff]
  %v4693 = vld [vmem:[#allocation3 + $0xa0] sm:$0xff]
  %v4694 = vld [vmem:[#allocation3 + $0xa8] sm:$0xff]
  %v4695 = vld [vmem:[#allocation3 + $0xb0] sm:$0xff]
  %v4696 = vld [vmem:[#allocation3 + $0xb8] sm:$0xff]
  %v4697 = vld [vmem:[#allocation3 + $0xc0] sm:$0xff]
  %v4698 = vld [vmem:[#allocation3 + $0xc8] sm:$0xff]
  %v4699 = vld [vmem:[#allocation3 + $0xd0] sm:$0xff]
  %v4700 = vld [vmem:[#allocation3 + $0xd8] sm:$0xff]
  %v4701 = vld [vmem:[#allocation3 + $0xe0] sm:$0xff]
  %v4702 = vld [vmem:[#allocation3 + $0xe8] sm:$0xff]
  %v4703 = vld [vmem:[#allocation3 + $0xf0] sm:$0xff]
  %v4704 = vld [vmem:[#allocation3 + $0xf8] sm:$0xff]
  %v4705 = vld [vmem:[#allocation3 + $0x100] sm:$0xff]
  %v4706 = vld [vmem:[#allocation3 + $0x108] sm:$0xff]
  %v4707 = vld [vmem:[#allocation3 + $0x110] sm:$0xff]
  %v4708 = vld [vmem:[#allocation3 + $0x118] sm:$0xff]
  %v4709 = vld [vmem:[#allocation3 + $0x120] sm:$0xff]
  %v4710 = vld [vmem:[#allocation3 + $0x128] sm:$0xff]
  %v4711 = vld [vmem:[#allocation3 + $0x130] sm:$0xff]
  %v4712 = vld [vmem:[#allocation3 + $0x138] sm:$0xff]
  %v4713 = vld [vmem:[#allocation3 + $0x140] sm:$0xff]
  %v4714 = vld [vmem:[#allocation3 + $0x148] sm:$0xff]
  %v4715 = vld [vmem:[#allocation3 + $0x150] sm:$0xff]
  %v4716 = vld [vmem:[#allocation3 + $0x158] sm:$0xff]
  %v4717 = vld [vmem:[#allocation3 + $0x160] sm:$0xff]
  %v4718 = vld [vmem:[#allocation3 + $0x168] sm:$0xff]
  %v4719 = vld [vmem:[#allocation3 + $0x170] sm:$0xff]
  %v4720 = vld [vmem:[#allocation3 + $0x178] sm:$0xff]
  %v4721 = vld [vmem:[#allocation3 + $0x180] sm:$0xff]
  %v4722 = vld [vmem:[#allocation3 + $0x188] sm:$0xff]
  %v4723 = vld [vmem:[#allocation3 + $0x190] sm:$0xff]
  %v4724 = vld [vmem:[#allocation3 + $0x198] sm:$0xff]
  %v4725 = vld [vmem:[#allocation3 + $0x1a0] sm:$0xff]
  %v4726 = vld [vmem:[#allocation3 + $0x1a8] sm:$0xff]
  %v4727 = vld [vmem:[#allocation3 + $0x1b0] sm:$0xff]
  %v4728 = vld [vmem:[#allocation3 + $0x1b8] sm:$0xff]
  %v4729 = vld [vmem:[#allocation3 + $0x1c0] sm:$0xff]
  %v4730 = vld [vmem:[#allocation3 + $0x1c8] sm:$0xff]
  %v4731 = vld [vmem:[#allocation3 + $0x1d0] sm:$0xff]
  %v4732 = vld [vmem:[#allocation3 + $0x1d8] sm:$0xff]
  %v4733 = vld [vmem:[#allocation3 + $0x1e0] sm:$0xff]
  %v4734 = vld [vmem:[#allocation3 + $0x1e8] sm:$0xff]
  %v4735 = vld [vmem:[#allocation3 + $0x1f0] sm:$0xff]
  %v4736 = vld [vmem:[#allocation3 + $0x1f8] sm:$0xff]
  %v4737 = vld [vmem:[#allocation3 + $0x200] sm:$0xff]
  %v4738 = vmul.f32 %v4689, %v958
  %v4739 = vmul.f32 %v4690, %v959
  %v4740 = vmul.f32 %v4691, %v960
  %v4741 = vmul.f32 %v4692, %v961
  %v4742 = vmul.f32 %v4693, %v962
  %v4743 = vmul.f32 %v4694, %v963
  %v4744 = vmul.f32 %v4695, %v964
  %v4745 = vmul.f32 %v4696, %v965
  %v4746 = vmul.f32 %v4697, %v966
  %v4747 = vmul.f32 %v4698, %v967
  %v4748 = vmul.f32 %v4699, %v968
  %v4749 = vmul.f32 %v4700, %v969
  %v4750 = vmul.f32 %v4701, %v970
  %v4751 = vmul.f32 %v4702, %v971
  %v4752 = vmul.f32 %v4703, %v972
  %v4753 = vmul.f32 %v4704, %v973
  %v4754 = vmul.f32 %v4705, %v974
  %v4755 = vmul.f32 %v4706, %v975
  %v4756 = vmul.f32 %v4707, %v976
  %v4757 = vmul.f32 %v4708, %v977
  %v4758 = vmul.f32 %v4709, %v978
  %v4759 = vmul.f32 %v4710, %v979
  %v4760 = vmul.f32 %v4711, %v980
  %v4761 = vmul.f32 %v4712, %v981
  %v4762 = vmul.f32 %v4713, %v982
  %v4763 = vmul.f32 %v4714, %v983
  %v4764 = vmul.f32 %v4715, %v984
  %v4765 = vmul.f32 %v4716, %v985
  %v4766 = vmul.f32 %v4717, %v986
  %v4767 = vmul.f32 %v4718, %v987
  %v4768 = vmul.f32 %v4719, %v988
  %v4769 = vmul.f32 %v4720, %v989
  %v4770 = vmul.f32 %v4721, %v990
  %v4771 = vmul.f32 %v4722, %v991
  %v4772 = vmul.f32 %v4723, %v992
  %v4773 = vmul.f32 %v4724, %v993
  %v4774 = vmul.f32 %v4725, %v994
  %v4775 = vmul.f32 %v4726, %v995
  %v4776 = vmul.f32 %v4727, %v996
  %v4777 = vmul.f32 %v4728, %v997
  %v4778 = vmul.f32 %v4729, %v998
  %v4779 = vmul.f32 %v4730, %v999
  %v4780 = vmul.f32 %v4731, %v1000
  %v4781 = vmul.f32 %v4732, %v1001
  %v4782 = vmul.f32 %v4733, %v1002
  %v4783 = vmul.f32 %v4734, %v1003
  %v4784 = vmul.f32 %v4735, %v1004
  %v4785 = vmul.f32 %v4736, %v1005
  %v4786 = vmul.f32 %v4737, %v1006
  %4787 = vst.msk [vmem:[#allocation4 + $0x20] sm:$0xff] %vm2565, %v4738
  %4788 = vst.msk [vmem:[#allocation4 + $0x48] sm:$0xff] %vm2565, %v4739
  %4789 = vst.msk [vmem:[#allocation4 + $0x70] sm:$0xff] %vm2565, %v4740
  %4790 = vst.msk [vmem:[#allocation4 + $0x98] sm:$0xff] %vm2565, %v4741
  %4791 = vst.msk [vmem:[#allocation4 + $0xc0] sm:$0xff] %vm2565, %v4742
  %4792 = vst.msk [vmem:[#allocation4 + $0xe8] sm:$0xff] %vm2565, %v4743
  %4793 = vst.msk [vmem:[#allocation4 + $0x110] sm:$0xff] %vm2565, %v4744
  %4794 = vst.msk [vmem:[#allocation4 + $0x138] sm:$0xff] %vm2565, %v4745
  %4795 = vst.msk [vmem:[#allocation4 + $0x160] sm:$0xff] %vm2565, %v4746
  %4796 = vst.msk [vmem:[#allocation4 + $0x188] sm:$0xff] %vm2565, %v4747
  %4797 = vst.msk [vmem:[#allocation4 + $0x1b0] sm:$0xff] %vm2565, %v4748
  %4798 = vst.msk [vmem:[#allocation4 + $0x1d8] sm:$0xff] %vm2565, %v4749
  %4799 = vst.msk [vmem:[#allocation4 + $0x200] sm:$0xff] %vm2565, %v4750
  %4800 = vst.msk [vmem:[#allocation4 + $0x228] sm:$0xff] %vm2565, %v4751
  %4801 = vst.msk [vmem:[#allocation4 + $0x250] sm:$0xff] %vm2565, %v4752
  %4802 = vst.msk [vmem:[#allocation4 + $0x278] sm:$0xff] %vm2565, %v4753
  %4803 = vst.msk [vmem:[#allocation4 + $0x2a0] sm:$0xff] %vm2565, %v4754
  %4804 = vst.msk [vmem:[#allocation4 + $0x2c8] sm:$0xff] %vm2565, %v4755
  %4805 = vst.msk [vmem:[#allocation4 + $0x2f0] sm:$0xff] %vm2565, %v4756
  %4806 = vst.msk [vmem:[#allocation4 + $0x318] sm:$0xff] %vm2565, %v4757
  %4807 = vst.msk [vmem:[#allocation4 + $0x340] sm:$0xff] %vm2565, %v4758
  %4808 = vst.msk [vmem:[#allocation4 + $0x368] sm:$0xff] %vm2565, %v4759
  %4809 = vst.msk [vmem:[#allocation4 + $0x390] sm:$0xff] %vm2565, %v4760
  %4810 = vst.msk [vmem:[#allocation4 + $0x3b8] sm:$0xff] %vm2565, %v4761
  %4811 = vst.msk [vmem:[#allocation4 + $0x3e0] sm:$0xff] %vm2565, %v4762
  %4812 = vst.msk [vmem:[#allocation4 + $0x408] sm:$0xff] %vm2565, %v4763
  %4813 = vst.msk [vmem:[#allocation4 + $0x430] sm:$0xff] %vm2565, %v4764
  %4814 = vst.msk [vmem:[#allocation4 + $0x458] sm:$0xff] %vm2565, %v4765
  %4815 = vst.msk [vmem:[#allocation4 + $0x480] sm:$0xff] %vm2565, %v4766
  %4816 = vst.msk [vmem:[#allocation4 + $0x4a8] sm:$0xff] %vm2565, %v4767
  %4817 = vst.msk [vmem:[#allocation4 + $0x4d0] sm:$0xff] %vm2565, %v4768
  %4818 = vst.msk [vmem:[#allocation4 + $0x4f8] sm:$0xff] %vm2565, %v4769
  %4819 = vst.msk [vmem:[#allocation4 + $0x520] sm:$0xff] %vm2565, %v4770
  %4820 = vst.msk [vmem:[#allocation4 + $0x548] sm:$0xff] %vm2565, %v4771
  %4821 = vst.msk [vmem:[#allocation4 + $0x570] sm:$0xff] %vm2565, %v4772
  %4822 = vst.msk [vmem:[#allocation4 + $0x598] sm:$0xff] %vm2565, %v4773
  %4823 = vst.msk [vmem:[#allocation4 + $0x5c0] sm:$0xff] %vm2565, %v4774
  %4824 = vst.msk [vmem:[#allocation4 + $0x5e8] sm:$0xff] %vm2565, %v4775
  %4825 = vst.msk [vmem:[#allocation4 + $0x610] sm:$0xff] %vm2565, %v4776
  %4826 = vst.msk [vmem:[#allocation4 + $0x638] sm:$0xff] %vm2565, %v4777
  %4827 = vst.msk [vmem:[#allocation4 + $0x660] sm:$0xff] %vm2565, %v4778
  %4828 = vst.msk [vmem:[#allocation4 + $0x688] sm:$0xff] %vm2565, %v4779
  %4829 = vst.msk [vmem:[#allocation4 + $0x6b0] sm:$0xff] %vm2565, %v4780
  %4830 = vst.msk [vmem:[#allocation4 + $0x6d8] sm:$0xff] %vm2565, %v4781
  %4831 = vst.msk [vmem:[#allocation4 + $0x700] sm:$0xff] %vm2565, %v4782
  %4832 = vst.msk [vmem:[#allocation4 + $0x728] sm:$0xff] %vm2565, %v4783
  %4833 = vst.msk [vmem:[#allocation4 + $0x750] sm:$0xff] %vm2565, %v4784
  %4834 = vst.msk [vmem:[#allocation4 + $0x778] sm:$0xff] %vm2565, %v4785
  %4835 = vst.msk [vmem:[#allocation4 + $0x7a0] sm:$0xff] %vm2565, %v4786
  %v4836 = vld [vmem:[#allocation4] sm:$0xff]
  %v4837 = vld [vmem:[#allocation4 + $0x8] sm:$0xff]
  %v4838 = vld [vmem:[#allocation4 + $0x10] sm:$0xff]
  %v4839 = vld [vmem:[#allocation4 + $0x18] sm:$0xff]
  %v4840 = vld [vmem:[#allocation4 + $0x20] sm:$0xff]
  %v4841 = vld [vmem:[#allocation4 + $0x28] sm:$0xff]
  %v4842 = vld [vmem:[#allocation4 + $0x30] sm:$0xff]
  %v4843 = vld [vmem:[#allocation4 + $0x38] sm:$0xff]
  %v4844 = vld [vmem:[#allocation4 + $0x40] sm:$0xff]
  %v4845 = vld [vmem:[#allocation4 + $0x48] sm:$0xff]
  %v4846 = vld [vmem:[#allocation4 + $0x50] sm:$0xff]
  %v4847 = vld [vmem:[#allocation4 + $0x58] sm:$0xff]
  %v4848 = vld [vmem:[#allocation4 + $0x60] sm:$0xff]
  %v4849 = vld [vmem:[#allocation4 + $0x68] sm:$0xff]
  %v4850 = vld [vmem:[#allocation4 + $0x70] sm:$0xff]
  %v4851 = vld [vmem:[#allocation4 + $0x78] sm:$0xff]
  %v4852 = vld [vmem:[#allocation4 + $0x80] sm:$0xff]
  %v4853 = vld [vmem:[#allocation4 + $0x88] sm:$0xff]
  %v4854 = vld [vmem:[#allocation4 + $0x90] sm:$0xff]
  %v4855 = vld [vmem:[#allocation4 + $0x98] sm:$0xff]
  %v4856 = vld [vmem:[#allocation4 + $0xa0] sm:$0xff]
  %v4857 = vld [vmem:[#allocation4 + $0xa8] sm:$0xff]
  %v4858 = vld [vmem:[#allocation4 + $0xb0] sm:$0xff]
  %v4859 = vld [vmem:[#allocation4 + $0xb8] sm:$0xff]
  %v4860 = vld [vmem:[#allocation4 + $0xc0] sm:$0xff]
  %v4861 = vld [vmem:[#allocation4 + $0xc8] sm:$0xff]
  %v4862 = vld [vmem:[#allocation4 + $0xd0] sm:$0xff]
  %v4863 = vld [vmem:[#allocation4 + $0xd8] sm:$0xff]
  %v4864 = vld [vmem:[#allocation4 + $0xe0] sm:$0xff]
  %v4865 = vld [vmem:[#allocation4 + $0xe8] sm:$0xff]
  %v4866 = vld [vmem:[#allocation4 + $0xf0] sm:$0xff]
  %v4867 = vld [vmem:[#allocation4 + $0xf8] sm:$0xff]
  %v4868 = vld [vmem:[#allocation4 + $0x100] sm:$0xff]
  %v4869 = vld [vmem:[#allocation4 + $0x108] sm:$0xff]
  %v4870 = vld [vmem:[#allocation4 + $0x110] sm:$0xff]
  %v4871 = vld [vmem:[#allocation4 + $0x118] sm:$0xff]
  %v4872 = vld [vmem:[#allocation4 + $0x120] sm:$0xff]
  %v4873 = vld [vmem:[#allocation4 + $0x128] sm:$0xff]
  %v4874 = vld [vmem:[#allocation4 + $0x130] sm:$0xff]
  %v4875 = vld [vmem:[#allocation4 + $0x138] sm:$0xff]
  %v4876 = vld [vmem:[#allocation4 + $0x140] sm:$0xff]
  %v4877 = vld [vmem:[#allocation4 + $0x148] sm:$0xff]
  %v4878 = vld [vmem:[#allocation4 + $0x150] sm:$0xff]
  %v4879 = vld [vmem:[#allocation4 + $0x158] sm:$0xff]
  %v4880 = vld [vmem:[#allocation4 + $0x160] sm:$0xff]
  %v4881 = vld [vmem:[#allocation4 + $0x168] sm:$0xff]
  %v4882 = vld [vmem:[#allocation4 + $0x170] sm:$0xff]
  %v4883 = vld [vmem:[#allocation4 + $0x178] sm:$0xff]
  %v4884 = vld [vmem:[#allocation4 + $0x180] sm:$0xff]
  %v4885 = vld [vmem:[#allocation4 + $0x188] sm:$0xff]
  %v4886 = vld [vmem:[#allocation4 + $0x190] sm:$0xff]
  %v4887 = vld [vmem:[#allocation4 + $0x198] sm:$0xff]
  %v4888 = vld [vmem:[#allocation4 + $0x1a0] sm:$0xff]
  %v4889 = vld [vmem:[#allocation4 + $0x1a8] sm:$0xff]
  %v4890 = vld [vmem:[#allocation4 + $0x1b0] sm:$0xff]
  %v4891 = vld [vmem:[#allocation4 + $0x1b8] sm:$0xff]
  %v4892 = vld [vmem:[#allocation4 + $0x1c0] sm:$0xff]
  %v4893 = vld [vmem:[#allocation4 + $0x1c8] sm:$0xff]
  %v4894 = vld [vmem:[#allocation4 + $0x1d0] sm:$0xff]
  %v4895 = vld [vmem:[#allocation4 + $0x1d8] sm:$0xff]
  %v4896 = vld [vmem:[#allocation4 + $0x1e0] sm:$0xff]
  %v4897 = vld [vmem:[#allocation4 + $0x1e8] sm:$0xff]
  %v4898 = vld [vmem:[#allocation4 + $0x1f0] sm:$0xff]
  %v4899 = vld [vmem:[#allocation4 + $0x1f8] sm:$0xff]
  %v4900 = vld [vmem:[#allocation4 + $0x200] sm:$0xff]
  %v4901 = vld [vmem:[#allocation4 + $0x208] sm:$0xff]
  %v4902 = vld [vmem:[#allocation4 + $0x210] sm:$0xff]
  %v4903 = vld [vmem:[#allocation4 + $0x218] sm:$0xff]
  %v4904 = vld [vmem:[#allocation4 + $0x220] sm:$0xff]
  %v4905 = vld [vmem:[#allocation4 + $0x228] sm:$0xff]
  %v4906 = vld [vmem:[#allocation4 + $0x230] sm:$0xff]
  %v4907 = vld [vmem:[#allocation4 + $0x238] sm:$0xff]
  %v4908 = vld [vmem:[#allocation4 + $0x240] sm:$0xff]
  %v4909 = vld [vmem:[#allocation4 + $0x248] sm:$0xff]
  %v4910 = vld [vmem:[#allocation4 + $0x250] sm:$0xff]
  %v4911 = vld [vmem:[#allocation4 + $0x258] sm:$0xff]
  %v4912 = vld [vmem:[#allocation4 + $0x260] sm:$0xff]
  %v4913 = vld [vmem:[#allocation4 + $0x268] sm:$0xff]
  %v4914 = vld [vmem:[#allocation4 + $0x270] sm:$0xff]
  %v4915 = vld [vmem:[#allocation4 + $0x278] sm:$0xff]
  %v4916 = vld [vmem:[#allocation4 + $0x280] sm:$0xff]
  %v4917 = vld [vmem:[#allocation4 + $0x288] sm:$0xff]
  %v4918 = vld [vmem:[#allocation4 + $0x290] sm:$0xff]
  %v4919 = vld [vmem:[#allocation4 + $0x298] sm:$0xff]
  %v4920 = vld [vmem:[#allocation4 + $0x2a0] sm:$0xff]
  %v4921 = vld [vmem:[#allocation4 + $0x2a8] sm:$0xff]
  %v4922 = vld [vmem:[#allocation4 + $0x2b0] sm:$0xff]
  %v4923 = vld [vmem:[#allocation4 + $0x2b8] sm:$0xff]
  %v4924 = vld [vmem:[#allocation4 + $0x2c0] sm:$0xff]
  %v4925 = vld [vmem:[#allocation4 + $0x2c8] sm:$0xff]
  %v4926 = vld [vmem:[#allocation4 + $0x2d0] sm:$0xff]
  %v4927 = vld [vmem:[#allocation4 + $0x2d8] sm:$0xff]
  %v4928 = vld [vmem:[#allocation4 + $0x2e0] sm:$0xff]
  %v4929 = vld [vmem:[#allocation4 + $0x2e8] sm:$0xff]
  %v4930 = vld [vmem:[#allocation4 + $0x2f0] sm:$0xff]
  %v4931 = vld [vmem:[#allocation4 + $0x2f8] sm:$0xff]
  %v4932 = vld [vmem:[#allocation4 + $0x300] sm:$0xff]
  %v4933 = vld [vmem:[#allocation4 + $0x308] sm:$0xff]
  %v4934 = vld [vmem:[#allocation4 + $0x310] sm:$0xff]
  %v4935 = vld [vmem:[#allocation4 + $0x318] sm:$0xff]
  %v4936 = vld [vmem:[#allocation4 + $0x320] sm:$0xff]
  %v4937 = vld [vmem:[#allocation4 + $0x328] sm:$0xff]
  %v4938 = vld [vmem:[#allocation4 + $0x330] sm:$0xff]
  %v4939 = vld [vmem:[#allocation4 + $0x338] sm:$0xff]
  %v4940 = vld [vmem:[#allocation4 + $0x340] sm:$0xff]
  %v4941 = vld [vmem:[#allocation4 + $0x348] sm:$0xff]
  %v4942 = vld [vmem:[#allocation4 + $0x350] sm:$0xff]
  %v4943 = vld [vmem:[#allocation4 + $0x358] sm:$0xff]
  %v4944 = vld [vmem:[#allocation4 + $0x360] sm:$0xff]
  %v4945 = vld [vmem:[#allocation4 + $0x368] sm:$0xff]
  %v4946 = vld [vmem:[#allocation4 + $0x370] sm:$0xff]
  %v4947 = vld [vmem:[#allocation4 + $0x378] sm:$0xff]
  %v4948 = vld [vmem:[#allocation4 + $0x380] sm:$0xff]
  %v4949 = vld [vmem:[#allocation4 + $0x388] sm:$0xff]
  %v4950 = vld [vmem:[#allocation4 + $0x390] sm:$0xff]
  %v4951 = vld [vmem:[#allocation4 + $0x398] sm:$0xff]
  %v4952 = vld [vmem:[#allocation4 + $0x3a0] sm:$0xff]
  %v4953 = vld [vmem:[#allocation4 + $0x3a8] sm:$0xff]
  %v4954 = vld [vmem:[#allocation4 + $0x3b0] sm:$0xff]
  %v4955 = vld [vmem:[#allocation4 + $0x3b8] sm:$0xff]
  %v4956 = vld [vmem:[#allocation4 + $0x3c0] sm:$0xff]
  %v4957 = vld [vmem:[#allocation4 + $0x3c8] sm:$0xff]
  %v4958 = vld [vmem:[#allocation4 + $0x3d0] sm:$0xff]
  %v4959 = vld [vmem:[#allocation4 + $0x3d8] sm:$0xff]
  %v4960 = vld [vmem:[#allocation4 + $0x3e0] sm:$0xff]
  %v4961 = vld [vmem:[#allocation4 + $0x3e8] sm:$0xff]
  %v4962 = vld [vmem:[#allocation4 + $0x3f0] sm:$0xff]
  %v4963 = vld [vmem:[#allocation4 + $0x3f8] sm:$0xff]
  %v4964 = vld [vmem:[#allocation4 + $0x400] sm:$0xff]
  %v4965 = vld [vmem:[#allocation4 + $0x408] sm:$0xff]
  %v4966 = vld [vmem:[#allocation4 + $0x410] sm:$0xff]
  %v4967 = vld [vmem:[#allocation4 + $0x418] sm:$0xff]
  %v4968 = vld [vmem:[#allocation4 + $0x420] sm:$0xff]
  %v4969 = vld [vmem:[#allocation4 + $0x428] sm:$0xff]
  %v4970 = vld [vmem:[#allocation4 + $0x430] sm:$0xff]
  %v4971 = vld [vmem:[#allocation4 + $0x438] sm:$0xff]
  %v4972 = vld [vmem:[#allocation4 + $0x440] sm:$0xff]
  %v4973 = vld [vmem:[#allocation4 + $0x448] sm:$0xff]
  %v4974 = vld [vmem:[#allocation4 + $0x450] sm:$0xff]
  %v4975 = vld [vmem:[#allocation4 + $0x458] sm:$0xff]
  %v4976 = vld [vmem:[#allocation4 + $0x460] sm:$0xff]
  %v4977 = vld [vmem:[#allocation4 + $0x468] sm:$0xff]
  %v4978 = vld [vmem:[#allocation4 + $0x470] sm:$0xff]
  %v4979 = vld [vmem:[#allocation4 + $0x478] sm:$0xff]
  %v4980 = vld [vmem:[#allocation4 + $0x480] sm:$0xff]
  %v4981 = vld [vmem:[#allocation4 + $0x488] sm:$0xff]
  %v4982 = vld [vmem:[#allocation4 + $0x490] sm:$0xff]
  %v4983 = vld [vmem:[#allocation4 + $0x498] sm:$0xff]
  %v4984 = vld [vmem:[#allocation4 + $0x4a0] sm:$0xff]
  %v4985 = vld [vmem:[#allocation4 + $0x4a8] sm:$0xff]
  %v4986 = vld [vmem:[#allocation4 + $0x4b0] sm:$0xff]
  %v4987 = vld [vmem:[#allocation4 + $0x4b8] sm:$0xff]
  %v4988 = vld [vmem:[#allocation4 + $0x4c0] sm:$0xff]
  %v4989 = vld [vmem:[#allocation4 + $0x4c8] sm:$0xff]
  %v4990 = vld [vmem:[#allocation4 + $0x4d0] sm:$0xff]
  %v4991 = vld [vmem:[#allocation4 + $0x4d8] sm:$0xff]
  %v4992 = vld [vmem:[#allocation4 + $0x4e0] sm:$0xff]
  %v4993 = vld [vmem:[#allocation4 + $0x4e8] sm:$0xff]
  %v4994 = vld [vmem:[#allocation4 + $0x4f0] sm:$0xff]
  %v4995 = vld [vmem:[#allocation4 + $0x4f8] sm:$0xff]
  %v4996 = vld [vmem:[#allocation4 + $0x500] sm:$0xff]
  %v4997 = vld [vmem:[#allocation4 + $0x508] sm:$0xff]
  %v4998 = vld [vmem:[#allocation4 + $0x510] sm:$0xff]
  %v4999 = vld [vmem:[#allocation4 + $0x518] sm:$0xff]
  %v5000 = vld [vmem:[#allocation4 + $0x520] sm:$0xff]
  %v5001 = vld [vmem:[#allocation4 + $0x528] sm:$0xff]
  %v5002 = vld [vmem:[#allocation4 + $0x530] sm:$0xff]
  %v5003 = vld [vmem:[#allocation4 + $0x538] sm:$0xff]
  %v5004 = vld [vmem:[#allocation4 + $0x540] sm:$0xff]
  %v5005 = vld [vmem:[#allocation4 + $0x548] sm:$0xff]
  %v5006 = vld [vmem:[#allocation4 + $0x550] sm:$0xff]
  %v5007 = vld [vmem:[#allocation4 + $0x558] sm:$0xff]
  %v5008 = vld [vmem:[#allocation4 + $0x560] sm:$0xff]
  %v5009 = vld [vmem:[#allocation4 + $0x568] sm:$0xff]
  %v5010 = vld [vmem:[#allocation4 + $0x570] sm:$0xff]
  %v5011 = vld [vmem:[#allocation4 + $0x578] sm:$0xff]
  %v5012 = vld [vmem:[#allocation4 + $0x580] sm:$0xff]
  %v5013 = vld [vmem:[#allocation4 + $0x588] sm:$0xff]
  %v5014 = vld [vmem:[#allocation4 + $0x590] sm:$0xff]
  %v5015 = vld [vmem:[#allocation4 + $0x598] sm:$0xff]
  %v5016 = vld [vmem:[#allocation4 + $0x5a0] sm:$0xff]
  %v5017 = vld [vmem:[#allocation4 + $0x5a8] sm:$0xff]
  %v5018 = vld [vmem:[#allocation4 + $0x5b0] sm:$0xff]
  %v5019 = vld [vmem:[#allocation4 + $0x5b8] sm:$0xff]
  %v5020 = vld [vmem:[#allocation4 + $0x5c0] sm:$0xff]
  %v5021 = vld [vmem:[#allocation4 + $0x5c8] sm:$0xff]
  %v5022 = vld [vmem:[#allocation4 + $0x5d0] sm:$0xff]
  %v5023 = vld [vmem:[#allocation4 + $0x5d8] sm:$0xff]
  %v5024 = vld [vmem:[#allocation4 + $0x5e0] sm:$0xff]
  %v5025 = vld [vmem:[#allocation4 + $0x5e8] sm:$0xff]
  %v5026 = vld [vmem:[#allocation4 + $0x5f0] sm:$0xff]
  %v5027 = vld [vmem:[#allocation4 + $0x5f8] sm:$0xff]
  %v5028 = vld [vmem:[#allocation4 + $0x600] sm:$0xff]
  %v5029 = vld [vmem:[#allocation4 + $0x608] sm:$0xff]
  %v5030 = vld [vmem:[#allocation4 + $0x610] sm:$0xff]
  %v5031 = vld [vmem:[#allocation4 + $0x618] sm:$0xff]
  %v5032 = vld [vmem:[#allocation4 + $0x620] sm:$0xff]
  %v5033 = vld [vmem:[#allocation4 + $0x628] sm:$0xff]
  %v5034 = vld [vmem:[#allocation4 + $0x630] sm:$0xff]
  %v5035 = vld [vmem:[#allocation4 + $0x638] sm:$0xff]
  %v5036 = vld [vmem:[#allocation4 + $0x640] sm:$0xff]
  %v5037 = vld [vmem:[#allocation4 + $0x648] sm:$0xff]
  %v5038 = vld [vmem:[#allocation4 + $0x650] sm:$0xff]
  %v5039 = vld [vmem:[#allocation4 + $0x658] sm:$0xff]
  %v5040 = vld [vmem:[#allocation4 + $0x660] sm:$0xff]
  %v5041 = vld [vmem:[#allocation4 + $0x668] sm:$0xff]
  %v5042 = vld [vmem:[#allocation4 + $0x670] sm:$0xff]
  %v5043 = vld [vmem:[#allocation4 + $0x678] sm:$0xff]
  %v5044 = vld [vmem:[#allocation4 + $0x680] sm:$0xff]
  %v5045 = vld [vmem:[#allocation4 + $0x688] sm:$0xff]
  %v5046 = vld [vmem:[#allocation4 + $0x690] sm:$0xff]
  %v5047 = vld [vmem:[#allocation4 + $0x698] sm:$0xff]
  %v5048 = vld [vmem:[#allocation4 + $0x6a0] sm:$0xff]
  %v5049 = vld [vmem:[#allocation4 + $0x6a8] sm:$0xff]
  %v5050 = vld [vmem:[#allocation4 + $0x6b0] sm:$0xff]
  %v5051 = vld [vmem:[#allocation4 + $0x6b8] sm:$0xff]
  %v5052 = vld [vmem:[#allocation4 + $0x6c0] sm:$0xff]
  %v5053 = vld [vmem:[#allocation4 + $0x6c8] sm:$0xff]
  %v5054 = vld [vmem:[#allocation4 + $0x6d0] sm:$0xff]
  %v5055 = vld [vmem:[#allocation4 + $0x6d8] sm:$0xff]
  %v5056 = vld [vmem:[#allocation4 + $0x6e0] sm:$0xff]
  %v5057 = vld [vmem:[#allocation4 + $0x6e8] sm:$0xff]
  %v5058 = vld [vmem:[#allocation4 + $0x6f0] sm:$0xff]
  %v5059 = vld [vmem:[#allocation4 + $0x6f8] sm:$0xff]
  %v5060 = vld [vmem:[#allocation4 + $0x700] sm:$0xff]
  %v5061 = vld [vmem:[#allocation4 + $0x708] sm:$0xff]
  %v5062 = vld [vmem:[#allocation4 + $0x710] sm:$0xff]
  %v5063 = vld [vmem:[#allocation4 + $0x718] sm:$0xff]
  %v5064 = vld [vmem:[#allocation4 + $0x720] sm:$0xff]
  %v5065 = vld [vmem:[#allocation4 + $0x728] sm:$0xff]
  %v5066 = vld [vmem:[#allocation4 + $0x730] sm:$0xff]
  %v5067 = vld [vmem:[#allocation4 + $0x738] sm:$0xff]
  %v5068 = vld [vmem:[#allocation4 + $0x740] sm:$0xff]
  %v5069 = vld [vmem:[#allocation4 + $0x748] sm:$0xff]
  %v5070 = vld [vmem:[#allocation4 + $0x750] sm:$0xff]
  %v5071 = vld [vmem:[#allocation4 + $0x758] sm:$0xff]
  %v5072 = vld [vmem:[#allocation4 + $0x760] sm:$0xff]
  %v5073 = vld [vmem:[#allocation4 + $0x768] sm:$0xff]
  %v5074 = vld [vmem:[#allocation4 + $0x770] sm:$0xff]
  %v5075 = vld [vmem:[#allocation4 + $0x778] sm:$0xff]
  %v5076 = vld [vmem:[#allocation4 + $0x780] sm:$0xff]
  %v5077 = vld [vmem:[#allocation4 + $0x788] sm:$0xff]
  %v5078 = vld [vmem:[#allocation4 + $0x790] sm:$0xff]
  %v5079 = vld [vmem:[#allocation4 + $0x798] sm:$0xff]
  %v5080 = vld [vmem:[#allocation4 + $0x7a0] sm:$0xff]
  %v5081 = vld [vmem:[%s3] sm:$0xff]
  %v5082 = vld [vmem:[%s3 + $0x8] sm:$0xff]
  %v5083 = vld [vmem:[%s3 + $0x10] sm:$0xff]
  %v5084 = vld [vmem:[%s3 + $0x18] sm:$0xff]
  %v5085 = vld [vmem:[%s3 + $0x20] sm:$0xff]
  %v5086 = vld [vmem:[%s3 + $0x28] sm:$0xff]
  %v5087 = vld [vmem:[%s3 + $0x30] sm:$0xff]
  %v5088 = vld [vmem:[%s3 + $0x38] sm:$0xff]
  %v5089 = vld [vmem:[%s3 + $0x40] sm:$0xff]
  %v5090 = vld [vmem:[%s3 + $0x48] sm:$0xff]
  %v5091 = vld [vmem:[%s3 + $0x50] sm:$0xff]
  %v5092 = vld [vmem:[%s3 + $0x58] sm:$0xff]
  %v5093 = vld [vmem:[%s3 + $0x60] sm:$0xff]
  %v5094 = vld [vmem:[%s3 + $0x68] sm:$0xff]
  %v5095 = vld [vmem:[%s3 + $0x70] sm:$0xff]
  %v5096 = vld [vmem:[%s3 + $0x78] sm:$0xff]
  %v5097 = vld [vmem:[%s3 + $0x80] sm:$0xff]
  %v5098 = vld [vmem:[%s3 + $0x88] sm:$0xff]
  %v5099 = vld [vmem:[%s3 + $0x90] sm:$0xff]
  %v5100 = vld [vmem:[%s3 + $0x98] sm:$0xff]
  %v5101 = vld [vmem:[%s3 + $0xa0] sm:$0xff]
  %v5102 = vld [vmem:[%s3 + $0xa8] sm:$0xff]
  %v5103 = vld [vmem:[%s3 + $0xb0] sm:$0xff]
  %v5104 = vld [vmem:[%s3 + $0xb8] sm:$0xff]
  %v5105 = vld [vmem:[%s3 + $0xc0] sm:$0xff]
  %v5106 = vld [vmem:[%s3 + $0xc8] sm:$0xff]
  %v5107 = vld [vmem:[%s3 + $0xd0] sm:$0xff]
  %v5108 = vld [vmem:[%s3 + $0xd8] sm:$0xff]
  %v5109 = vld [vmem:[%s3 + $0xe0] sm:$0xff]
  %v5110 = vld [vmem:[%s3 + $0xe8] sm:$0xff]
  %v5111 = vld [vmem:[%s3 + $0xf0] sm:$0xff]
  %v5112 = vld [vmem:[%s3 + $0xf8] sm:$0xff]
  %v5113 = vld [vmem:[%s3 + $0x100] sm:$0xff]
  %v5114 = vld [vmem:[%s3 + $0x108] sm:$0xff]
  %v5115 = vld [vmem:[%s3 + $0x110] sm:$0xff]
  %v5116 = vld [vmem:[%s3 + $0x118] sm:$0xff]
  %v5117 = vld [vmem:[%s3 + $0x120] sm:$0xff]
  %v5118 = vld [vmem:[%s3 + $0x128] sm:$0xff]
  %v5119 = vld [vmem:[%s3 + $0x130] sm:$0xff]
  %v5120 = vld [vmem:[%s3 + $0x138] sm:$0xff]
  %v5121 = vld [vmem:[%s3 + $0x140] sm:$0xff]
  %v5122 = vld [vmem:[%s3 + $0x148] sm:$0xff]
  %v5123 = vld [vmem:[%s3 + $0x150] sm:$0xff]
  %v5124 = vld [vmem:[%s3 + $0x158] sm:$0xff]
  %v5125 = vld [vmem:[%s3 + $0x160] sm:$0xff]
  %v5126 = vld [vmem:[%s3 + $0x168] sm:$0xff]
  %v5127 = vld [vmem:[%s3 + $0x170] sm:$0xff]
  %v5128 = vld [vmem:[%s3 + $0x178] sm:$0xff]
  %v5129 = vld [vmem:[%s3 + $0x180] sm:$0xff]
  %v5130 = vld [vmem:[%s3 + $0x188] sm:$0xff]
  %v5131 = vld [vmem:[%s3 + $0x190] sm:$0xff]
  %v5132 = vld [vmem:[%s3 + $0x198] sm:$0xff]
  %v5133 = vld [vmem:[%s3 + $0x1a0] sm:$0xff]
  %v5134 = vld [vmem:[%s3 + $0x1a8] sm:$0xff]
  %v5135 = vld [vmem:[%s3 + $0x1b0] sm:$0xff]
  %v5136 = vld [vmem:[%s3 + $0x1b8] sm:$0xff]
  %v5137 = vld [vmem:[%s3 + $0x1c0] sm:$0xff]
  %v5138 = vld [vmem:[%s3 + $0x1c8] sm:$0xff]
  %v5139 = vld [vmem:[%s3 + $0x1d0] sm:$0xff]
  %v5140 = vld [vmem:[%s3 + $0x1d8] sm:$0xff]
  %v5141 = vld [vmem:[%s3 + $0x1e0] sm:$0xff]
  %v5142 = vld [vmem:[%s3 + $0x1e8] sm:$0xff]
  %v5143 = vld [vmem:[%s3 + $0x1f0] sm:$0xff]
  %v5144 = vld [vmem:[%s3 + $0x1f8] sm:$0xff]
  %v5145 = vld [vmem:[%s3 + $0x200] sm:$0xff]
  %v5146 = vld [vmem:[%s3 + $0x208] sm:$0xff]
  %v5147 = vld [vmem:[%s3 + $0x210] sm:$0xff]
  %v5148 = vld [vmem:[%s3 + $0x218] sm:$0xff]
  %v5149 = vld [vmem:[%s3 + $0x220] sm:$0xff]
  %v5150 = vld [vmem:[%s3 + $0x228] sm:$0xff]
  %v5151 = vld [vmem:[%s3 + $0x230] sm:$0xff]
  %v5152 = vld [vmem:[%s3 + $0x238] sm:$0xff]
  %v5153 = vld [vmem:[%s4] sm:$0x1]
  %v5155 = vlaneseq
  %v5156 = vshrl.u32 %v5155, 7
  %v5157 = vsub.s32 0, %v5156
  %v5158 = vrot.slane %v5153, %v5157
  %v5161 = vsel %vm2565, %v4840, 0
  %v5164 = vsel %vm2565, %v4845, 0
  %v5167 = vsel %vm2565, %v4850, 0
  %v5170 = vsel %vm2565, %v4855, 0
  %v5173 = vsel %vm2565, %v4860, 0
  %v5176 = vsel %vm2565, %v4865, 0
  %v5179 = vsel %vm2565, %v4870, 0
  %v5182 = vsel %vm2565, %v4875, 0
  %v5185 = vsel %vm2565, %v4880, 0
  %v5188 = vsel %vm2565, %v4885, 0
  %v5191 = vsel %vm2565, %v4890, 0
  %v5194 = vsel %vm2565, %v4895, 0
  %v5197 = vsel %vm2565, %v4900, 0
  %v5200 = vsel %vm2565, %v4905, 0
  %v5203 = vsel %vm2565, %v4910, 0
  %v5206 = vsel %vm2565, %v4915, 0
  %v5209 = vsel %vm2565, %v4920, 0
  %v5212 = vsel %vm2565, %v4925, 0
  %v5215 = vsel %vm2565, %v4930, 0
  %v5218 = vsel %vm2565, %v4935, 0
  %v5221 = vsel %vm2565, %v4940, 0
  %v5224 = vsel %vm2565, %v4945, 0
  %v5227 = vsel %vm2565, %v4950, 0
  %v5230 = vsel %vm2565, %v4955, 0
  %v5233 = vsel %vm2565, %v4960, 0
  %v5236 = vsel %vm2565, %v4965, 0
  %v5239 = vsel %vm2565, %v4970, 0
  %v5242 = vsel %vm2565, %v4975, 0
  %v5245 = vsel %vm2565, %v4980, 0
  %v5248 = vsel %vm2565, %v4985, 0
  %v5251 = vsel %vm2565, %v4990, 0
  %v5254 = vsel %vm2565, %v4995, 0
  %v5257 = vsel %vm2565, %v5000, 0
  %v5260 = vsel %vm2565, %v5005, 0
  %v5263 = vsel %vm2565, %v5010, 0
  %v5266 = vsel %vm2565, %v5015, 0
  %v5269 = vsel %vm2565, %v5020, 0
  %v5272 = vsel %vm2565, %v5025, 0
  %v5275 = vsel %vm2565, %v5030, 0
  %v5278 = vsel %vm2565, %v5035, 0
  %v5281 = vsel %vm2565, %v5040, 0
  %v5284 = vsel %vm2565, %v5045, 0
  %v5287 = vsel %vm2565, %v5050, 0
  %v5290 = vsel %vm2565, %v5055, 0
  %v5293 = vsel %vm2565, %v5060, 0
  %v5296 = vsel %vm2565, %v5065, 0
  %v5299 = vsel %vm2565, %v5070, 0
  %v5302 = vsel %vm2565, %v5075, 0
  %v5305 = vsel %vm2565, %v5080, 0
  %5307 = vmatprep.subr.mxu0 0.0
  %5308 = vmatpush1.msra.mxu0 %v5081
  %5309 = vmatprep.subr.mxu0 0.0
  %5310 = vmatpush1.msra.mxu0 %v5082
  %5311 = vmatprep.subr.mxu0 0.0
  %5312 = vmatpush1.msra.mxu0 %v5083
  %5313 = vmatprep.subr.mxu0 0.0
  %5314 = vmatpush1.msra.mxu0 %v5084
  %5315 = vmatprep.subr.mxu0 0.0
  %5316 = vmatpush1.msra.mxu0 %v5085
  %5317 = vmatprep.subr.mxu0 0.0
  %5318 = vmatpush1.msra.mxu0 %v5086
  %5319 = vmatprep.subr.mxu0 0.0
  %5320 = vmatpush1.msra.mxu0 %v5087
  %5321 = vmatprep.subr.mxu0 0.0
  %5322 = vmatpush1.msra.mxu0 %v5088
  %5323 = vmatprep.subr.mxu0 0.0
  %5324 = vmatpush1.msra.mxu0 %v5089
  %5325 = vmatprep.subr.mxu0 0.0
  %5326 = vmatpush1.msra.mxu0 %v5090
  %5327 = vmatprep.subr.mxu0 0.0
  %5328 = vmatpush1.msra.mxu0 %v5091
  %5329 = vmatprep.subr.mxu0 0.0
  %5330 = vmatpush1.msra.mxu0 %v5092
  %5331 = vmatprep.subr.mxu0 0.0
  %5332 = vmatpush1.msra.mxu0 %v5093
  %5333 = vmatprep.subr.mxu0 0.0
  %5334 = vmatpush1.msra.mxu0 %v5094
  %5335 = vmatprep.subr.mxu0 0.0
  %5336 = vmatpush1.msra.mxu0 %v5095
  %5337 = vmatprep.subr.mxu0 0.0
  %5338 = vmatpush1.msra.mxu0 %v5096
  %5339 = vmatprep.subr.mxu0 0.0
  %5340 = vmatpush1.msra.mxu0 %v5097
  %5341 = vmatprep.subr.mxu0 0.0
  %5342 = vmatpush1.msra.mxu0 %v5098
  %5343 = vmatprep.subr.mxu0 0.0
  %5344 = vmatpush1.msra.mxu0 %v5099
  %5345 = vmatprep.subr.mxu0 0.0
  %5346 = vmatpush1.msra.mxu0 %v5100
  %5347 = vmatprep.subr.mxu0 0.0
  %5348 = vmatpush1.msra.mxu0 %v5101
  %5349 = vmatprep.subr.mxu0 0.0
  %5350 = vmatpush1.msra.mxu0 %v5102
  %5351 = vmatprep.subr.mxu0 0.0
  %5352 = vmatpush1.msra.mxu0 %v5103
  %5353 = vmatprep.subr.mxu0 0.0
  %5354 = vmatpush1.msra.mxu0 %v5104
  %5355 = vmatprep.subr.mxu0 0.0
  %5356 = vmatpush1.msra.mxu0 %v5105
  %5357 = vmatprep.subr.mxu0 0.0
  %5358 = vmatpush1.msra.mxu0 %v5106
  %5359 = vmatprep.subr.mxu0 0.0
  %5360 = vmatpush1.msra.mxu0 %v5107
  %5361 = vmatprep.subr.mxu0 0.0
  %5362 = vmatpush1.msra.mxu0 %v5108
  %5363 = vmatprep.subr.mxu0 0.0
  %5364 = vmatpush1.msra.mxu0 %v5109
  %5365 = vmatprep.subr.mxu0 0.0
  %5366 = vmatpush1.msra.mxu0 %v5110
  %5367 = vmatprep.subr.mxu0 0.0
  %5368 = vmatpush1.msra.mxu0 %v5111
  %5369 = vmatprep.subr.mxu0 0.0
  %5370 = vmatpush1.msra.mxu0 %v5112
  %5371 = vmatprep.mubr.f32.mxu0 %v4837
  %5372 = vmatmul.mubr.f32.gmra.mrb[0].mxu0 %v4836
  %v5373 = vpop.f32.mrb[0].mxu0
  %v5374 = vadd.f32 %v5158, %v5373
  %v5375 = vpop.f32.mrb[0].mxu0
  %5376 = vmatprep.mubr.f32.mxu0 %v4842
  %5377 = vmatmul.mubr.f32.gmra.mrb[0].mxu0 %v4841
  %v5378 = vpop.f32.mrb[0].mxu0
  %v5379 = vadd.f32 %v5158, %v5378
  %v5380 = vpop.f32.mrb[0].mxu0
  %5381 = vmatprep.mubr.f32.mxu0 %v4847
  %5382 = vmatmul.mubr.f32.gmra.mrb[0].mxu0 %v4846
  %v5383 = vpop.f32.mrb[0].mxu0
  %v5384 = vadd.f32 %v5158, %v5383
  %v5385 = vpop.f32.mrb[0].mxu0
  %5386 = vmatprep.mubr.f32.mxu0 %v4852
  %5387 = vmatmul.mubr.f32.gmra.mrb[0].mxu0 %v4851
  %v5388 = vpop.f32.mrb[0].mxu0
  %v5389 = vadd.f32 %v5158, %v5388
  %v5390 = vpop.f32.mrb[0].mxu0
  %5391 = vmatprep.mubr.f32.mxu0 %v4857
  %5392 = vmatmul.mubr.f32.gmra.mrb[0].mxu0 %v4856
  %v5393 = vpop.f32.mrb[0].mxu0
  %v5394 = vadd.f32 %v5158, %v5393
  %v5395 = vpop.f32.mrb[0].mxu0
  %5396 = vmatprep.mubr.f32.mxu0 %v4862
  %5397 = vmatmul.mubr.f32.gmra.mrb[0].mxu0 %v4861
  %v5398 = vpop.f32.mrb[0].mxu0
  %v5399 = vadd.f32 %v5158, %v5398
  %v5400 = vpop.f32.mrb[0].mxu0
  %5401 = vmatprep.mubr.f32.mxu0 %v4867
  %5402 = vmatmul.mubr.f32.gmra.mrb[0].mxu0 %v4866
  %v5403 = vpop.f32.mrb[0].mxu0
  %v5404 = vadd.f32 %v5158, %v5403
  %v5405 = vpop.f32.mrb[0].mxu0
  %5406 = vmatprep.mubr.f32.mxu0 %v4872
  %5407 = vmatmul.mubr.f32.gmra.mrb[0].mxu0 %v4871
  %v5408 = vpop.f32.mrb[0].mxu0
  %v5409 = vadd.f32 %v5158, %v5408
  %v5410 = vpop.f32.mrb[0].mxu0
  %5411 = vmatprep.mubr.f32.mxu0 %v4877
  %5412 = vmatmul.mubr.f32.gmra.mrb[0].mxu0 %v4876
  %v5413 = vpop.f32.mrb[0].mxu0
  %v5414 = vadd.f32 %v5158, %v5413
  %v5415 = vpop.f32.mrb[0].mxu0
  %5416 = vmatprep.mubr.f32.mxu0 %v4882
  %5417 = vmatmul.mubr.f32.gmra.mrb[0].mxu0 %v4881
  %v5418 = vpop.f32.mrb[0].mxu0
  %v5419 = vadd.f32 %v5158, %v5418
  %v5420 = vpop.f32.mrb[0].mxu0
  %5421 = vmatprep.mubr.f32.mxu0 %v4887
  %5422 = vmatmul.mubr.f32.gmra.mrb[0].mxu0 %v4886
  %v5423 = vpop.f32.mrb[0].mxu0
  %v5424 = vadd.f32 %v5158, %v5423
  %v5425 = vpop.f32.mrb[0].mxu0
  %5426 = vmatprep.mubr.f32.mxu0 %v4892
  %5427 = vmatmul.mubr.f32.gmra.mrb[0].mxu0 %v4891
  %v5428 = vpop.f32.mrb[0].mxu0
  %v5429 = vadd.f32 %v5158, %v5428
  %v5430 = vpop.f32.mrb[0].mxu0
  %5431 = vmatprep.mubr.f32.mxu0 %v4897
  %5432 = vmatmul.mubr.f32.gmra.mrb[0].mxu0 %v4896
  %v5433 = vpop.f32.mrb[0].mxu0
  %v5434 = vadd.f32 %v5158, %v5433
  %v5435 = vpop.f32.mrb[0].mxu0
  %5436 = vmatprep.mubr.f32.mxu0 %v4902
  %5437 = vmatmul.mubr.f32.gmra.mrb[0].mxu0 %v4901
  %v5438 = vpop.f32.mrb[0].mxu0
  %v5439 = vadd.f32 %v5158, %v5438
  %v5440 = vpop.f32.mrb[0].mxu0
  %5441 = vmatprep.mubr.f32.mxu0 %v4907
  %5442 = vmatmul.mubr.f32.gmra.mrb[0].mxu0 %v4906
  %v5443 = vpop.f32.mrb[0].mxu0
  %v5444 = vadd.f32 %v5158, %v5443
  %v5445 = vpop.f32.mrb[0].mxu0
  %5446 = vmatprep.mubr.f32.mxu0 %v4912
  %5447 = vmatmul.mubr.f32.gmra.mrb[0].mxu0 %v4911
  %v5448 = vpop.f32.mrb[0].mxu0
  %v5449 = vadd.f32 %v5158, %v5448
  %v5450 = vpop.f32.mrb[0].mxu0
  %5451 = vmatprep.mubr.f32.mxu0 %v4917
  %5452 = vmatmul.mubr.f32.gmra.mrb[0].mxu0 %v4916
  %v5453 = vpop.f32.mrb[0].mxu0
  %v5454 = vadd.f32 %v5158, %v5453
  %v5455 = vpop.f32.mrb[0].mxu0
  %5456 = vmatprep.mubr.f32.mxu0 %v4922
  %5457 = vmatmul.mubr.f32.gmra.mrb[0].mxu0 %v4921
  %v5458 = vpop.f32.mrb[0].mxu0
  %v5459 = vadd.f32 %v5158, %v5458
  %v5460 = vpop.f32.mrb[0].mxu0
  %5461 = vmatprep.mubr.f32.mxu0 %v4927
  %5462 = vmatmul.mubr.f32.gmra.mrb[0].mxu0 %v4926
  %v5463 = vpop.f32.mrb[0].mxu0
  %v5464 = vadd.f32 %v5158, %v5463
  %v5465 = vpop.f32.mrb[0].mxu0
  %5466 = vmatprep.mubr.f32.mxu0 %v4932
  %5467 = vmatmul.mubr.f32.gmra.mrb[0].mxu0 %v4931
  %v5468 = vpop.f32.mrb[0].mxu0
  %v5469 = vadd.f32 %v5158, %v5468
  %v5470 = vpop.f32.mrb[0].mxu0
  %5471 = vmatprep.mubr.f32.mxu0 %v4937
  %5472 = vmatmul.mubr.f32.gmra.mrb[0].mxu0 %v4936
  %v5473 = vpop.f32.mrb[0].mxu0
  %v5474 = vadd.f32 %v5158, %v5473
  %v5475 = vpop.f32.mrb[0].mxu0
  %5476 = vmatprep.mubr.f32.mxu0 %v4942
  %5477 = vmatmul.mubr.f32.gmra.mrb[0].mxu0 %v4941
  %v5478 = vpop.f32.mrb[0].mxu0
  %v5479 = vadd.f32 %v5158, %v5478
  %v5480 = vpop.f32.mrb[0].mxu0
  %5481 = vmatprep.mubr.f32.mxu0 %v4947
  %5482 = vmatmul.mubr.f32.gmra.mrb[0].mxu0 %v4946
  %v5483 = vpop.f32.mrb[0].mxu0
  %v5484 = vadd.f32 %v5158, %v5483
  %v5485 = vpop.f32.mrb[0].mxu0
  %5486 = vmatprep.mubr.f32.mxu0 %v4952
  %5487 = vmatmul.mubr.f32.gmra.mrb[0].mxu0 %v4951
  %v5488 = vpop.f32.mrb[0].mxu0
  %v5489 = vadd.f32 %v5158, %v5488
  %v5490 = vpop.f32.mrb[0].mxu0
  %5491 = vmatprep.mubr.f32.mxu0 %v4957
  %5492 = vmatmul.mubr.f32.gmra.mrb[0].mxu0 %v4956
  %v5493 = vpop.f32.mrb[0].mxu0
  %v5494 = vadd.f32 %v5158, %v5493
  %v5495 = vpop.f32.mrb[0].mxu0
  %5496 = vmatprep.mubr.f32.mxu0 %v4962
  %5497 = vmatmul.mubr.f32.gmra.mrb[0].mxu0 %v4961
  %v5498 = vpop.f32.mrb[0].mxu0
  %v5499 = vadd.f32 %v5158, %v5498
  %v5500 = vpop.f32.mrb[0].mxu0
  %5501 = vmatprep.mubr.f32.mxu0 %v4967
  %5502 = vmatmul.mubr.f32.gmra.mrb[0].mxu0 %v4966
  %v5503 = vpop.f32.mrb[0].mxu0
  %v5504 = vadd.f32 %v5158, %v5503
  %v5505 = vpop.f32.mrb[0].mxu0
  %5506 = vmatprep.mubr.f32.mxu0 %v4972
  %5507 = vmatmul.mubr.f32.gmra.mrb[0].mxu0 %v4971
  %v5508 = vpop.f32.mrb[0].mxu0
  %v5509 = vadd.f32 %v5158, %v5508
  %v5510 = vpop.f32.mrb[0].mxu0
  %5511 = vmatprep.mubr.f32.mxu0 %v4977
  %5512 = vmatmul.mubr.f32.gmra.mrb[0].mxu0 %v4976
  %v5513 = vpop.f32.mrb[0].mxu0
  %v5514 = vadd.f32 %v5158, %v5513
  %v5515 = vpop.f32.mrb[0].mxu0
  %5516 = vmatprep.mubr.f32.mxu0 %v4982
  %5517 = vmatmul.mubr.f32.gmra.mrb[0].mxu0 %v4981
  %v5518 = vpop.f32.mrb[0].mxu0
  %v5519 = vadd.f32 %v5158, %v5518
  %v5520 = vpop.f32.mrb[0].mxu0
  %5521 = vmatprep.mubr.f32.mxu0 %v4987
  %5522 = vmatmul.mubr.f32.gmra.mrb[0].mxu0 %v4986
  %v5523 = vpop.f32.mrb[0].mxu0
  %v5524 = vadd.f32 %v5158, %v5523
  %v5525 = vpop.f32.mrb[0].mxu0
  %5526 = vmatprep.mubr.f32.mxu0 %v4992
  %5527 = vmatmul.mubr.f32.gmra.mrb[0].mxu0 %v4991
  %v5528 = vpop.f32.mrb[0].mxu0
  %v5529 = vadd.f32 %v5158, %v5528
  %v5530 = vpop.f32.mrb[0].mxu0
  %5531 = vmatprep.mubr.f32.mxu0 %v4997
  %5532 = vmatmul.mubr.f32.gmra.mrb[0].mxu0 %v4996
  %v5533 = vpop.f32.mrb[0].mxu0
  %v5534 = vadd.f32 %v5158, %v5533
  %v5535 = vpop.f32.mrb[0].mxu0
  %5536 = vmatprep.mubr.f32.mxu0 %v5002
  %5537 = vmatmul.mubr.f32.gmra.mrb[0].mxu0 %v5001
  %v5538 = vpop.f32.mrb[0].mxu0
  %v5539 = vadd.f32 %v5158, %v5538
  %v5540 = vpop.f32.mrb[0].mxu0
  %5541 = vmatprep.mubr.f32.mxu0 %v5007
  %5542 = vmatmul.mubr.f32.gmra.mrb[0].mxu0 %v5006
  %v5543 = vpop.f32.mrb[0].mxu0
  %v5544 = vadd.f32 %v5158, %v5543
  %v5545 = vpop.f32.mrb[0].mxu0
  %5546 = vmatprep.mubr.f32.mxu0 %v5012
  %5547 = vmatmul.mubr.f32.gmra.mrb[0].mxu0 %v5011
  %v5548 = vpop.f32.mrb[0].mxu0
  %v5549 = vadd.f32 %v5158, %v5548
  %v5550 = vpop.f32.mrb[0].mxu0
  %5551 = vmatprep.mubr.f32.mxu0 %v5017
  %5552 = vmatmul.mubr.f32.gmra.mrb[0].mxu0 %v5016
  %v5553 = vpop.f32.mrb[0].mxu0
  %v5554 = vadd.f32 %v5158, %v5553
  %v5555 = vpop.f32.mrb[0].mxu0
  %5556 = vmatprep.mubr.f32.mxu0 %v5022
  %5557 = vmatmul.mubr.f32.gmra.mrb[0].mxu0 %v5021
  %v5558 = vpop.f32.mrb[0].mxu0
  %v5559 = vadd.f32 %v5158, %v5558
  %v5560 = vpop.f32.mrb[0].mxu0
  %5561 = vmatprep.mubr.f32.mxu0 %v5027
  %5562 = vmatmul.mubr.f32.gmra.mrb[0].mxu0 %v5026
  %v5563 = vpop.f32.mrb[0].mxu0
  %v5564 = vadd.f32 %v5158, %v5563
  %v5565 = vpop.f32.mrb[0].mxu0
  %5566 = vmatprep.mubr.f32.mxu0 %v5032
  %5567 = vmatmul.mubr.f32.gmra.mrb[0].mxu0 %v5031
  %v5568 = vpop.f32.mrb[0].mxu0
  %v5569 = vadd.f32 %v5158, %v5568
  %v5570 = vpop.f32.mrb[0].mxu0
  %5571 = vmatprep.mubr.f32.mxu0 %v5037
  %5572 = vmatmul.mubr.f32.gmra.mrb[0].mxu0 %v5036
  %v5573 = vpop.f32.mrb[0].mxu0
  %v5574 = vadd.f32 %v5158, %v5573
  %v5575 = vpop.f32.mrb[0].mxu0
  %5576 = vmatprep.mubr.f32.mxu0 %v5042
  %5577 = vmatmul.mubr.f32.gmra.mrb[0].mxu0 %v5041
  %v5578 = vpop.f32.mrb[0].mxu0
  %v5579 = vadd.f32 %v5158, %v5578
  %v5580 = vpop.f32.mrb[0].mxu0
  %5581 = vmatprep.mubr.f32.mxu0 %v5047
  %5582 = vmatmul.mubr.f32.gmra.mrb[0].mxu0 %v5046
  %v5583 = vpop.f32.mrb[0].mxu0
  %v5584 = vadd.f32 %v5158, %v5583
  %v5585 = vpop.f32.mrb[0].mxu0
  %5586 = vmatprep.mubr.f32.mxu0 %v5052
  %5587 = vmatmul.mubr.f32.gmra.mrb[0].mxu0 %v5051
  %v5588 = vpop.f32.mrb[0].mxu0
  %v5589 = vadd.f32 %v5158, %v5588
  %v5590 = vpop.f32.mrb[0].mxu0
  %5591 = vmatprep.mubr.f32.mxu0 %v5057
  %5592 = vmatmul.mubr.f32.gmra.mrb[0].mxu0 %v5056
  %v5593 = vpop.f32.mrb[0].mxu0
  %v5594 = vadd.f32 %v5158, %v5593
  %v5595 = vpop.f32.mrb[0].mxu0
  %5596 = vmatprep.mubr.f32.mxu0 %v5062
  %5597 = vmatmul.mubr.f32.gmra.mrb[0].mxu0 %v5061
  %v5598 = vpop.f32.mrb[0].mxu0
  %v5599 = vadd.f32 %v5158, %v5598
  %v5600 = vpop.f32.mrb[0].mxu0
  %5601 = vmatprep.mubr.f32.mxu0 %v5067
  %5602 = vmatmul.mubr.f32.gmra.mrb[0].mxu0 %v5066
  %v5603 = vpop.f32.mrb[0].mxu0
  %v5604 = vadd.f32 %v5158, %v5603
  %v5605 = vpop.f32.mrb[0].mxu0
  %5606 = vmatprep.mubr.f32.mxu0 %v5072
  %5607 = vmatmul.mubr.f32.gmra.mrb[0].mxu0 %v5071
  %v5608 = vpop.f32.mrb[0].mxu0
  %v5609 = vadd.f32 %v5158, %v5608
  %v5610 = vpop.f32.mrb[0].mxu0
  %5611 = vmatprep.mubr.f32.mxu0 %v5077
  %5612 = vmatmul.mubr.f32.gmra.mrb[0].mxu0 %v5076
  %v5613 = vpop.f32.mrb[0].mxu0
  %v5614 = vadd.f32 %v5158, %v5613
  %v5615 = vpop.f32.mrb[0].mxu0
  %5616 = vdwg.mxu0
  %5617 = vmatprep.subr.mxu0 0.0
  %5618 = vmatpush1.msra.mxu0 %v5113
  %5619 = vmatprep.subr.mxu0 0.0
  %5620 = vmatpush1.msra.mxu0 %v5114
  %5621 = vmatprep.subr.mxu0 0.0
  %5622 = vmatpush1.msra.mxu0 %v5115
  %5623 = vmatprep.subr.mxu0 0.0
  %5624 = vmatpush1.msra.mxu0 %v5116
  %5625 = vmatprep.subr.mxu0 0.0
  %5626 = vmatpush1.msra.mxu0 %v5117
  %5627 = vmatprep.subr.mxu0 0.0
  %5628 = vmatpush1.msra.mxu0 %v5118
  %5629 = vmatprep.subr.mxu0 0.0
  %5630 = vmatpush1.msra.mxu0 %v5119
  %5631 = vmatprep.subr.mxu0 0.0
  %5632 = vmatpush1.msra.mxu0 %v5120
  %5633 = vmatprep.subr.mxu0 0.0
  %5634 = vmatpush1.msra.mxu0 %v5121
  %5635 = vmatprep.subr.mxu0 0.0
  %5636 = vmatpush1.msra.mxu0 %v5122
  %5637 = vmatprep.subr.mxu0 0.0
  %5638 = vmatpush1.msra.mxu0 %v5123
  %5639 = vmatprep.subr.mxu0 0.0
  %5640 = vmatpush1.msra.mxu0 %v5124
  %5641 = vmatprep.subr.mxu0 0.0
  %5642 = vmatpush1.msra.mxu0 %v5125
  %5643 = vmatprep.subr.mxu0 0.0
  %5644 = vmatpush1.msra.mxu0 %v5126
  %5645 = vmatprep.subr.mxu0 0.0
  %5646 = vmatpush1.msra.mxu0 %v5127
  %5647 = vmatprep.subr.mxu0 0.0
  %5648 = vmatpush1.msra.mxu0 %v5128
  %5649 = vmatprep.subr.mxu0 0.0
  %5650 = vmatpush1.msra.mxu0 %v5129
  %5651 = vmatprep.subr.mxu0 0.0
  %5652 = vmatpush1.msra.mxu0 %v5130
  %5653 = vmatprep.subr.mxu0 0.0
  %5654 = vmatpush1.msra.mxu0 %v5131
  %5655 = vmatprep.subr.mxu0 0.0
  %5656 = vmatpush1.msra.mxu0 %v5132
  %5657 = vmatprep.subr.mxu0 0.0
  %5658 = vmatpush1.msra.mxu0 %v5133
  %5659 = vmatprep.subr.mxu0 0.0
  %5660 = vmatpush1.msra.mxu0 %v5134
  %5661 = vmatprep.subr.mxu0 0.0
  %5662 = vmatpush1.msra.mxu0 %v5135
  %5663 = vmatprep.subr.mxu0 0.0
  %5664 = vmatpush1.msra.mxu0 %v5136
  %5665 = vmatprep.subr.mxu0 0.0
  %5666 = vmatpush1.msra.mxu0 %v5137
  %5667 = vmatprep.subr.mxu0 0.0
  %5668 = vmatpush1.msra.mxu0 %v5138
  %5669 = vmatprep.subr.mxu0 0.0
  %5670 = vmatpush1.msra.mxu0 %v5139
  %5671 = vmatprep.subr.mxu0 0.0
  %5672 = vmatpush1.msra.mxu0 %v5140
  %5673 = vmatprep.subr.mxu0 0.0
  %5674 = vmatpush1.msra.mxu0 %v5141
  %5675 = vmatprep.subr.mxu0 0.0
  %5676 = vmatpush1.msra.mxu0 %v5142
  %5677 = vmatprep.subr.mxu0 0.0
  %5678 = vmatpush1.msra.mxu0 %v5143
  %5679 = vmatprep.subr.mxu0 0.0
  %5680 = vmatpush1.msra.mxu0 %v5144
  %5681 = vmatprep.mubr.f32.mxu0 %v4839
  %5682 = vmatmul.mubr.f32.gmra.mrb[0].mxu0 %v4838
  %v5683 = vpop.f32.mrb[0].mxu0
  %v5684 = vadd.f32 %v5374, %v5683
  %v5685 = vpop.f32.mrb[0].mxu0
  %5686 = vmatprep.mubr.f32.mxu0 %v4844
  %5687 = vmatmul.mubr.f32.gmra.mrb[0].mxu0 %v4843
  %v5688 = vpop.f32.mrb[0].mxu0
  %v5689 = vadd.f32 %v5379, %v5688
  %v5690 = vpop.f32.mrb[0].mxu0
  %5691 = vmatprep.mubr.f32.mxu0 %v4849
  %5692 = vmatmul.mubr.f32.gmra.mrb[0].mxu0 %v4848
  %v5693 = vpop.f32.mrb[0].mxu0
  %v5694 = vadd.f32 %v5384, %v5693
  %v5695 = vpop.f32.mrb[0].mxu0
  %5696 = vmatprep.mubr.f32.mxu0 %v4854
  %5697 = vmatmul.mubr.f32.gmra.mrb[0].mxu0 %v4853
  %v5698 = vpop.f32.mrb[0].mxu0
  %v5699 = vadd.f32 %v5389, %v5698
  %v5700 = vpop.f32.mrb[0].mxu0
  %5701 = vmatprep.mubr.f32.mxu0 %v4859
  %5702 = vmatmul.mubr.f32.gmra.mrb[0].mxu0 %v4858
  %v5703 = vpop.f32.mrb[0].mxu0
  %v5704 = vadd.f32 %v5394, %v5703
  %v5705 = vpop.f32.mrb[0].mxu0
  %5706 = vmatprep.mubr.f32.mxu0 %v4864
  %5707 = vmatmul.mubr.f32.gmra.mrb[0].mxu0 %v4863
  %v5708 = vpop.f32.mrb[0].mxu0
  %v5709 = vadd.f32 %v5399, %v5708
  %v5710 = vpop.f32.mrb[0].mxu0
  %5711 = vmatprep.mubr.f32.mxu0 %v4869
  %5712 = vmatmul.mubr.f32.gmra.mrb[0].mxu0 %v4868
  %v5713 = vpop.f32.mrb[0].mxu0
  %v5714 = vadd.f32 %v5404, %v5713
  %v5715 = vpop.f32.mrb[0].mxu0
  %5716 = vmatprep.mubr.f32.mxu0 %v4874
  %5717 = vmatmul.mubr.f32.gmra.mrb[0].mxu0 %v4873
  %v5718 = vpop.f32.mrb[0].mxu0
  %v5719 = vadd.f32 %v5409, %v5718
  %v5720 = vpop.f32.mrb[0].mxu0
  %5721 = vmatprep.mubr.f32.mxu0 %v4879
  %5722 = vmatmul.mubr.f32.gmra.mrb[0].mxu0 %v4878
  %v5723 = vpop.f32.mrb[0].mxu0
  %v5724 = vadd.f32 %v5414, %v5723
  %v5725 = vpop.f32.mrb[0].mxu0
  %5726 = vmatprep.mubr.f32.mxu0 %v4884
  %5727 = vmatmul.mubr.f32.gmra.mrb[0].mxu0 %v4883
  %v5728 = vpop.f32.mrb[0].mxu0
  %v5729 = vadd.f32 %v5419, %v5728
  %v5730 = vpop.f32.mrb[0].mxu0
  %5731 = vmatprep.mubr.f32.mxu0 %v4889
  %5732 = vmatmul.mubr.f32.gmra.mrb[0].mxu0 %v4888
  %v5733 = vpop.f32.mrb[0].mxu0
  %v5734 = vadd.f32 %v5424, %v5733
  %v5735 = vpop.f32.mrb[0].mxu0
  %5736 = vmatprep.mubr.f32.mxu0 %v4894
  %5737 = vmatmul.mubr.f32.gmra.mrb[0].mxu0 %v4893
  %v5738 = vpop.f32.mrb[0].mxu0
  %v5739 = vadd.f32 %v5429, %v5738
  %v5740 = vpop.f32.mrb[0].mxu0
  %5741 = vmatprep.mubr.f32.mxu0 %v4899
  %5742 = vmatmul.mubr.f32.gmra.mrb[0].mxu0 %v4898
  %v5743 = vpop.f32.mrb[0].mxu0
  %v5744 = vadd.f32 %v5434, %v5743
  %v5745 = vpop.f32.mrb[0].mxu0
  %5746 = vmatprep.mubr.f32.mxu0 %v4904
  %5747 = vmatmul.mubr.f32.gmra.mrb[0].mxu0 %v4903
  %v5748 = vpop.f32.mrb[0].mxu0
  %v5749 = vadd.f32 %v5439, %v5748
  %v5750 = vpop.f32.mrb[0].mxu0
  %5751 = vmatprep.mubr.f32.mxu0 %v4909
  %5752 = vmatmul.mubr.f32.gmra.mrb[0].mxu0 %v4908
  %v5753 = vpop.f32.mrb[0].mxu0
  %v5754 = vadd.f32 %v5444, %v5753
  %v5755 = vpop.f32.mrb[0].mxu0
  %5756 = vmatprep.mubr.f32.mxu0 %v4914
  %5757 = vmatmul.mubr.f32.gmra.mrb[0].mxu0 %v4913
  %v5758 = vpop.f32.mrb[0].mxu0
  %v5759 = vadd.f32 %v5449, %v5758
  %v5760 = vpop.f32.mrb[0].mxu0
  %5761 = vmatprep.mubr.f32.mxu0 %v4919
  %5762 = vmatmul.mubr.f32.gmra.mrb[0].mxu0 %v4918
  %v5763 = vpop.f32.mrb[0].mxu0
  %v5764 = vadd.f32 %v5454, %v5763
  %v5765 = vpop.f32.mrb[0].mxu0
  %5766 = vmatprep.mubr.f32.mxu0 %v4924
  %5767 = vmatmul.mubr.f32.gmra.mrb[0].mxu0 %v4923
  %v5768 = vpop.f32.mrb[0].mxu0
  %v5769 = vadd.f32 %v5459, %v5768
  %v5770 = vpop.f32.mrb[0].mxu0
  %5771 = vmatprep.mubr.f32.mxu0 %v4929
  %5772 = vmatmul.mubr.f32.gmra.mrb[0].mxu0 %v4928
  %v5773 = vpop.f32.mrb[0].mxu0
  %v5774 = vadd.f32 %v5464, %v5773
  %v5775 = vpop.f32.mrb[0].mxu0
  %5776 = vmatprep.mubr.f32.mxu0 %v4934
  %5777 = vmatmul.mubr.f32.gmra.mrb[0].mxu0 %v4933
  %v5778 = vpop.f32.mrb[0].mxu0
  %v5779 = vadd.f32 %v5469, %v5778
  %v5780 = vpop.f32.mrb[0].mxu0
  %5781 = vmatprep.mubr.f32.mxu0 %v4939
  %5782 = vmatmul.mubr.f32.gmra.mrb[0].mxu0 %v4938
  %v5783 = vpop.f32.mrb[0].mxu0
  %v5784 = vadd.f32 %v5474, %v5783
  %v5785 = vpop.f32.mrb[0].mxu0
  %5786 = vmatprep.mubr.f32.mxu0 %v4944
  %5787 = vmatmul.mubr.f32.gmra.mrb[0].mxu0 %v4943
  %v5788 = vpop.f32.mrb[0].mxu0
  %v5789 = vadd.f32 %v5479, %v5788
  %v5790 = vpop.f32.mrb[0].mxu0
  %5791 = vmatprep.mubr.f32.mxu0 %v4949
  %5792 = vmatmul.mubr.f32.gmra.mrb[0].mxu0 %v4948
  %v5793 = vpop.f32.mrb[0].mxu0
  %v5794 = vadd.f32 %v5484, %v5793
  %v5795 = vpop.f32.mrb[0].mxu0
  %5796 = vmatprep.mubr.f32.mxu0 %v4954
  %5797 = vmatmul.mubr.f32.gmra.mrb[0].mxu0 %v4953
  %v5798 = vpop.f32.mrb[0].mxu0
  %v5799 = vadd.f32 %v5489, %v5798
  %v5800 = vpop.f32.mrb[0].mxu0
  %5801 = vmatprep.mubr.f32.mxu0 %v4959
  %5802 = vmatmul.mubr.f32.gmra.mrb[0].mxu0 %v4958
  %v5803 = vpop.f32.mrb[0].mxu0
  %v5804 = vadd.f32 %v5494, %v5803
  %v5805 = vpop.f32.mrb[0].mxu0
  %5806 = vmatprep.mubr.f32.mxu0 %v4964
  %5807 = vmatmul.mubr.f32.gmra.mrb[0].mxu0 %v4963
  %v5808 = vpop.f32.mrb[0].mxu0
  %v5809 = vadd.f32 %v5499, %v5808
  %v5810 = vpop.f32.mrb[0].mxu0
  %5811 = vmatprep.mubr.f32.mxu0 %v4969
  %5812 = vmatmul.mubr.f32.gmra.mrb[0].mxu0 %v4968
  %v5813 = vpop.f32.mrb[0].mxu0
  %v5814 = vadd.f32 %v5504, %v5813
  %v5815 = vpop.f32.mrb[0].mxu0
  %5816 = vmatprep.mubr.f32.mxu0 %v4974
  %5817 = vmatmul.mubr.f32.gmra.mrb[0].mxu0 %v4973
  %v5818 = vpop.f32.mrb[0].mxu0
  %v5819 = vadd.f32 %v5509, %v5818
  %v5820 = vpop.f32.mrb[0].mxu0
  %5821 = vmatprep.mubr.f32.mxu0 %v4979
  %5822 = vmatmul.mubr.f32.gmra.mrb[0].mxu0 %v4978
  %v5823 = vpop.f32.mrb[0].mxu0
  %v5824 = vadd.f32 %v5514, %v5823
  %v5825 = vpop.f32.mrb[0].mxu0
  %5826 = vmatprep.mubr.f32.mxu0 %v4984
  %5827 = vmatmul.mubr.f32.gmra.mrb[0].mxu0 %v4983
  %v5828 = vpop.f32.mrb[0].mxu0
  %v5829 = vadd.f32 %v5519, %v5828
  %v5830 = vpop.f32.mrb[0].mxu0
  %5831 = vmatprep.mubr.f32.mxu0 %v4989
  %5832 = vmatmul.mubr.f32.gmra.mrb[0].mxu0 %v4988
  %v5833 = vpop.f32.mrb[0].mxu0
  %v5834 = vadd.f32 %v5524, %v5833
  %v5835 = vpop.f32.mrb[0].mxu0
  %5836 = vmatprep.mubr.f32.mxu0 %v4994
  %5837 = vmatmul.mubr.f32.gmra.mrb[0].mxu0 %v4993
  %v5838 = vpop.f32.mrb[0].mxu0
  %v5839 = vadd.f32 %v5529, %v5838
  %v5840 = vpop.f32.mrb[0].mxu0
  %5841 = vmatprep.mubr.f32.mxu0 %v4999
  %5842 = vmatmul.mubr.f32.gmra.mrb[0].mxu0 %v4998
  %v5843 = vpop.f32.mrb[0].mxu0
  %v5844 = vadd.f32 %v5534, %v5843
  %v5845 = vpop.f32.mrb[0].mxu0
  %5846 = vmatprep.mubr.f32.mxu0 %v5004
  %5847 = vmatmul.mubr.f32.gmra.mrb[0].mxu0 %v5003
  %v5848 = vpop.f32.mrb[0].mxu0
  %v5849 = vadd.f32 %v5539, %v5848
  %v5850 = vpop.f32.mrb[0].mxu0
  %5851 = vmatprep.mubr.f32.mxu0 %v5009
  %5852 = vmatmul.mubr.f32.gmra.mrb[0].mxu0 %v5008
  %v5853 = vpop.f32.mrb[0].mxu0
  %v5854 = vadd.f32 %v5544, %v5853
  %v5855 = vpop.f32.mrb[0].mxu0
  %5856 = vmatprep.mubr.f32.mxu0 %v5014
  %5857 = vmatmul.mubr.f32.gmra.mrb[0].mxu0 %v5013
  %v5858 = vpop.f32.mrb[0].mxu0
  %v5859 = vadd.f32 %v5549, %v5858
  %v5860 = vpop.f32.mrb[0].mxu0
  %5861 = vmatprep.mubr.f32.mxu0 %v5019
  %5862 = vmatmul.mubr.f32.gmra.mrb[0].mxu0 %v5018
  %v5863 = vpop.f32.mrb[0].mxu0
  %v5864 = vadd.f32 %v5554, %v5863
  %v5865 = vpop.f32.mrb[0].mxu0
  %5866 = vmatprep.mubr.f32.mxu0 %v5024
  %5867 = vmatmul.mubr.f32.gmra.mrb[0].mxu0 %v5023
  %v5868 = vpop.f32.mrb[0].mxu0
  %v5869 = vadd.f32 %v5559, %v5868
  %v5870 = vpop.f32.mrb[0].mxu0
  %5871 = vmatprep.mubr.f32.mxu0 %v5029
  %5872 = vmatmul.mubr.f32.gmra.mrb[0].mxu0 %v5028
  %v5873 = vpop.f32.mrb[0].mxu0
  %v5874 = vadd.f32 %v5564, %v5873
  %v5875 = vpop.f32.mrb[0].mxu0
  %5876 = vmatprep.mubr.f32.mxu0 %v5034
  %5877 = vmatmul.mubr.f32.gmra.mrb[0].mxu0 %v5033
  %v5878 = vpop.f32.mrb[0].mxu0
  %v5879 = vadd.f32 %v5569, %v5878
  %v5880 = vpop.f32.mrb[0].mxu0
  %5881 = vmatprep.mubr.f32.mxu0 %v5039
  %5882 = vmatmul.mubr.f32.gmra.mrb[0].mxu0 %v5038
  %v5883 = vpop.f32.mrb[0].mxu0
  %v5884 = vadd.f32 %v5574, %v5883
  %v5885 = vpop.f32.mrb[0].mxu0
  %5886 = vmatprep.mubr.f32.mxu0 %v5044
  %5887 = vmatmul.mubr.f32.gmra.mrb[0].mxu0 %v5043
  %v5888 = vpop.f32.mrb[0].mxu0
  %v5889 = vadd.f32 %v5579, %v5888
  %v5890 = vpop.f32.mrb[0].mxu0
  %5891 = vmatprep.mubr.f32.mxu0 %v5049
  %5892 = vmatmul.mubr.f32.gmra.mrb[0].mxu0 %v5048
  %v5893 = vpop.f32.mrb[0].mxu0
  %v5894 = vadd.f32 %v5584, %v5893
  %v5895 = vpop.f32.mrb[0].mxu0
  %5896 = vmatprep.mubr.f32.mxu0 %v5054
  %5897 = vmatmul.mubr.f32.gmra.mrb[0].mxu0 %v5053
  %v5898 = vpop.f32.mrb[0].mxu0
  %v5899 = vadd.f32 %v5589, %v5898
  %v5900 = vpop.f32.mrb[0].mxu0
  %5901 = vmatprep.mubr.f32.mxu0 %v5059
  %5902 = vmatmul.mubr.f32.gmra.mrb[0].mxu0 %v5058
  %v5903 = vpop.f32.mrb[0].mxu0
  %v5904 = vadd.f32 %v5594, %v5903
  %v5905 = vpop.f32.mrb[0].mxu0
  %5906 = vmatprep.mubr.f32.mxu0 %v5064
  %5907 = vmatmul.mubr.f32.gmra.mrb[0].mxu0 %v5063
  %v5908 = vpop.f32.mrb[0].mxu0
  %v5909 = vadd.f32 %v5599, %v5908
  %v5910 = vpop.f32.mrb[0].mxu0
  %5911 = vmatprep.mubr.f32.mxu0 %v5069
  %5912 = vmatmul.mubr.f32.gmra.mrb[0].mxu0 %v5068
  %v5913 = vpop.f32.mrb[0].mxu0
  %v5914 = vadd.f32 %v5604, %v5913
  %v5915 = vpop.f32.mrb[0].mxu0
  %5916 = vmatprep.mubr.f32.mxu0 %v5074
  %5917 = vmatmul.mubr.f32.gmra.mrb[0].mxu0 %v5073
  %v5918 = vpop.f32.mrb[0].mxu0
  %v5919 = vadd.f32 %v5609, %v5918
  %v5920 = vpop.f32.mrb[0].mxu0
  %5921 = vmatprep.mubr.f32.mxu0 %v5079
  %5922 = vmatmul.mubr.f32.gmra.mrb[0].mxu0 %v5078
  %v5923 = vpop.f32.mrb[0].mxu0
  %v5924 = vadd.f32 %v5614, %v5923
  %v5925 = vpop.f32.mrb[0].mxu0
  %5926 = vdwg.mxu0
  %5927 = vmatprep.subr.mxu0 0.0
  %5928 = vmatpush1.msra.mxu0 %v5145
  %5929 = vmatprep.subr.mxu0 0.0
  %5930 = vmatpush1.msra.mxu0 %v5146
  %5931 = vmatprep.subr.mxu0 0.0
  %5932 = vmatpush1.msra.mxu0 %v5147
  %5933 = vmatprep.subr.mxu0 0.0
  %5934 = vmatpush1.msra.mxu0 %v5148
  %5935 = vmatprep.subr.mxu0 0.0
  %5936 = vmatpush1.msra.mxu0 %v5149
  %5937 = vmatprep.subr.mxu0 0.0
  %5938 = vmatpush1.msra.mxu0 %v5150
  %5939 = vmatprep.subr.mxu0 0.0
  %5940 = vmatpush1.msra.mxu0 %v5151
  %5941 = vmatprep.subr.mxu0 0.0
  %5942 = vmatpush1.msra.mxu0 %v5152
  %5943 = vmatprep.subr.mxu0 0.0
  %5944 = vmatpush1.msra.mxu0 0.0
  %5945 = vmatprep.subr.mxu0 0.0
  %5946 = vmatpush1.msra.mxu0 0.0
  %5947 = vmatprep.subr.mxu0 0.0
  %5948 = vmatpush1.msra.mxu0 0.0
  %5949 = vmatprep.subr.mxu0 0.0
  %5950 = vmatpush1.msra.mxu0 0.0
  %5951 = vmatprep.subr.mxu0 0.0
  %5952 = vmatpush1.msra.mxu0 0.0
  %5953 = vmatprep.subr.mxu0 0.0
  %5954 = vmatpush1.msra.mxu0 0.0
  %5955 = vmatprep.subr.mxu0 0.0
  %5956 = vmatpush1.msra.mxu0 0.0
  %5957 = vmatprep.subr.mxu0 0.0
  %5958 = vmatpush1.msra.mxu0 0.0
  %5959 = vmatprep.subr.mxu0 0.0
  %5960 = vmatpush1.msra.mxu0 0.0
  %5961 = vmatprep.subr.mxu0 0.0
  %5962 = vmatpush1.msra.mxu0 0.0
  %5963 = vmatprep.subr.mxu0 0.0
  %5964 = vmatpush1.msra.mxu0 0.0
  %5965 = vmatprep.subr.mxu0 0.0
  %5966 = vmatpush1.msra.mxu0 0.0
  %5967 = vmatprep.subr.mxu0 0.0
  %5968 = vmatpush1.msra.mxu0 0.0
  %5969 = vmatprep.subr.mxu0 0.0
  %5970 = vmatpush1.msra.mxu0 0.0
  %5971 = vmatprep.subr.mxu0 0.0
  %5972 = vmatpush1.msra.mxu0 0.0
  %5973 = vmatprep.subr.mxu0 0.0
  %5974 = vmatpush1.msra.mxu0 0.0
  %5975 = vmatprep.subr.mxu0 0.0
  %5976 = vmatpush1.msra.mxu0 0.0
  %5977 = vmatprep.subr.mxu0 0.0
  %5978 = vmatpush1.msra.mxu0 0.0
  %5979 = vmatprep.subr.mxu0 0.0
  %5980 = vmatpush1.msra.mxu0 0.0
  %5981 = vmatprep.subr.mxu0 0.0
  %5982 = vmatpush1.msra.mxu0 0.0
  %5983 = vmatprep.subr.mxu0 0.0
  %5984 = vmatpush1.msra.mxu0 0.0
  %5985 = vmatprep.subr.mxu0 0.0
  %5986 = vmatpush1.msra.mxu0 0.0
  %5987 = vmatprep.subr.mxu0 0.0
  %5988 = vmatpush1.msra.mxu0 0.0
  %5989 = vmatprep.subr.mxu0 0.0
  %5990 = vmatpush1.msra.mxu0 0.0
  %5991 = vmatprep.mubr.f32.mxu0 0.0
  %5992 = vmatmul.mubr.f32.gmra.mrb[0].mxu0 %v5161
  %v5993 = vpop.f32.mrb[0].mxu0
  %v5994 = vadd.f32 %v5684, %v5993
  %v5995 = vpop.f32.mrb[0].mxu0
  %5996 = vmatprep.mubr.f32.mxu0 0.0
  %5997 = vmatmul.mubr.f32.gmra.mrb[0].mxu0 %v5164
  %v5998 = vpop.f32.mrb[0].mxu0
  %v5999 = vadd.f32 %v5689, %v5998
  %v6000 = vpop.f32.mrb[0].mxu0
  %6001 = vmatprep.mubr.f32.mxu0 0.0
  %6002 = vmatmul.mubr.f32.gmra.mrb[0].mxu0 %v5167
  %v6003 = vpop.f32.mrb[0].mxu0
  %v6004 = vadd.f32 %v5694, %v6003
  %v6005 = vpop.f32.mrb[0].mxu0
  %6006 = vmatprep.mubr.f32.mxu0 0.0
  %6007 = vmatmul.mubr.f32.gmra.mrb[0].mxu0 %v5170
  %v6008 = vpop.f32.mrb[0].mxu0
  %v6009 = vadd.f32 %v5699, %v6008
  %v6010 = vpop.f32.mrb[0].mxu0
  %6011 = vmatprep.mubr.f32.mxu0 0.0
  %6012 = vmatmul.mubr.f32.gmra.mrb[0].mxu0 %v5173
  %v6013 = vpop.f32.mrb[0].mxu0
  %v6014 = vadd.f32 %v5704, %v6013
  %v6015 = vpop.f32.mrb[0].mxu0
  %6016 = vmatprep.mubr.f32.mxu0 0.0
  %6017 = vmatmul.mubr.f32.gmra.mrb[0].mxu0 %v5176
  %v6018 = vpop.f32.mrb[0].mxu0
  %v6019 = vadd.f32 %v5709, %v6018
  %v6020 = vpop.f32.mrb[0].mxu0
  %6021 = vmatprep.mubr.f32.mxu0 0.0
  %6022 = vmatmul.mubr.f32.gmra.mrb[0].mxu0 %v5179
  %v6023 = vpop.f32.mrb[0].mxu0
  %v6024 = vadd.f32 %v5714, %v6023
  %v6025 = vpop.f32.mrb[0].mxu0
  %6026 = vmatprep.mubr.f32.mxu0 0.0
  %6027 = vmatmul.mubr.f32.gmra.mrb[0].mxu0 %v5182
  %v6028 = vpop.f32.mrb[0].mxu0
  %v6029 = vadd.f32 %v5719, %v6028
  %v6030 = vpop.f32.mrb[0].mxu0
  %6031 = vmatprep.mubr.f32.mxu0 0.0
  %6032 = vmatmul.mubr.f32.gmra.mrb[0].mxu0 %v5185
  %v6033 = vpop.f32.mrb[0].mxu0
  %v6034 = vadd.f32 %v5724, %v6033
  %v6035 = vpop.f32.mrb[0].mxu0
  %6036 = vmatprep.mubr.f32.mxu0 0.0
  %6037 = vmatmul.mubr.f32.gmra.mrb[0].mxu0 %v5188
  %v6038 = vpop.f32.mrb[0].mxu0
  %v6039 = vadd.f32 %v5729, %v6038
  %v6040 = vpop.f32.mrb[0].mxu0
  %6041 = vmatprep.mubr.f32.mxu0 0.0
  %6042 = vmatmul.mubr.f32.gmra.mrb[0].mxu0 %v5191
  %v6043 = vpop.f32.mrb[0].mxu0
  %v6044 = vadd.f32 %v5734, %v6043
  %v6045 = vpop.f32.mrb[0].mxu0
  %6046 = vmatprep.mubr.f32.mxu0 0.0
  %6047 = vmatmul.mubr.f32.gmra.mrb[0].mxu0 %v5194
  %v6048 = vpop.f32.mrb[0].mxu0
  %v6049 = vadd.f32 %v5739, %v6048
  %v6050 = vpop.f32.mrb[0].mxu0
  %6051 = vmatprep.mubr.f32.mxu0 0.0
  %6052 = vmatmul.mubr.f32.gmra.mrb[0].mxu0 %v5197
  %v6053 = vpop.f32.mrb[0].mxu0
  %v6054 = vadd.f32 %v5744, %v6053
  %v6055 = vpop.f32.mrb[0].mxu0
  %6056 = vmatprep.mubr.f32.mxu0 0.0
  %6057 = vmatmul.mubr.f32.gmra.mrb[0].mxu0 %v5200
  %v6058 = vpop.f32.mrb[0].mxu0
  %v6059 = vadd.f32 %v5749, %v6058
  %v6060 = vpop.f32.mrb[0].mxu0
  %6061 = vmatprep.mubr.f32.mxu0 0.0
  %6062 = vmatmul.mubr.f32.gmra.mrb[0].mxu0 %v5203
  %v6063 = vpop.f32.mrb[0].mxu0
  %v6064 = vadd.f32 %v5754, %v6063
  %v6065 = vpop.f32.mrb[0].mxu0
  %6066 = vmatprep.mubr.f32.mxu0 0.0
  %6067 = vmatmul.mubr.f32.gmra.mrb[0].mxu0 %v5206
  %v6068 = vpop.f32.mrb[0].mxu0
  %v6069 = vadd.f32 %v5759, %v6068
  %v6070 = vpop.f32.mrb[0].mxu0
  %6071 = vmatprep.mubr.f32.mxu0 0.0
  %6072 = vmatmul.mubr.f32.gmra.mrb[0].mxu0 %v5209
  %v6073 = vpop.f32.mrb[0].mxu0
  %v6074 = vadd.f32 %v5764, %v6073
  %v6075 = vpop.f32.mrb[0].mxu0
  %6076 = vmatprep.mubr.f32.mxu0 0.0
  %6077 = vmatmul.mubr.f32.gmra.mrb[0].mxu0 %v5212
  %v6078 = vpop.f32.mrb[0].mxu0
  %v6079 = vadd.f32 %v5769, %v6078
  %v6080 = vpop.f32.mrb[0].mxu0
  %6081 = vmatprep.mubr.f32.mxu0 0.0
  %6082 = vmatmul.mubr.f32.gmra.mrb[0].mxu0 %v5215
  %v6083 = vpop.f32.mrb[0].mxu0
  %v6084 = vadd.f32 %v5774, %v6083
  %v6085 = vpop.f32.mrb[0].mxu0
  %6086 = vmatprep.mubr.f32.mxu0 0.0
  %6087 = vmatmul.mubr.f32.gmra.mrb[0].mxu0 %v5218
  %v6088 = vpop.f32.mrb[0].mxu0
  %v6089 = vadd.f32 %v5779, %v6088
  %v6090 = vpop.f32.mrb[0].mxu0
  %6091 = vmatprep.mubr.f32.mxu0 0.0
  %6092 = vmatmul.mubr.f32.gmra.mrb[0].mxu0 %v5221
  %v6093 = vpop.f32.mrb[0].mxu0
  %v6094 = vadd.f32 %v5784, %v6093
  %v6095 = vpop.f32.mrb[0].mxu0
  %6096 = vmatprep.mubr.f32.mxu0 0.0
  %6097 = vmatmul.mubr.f32.gmra.mrb[0].mxu0 %v5224
  %v6098 = vpop.f32.mrb[0].mxu0
  %v6099 = vadd.f32 %v5789, %v6098
  %v6100 = vpop.f32.mrb[0].mxu0
  %6101 = vmatprep.mubr.f32.mxu0 0.0
  %6102 = vmatmul.mubr.f32.gmra.mrb[0].mxu0 %v5227
  %v6103 = vpop.f32.mrb[0].mxu0
  %v6104 = vadd.f32 %v5794, %v6103
  %v6105 = vpop.f32.mrb[0].mxu0
  %6106 = vmatprep.mubr.f32.mxu0 0.0
  %6107 = vmatmul.mubr.f32.gmra.mrb[0].mxu0 %v5230
  %v6108 = vpop.f32.mrb[0].mxu0
  %v6109 = vadd.f32 %v5799, %v6108
  %v6110 = vpop.f32.mrb[0].mxu0
  %6111 = vmatprep.mubr.f32.mxu0 0.0
  %6112 = vmatmul.mubr.f32.gmra.mrb[0].mxu0 %v5233
  %v6113 = vpop.f32.mrb[0].mxu0
  %v6114 = vadd.f32 %v5804, %v6113
  %v6115 = vpop.f32.mrb[0].mxu0
  %6116 = vmatprep.mubr.f32.mxu0 0.0
  %6117 = vmatmul.mubr.f32.gmra.mrb[0].mxu0 %v5236
  %v6118 = vpop.f32.mrb[0].mxu0
  %v6119 = vadd.f32 %v5809, %v6118
  %v6120 = vpop.f32.mrb[0].mxu0
  %6121 = vmatprep.mubr.f32.mxu0 0.0
  %6122 = vmatmul.mubr.f32.gmra.mrb[0].mxu0 %v5239
  %v6123 = vpop.f32.mrb[0].mxu0
  %v6124 = vadd.f32 %v5814, %v6123
  %v6125 = vpop.f32.mrb[0].mxu0
  %6126 = vmatprep.mubr.f32.mxu0 0.0
  %6127 = vmatmul.mubr.f32.gmra.mrb[0].mxu0 %v5242
  %v6128 = vpop.f32.mrb[0].mxu0
  %v6129 = vadd.f32 %v5819, %v6128
  %v6130 = vpop.f32.mrb[0].mxu0
  %6131 = vmatprep.mubr.f32.mxu0 0.0
  %6132 = vmatmul.mubr.f32.gmra.mrb[0].mxu0 %v5245
  %v6133 = vpop.f32.mrb[0].mxu0
  %v6134 = vadd.f32 %v5824, %v6133
  %v6135 = vpop.f32.mrb[0].mxu0
  %6136 = vmatprep.mubr.f32.mxu0 0.0
  %6137 = vmatmul.mubr.f32.gmra.mrb[0].mxu0 %v5248
  %v6138 = vpop.f32.mrb[0].mxu0
  %v6139 = vadd.f32 %v5829, %v6138
  %v6140 = vpop.f32.mrb[0].mxu0
  %6141 = vmatprep.mubr.f32.mxu0 0.0
  %6142 = vmatmul.mubr.f32.gmra.mrb[0].mxu0 %v5251
  %v6143 = vpop.f32.mrb[0].mxu0
  %v6144 = vadd.f32 %v5834, %v6143
  %v6145 = vpop.f32.mrb[0].mxu0
  %6146 = vmatprep.mubr.f32.mxu0 0.0
  %6147 = vmatmul.mubr.f32.gmra.mrb[0].mxu0 %v5254
  %v6148 = vpop.f32.mrb[0].mxu0
  %v6149 = vadd.f32 %v5839, %v6148
  %v6150 = vpop.f32.mrb[0].mxu0
  %6151 = vmatprep.mubr.f32.mxu0 0.0
  %6152 = vmatmul.mubr.f32.gmra.mrb[0].mxu0 %v5257
  %v6153 = vpop.f32.mrb[0].mxu0
  %v6154 = vadd.f32 %v5844, %v6153
  %v6155 = vpop.f32.mrb[0].mxu0
  %6156 = vmatprep.mubr.f32.mxu0 0.0
  %6157 = vmatmul.mubr.f32.gmra.mrb[0].mxu0 %v5260
  %v6158 = vpop.f32.mrb[0].mxu0
  %v6159 = vadd.f32 %v5849, %v6158
  %v6160 = vpop.f32.mrb[0].mxu0
  %6161 = vmatprep.mubr.f32.mxu0 0.0
  %6162 = vmatmul.mubr.f32.gmra.mrb[0].mxu0 %v5263
  %v6163 = vpop.f32.mrb[0].mxu0
  %v6164 = vadd.f32 %v5854, %v6163
  %v6165 = vpop.f32.mrb[0].mxu0
  %6166 = vmatprep.mubr.f32.mxu0 0.0
  %6167 = vmatmul.mubr.f32.gmra.mrb[0].mxu0 %v5266
  %v6168 = vpop.f32.mrb[0].mxu0
  %v6169 = vadd.f32 %v5859, %v6168
  %v6170 = vpop.f32.mrb[0].mxu0
  %6171 = vmatprep.mubr.f32.mxu0 0.0
  %6172 = vmatmul.mubr.f32.gmra.mrb[0].mxu0 %v5269
  %v6173 = vpop.f32.mrb[0].mxu0
  %v6174 = vadd.f32 %v5864, %v6173
  %v6175 = vpop.f32.mrb[0].mxu0
  %6176 = vmatprep.mubr.f32.mxu0 0.0
  %6177 = vmatmul.mubr.f32.gmra.mrb[0].mxu0 %v5272
  %v6178 = vpop.f32.mrb[0].mxu0
  %v6179 = vadd.f32 %v5869, %v6178
  %v6180 = vpop.f32.mrb[0].mxu0
  %6181 = vmatprep.mubr.f32.mxu0 0.0
  %6182 = vmatmul.mubr.f32.gmra.mrb[0].mxu0 %v5275
  %v6183 = vpop.f32.mrb[0].mxu0
  %v6184 = vadd.f32 %v5874, %v6183
  %v6185 = vpop.f32.mrb[0].mxu0
  %6186 = vmatprep.mubr.f32.mxu0 0.0
  %6187 = vmatmul.mubr.f32.gmra.mrb[0].mxu0 %v5278
  %v6188 = vpop.f32.mrb[0].mxu0
  %v6189 = vadd.f32 %v5879, %v6188
  %v6190 = vpop.f32.mrb[0].mxu0
  %6191 = vmatprep.mubr.f32.mxu0 0.0
  %6192 = vmatmul.mubr.f32.gmra.mrb[0].mxu0 %v5281
  %v6193 = vpop.f32.mrb[0].mxu0
  %v6194 = vadd.f32 %v5884, %v6193
  %v6195 = vpop.f32.mrb[0].mxu0
  %6196 = vmatprep.mubr.f32.mxu0 0.0
  %6197 = vmatmul.mubr.f32.gmra.mrb[0].mxu0 %v5284
  %v6198 = vpop.f32.mrb[0].mxu0
  %v6199 = vadd.f32 %v5889, %v6198
  %v6200 = vpop.f32.mrb[0].mxu0
  %6201 = vmatprep.mubr.f32.mxu0 0.0
  %6202 = vmatmul.mubr.f32.gmra.mrb[0].mxu0 %v5287
  %v6203 = vpop.f32.mrb[0].mxu0
  %v6204 = vadd.f32 %v5894, %v6203
  %v6205 = vpop.f32.mrb[0].mxu0
  %6206 = vmatprep.mubr.f32.mxu0 0.0
  %6207 = vmatmul.mubr.f32.gmra.mrb[0].mxu0 %v5290
  %v6208 = vpop.f32.mrb[0].mxu0
  %v6209 = vadd.f32 %v5899, %v6208
  %v6210 = vpop.f32.mrb[0].mxu0
  %6211 = vmatprep.mubr.f32.mxu0 0.0
  %6212 = vmatmul.mubr.f32.gmra.mrb[0].mxu0 %v5293
  %v6213 = vpop.f32.mrb[0].mxu0
  %v6214 = vadd.f32 %v5904, %v6213
  %v6215 = vpop.f32.mrb[0].mxu0
  %6216 = vmatprep.mubr.f32.mxu0 0.0
  %6217 = vmatmul.mubr.f32.gmra.mrb[0].mxu0 %v5296
  %v6218 = vpop.f32.mrb[0].mxu0
  %v6219 = vadd.f32 %v5909, %v6218
  %v6220 = vpop.f32.mrb[0].mxu0
  %6221 = vmatprep.mubr.f32.mxu0 0.0
  %6222 = vmatmul.mubr.f32.gmra.mrb[0].mxu0 %v5299
  %v6223 = vpop.f32.mrb[0].mxu0
  %v6224 = vadd.f32 %v5914, %v6223
  %v6225 = vpop.f32.mrb[0].mxu0
  %6226 = vmatprep.mubr.f32.mxu0 0.0
  %6227 = vmatmul.mubr.f32.gmra.mrb[0].mxu0 %v5302
  %v6228 = vpop.f32.mrb[0].mxu0
  %v6229 = vadd.f32 %v5919, %v6228
  %v6230 = vpop.f32.mrb[0].mxu0
  %6231 = vmatprep.mubr.f32.mxu0 0.0
  %6232 = vmatmul.mubr.f32.gmra.mrb[0].mxu0 %v5305
  %v6233 = vpop.f32.mrb[0].mxu0
  %v6234 = vadd.f32 %v5924, %v6233
  %v6235 = vpop.f32.mrb[0].mxu0
  %6236 = vdwg.mxu0
  %vm6237 = vcmp.ge.f32.partialorder %v5994, 0.0
  %vm6238 = vcmp.ge.f32.partialorder %v5999, 0.0
  %vm6239 = vcmp.ge.f32.partialorder %v6004, 0.0
  %vm6240 = vcmp.ge.f32.partialorder %v6009, 0.0
  %vm6241 = vcmp.ge.f32.partialorder %v6014, 0.0
  %vm6242 = vcmp.ge.f32.partialorder %v6019, 0.0
  %vm6243 = vcmp.ge.f32.partialorder %v6024, 0.0
  %vm6244 = vcmp.ge.f32.partialorder %v6029, 0.0
  %vm6245 = vcmp.ge.f32.partialorder %v6034, 0.0
  %vm6246 = vcmp.ge.f32.partialorder %v6039, 0.0
  %vm6247 = vcmp.ge.f32.partialorder %v6044, 0.0
  %vm6248 = vcmp.ge.f32.partialorder %v6049, 0.0
  %vm6249 = vcmp.ge.f32.partialorder %v6054, 0.0
  %vm6250 = vcmp.ge.f32.partialorder %v6059, 0.0
  %vm6251 = vcmp.ge.f32.partialorder %v6064, 0.0
  %vm6252 = vcmp.ge.f32.partialorder %v6069, 0.0
  %vm6253 = vcmp.ge.f32.partialorder %v6074, 0.0
  %vm6254 = vcmp.ge.f32.partialorder %v6079, 0.0
  %vm6255 = vcmp.ge.f32.partialorder %v6084, 0.0
  %vm6256 = vcmp.ge.f32.partialorder %v6089, 0.0
  %vm6257 = vcmp.ge.f32.partialorder %v6094, 0.0
  %vm6258 = vcmp.ge.f32.partialorder %v6099, 0.0
  %vm6259 = vcmp.ge.f32.partialorder %v6104, 0.0
  %vm6260 = vcmp.ge.f32.partialorder %v6109, 0.0
  %vm6261 = vcmp.ge.f32.partialorder %v6114, 0.0
  %vm6262 = vcmp.ge.f32.partialorder %v6119, 0.0
  %vm6263 = vcmp.ge.f32.partialorder %v6124, 0.0
  %vm6264 = vcmp.ge.f32.partialorder %v6129, 0.0
  %vm6265 = vcmp.ge.f32.partialorder %v6134, 0.0
  %vm6266 = vcmp.ge.f32.partialorder %v6139, 0.0
  %vm6267 = vcmp.ge.f32.partialorder %v6144, 0.0
  %vm6268 = vcmp.ge.f32.partialorder %v6149, 0.0
  %vm6269 = vcmp.ge.f32.partialorder %v6154, 0.0
  %vm6270 = vcmp.ge.f32.partialorder %v6159, 0.0
  %vm6271 = vcmp.ge.f32.partialorder %v6164, 0.0
  %vm6272 = vcmp.ge.f32.partialorder %v6169, 0.0
  %vm6273 = vcmp.ge.f32.partialorder %v6174, 0.0
  %vm6274 = vcmp.ge.f32.partialorder %v6179, 0.0
  %vm6275 = vcmp.ge.f32.partialorder %v6184, 0.0
  %vm6276 = vcmp.ge.f32.partialorder %v6189, 0.0
  %vm6277 = vcmp.ge.f32.partialorder %v6194, 0.0
  %vm6278 = vcmp.ge.f32.partialorder %v6199, 0.0
  %vm6279 = vcmp.ge.f32.partialorder %v6204, 0.0
  %vm6280 = vcmp.ge.f32.partialorder %v6209, 0.0
  %vm6281 = vcmp.ge.f32.partialorder %v6214, 0.0
  %vm6282 = vcmp.ge.f32.partialorder %v6219, 0.0
  %vm6283 = vcmp.ge.f32.partialorder %v6224, 0.0
  %vm6284 = vcmp.ge.f32.partialorder %v6229, 0.0
  %vm6285 = vcmp.ge.f32.partialorder %v6234, 0.0
  %v6286 = vmul.f32 %v5994, 0.2
  %v6287 = vmul.f32 %v5999, 0.2
  %v6288 = vmul.f32 %v6004, 0.2
  %v6289 = vmul.f32 %v6009, 0.2
  %v6290 = vmul.f32 %v6014, 0.2
  %v6291 = vmul.f32 %v6019, 0.2
  %v6292 = vmul.f32 %v6024, 0.2
  %v6293 = vmul.f32 %v6029, 0.2
  %v6294 = vmul.f32 %v6034, 0.2
  %v6295 = vmul.f32 %v6039, 0.2
  %v6296 = vmul.f32 %v6044, 0.2
  %v6297 = vmul.f32 %v6049, 0.2
  %v6298 = vmul.f32 %v6054, 0.2
  %v6299 = vmul.f32 %v6059, 0.2
  %v6300 = vmul.f32 %v6064, 0.2
  %v6301 = vmul.f32 %v6069, 0.2
  %v6302 = vmul.f32 %v6074, 0.2
  %v6303 = vmul.f32 %v6079, 0.2
  %v6304 = vmul.f32 %v6084, 0.2
  %v6305 = vmul.f32 %v6089, 0.2
  %v6306 = vmul.f32 %v6094, 0.2
  %v6307 = vmul.f32 %v6099, 0.2
  %v6308 = vmul.f32 %v6104, 0.2
  %v6309 = vmul.f32 %v6109, 0.2
  %v6310 = vmul.f32 %v6114, 0.2
  %v6311 = vmul.f32 %v6119, 0.2
  %v6312 = vmul.f32 %v6124, 0.2
  %v6313 = vmul.f32 %v6129, 0.2
  %v6314 = vmul.f32 %v6134, 0.2
  %v6315 = vmul.f32 %v6139, 0.2
  %v6316 = vmul.f32 %v6144, 0.2
  %v6317 = vmul.f32 %v6149, 0.2
  %v6318 = vmul.f32 %v6154, 0.2
  %v6319 = vmul.f32 %v6159, 0.2
  %v6320 = vmul.f32 %v6164, 0.2
  %v6321 = vmul.f32 %v6169, 0.2
  %v6322 = vmul.f32 %v6174, 0.2
  %v6323 = vmul.f32 %v6179, 0.2
  %v6324 = vmul.f32 %v6184, 0.2
  %v6325 = vmul.f32 %v6189, 0.2
  %v6326 = vmul.f32 %v6194, 0.2
  %v6327 = vmul.f32 %v6199, 0.2
  %v6328 = vmul.f32 %v6204, 0.2
  %v6329 = vmul.f32 %v6209, 0.2
  %v6330 = vmul.f32 %v6214, 0.2
  %v6331 = vmul.f32 %v6219, 0.2
  %v6332 = vmul.f32 %v6224, 0.2
  %v6333 = vmul.f32 %v6229, 0.2
  %v6334 = vmul.f32 %v6234, 0.2
  %v6335 = vsel %vm6237, %v5994, %v6286
  %v6336 = vsel %vm6238, %v5999, %v6287
  %v6337 = vsel %vm6239, %v6004, %v6288
  %v6338 = vsel %vm6240, %v6009, %v6289
  %v6339 = vsel %vm6241, %v6014, %v6290
  %v6340 = vsel %vm6242, %v6019, %v6291
  %v6341 = vsel %vm6243, %v6024, %v6292
  %v6342 = vsel %vm6244, %v6029, %v6293
  %v6343 = vsel %vm6245, %v6034, %v6294
  %v6344 = vsel %vm6246, %v6039, %v6295
  %v6345 = vsel %vm6247, %v6044, %v6296
  %v6346 = vsel %vm6248, %v6049, %v6297
  %v6347 = vsel %vm6249, %v6054, %v6298
  %v6348 = vsel %vm6250, %v6059, %v6299
  %v6349 = vsel %vm6251, %v6064, %v6300
  %v6350 = vsel %vm6252, %v6069, %v6301
  %v6351 = vsel %vm6253, %v6074, %v6302
  %v6352 = vsel %vm6254, %v6079, %v6303
  %v6353 = vsel %vm6255, %v6084, %v6304
  %v6354 = vsel %vm6256, %v6089, %v6305
  %v6355 = vsel %vm6257, %v6094, %v6306
  %v6356 = vsel %vm6258, %v6099, %v6307
  %v6357 = vsel %vm6259, %v6104, %v6308
  %v6358 = vsel %vm6260, %v6109, %v6309
  %v6359 = vsel %vm6261, %v6114, %v6310
  %v6360 = vsel %vm6262, %v6119, %v6311
  %v6361 = vsel %vm6263, %v6124, %v6312
  %v6362 = vsel %vm6264, %v6129, %v6313
  %v6363 = vsel %vm6265, %v6134, %v6314
  %v6364 = vsel %vm6266, %v6139, %v6315
  %v6365 = vsel %vm6267, %v6144, %v6316
  %v6366 = vsel %vm6268, %v6149, %v6317
  %v6367 = vsel %vm6269, %v6154, %v6318
  %v6368 = vsel %vm6270, %v6159, %v6319
  %v6369 = vsel %vm6271, %v6164, %v6320
  %v6370 = vsel %vm6272, %v6169, %v6321
  %v6371 = vsel %vm6273, %v6174, %v6322
  %v6372 = vsel %vm6274, %v6179, %v6323
  %v6373 = vsel %vm6275, %v6184, %v6324
  %v6374 = vsel %vm6276, %v6189, %v6325
  %v6375 = vsel %vm6277, %v6194, %v6326
  %v6376 = vsel %vm6278, %v6199, %v6327
  %v6377 = vsel %vm6279, %v6204, %v6328
  %v6378 = vsel %vm6280, %v6209, %v6329
  %v6379 = vsel %vm6281, %v6214, %v6330
  %v6380 = vsel %vm6282, %v6219, %v6331
  %v6381 = vsel %vm6283, %v6224, %v6332
  %v6382 = vsel %vm6284, %v6229, %v6333
  %v6383 = vsel %vm6285, %v6234, %v6334
  %6384 = vst [vmem:[#allocation5] sm:$0xff] 0.0
  %vm6385 = vcmask 130048
  %6386 = vst.msk [vmem:[#allocation5 + $0x8] sm:$0xff] %vm6385, 0.0
  %6387 = vst [vmem:[#allocation5 + $0x10] sm:$0xff] 0.0
  %6388 = vst.msk [vmem:[#allocation5 + $0x18] sm:$0xff] %vm6385, 0.0
  %6389 = vst [vmem:[#allocation5 + $0x20] sm:$0xff] 0.0
  %6390 = vst.msk [vmem:[#allocation5 + $0x28] sm:$0xff] %vm6385, 0.0
  %6391 = vst [vmem:[#allocation5 + $0x30] sm:$0xff] 0.0
  %6392 = vst.msk [vmem:[#allocation5 + $0x38] sm:$0xff] %vm6385, 0.0
  %6393 = vst [vmem:[#allocation5 + $0x40] sm:$0xff] 0.0
  %6394 = vst.msk [vmem:[#allocation5 + $0x48] sm:$0xff] %vm6385, 0.0
  %6395 = vst [vmem:[#allocation5 + $0x50] sm:$0xff] 0.0
  %6396 = vst.msk [vmem:[#allocation5 + $0x58] sm:$0xff] %vm6385, 0.0
  %6397 = vst [vmem:[#allocation5 + $0x60] sm:$0xff] 0.0
  %6398 = vst.msk [vmem:[#allocation5 + $0x68] sm:$0xff] %vm6385, 0.0
  %6399 = vst [vmem:[#allocation5 + $0x70] sm:$0xff] 0.0
  %6400 = vst.msk [vmem:[#allocation5 + $0x78] sm:$0xff] %vm6385, 0.0
  %6401 = vst [vmem:[#allocation5 + $0x390] sm:$0xff] 0.0
  %6402 = vst.msk [vmem:[#allocation5 + $0x398] sm:$0xff] %vm6385, 0.0
  %6403 = vst [vmem:[#allocation5 + $0x3a0] sm:$0xff] 0.0
  %6404 = vst.msk [vmem:[#allocation5 + $0x3a8] sm:$0xff] %vm6385, 0.0
  %6405 = vst [vmem:[#allocation5 + $0x3b0] sm:$0xff] 0.0
  %6406 = vst.msk [vmem:[#allocation5 + $0x3b8] sm:$0xff] %vm6385, 0.0
  %6407 = vst [vmem:[#allocation5 + $0x3c0] sm:$0xff] 0.0
  %6408 = vst.msk [vmem:[#allocation5 + $0x3c8] sm:$0xff] %vm6385, 0.0
  %6409 = vst [vmem:[#allocation5 + $0x3d0] sm:$0xff] 0.0
  %6410 = vst.msk [vmem:[#allocation5 + $0x3d8] sm:$0xff] %vm6385, 0.0
  %6411 = vst [vmem:[#allocation5 + $0x3e0] sm:$0xff] 0.0
  %6412 = vst.msk [vmem:[#allocation5 + $0x3e8] sm:$0xff] %vm6385, 0.0
  %6413 = vst [vmem:[#allocation5 + $0x3f0] sm:$0xff] 0.0
  %6414 = vst.msk [vmem:[#allocation5 + $0x3f8] sm:$0xff] %vm6385, 0.0
  %6415 = vst [vmem:[#allocation5 + $0x400] sm:$0xff] 0.0
  %6416 = vst.msk [vmem:[#allocation5 + $0x408] sm:$0xff] %vm6385, 0.0
  %v6417 = vld [vmem:[%s5] sm:$0xff]
  %v6418 = vld [vmem:[%s5 + $0x8] sm:$0xff]
  %v6419 = vld [vmem:[%s5 + $0x10] sm:$0xff]
  %v6420 = vld [vmem:[%s5 + $0x18] sm:$0xff]
  %v6421 = vld [vmem:[%s5 + $0x20] sm:$0xff]
  %v6422 = vld [vmem:[%s5 + $0x28] sm:$0xff]
  %v6423 = vld [vmem:[%s5 + $0x30] sm:$0xff]
  %v6424 = vld [vmem:[%s5 + $0x38] sm:$0xff]
  %v6425 = vld [vmem:[%s5 + $0x40] sm:$0xff]
  %v6426 = vld [vmem:[%s5 + $0x48] sm:$0xff]
  %v6427 = vld [vmem:[%s5 + $0x50] sm:$0xff]
  %v6428 = vld [vmem:[%s5 + $0x58] sm:$0xff]
  %v6429 = vld [vmem:[%s5 + $0x60] sm:$0xff]
  %v6430 = vld [vmem:[%s5 + $0x68] sm:$0xff]
  %v6431 = vld [vmem:[%s5 + $0x70] sm:$0xff]
  %v6432 = vld [vmem:[%s5 + $0x78] sm:$0xff]
  %v6433 = vld [vmem:[%s5 + $0x80] sm:$0xff]
  %v6434 = vld [vmem:[%s5 + $0x88] sm:$0xff]
  %v6435 = vld [vmem:[%s5 + $0x90] sm:$0xff]
  %v6436 = vld [vmem:[%s5 + $0x98] sm:$0xff]
  %v6437 = vld [vmem:[%s5 + $0xa0] sm:$0xff]
  %v6438 = vld [vmem:[%s5 + $0xa8] sm:$0xff]
  %v6439 = vld [vmem:[%s5 + $0xb0] sm:$0xff]
  %v6440 = vld [vmem:[%s5 + $0xb8] sm:$0xff]
  %v6441 = vld [vmem:[%s5 + $0xc0] sm:$0xff]
  %v6442 = vld [vmem:[%s5 + $0xc8] sm:$0xff]
  %v6443 = vld [vmem:[%s5 + $0xd0] sm:$0xff]
  %v6444 = vld [vmem:[%s5 + $0xd8] sm:$0xff]
  %v6445 = vld [vmem:[%s5 + $0xe0] sm:$0xff]
  %v6446 = vld [vmem:[%s5 + $0xe8] sm:$0xff]
  %v6447 = vld [vmem:[%s5 + $0xf0] sm:$0xff]
  %v6448 = vld [vmem:[%s5 + $0xf8] sm:$0xff]
  %6449 = vmatprep.subr.mxu0 %v6418
  %6450 = vmatpush1.msra.mxu0 %v6417
  %6451 = vmatprep.subr.mxu0 %v6420
  %6452 = vmatpush1.msra.mxu0 %v6419
  %6453 = vmatprep.subr.mxu0 %v6422
  %6454 = vmatpush1.msra.mxu0 %v6421
  %6455 = vmatprep.subr.mxu0 %v6424
  %6456 = vmatpush1.msra.mxu0 %v6423
  %6457 = vmatprep.subr.mxu0 %v6426
  %6458 = vmatpush1.msra.mxu0 %v6425
  %6459 = vmatprep.subr.mxu0 %v6428
  %6460 = vmatpush1.msra.mxu0 %v6427
  %6461 = vmatprep.subr.mxu0 %v6430
  %6462 = vmatpush1.msra.mxu0 %v6429
  %6463 = vmatprep.subr.mxu0 %v6432
  %6464 = vmatpush1.msra.mxu0 %v6431
  %6465 = vmatprep.subr.mxu0 %v6434
  %6466 = vmatpush1.msra.mxu0 %v6433
  %6467 = vmatprep.subr.mxu0 %v6436
  %6468 = vmatpush1.msra.mxu0 %v6435
  %6469 = vmatprep.subr.mxu0 %v6438
  %6470 = vmatpush1.msra.mxu0 %v6437
  %6471 = vmatprep.subr.mxu0 %v6440
  %6472 = vmatpush1.msra.mxu0 %v6439
  %6473 = vmatprep.subr.mxu0 %v6442
  %6474 = vmatpush1.msra.mxu0 %v6441
  %6475 = vmatprep.subr.mxu0 %v6444
  %6476 = vmatpush1.msra.mxu0 %v6443
  %6477 = vmatprep.subr.mxu0 %v6446
  %6478 = vmatpush1.msra.mxu0 %v6445
  %6479 = vmatprep.subr.mxu0 %v6448
  %6480 = vmatpush1.msra.mxu0 %v6447
  %6481 = vmatprep.subr.mxu0 0.0
  %6482 = vmatpush1.msra.mxu0 0.0
  %6483 = vmatprep.subr.mxu0 0.0
  %6484 = vmatpush1.msra.mxu0 0.0
  %6485 = vmatprep.subr.mxu0 0.0
  %6486 = vmatpush1.msra.mxu0 0.0
  %6487 = vmatprep.subr.mxu0 0.0
  %6488 = vmatpush1.msra.mxu0 0.0
  %6489 = vmatprep.subr.mxu0 0.0
  %6490 = vmatpush1.msra.mxu0 0.0
  %6491 = vmatprep.subr.mxu0 0.0
  %6492 = vmatpush1.msra.mxu0 0.0
  %6493 = vmatprep.subr.mxu0 0.0
  %6494 = vmatpush1.msra.mxu0 0.0
  %6495 = vmatprep.subr.mxu0 0.0
  %6496 = vmatpush1.msra.mxu0 0.0
  %6497 = vmatprep.subr.mxu0 0.0
  %6498 = vmatpush1.msra.mxu0 0.0
  %6499 = vmatprep.subr.mxu0 0.0
  %6500 = vmatpush1.msra.mxu0 0.0
  %6501 = vmatprep.subr.mxu0 0.0
  %6502 = vmatpush1.msra.mxu0 0.0
  %6503 = vmatprep.subr.mxu0 0.0
  %6504 = vmatpush1.msra.mxu0 0.0
  %6505 = vmatprep.subr.mxu0 0.0
  %6506 = vmatpush1.msra.mxu0 0.0
  %6507 = vmatprep.subr.mxu0 0.0
  %6508 = vmatpush1.msra.mxu0 0.0
  %6509 = vmatprep.subr.mxu0 0.0
  %6510 = vmatpush1.msra.mxu0 0.0
  %6511 = vmatprep.subr.mxu0 0.0
  %6512 = vmatpush1.msra.mxu0 0.0
  %6513 = vmatprep.mubr.f32.mxu0 0.0
  %6514 = vmatmul.mubr.f32.gmra.mrb[0].mxu0 %v6335
  %v6515 = vpop.f32.mrb[0].mxu0
  %v6516 = vadd.f32 0.0, %v6515
  %v6517 = vpop.f32.mrb[0].mxu0
  %v6518 = vadd.f32 0.0, %v6517
  %6519 = vmatprep.mubr.f32.mxu0 0.0
  %6520 = vmatmul.mubr.f32.gmra.mrb[0].mxu0 %v6336
  %v6521 = vpop.f32.mrb[0].mxu0
  %v6522 = vadd.f32 0.0, %v6521
  %v6523 = vpop.f32.mrb[0].mxu0
  %v6524 = vadd.f32 0.0, %v6523
  %6525 = vmatprep.mubr.f32.mxu0 0.0
  %6526 = vmatmul.mubr.f32.gmra.mrb[0].mxu0 %v6337
  %v6527 = vpop.f32.mrb[0].mxu0
  %v6528 = vadd.f32 0.0, %v6527
  %v6529 = vpop.f32.mrb[0].mxu0
  %v6530 = vadd.f32 0.0, %v6529
  %6531 = vmatprep.mubr.f32.mxu0 0.0
  %6532 = vmatmul.mubr.f32.gmra.mrb[0].mxu0 %v6338
  %v6533 = vpop.f32.mrb[0].mxu0
  %v6534 = vadd.f32 0.0, %v6533
  %v6535 = vpop.f32.mrb[0].mxu0
  %v6536 = vadd.f32 0.0, %v6535
  %6537 = vmatprep.mubr.f32.mxu0 0.0
  %6538 = vmatmul.mubr.f32.gmra.mrb[0].mxu0 %v6339
  %v6539 = vpop.f32.mrb[0].mxu0
  %v6540 = vadd.f32 0.0, %v6539
  %v6541 = vpop.f32.mrb[0].mxu0
  %v6542 = vadd.f32 0.0, %v6541
  %6543 = vmatprep.mubr.f32.mxu0 0.0
  %6544 = vmatmul.mubr.f32.gmra.mrb[0].mxu0 %v6340
  %v6545 = vpop.f32.mrb[0].mxu0
  %v6546 = vadd.f32 0.0, %v6545
  %v6547 = vpop.f32.mrb[0].mxu0
  %v6548 = vadd.f32 0.0, %v6547
  %6549 = vmatprep.mubr.f32.mxu0 0.0
  %6550 = vmatmul.mubr.f32.gmra.mrb[0].mxu0 %v6341
  %v6551 = vpop.f32.mrb[0].mxu0
  %v6552 = vadd.f32 0.0, %v6551
  %v6553 = vpop.f32.mrb[0].mxu0
  %v6554 = vadd.f32 0.0, %v6553
  %6555 = vmatprep.mubr.f32.mxu0 0.0
  %6556 = vmatmul.mubr.f32.gmra.mrb[0].mxu0 %v6342
  %v6557 = vpop.f32.mrb[0].mxu0
  %v6558 = vadd.f32 0.0, %v6557
  %v6559 = vpop.f32.mrb[0].mxu0
  %v6560 = vadd.f32 0.0, %v6559
  %6561 = vmatprep.mubr.f32.mxu0 0.0
  %6562 = vmatmul.mubr.f32.gmra.mrb[0].mxu0 %v6343
  %v6563 = vpop.f32.mrb[0].mxu0
  %v6564 = vadd.f32 0.0, %v6563
  %v6565 = vpop.f32.mrb[0].mxu0
  %v6566 = vadd.f32 0.0, %v6565
  %6567 = vmatprep.mubr.f32.mxu0 0.0
  %6568 = vmatmul.mubr.f32.gmra.mrb[0].mxu0 %v6344
  %v6569 = vpop.f32.mrb[0].mxu0
  %v6570 = vadd.f32 0.0, %v6569
  %v6571 = vpop.f32.mrb[0].mxu0
  %v6572 = vadd.f32 0.0, %v6571
  %6573 = vmatprep.mubr.f32.mxu0 0.0
  %6574 = vmatmul.mubr.f32.gmra.mrb[0].mxu0 %v6345
  %v6575 = vpop.f32.mrb[0].mxu0
  %v6576 = vadd.f32 0.0, %v6575
  %v6577 = vpop.f32.mrb[0].mxu0
  %v6578 = vadd.f32 0.0, %v6577
  %6579 = vmatprep.mubr.f32.mxu0 0.0
  %6580 = vmatmul.mubr.f32.gmra.mrb[0].mxu0 %v6346
  %v6581 = vpop.f32.mrb[0].mxu0
  %v6582 = vadd.f32 0.0, %v6581
  %v6583 = vpop.f32.mrb[0].mxu0
  %v6584 = vadd.f32 0.0, %v6583
  %6585 = vmatprep.mubr.f32.mxu0 0.0
  %6586 = vmatmul.mubr.f32.gmra.mrb[0].mxu0 %v6347
  %v6587 = vpop.f32.mrb[0].mxu0
  %v6588 = vadd.f32 0.0, %v6587
  %v6589 = vpop.f32.mrb[0].mxu0
  %v6590 = vadd.f32 0.0, %v6589
  %6591 = vmatprep.mubr.f32.mxu0 0.0
  %6592 = vmatmul.mubr.f32.gmra.mrb[0].mxu0 %v6348
  %v6593 = vpop.f32.mrb[0].mxu0
  %v6594 = vadd.f32 0.0, %v6593
  %v6595 = vpop.f32.mrb[0].mxu0
  %v6596 = vadd.f32 0.0, %v6595
  %6597 = vmatprep.mubr.f32.mxu0 0.0
  %6598 = vmatmul.mubr.f32.gmra.mrb[0].mxu0 %v6349
  %v6599 = vpop.f32.mrb[0].mxu0
  %v6600 = vadd.f32 0.0, %v6599
  %v6601 = vpop.f32.mrb[0].mxu0
  %v6602 = vadd.f32 0.0, %v6601
  %6603 = vmatprep.mubr.f32.mxu0 0.0
  %6604 = vmatmul.mubr.f32.gmra.mrb[0].mxu0 %v6350
  %v6605 = vpop.f32.mrb[0].mxu0
  %v6606 = vadd.f32 0.0, %v6605
  %v6607 = vpop.f32.mrb[0].mxu0
  %v6608 = vadd.f32 0.0, %v6607
  %6609 = vmatprep.mubr.f32.mxu0 0.0
  %6610 = vmatmul.mubr.f32.gmra.mrb[0].mxu0 %v6351
  %v6611 = vpop.f32.mrb[0].mxu0
  %v6612 = vadd.f32 0.0, %v6611
  %v6613 = vpop.f32.mrb[0].mxu0
  %v6614 = vadd.f32 0.0, %v6613
  %6615 = vmatprep.mubr.f32.mxu0 0.0
  %6616 = vmatmul.mubr.f32.gmra.mrb[0].mxu0 %v6352
  %v6617 = vpop.f32.mrb[0].mxu0
  %v6618 = vadd.f32 0.0, %v6617
  %v6619 = vpop.f32.mrb[0].mxu0
  %v6620 = vadd.f32 0.0, %v6619
  %6621 = vmatprep.mubr.f32.mxu0 0.0
  %6622 = vmatmul.mubr.f32.gmra.mrb[0].mxu0 %v6353
  %v6623 = vpop.f32.mrb[0].mxu0
  %v6624 = vadd.f32 0.0, %v6623
  %v6625 = vpop.f32.mrb[0].mxu0
  %v6626 = vadd.f32 0.0, %v6625
  %6627 = vmatprep.mubr.f32.mxu0 0.0
  %6628 = vmatmul.mubr.f32.gmra.mrb[0].mxu0 %v6354
  %v6629 = vpop.f32.mrb[0].mxu0
  %v6630 = vadd.f32 0.0, %v6629
  %v6631 = vpop.f32.mrb[0].mxu0
  %v6632 = vadd.f32 0.0, %v6631
  %6633 = vmatprep.mubr.f32.mxu0 0.0
  %6634 = vmatmul.mubr.f32.gmra.mrb[0].mxu0 %v6355
  %v6635 = vpop.f32.mrb[0].mxu0
  %v6636 = vadd.f32 0.0, %v6635
  %v6637 = vpop.f32.mrb[0].mxu0
  %v6638 = vadd.f32 0.0, %v6637
  %6639 = vmatprep.mubr.f32.mxu0 0.0
  %6640 = vmatmul.mubr.f32.gmra.mrb[0].mxu0 %v6356
  %v6641 = vpop.f32.mrb[0].mxu0
  %v6642 = vadd.f32 0.0, %v6641
  %v6643 = vpop.f32.mrb[0].mxu0
  %v6644 = vadd.f32 0.0, %v6643
  %6645 = vmatprep.mubr.f32.mxu0 0.0
  %6646 = vmatmul.mubr.f32.gmra.mrb[0].mxu0 %v6357
  %v6647 = vpop.f32.mrb[0].mxu0
  %v6648 = vadd.f32 0.0, %v6647
  %v6649 = vpop.f32.mrb[0].mxu0
  %v6650 = vadd.f32 0.0, %v6649
  %6651 = vmatprep.mubr.f32.mxu0 0.0
  %6652 = vmatmul.mubr.f32.gmra.mrb[0].mxu0 %v6358
  %v6653 = vpop.f32.mrb[0].mxu0
  %v6654 = vadd.f32 0.0, %v6653
  %v6655 = vpop.f32.mrb[0].mxu0
  %v6656 = vadd.f32 0.0, %v6655
  %6657 = vmatprep.mubr.f32.mxu0 0.0
  %6658 = vmatmul.mubr.f32.gmra.mrb[0].mxu0 %v6359
  %v6659 = vpop.f32.mrb[0].mxu0
  %v6660 = vadd.f32 0.0, %v6659
  %v6661 = vpop.f32.mrb[0].mxu0
  %v6662 = vadd.f32 0.0, %v6661
  %6663 = vmatprep.mubr.f32.mxu0 0.0
  %6664 = vmatmul.mubr.f32.gmra.mrb[0].mxu0 %v6360
  %v6665 = vpop.f32.mrb[0].mxu0
  %v6666 = vadd.f32 0.0, %v6665
  %v6667 = vpop.f32.mrb[0].mxu0
  %v6668 = vadd.f32 0.0, %v6667
  %6669 = vmatprep.mubr.f32.mxu0 0.0
  %6670 = vmatmul.mubr.f32.gmra.mrb[0].mxu0 %v6361
  %v6671 = vpop.f32.mrb[0].mxu0
  %v6672 = vadd.f32 0.0, %v6671
  %v6673 = vpop.f32.mrb[0].mxu0
  %v6674 = vadd.f32 0.0, %v6673
  %6675 = vmatprep.mubr.f32.mxu0 0.0
  %6676 = vmatmul.mubr.f32.gmra.mrb[0].mxu0 %v6362
  %v6677 = vpop.f32.mrb[0].mxu0
  %v6678 = vadd.f32 0.0, %v6677
  %v6679 = vpop.f32.mrb[0].mxu0
  %v6680 = vadd.f32 0.0, %v6679
  %6681 = vmatprep.mubr.f32.mxu0 0.0
  %6682 = vmatmul.mubr.f32.gmra.mrb[0].mxu0 %v6363
  %v6683 = vpop.f32.mrb[0].mxu0
  %v6684 = vadd.f32 0.0, %v6683
  %v6685 = vpop.f32.mrb[0].mxu0
  %v6686 = vadd.f32 0.0, %v6685
  %6687 = vmatprep.mubr.f32.mxu0 0.0
  %6688 = vmatmul.mubr.f32.gmra.mrb[0].mxu0 %v6364
  %v6689 = vpop.f32.mrb[0].mxu0
  %v6690 = vadd.f32 0.0, %v6689
  %v6691 = vpop.f32.mrb[0].mxu0
  %v6692 = vadd.f32 0.0, %v6691
  %6693 = vmatprep.mubr.f32.mxu0 0.0
  %6694 = vmatmul.mubr.f32.gmra.mrb[0].mxu0 %v6365
  %v6695 = vpop.f32.mrb[0].mxu0
  %v6696 = vadd.f32 0.0, %v6695
  %v6697 = vpop.f32.mrb[0].mxu0
  %v6698 = vadd.f32 0.0, %v6697
  %6699 = vmatprep.mubr.f32.mxu0 0.0
  %6700 = vmatmul.mubr.f32.gmra.mrb[0].mxu0 %v6366
  %v6701 = vpop.f32.mrb[0].mxu0
  %v6702 = vadd.f32 0.0, %v6701
  %v6703 = vpop.f32.mrb[0].mxu0
  %v6704 = vadd.f32 0.0, %v6703
  %6705 = vmatprep.mubr.f32.mxu0 0.0
  %6706 = vmatmul.mubr.f32.gmra.mrb[0].mxu0 %v6367
  %v6707 = vpop.f32.mrb[0].mxu0
  %v6708 = vadd.f32 0.0, %v6707
  %v6709 = vpop.f32.mrb[0].mxu0
  %v6710 = vadd.f32 0.0, %v6709
  %6711 = vmatprep.mubr.f32.mxu0 0.0
  %6712 = vmatmul.mubr.f32.gmra.mrb[0].mxu0 %v6368
  %v6713 = vpop.f32.mrb[0].mxu0
  %v6714 = vadd.f32 0.0, %v6713
  %v6715 = vpop.f32.mrb[0].mxu0
  %v6716 = vadd.f32 0.0, %v6715
  %6717 = vmatprep.mubr.f32.mxu0 0.0
  %6718 = vmatmul.mubr.f32.gmra.mrb[0].mxu0 %v6369
  %v6719 = vpop.f32.mrb[0].mxu0
  %v6720 = vadd.f32 0.0, %v6719
  %v6721 = vpop.f32.mrb[0].mxu0
  %v6722 = vadd.f32 0.0, %v6721
  %6723 = vmatprep.mubr.f32.mxu0 0.0
  %6724 = vmatmul.mubr.f32.gmra.mrb[0].mxu0 %v6370
  %v6725 = vpop.f32.mrb[0].mxu0
  %v6726 = vadd.f32 0.0, %v6725
  %v6727 = vpop.f32.mrb[0].mxu0
  %v6728 = vadd.f32 0.0, %v6727
  %6729 = vmatprep.mubr.f32.mxu0 0.0
  %6730 = vmatmul.mubr.f32.gmra.mrb[0].mxu0 %v6371
  %v6731 = vpop.f32.mrb[0].mxu0
  %v6732 = vadd.f32 0.0, %v6731
  %v6733 = vpop.f32.mrb[0].mxu0
  %v6734 = vadd.f32 0.0, %v6733
  %6735 = vmatprep.mubr.f32.mxu0 0.0
  %6736 = vmatmul.mubr.f32.gmra.mrb[0].mxu0 %v6372
  %v6737 = vpop.f32.mrb[0].mxu0
  %v6738 = vadd.f32 0.0, %v6737
  %v6739 = vpop.f32.mrb[0].mxu0
  %v6740 = vadd.f32 0.0, %v6739
  %6741 = vmatprep.mubr.f32.mxu0 0.0
  %6742 = vmatmul.mubr.f32.gmra.mrb[0].mxu0 %v6373
  %v6743 = vpop.f32.mrb[0].mxu0
  %v6744 = vadd.f32 0.0, %v6743
  %v6745 = vpop.f32.mrb[0].mxu0
  %v6746 = vadd.f32 0.0, %v6745
  %6747 = vmatprep.mubr.f32.mxu0 0.0
  %6748 = vmatmul.mubr.f32.gmra.mrb[0].mxu0 %v6374
  %v6749 = vpop.f32.mrb[0].mxu0
  %v6750 = vadd.f32 0.0, %v6749
  %v6751 = vpop.f32.mrb[0].mxu0
  %v6752 = vadd.f32 0.0, %v6751
  %6753 = vmatprep.mubr.f32.mxu0 0.0
  %6754 = vmatmul.mubr.f32.gmra.mrb[0].mxu0 %v6375
  %v6755 = vpop.f32.mrb[0].mxu0
  %v6756 = vadd.f32 0.0, %v6755
  %v6757 = vpop.f32.mrb[0].mxu0
  %v6758 = vadd.f32 0.0, %v6757
  %6759 = vmatprep.mubr.f32.mxu0 0.0
  %6760 = vmatmul.mubr.f32.gmra.mrb[0].mxu0 %v6376
  %v6761 = vpop.f32.mrb[0].mxu0
  %v6762 = vadd.f32 0.0, %v6761
  %v6763 = vpop.f32.mrb[0].mxu0
  %v6764 = vadd.f32 0.0, %v6763
  %6765 = vmatprep.mubr.f32.mxu0 0.0
  %6766 = vmatmul.mubr.f32.gmra.mrb[0].mxu0 %v6377
  %v6767 = vpop.f32.mrb[0].mxu0
  %v6768 = vadd.f32 0.0, %v6767
  %v6769 = vpop.f32.mrb[0].mxu0
  %v6770 = vadd.f32 0.0, %v6769
  %6771 = vmatprep.mubr.f32.mxu0 0.0
  %6772 = vmatmul.mubr.f32.gmra.mrb[0].mxu0 %v6378
  %v6773 = vpop.f32.mrb[0].mxu0
  %v6774 = vadd.f32 0.0, %v6773
  %v6775 = vpop.f32.mrb[0].mxu0
  %v6776 = vadd.f32 0.0, %v6775
  %6777 = vmatprep.mubr.f32.mxu0 0.0
  %6778 = vmatmul.mubr.f32.gmra.mrb[0].mxu0 %v6379
  %v6779 = vpop.f32.mrb[0].mxu0
  %v6780 = vadd.f32 0.0, %v6779
  %v6781 = vpop.f32.mrb[0].mxu0
  %v6782 = vadd.f32 0.0, %v6781
  %6783 = vmatprep.mubr.f32.mxu0 0.0
  %6784 = vmatmul.mubr.f32.gmra.mrb[0].mxu0 %v6380
  %v6785 = vpop.f32.mrb[0].mxu0
  %v6786 = vadd.f32 0.0, %v6785
  %v6787 = vpop.f32.mrb[0].mxu0
  %v6788 = vadd.f32 0.0, %v6787
  %6789 = vmatprep.mubr.f32.mxu0 0.0
  %6790 = vmatmul.mubr.f32.gmra.mrb[0].mxu0 %v6381
  %v6791 = vpop.f32.mrb[0].mxu0
  %v6792 = vadd.f32 0.0, %v6791
  %v6793 = vpop.f32.mrb[0].mxu0
  %v6794 = vadd.f32 0.0, %v6793
  %6795 = vmatprep.mubr.f32.mxu0 0.0
  %6796 = vmatmul.mubr.f32.gmra.mrb[0].mxu0 %v6382
  %v6797 = vpop.f32.mrb[0].mxu0
  %v6798 = vadd.f32 0.0, %v6797
  %v6799 = vpop.f32.mrb[0].mxu0
  %v6800 = vadd.f32 0.0, %v6799
  %6801 = vmatprep.mubr.f32.mxu0 0.0
  %6802 = vmatmul.mubr.f32.gmra.mrb[0].mxu0 %v6383
  %v6803 = vpop.f32.mrb[0].mxu0
  %v6804 = vadd.f32 0.0, %v6803
  %v6805 = vpop.f32.mrb[0].mxu0
  %v6806 = vadd.f32 0.0, %v6805
  %6807 = vdwg.mxu0
  %6808 = vst [vmem:[#allocation5 + $0x80] sm:$0xff] %v6516
  %6809 = vst.msk [vmem:[#allocation5 + $0x88] sm:$0xff] %vm6385, %v6518
  %6810 = vst [vmem:[#allocation5 + $0x90] sm:$0xff] %v6522
  %6811 = vst.msk [vmem:[#allocation5 + $0x98] sm:$0xff] %vm6385, %v6524
  %6812 = vst [vmem:[#allocation5 + $0xa0] sm:$0xff] %v6528
  %6813 = vst.msk [vmem:[#allocation5 + $0xa8] sm:$0xff] %vm6385, %v6530
  %6814 = vst [vmem:[#allocation5 + $0xb0] sm:$0xff] %v6534
  %6815 = vst.msk [vmem:[#allocation5 + $0xb8] sm:$0xff] %vm6385, %v6536
  %6816 = vst [vmem:[#allocation5 + $0xc0] sm:$0xff] %v6540
  %6817 = vst.msk [vmem:[#allocation5 + $0xc8] sm:$0xff] %vm6385, %v6542
  %6818 = vst [vmem:[#allocation5 + $0xd0] sm:$0xff] %v6546
  %6819 = vst.msk [vmem:[#allocation5 + $0xd8] sm:$0xff] %vm6385, %v6548
  %6820 = vst [vmem:[#allocation5 + $0xe0] sm:$0xff] %v6552
  %6821 = vst.msk [vmem:[#allocation5 + $0xe8] sm:$0xff] %vm6385, %v6554
  %6822 = vst [vmem:[#allocation5 + $0xf0] sm:$0xff] %v6558
  %6823 = vst.msk [vmem:[#allocation5 + $0xf8] sm:$0xff] %vm6385, %v6560
  %6824 = vst [vmem:[#allocation5 + $0x100] sm:$0xff] %v6564
  %6825 = vst.msk [vmem:[#allocation5 + $0x108] sm:$0xff] %vm6385, %v6566
  %6826 = vst [vmem:[#allocation5 + $0x110] sm:$0xff] %v6570
  %6827 = vst.msk [vmem:[#allocation5 + $0x118] sm:$0xff] %vm6385, %v6572
  %6828 = vst [vmem:[#allocation5 + $0x120] sm:$0xff] %v6576
  %6829 = vst.msk [vmem:[#allocation5 + $0x128] sm:$0xff] %vm6385, %v6578
  %6830 = vst [vmem:[#allocation5 + $0x130] sm:$0xff] %v6582
  %6831 = vst.msk [vmem:[#allocation5 + $0x138] sm:$0xff] %vm6385, %v6584
  %6832 = vst [vmem:[#allocation5 + $0x140] sm:$0xff] %v6588
  %6833 = vst.msk [vmem:[#allocation5 + $0x148] sm:$0xff] %vm6385, %v6590
  %6834 = vst [vmem:[#allocation5 + $0x150] sm:$0xff] %v6594
  %6835 = vst.msk [vmem:[#allocation5 + $0x158] sm:$0xff] %vm6385, %v6596
  %6836 = vst [vmem:[#allocation5 + $0x160] sm:$0xff] %v6600
  %6837 = vst.msk [vmem:[#allocation5 + $0x168] sm:$0xff] %vm6385, %v6602
  %6838 = vst [vmem:[#allocation5 + $0x170] sm:$0xff] %v6606
  %6839 = vst.msk [vmem:[#allocation5 + $0x178] sm:$0xff] %vm6385, %v6608
  %6840 = vst [vmem:[#allocation5 + $0x180] sm:$0xff] %v6612
  %6841 = vst.msk [vmem:[#allocation5 + $0x188] sm:$0xff] %vm6385, %v6614
  %6842 = vst [vmem:[#allocation5 + $0x190] sm:$0xff] %v6618
  %6843 = vst.msk [vmem:[#allocation5 + $0x198] sm:$0xff] %vm6385, %v6620
  %6844 = vst [vmem:[#allocation5 + $0x1a0] sm:$0xff] %v6624
  %6845 = vst.msk [vmem:[#allocation5 + $0x1a8] sm:$0xff] %vm6385, %v6626
  %6846 = vst [vmem:[#allocation5 + $0x1b0] sm:$0xff] %v6630
  %6847 = vst.msk [vmem:[#allocation5 + $0x1b8] sm:$0xff] %vm6385, %v6632
  %6848 = vst [vmem:[#allocation5 + $0x1c0] sm:$0xff] %v6636
  %6849 = vst.msk [vmem:[#allocation5 + $0x1c8] sm:$0xff] %vm6385, %v6638
  %6850 = vst [vmem:[#allocation5 + $0x1d0] sm:$0xff] %v6642
  %6851 = vst.msk [vmem:[#allocation5 + $0x1d8] sm:$0xff] %vm6385, %v6644
  %6852 = vst [vmem:[#allocation5 + $0x1e0] sm:$0xff] %v6648
  %6853 = vst.msk [vmem:[#allocation5 + $0x1e8] sm:$0xff] %vm6385, %v6650
  %6854 = vst [vmem:[#allocation5 + $0x1f0] sm:$0xff] %v6654
  %6855 = vst.msk [vmem:[#allocation5 + $0x1f8] sm:$0xff] %vm6385, %v6656
  %6856 = vst [vmem:[#allocation5 + $0x200] sm:$0xff] %v6660
  %6857 = vst.msk [vmem:[#allocation5 + $0x208] sm:$0xff] %vm6385, %v6662
  %6858 = vst [vmem:[#allocation5 + $0x210] sm:$0xff] %v6666
  %6859 = vst.msk [vmem:[#allocation5 + $0x218] sm:$0xff] %vm6385, %v6668
  %6860 = vst [vmem:[#allocation5 + $0x220] sm:$0xff] %v6672
  %6861 = vst.msk [vmem:[#allocation5 + $0x228] sm:$0xff] %vm6385, %v6674
  %6862 = vst [vmem:[#allocation5 + $0x230] sm:$0xff] %v6678
  %6863 = vst.msk [vmem:[#allocation5 + $0x238] sm:$0xff] %vm6385, %v6680
  %6864 = vst [vmem:[#allocation5 + $0x240] sm:$0xff] %v6684
  %6865 = vst.msk [vmem:[#allocation5 + $0x248] sm:$0xff] %vm6385, %v6686
  %6866 = vst [vmem:[#allocation5 + $0x250] sm:$0xff] %v6690
  %6867 = vst.msk [vmem:[#allocation5 + $0x258] sm:$0xff] %vm6385, %v6692
  %6868 = vst [vmem:[#allocation5 + $0x260] sm:$0xff] %v6696
  %6869 = vst.msk [vmem:[#allocation5 + $0x268] sm:$0xff] %vm6385, %v6698
  %6870 = vst [vmem:[#allocation5 + $0x270] sm:$0xff] %v6702
  %6871 = vst.msk [vmem:[#allocation5 + $0x278] sm:$0xff] %vm6385, %v6704
  %6872 = vst [vmem:[#allocation5 + $0x280] sm:$0xff] %v6708
  %6873 = vst.msk [vmem:[#allocation5 + $0x288] sm:$0xff] %vm6385, %v6710
  %6874 = vst [vmem:[#allocation5 + $0x290] sm:$0xff] %v6714
  %6875 = vst.msk [vmem:[#allocation5 + $0x298] sm:$0xff] %vm6385, %v6716
  %6876 = vst [vmem:[#allocation5 + $0x2a0] sm:$0xff] %v6720
  %6877 = vst.msk [vmem:[#allocation5 + $0x2a8] sm:$0xff] %vm6385, %v6722
  %6878 = vst [vmem:[#allocation5 + $0x2b0] sm:$0xff] %v6726
  %6879 = vst.msk [vmem:[#allocation5 + $0x2b8] sm:$0xff] %vm6385, %v6728
  %6880 = vst [vmem:[#allocation5 + $0x2c0] sm:$0xff] %v6732
  %6881 = vst.msk [vmem:[#allocation5 + $0x2c8] sm:$0xff] %vm6385, %v6734
  %6882 = vst [vmem:[#allocation5 + $0x2d0] sm:$0xff] %v6738
  %6883 = vst.msk [vmem:[#allocation5 + $0x2d8] sm:$0xff] %vm6385, %v6740
  %6884 = vst [vmem:[#allocation5 + $0x2e0] sm:$0xff] %v6744
  %6885 = vst.msk [vmem:[#allocation5 + $0x2e8] sm:$0xff] %vm6385, %v6746
  %6886 = vst [vmem:[#allocation5 + $0x2f0] sm:$0xff] %v6750
  %6887 = vst.msk [vmem:[#allocation5 + $0x2f8] sm:$0xff] %vm6385, %v6752
  %6888 = vst [vmem:[#allocation5 + $0x300] sm:$0xff] %v6756
  %6889 = vst.msk [vmem:[#allocation5 + $0x308] sm:$0xff] %vm6385, %v6758
  %6890 = vst [vmem:[#allocation5 + $0x310] sm:$0xff] %v6762
  %6891 = vst.msk [vmem:[#allocation5 + $0x318] sm:$0xff] %vm6385, %v6764
  %6892 = vst [vmem:[#allocation5 + $0x320] sm:$0xff] %v6768
  %6893 = vst.msk [vmem:[#allocation5 + $0x328] sm:$0xff] %vm6385, %v6770
  %6894 = vst [vmem:[#allocation5 + $0x330] sm:$0xff] %v6774
  %6895 = vst.msk [vmem:[#allocation5 + $0x338] sm:$0xff] %vm6385, %v6776
  %6896 = vst [vmem:[#allocation5 + $0x340] sm:$0xff] %v6780
  %6897 = vst.msk [vmem:[#allocation5 + $0x348] sm:$0xff] %vm6385, %v6782
  %6898 = vst [vmem:[#allocation5 + $0x350] sm:$0xff] %v6786
  %6899 = vst.msk [vmem:[#allocation5 + $0x358] sm:$0xff] %vm6385, %v6788
  %6900 = vst [vmem:[#allocation5 + $0x360] sm:$0xff] %v6792
  %6901 = vst.msk [vmem:[#allocation5 + $0x368] sm:$0xff] %vm6385, %v6794
  %6902 = vst [vmem:[#allocation5 + $0x370] sm:$0xff] %v6798
  %6903 = vst.msk [vmem:[#allocation5 + $0x378] sm:$0xff] %vm6385, %v6800
  %6904 = vst [vmem:[#allocation5 + $0x380] sm:$0xff] %v6804
  %6905 = vst.msk [vmem:[#allocation5 + $0x388] sm:$0xff] %vm6385, %v6806
  %v6906 = vld [vmem:[%s6] sm:$0x1]
  %v6908 = vlaneseq
  %v6909 = vshrl.u32 %v6908, 7
  %v6910 = vsub.s32 0, %v6909
  %v6911 = vrot.slane %v6906, %v6910
  %v6913 = vadd.f32 %v6911, 0.0
  %v6914 = vld [vmem:[#allocation5] sm:$0xff]
  %v6915 = vld [vmem:[#allocation5 + $0x10] sm:$0xff]
  %v6916 = vld [vmem:[#allocation5 + $0x20] sm:$0xff]
  %v6917 = vld [vmem:[#allocation5 + $0x30] sm:$0xff]
  %v6918 = vld [vmem:[#allocation5 + $0x40] sm:$0xff]
  %v6919 = vld [vmem:[#allocation5 + $0x50] sm:$0xff]
  %v6920 = vld [vmem:[#allocation5 + $0x60] sm:$0xff]
  %v6921 = vld [vmem:[#allocation5 + $0x70] sm:$0xff]
  %v6922 = vld [vmem:[#allocation5 + $0x80] sm:$0xff]
  %v6923 = vld [vmem:[#allocation5 + $0x90] sm:$0xff]
  %v6924 = vld [vmem:[#allocation5 + $0xa0] sm:$0xff]
  %v6925 = vld [vmem:[#allocation5 + $0xb0] sm:$0xff]
  %v6926 = vld [vmem:[#allocation5 + $0xc0] sm:$0xff]
  %v6927 = vld [vmem:[#allocation5 + $0xd0] sm:$0xff]
  %v6928 = vld [vmem:[#allocation5 + $0xe0] sm:$0xff]
  %v6929 = vld [vmem:[#allocation5 + $0xf0] sm:$0xff]
  %v6930 = vld [vmem:[#allocation5 + $0x100] sm:$0xff]
  %v6931 = vld [vmem:[#allocation5 + $0x110] sm:$0xff]
  %v6932 = vld [vmem:[#allocation5 + $0x120] sm:$0xff]
  %v6933 = vld [vmem:[#allocation5 + $0x130] sm:$0xff]
  %v6934 = vld [vmem:[#allocation5 + $0x140] sm:$0xff]
  %v6935 = vld [vmem:[#allocation5 + $0x150] sm:$0xff]
  %v6936 = vld [vmem:[#allocation5 + $0x160] sm:$0xff]
  %v6937 = vld [vmem:[#allocation5 + $0x170] sm:$0xff]
  %v6938 = vld [vmem:[#allocation5 + $0x180] sm:$0xff]
  %v6939 = vld [vmem:[#allocation5 + $0x190] sm:$0xff]
  %v6940 = vld [vmem:[#allocation5 + $0x1a0] sm:$0xff]
  %v6941 = vld [vmem:[#allocation5 + $0x1b0] sm:$0xff]
  %v6942 = vld [vmem:[#allocation5 + $0x1c0] sm:$0xff]
  %v6943 = vld [vmem:[#allocation5 + $0x1d0] sm:$0xff]
  %v6944 = vld [vmem:[#allocation5 + $0x1e0] sm:$0xff]
  %v6945 = vld [vmem:[#allocation5 + $0x1f0] sm:$0xff]
  %v6946 = vld [vmem:[#allocation5 + $0x200] sm:$0xff]
  %v6947 = vld [vmem:[#allocation5 + $0x210] sm:$0xff]
  %v6948 = vld [vmem:[#allocation5 + $0x220] sm:$0xff]
  %v6949 = vld [vmem:[#allocation5 + $0x230] sm:$0xff]
  %v6950 = vld [vmem:[#allocation5 + $0x240] sm:$0xff]
  %v6951 = vld [vmem:[#allocation5 + $0x250] sm:$0xff]
  %v6952 = vld [vmem:[#allocation5 + $0x260] sm:$0xff]
  %v6953 = vld [vmem:[#allocation5 + $0x270] sm:$0xff]
  %v6954 = vld [vmem:[#allocation5 + $0x280] sm:$0xff]
  %v6955 = vld [vmem:[#allocation5 + $0x290] sm:$0xff]
  %v6956 = vld [vmem:[#allocation5 + $0x2a0] sm:$0xff]
  %v6957 = vld [vmem:[#allocation5 + $0x2b0] sm:$0xff]
  %v6958 = vld [vmem:[#allocation5 + $0x2c0] sm:$0xff]
  %v6959 = vld [vmem:[#allocation5 + $0x2d0] sm:$0xff]
  %v6960 = vld [vmem:[#allocation5 + $0x2e0] sm:$0xff]
  %v6961 = vld [vmem:[#allocation5 + $0x2f0] sm:$0xff]
  %v6962 = vld [vmem:[#allocation5 + $0x300] sm:$0xff]
  %v6963 = vmul.f32 %v6914, %v811
  %v6964 = vmul.f32 %v6915, %v812
  %v6965 = vmul.f32 %v6916, %v813
  %v6966 = vmul.f32 %v6917, %v814
  %v6967 = vmul.f32 %v6918, %v815
  %v6968 = vmul.f32 %v6919, %v816
  %v6969 = vmul.f32 %v6920, %v817
  %v6970 = vmul.f32 %v6921, %v818
  %v6971 = vmul.f32 %v6922, %v819
  %v6972 = vmul.f32 %v6923, %v820
  %v6973 = vmul.f32 %v6924, %v821
  %v6974 = vmul.f32 %v6925, %v822
  %v6975 = vmul.f32 %v6926, %v823
  %v6976 = vmul.f32 %v6927, %v824
  %v6977 = vmul.f32 %v6928, %v825
  %v6978 = vmul.f32 %v6929, %v826
  %v6979 = vmul.f32 %v6930, %v827
  %v6980 = vmul.f32 %v6931, %v828
  %v6981 = vmul.f32 %v6932, %v829
  %v6982 = vmul.f32 %v6933, %v830
  %v6983 = vmul.f32 %v6934, %v831
  %v6984 = vmul.f32 %v6935, %v832
  %v6985 = vmul.f32 %v6936, %v833
  %v6986 = vmul.f32 %v6937, %v834
  %v6987 = vmul.f32 %v6938, %v835
  %v6988 = vmul.f32 %v6939, %v836
  %v6989 = vmul.f32 %v6940, %v837
  %v6990 = vmul.f32 %v6941, %v838
  %v6991 = vmul.f32 %v6942, %v839
  %v6992 = vmul.f32 %v6943, %v840
  %v6993 = vmul.f32 %v6944, %v841
  %v6994 = vmul.f32 %v6945, %v842
  %v6995 = vmul.f32 %v6946, %v843
  %v6996 = vmul.f32 %v6947, %v844
  %v6997 = vmul.f32 %v6948, %v845
  %v6998 = vmul.f32 %v6949, %v846
  %v6999 = vmul.f32 %v6950, %v847
  %v7000 = vmul.f32 %v6951, %v848
  %v7001 = vmul.f32 %v6952, %v849
  %v7002 = vmul.f32 %v6953, %v850
  %v7003 = vmul.f32 %v6954, %v851
  %v7004 = vmul.f32 %v6955, %v852
  %v7005 = vmul.f32 %v6956, %v853
  %v7006 = vmul.f32 %v6957, %v854
  %v7007 = vmul.f32 %v6958, %v855
  %v7008 = vmul.f32 %v6959, %v856
  %v7009 = vmul.f32 %v6960, %v857
  %v7010 = vmul.f32 %v6961, %v858
  %v7011 = vmul.f32 %v6962, %v859
  %v7012 = vadd.f32 %v6913, %v6963
  %v7013 = vadd.f32 %v6913, %v6964
  %v7014 = vadd.f32 %v6913, %v6965
  %v7015 = vadd.f32 %v6913, %v6966
  %v7016 = vadd.f32 %v6913, %v6967
  %v7017 = vadd.f32 %v6913, %v6968
  %v7018 = vadd.f32 %v6913, %v6969
  %v7019 = vadd.f32 %v6913, %v6970
  %v7020 = vadd.f32 %v6913, %v6971
  %v7021 = vadd.f32 %v6913, %v6972
  %v7022 = vadd.f32 %v6913, %v6973
  %v7023 = vadd.f32 %v6913, %v6974
  %v7024 = vadd.f32 %v6913, %v6975
  %v7025 = vadd.f32 %v6913, %v6976
  %v7026 = vadd.f32 %v6913, %v6977
  %v7027 = vadd.f32 %v6913, %v6978
  %v7028 = vadd.f32 %v6913, %v6979
  %v7029 = vadd.f32 %v6913, %v6980
  %v7030 = vadd.f32 %v6913, %v6981
  %v7031 = vadd.f32 %v6913, %v6982
  %v7032 = vadd.f32 %v6913, %v6983
  %v7033 = vadd.f32 %v6913, %v6984
  %v7034 = vadd.f32 %v6913, %v6985
  %v7035 = vadd.f32 %v6913, %v6986
  %v7036 = vadd.f32 %v6913, %v6987
  %v7037 = vadd.f32 %v6913, %v6988
  %v7038 = vadd.f32 %v6913, %v6989
  %v7039 = vadd.f32 %v6913, %v6990
  %v7040 = vadd.f32 %v6913, %v6991
  %v7041 = vadd.f32 %v6913, %v6992
  %v7042 = vadd.f32 %v6913, %v6993
  %v7043 = vadd.f32 %v6913, %v6994
  %v7044 = vadd.f32 %v6913, %v6995
  %v7045 = vadd.f32 %v6913, %v6996
  %v7046 = vadd.f32 %v6913, %v6997
  %v7047 = vadd.f32 %v6913, %v6998
  %v7048 = vadd.f32 %v6913, %v6999
  %v7049 = vadd.f32 %v6913, %v7000
  %v7050 = vadd.f32 %v6913, %v7001
  %v7051 = vadd.f32 %v6913, %v7002
  %v7052 = vadd.f32 %v6913, %v7003
  %v7053 = vadd.f32 %v6913, %v7004
  %v7054 = vadd.f32 %v6913, %v7005
  %v7055 = vadd.f32 %v6913, %v7006
  %v7056 = vadd.f32 %v6913, %v7007
  %v7057 = vadd.f32 %v6913, %v7008
  %v7058 = vadd.f32 %v6913, %v7009
  %v7059 = vadd.f32 %v6913, %v7010
  %v7060 = vadd.f32 %v6913, %v7011
  %v7061 = vld [vmem:[#allocation5 + $0x310] sm:$0xff]
  %v7062 = vmul.f32 %v6915, %v468
  %v7063 = vmul.f32 %v6916, %v469
  %v7064 = vmul.f32 %v6917, %v470
  %v7065 = vmul.f32 %v6918, %v471
  %v7066 = vmul.f32 %v6919, %v472
  %v7067 = vmul.f32 %v6920, %v473
  %v7068 = vmul.f32 %v6921, %v474
  %v7069 = vmul.f32 %v6922, %v475
  %v7070 = vmul.f32 %v6923, %v476
  %v7071 = vmul.f32 %v6924, %v477
  %v7072 = vmul.f32 %v6925, %v478
  %v7073 = vmul.f32 %v6926, %v479
  %v7074 = vmul.f32 %v6927, %v480
  %v7075 = vmul.f32 %v6928, %v481
  %v7076 = vmul.f32 %v6929, %v482
  %v7077 = vmul.f32 %v6930, %v483
  %v7078 = vmul.f32 %v6931, %v484
  %v7079 = vmul.f32 %v6932, %v485
  %v7080 = vmul.f32 %v6933, %v486
  %v7081 = vmul.f32 %v6934, %v487
  %v7082 = vmul.f32 %v6935, %v488
  %v7083 = vmul.f32 %v6936, %v489
  %v7084 = vmul.f32 %v6937, %v490
  %v7085 = vmul.f32 %v6938, %v491
  %v7086 = vmul.f32 %v6939, %v492
  %v7087 = vmul.f32 %v6940, %v493
  %v7088 = vmul.f32 %v6941, %v494
  %v7089 = vmul.f32 %v6942, %v495
  %v7090 = vmul.f32 %v6943, %v496
  %v7091 = vmul.f32 %v6944, %v497
  %v7092 = vmul.f32 %v6945, %v498
  %v7093 = vmul.f32 %v6946, %v499
  %v7094 = vmul.f32 %v6947, %v500
  %v7095 = vmul.f32 %v6948, %v501
  %v7096 = vmul.f32 %v6949, %v502
  %v7097 = vmul.f32 %v6950, %v503
  %v7098 = vmul.f32 %v6951, %v504
  %v7099 = vmul.f32 %v6952, %v505
  %v7100 = vmul.f32 %v6953, %v506
  %v7101 = vmul.f32 %v6954, %v507
  %v7102 = vmul.f32 %v6955, %v508
  %v7103 = vmul.f32 %v6956, %v509
  %v7104 = vmul.f32 %v6957, %v510
  %v7105 = vmul.f32 %v6958, %v511
  %v7106 = vmul.f32 %v6959, %v512
  %v7107 = vmul.f32 %v6960, %v513
  %v7108 = vmul.f32 %v6961, %v514
  %v7109 = vmul.f32 %v6962, %v515
  %v7110 = vmul.f32 %v7061, %v516
  %7160 = vrot.lane.b32.xlu0 %v7062, 112
  %v7161 = vpop.permute.xlu0 %7160
  %7162 = vrot.lane.b32.xlu0 %v7063, 112
  %v7163 = vpop.permute.xlu0 %7162
  %7164 = vrot.lane.b32.xlu0 %v7064, 112
  %v7165 = vpop.permute.xlu0 %7164
  %7166 = vrot.lane.b32.xlu0 %v7065, 112
  %v7167 = vpop.permute.xlu0 %7166
  %7168 = vrot.lane.b32.xlu0 %v7066, 112
  %v7169 = vpop.permute.xlu0 %7168
  %7170 = vrot.lane.b32.xlu0 %v7067, 112
  %v7171 = vpop.permute.xlu0 %7170
  %7172 = vrot.lane.b32.xlu0 %v7068, 112
  %v7173 = vpop.permute.xlu0 %7172
  %7174 = vrot.lane.b32.xlu0 %v7069, 112
  %v7175 = vpop.permute.xlu0 %7174
  %7176 = vrot.lane.b32.xlu0 %v7070, 112
  %v7177 = vpop.permute.xlu0 %7176
  %7178 = vrot.lane.b32.xlu0 %v7071, 112
  %v7179 = vpop.permute.xlu0 %7178
  %7180 = vrot.lane.b32.xlu0 %v7072, 112
  %v7181 = vpop.permute.xlu0 %7180
  %7182 = vrot.lane.b32.xlu0 %v7073, 112
  %v7183 = vpop.permute.xlu0 %7182
  %7184 = vrot.lane.b32.xlu0 %v7074, 112
  %v7185 = vpop.permute.xlu0 %7184
  %7186 = vrot.lane.b32.xlu0 %v7075, 112
  %v7187 = vpop.permute.xlu0 %7186
  %7188 = vrot.lane.b32.xlu0 %v7076, 112
  %v7189 = vpop.permute.xlu0 %7188
  %7190 = vrot.lane.b32.xlu0 %v7077, 112
  %v7191 = vpop.permute.xlu0 %7190
  %7192 = vrot.lane.b32.xlu0 %v7078, 112
  %v7193 = vpop.permute.xlu0 %7192
  %7194 = vrot.lane.b32.xlu0 %v7079, 112
  %v7195 = vpop.permute.xlu0 %7194
  %7196 = vrot.lane.b32.xlu0 %v7080, 112
  %v7197 = vpop.permute.xlu0 %7196
  %7198 = vrot.lane.b32.xlu0 %v7081, 112
  %v7199 = vpop.permute.xlu0 %7198
  %7200 = vrot.lane.b32.xlu0 %v7082, 112
  %v7201 = vpop.permute.xlu0 %7200
  %7202 = vrot.lane.b32.xlu0 %v7083, 112
  %v7203 = vpop.permute.xlu0 %7202
  %7204 = vrot.lane.b32.xlu0 %v7084, 112
  %v7205 = vpop.permute.xlu0 %7204
  %7206 = vrot.lane.b32.xlu0 %v7085, 112
  %v7207 = vpop.permute.xlu0 %7206
  %7208 = vrot.lane.b32.xlu0 %v7086, 112
  %v7209 = vpop.permute.xlu0 %7208
  %7210 = vrot.lane.b32.xlu0 %v7087, 112
  %v7211 = vpop.permute.xlu0 %7210
  %7212 = vrot.lane.b32.xlu0 %v7088, 112
  %v7213 = vpop.permute.xlu0 %7212
  %7214 = vrot.lane.b32.xlu0 %v7089, 112
  %v7215 = vpop.permute.xlu0 %7214
  %7216 = vrot.lane.b32.xlu0 %v7090, 112
  %v7217 = vpop.permute.xlu0 %7216
  %7218 = vrot.lane.b32.xlu0 %v7091, 112
  %v7219 = vpop.permute.xlu0 %7218
  %7220 = vrot.lane.b32.xlu0 %v7092, 112
  %v7221 = vpop.permute.xlu0 %7220
  %7222 = vrot.lane.b32.xlu0 %v7093, 112
  %v7223 = vpop.permute.xlu0 %7222
  %7224 = vrot.lane.b32.xlu0 %v7094, 112
  %v7225 = vpop.permute.xlu0 %7224
  %7226 = vrot.lane.b32.xlu0 %v7095, 112
  %v7227 = vpop.permute.xlu0 %7226
  %7228 = vrot.lane.b32.xlu0 %v7096, 112
  %v7229 = vpop.permute.xlu0 %7228
  %7230 = vrot.lane.b32.xlu0 %v7097, 112
  %v7231 = vpop.permute.xlu0 %7230
  %7232 = vrot.lane.b32.xlu0 %v7098, 112
  %v7233 = vpop.permute.xlu0 %7232
  %7234 = vrot.lane.b32.xlu0 %v7099, 112
  %v7235 = vpop.permute.xlu0 %7234
  %7236 = vrot.lane.b32.xlu0 %v7100, 112
  %v7237 = vpop.permute.xlu0 %7236
  %7238 = vrot.lane.b32.xlu0 %v7101, 112
  %v7239 = vpop.permute.xlu0 %7238
  %7240 = vrot.lane.b32.xlu0 %v7102, 112
  %v7241 = vpop.permute.xlu0 %7240
  %7242 = vrot.lane.b32.xlu0 %v7103, 112
  %v7243 = vpop.permute.xlu0 %7242
  %7244 = vrot.lane.b32.xlu0 %v7104, 112
  %v7245 = vpop.permute.xlu0 %7244
  %7246 = vrot.lane.b32.xlu0 %v7105, 112
  %v7247 = vpop.permute.xlu0 %7246
  %7248 = vrot.lane.b32.xlu0 %v7106, 112
  %v7249 = vpop.permute.xlu0 %7248
  %7250 = vrot.lane.b32.xlu0 %v7107, 112
  %v7251 = vpop.permute.xlu0 %7250
  %7252 = vrot.lane.b32.xlu0 %v7108, 112
  %v7253 = vpop.permute.xlu0 %7252
  %7254 = vrot.lane.b32.xlu0 %v7109, 112
  %v7255 = vpop.permute.xlu0 %7254
  %7256 = vrot.lane.b32.xlu0 %v7110, 112
  %v7257 = vpop.permute.xlu0 %7256
  %v7307 = vadd.f32 %v7012, %v7161
  %v7308 = vadd.f32 %v7013, %v7163
  %v7309 = vadd.f32 %v7014, %v7165
  %v7310 = vadd.f32 %v7015, %v7167
  %v7311 = vadd.f32 %v7016, %v7169
  %v7312 = vadd.f32 %v7017, %v7171
  %v7313 = vadd.f32 %v7018, %v7173
  %v7314 = vadd.f32 %v7019, %v7175
  %v7315 = vadd.f32 %v7020, %v7177
  %v7316 = vadd.f32 %v7021, %v7179
  %v7317 = vadd.f32 %v7022, %v7181
  %v7318 = vadd.f32 %v7023, %v7183
  %v7319 = vadd.f32 %v7024, %v7185
  %v7320 = vadd.f32 %v7025, %v7187
  %v7321 = vadd.f32 %v7026, %v7189
  %v7322 = vadd.f32 %v7027, %v7191
  %v7323 = vadd.f32 %v7028, %v7193
  %v7324 = vadd.f32 %v7029, %v7195
  %v7325 = vadd.f32 %v7030, %v7197
  %v7326 = vadd.f32 %v7031, %v7199
  %v7327 = vadd.f32 %v7032, %v7201
  %v7328 = vadd.f32 %v7033, %v7203
  %v7329 = vadd.f32 %v7034, %v7205
  %v7330 = vadd.f32 %v7035, %v7207
  %v7331 = vadd.f32 %v7036, %v7209
  %v7332 = vadd.f32 %v7037, %v7211
  %v7333 = vadd.f32 %v7038, %v7213
  %v7334 = vadd.f32 %v7039, %v7215
  %v7335 = vadd.f32 %v7040, %v7217
  %v7336 = vadd.f32 %v7041, %v7219
  %v7337 = vadd.f32 %v7042, %v7221
  %v7338 = vadd.f32 %v7043, %v7223
  %v7339 = vadd.f32 %v7044, %v7225
  %v7340 = vadd.f32 %v7045, %v7227
  %v7341 = vadd.f32 %v7046, %v7229
  %v7342 = vadd.f32 %v7047, %v7231
  %v7343 = vadd.f32 %v7048, %v7233
  %v7344 = vadd.f32 %v7049, %v7235
  %v7345 = vadd.f32 %v7050, %v7237
  %v7346 = vadd.f32 %v7051, %v7239
  %v7347 = vadd.f32 %v7052, %v7241
  %v7348 = vadd.f32 %v7053, %v7243
  %v7349 = vadd.f32 %v7054, %v7245
  %v7350 = vadd.f32 %v7055, %v7247
  %v7351 = vadd.f32 %v7056, %v7249
  %v7352 = vadd.f32 %v7057, %v7251
  %v7353 = vadd.f32 %v7058, %v7253
  %v7354 = vadd.f32 %v7059, %v7255
  %v7355 = vadd.f32 %v7060, %v7257
  %v7356 = vld [vmem:[#allocation5 + $0x320] sm:$0xff]
  %v7357 = vmul.f32 %v6916, %v860
  %v7358 = vmul.f32 %v6917, %v861
  %v7359 = vmul.f32 %v6918, %v862
  %v7360 = vmul.f32 %v6919, %v863
  %v7361 = vmul.f32 %v6920, %v864
  %v7362 = vmul.f32 %v6921, %v865
  %v7363 = vmul.f32 %v6922, %v866
  %v7364 = vmul.f32 %v6923, %v867
  %v7365 = vmul.f32 %v6924, %v868
  %v7366 = vmul.f32 %v6925, %v869
  %v7367 = vmul.f32 %v6926, %v870
  %v7368 = vmul.f32 %v6927, %v871
  %v7369 = vmul.f32 %v6928, %v872
  %v7370 = vmul.f32 %v6929, %v873
  %v7371 = vmul.f32 %v6930, %v874
  %v7372 = vmul.f32 %v6931, %v875
  %v7373 = vmul.f32 %v6932, %v876
  %v7374 = vmul.f32 %v6933, %v877
  %v7375 = vmul.f32 %v6934, %v878
  %v7376 = vmul.f32 %v6935, %v879
  %v7377 = vmul.f32 %v6936, %v880
  %v7378 = vmul.f32 %v6937, %v881
  %v7379 = vmul.f32 %v6938, %v882
  %v7380 = vmul.f32 %v6939, %v883
  %v7381 = vmul.f32 %v6940, %v884
  %v7382 = vmul.f32 %v6941, %v885
  %v7383 = vmul.f32 %v6942, %v886
  %v7384 = vmul.f32 %v6943, %v887
  %v7385 = vmul.f32 %v6944, %v888
  %v7386 = vmul.f32 %v6945, %v889
  %v7387 = vmul.f32 %v6946, %v890
  %v7388 = vmul.f32 %v6947, %v891
  %v7389 = vmul.f32 %v6948, %v892
  %v7390 = vmul.f32 %v6949, %v893
  %v7391 = vmul.f32 %v6950, %v894
  %v7392 = vmul.f32 %v6951, %v895
  %v7393 = vmul.f32 %v6952, %v896
  %v7394 = vmul.f32 %v6953, %v897
  %v7395 = vmul.f32 %v6954, %v898
  %v7396 = vmul.f32 %v6955, %v899
  %v7397 = vmul.f32 %v6956, %v900
  %v7398 = vmul.f32 %v6957, %v901
  %v7399 = vmul.f32 %v6958, %v902
  %v7400 = vmul.f32 %v6959, %v903
  %v7401 = vmul.f32 %v6960, %v904
  %v7402 = vmul.f32 %v6961, %v905
  %v7403 = vmul.f32 %v6962, %v906
  %v7404 = vmul.f32 %v7061, %v907
  %v7405 = vmul.f32 %v7356, %v908
  %7455 = vrot.lane.b32.xlu0 %v7357, 96
  %v7456 = vpop.permute.xlu0 %7455
  %7457 = vrot.lane.b32.xlu0 %v7358, 96
  %v7458 = vpop.permute.xlu0 %7457
  %7459 = vrot.lane.b32.xlu0 %v7359, 96
  %v7460 = vpop.permute.xlu0 %7459
  %7461 = vrot.lane.b32.xlu0 %v7360, 96
  %v7462 = vpop.permute.xlu0 %7461
  %7463 = vrot.lane.b32.xlu0 %v7361, 96
  %v7464 = vpop.permute.xlu0 %7463
  %7465 = vrot.lane.b32.xlu0 %v7362, 96
  %v7466 = vpop.permute.xlu0 %7465
  %7467 = vrot.lane.b32.xlu0 %v7363, 96
  %v7468 = vpop.permute.xlu0 %7467
  %7469 = vrot.lane.b32.xlu0 %v7364, 96
  %v7470 = vpop.permute.xlu0 %7469
  %7471 = vrot.lane.b32.xlu0 %v7365, 96
  %v7472 = vpop.permute.xlu0 %7471
  %7473 = vrot.lane.b32.xlu0 %v7366, 96
  %v7474 = vpop.permute.xlu0 %7473
  %7475 = vrot.lane.b32.xlu0 %v7367, 96
  %v7476 = vpop.permute.xlu0 %7475
  %7477 = vrot.lane.b32.xlu0 %v7368, 96
  %v7478 = vpop.permute.xlu0 %7477
  %7479 = vrot.lane.b32.xlu0 %v7369, 96
  %v7480 = vpop.permute.xlu0 %7479
  %7481 = vrot.lane.b32.xlu0 %v7370, 96
  %v7482 = vpop.permute.xlu0 %7481
  %7483 = vrot.lane.b32.xlu0 %v7371, 96
  %v7484 = vpop.permute.xlu0 %7483
  %7485 = vrot.lane.b32.xlu0 %v7372, 96
  %v7486 = vpop.permute.xlu0 %7485
  %7487 = vrot.lane.b32.xlu0 %v7373, 96
  %v7488 = vpop.permute.xlu0 %7487
  %7489 = vrot.lane.b32.xlu0 %v7374, 96
  %v7490 = vpop.permute.xlu0 %7489
  %7491 = vrot.lane.b32.xlu0 %v7375, 96
  %v7492 = vpop.permute.xlu0 %7491
  %7493 = vrot.lane.b32.xlu0 %v7376, 96
  %v7494 = vpop.permute.xlu0 %7493
  %7495 = vrot.lane.b32.xlu0 %v7377, 96
  %v7496 = vpop.permute.xlu0 %7495
  %7497 = vrot.lane.b32.xlu0 %v7378, 96
  %v7498 = vpop.permute.xlu0 %7497
  %7499 = vrot.lane.b32.xlu0 %v7379, 96
  %v7500 = vpop.permute.xlu0 %7499
  %7501 = vrot.lane.b32.xlu0 %v7380, 96
  %v7502 = vpop.permute.xlu0 %7501
  %7503 = vrot.lane.b32.xlu0 %v7381, 96
  %v7504 = vpop.permute.xlu0 %7503
  %7505 = vrot.lane.b32.xlu0 %v7382, 96
  %v7506 = vpop.permute.xlu0 %7505
  %7507 = vrot.lane.b32.xlu0 %v7383, 96
  %v7508 = vpop.permute.xlu0 %7507
  %7509 = vrot.lane.b32.xlu0 %v7384, 96
  %v7510 = vpop.permute.xlu0 %7509
  %7511 = vrot.lane.b32.xlu0 %v7385, 96
  %v7512 = vpop.permute.xlu0 %7511
  %7513 = vrot.lane.b32.xlu0 %v7386, 96
  %v7514 = vpop.permute.xlu0 %7513
  %7515 = vrot.lane.b32.xlu0 %v7387, 96
  %v7516 = vpop.permute.xlu0 %7515
  %7517 = vrot.lane.b32.xlu0 %v7388, 96
  %v7518 = vpop.permute.xlu0 %7517
  %7519 = vrot.lane.b32.xlu0 %v7389, 96
  %v7520 = vpop.permute.xlu0 %7519
  %7521 = vrot.lane.b32.xlu0 %v7390, 96
  %v7522 = vpop.permute.xlu0 %7521
  %7523 = vrot.lane.b32.xlu0 %v7391, 96
  %v7524 = vpop.permute.xlu0 %7523
  %7525 = vrot.lane.b32.xlu0 %v7392, 96
  %v7526 = vpop.permute.xlu0 %7525
  %7527 = vrot.lane.b32.xlu0 %v7393, 96
  %v7528 = vpop.permute.xlu0 %7527
  %7529 = vrot.lane.b32.xlu0 %v7394, 96
  %v7530 = vpop.permute.xlu0 %7529
  %7531 = vrot.lane.b32.xlu0 %v7395, 96
  %v7532 = vpop.permute.xlu0 %7531
  %7533 = vrot.lane.b32.xlu0 %v7396, 96
  %v7534 = vpop.permute.xlu0 %7533
  %7535 = vrot.lane.b32.xlu0 %v7397, 96
  %v7536 = vpop.permute.xlu0 %7535
  %7537 = vrot.lane.b32.xlu0 %v7398, 96
  %v7538 = vpop.permute.xlu0 %7537
  %7539 = vrot.lane.b32.xlu0 %v7399, 96
  %v7540 = vpop.permute.xlu0 %7539
  %7541 = vrot.lane.b32.xlu0 %v7400, 96
  %v7542 = vpop.permute.xlu0 %7541
  %7543 = vrot.lane.b32.xlu0 %v7401, 96
  %v7544 = vpop.permute.xlu0 %7543
  %7545 = vrot.lane.b32.xlu0 %v7402, 96
  %v7546 = vpop.permute.xlu0 %7545
  %7547 = vrot.lane.b32.xlu0 %v7403, 96
  %v7548 = vpop.permute.xlu0 %7547
  %7549 = vrot.lane.b32.xlu0 %v7404, 96
  %v7550 = vpop.permute.xlu0 %7549
  %7551 = vrot.lane.b32.xlu0 %v7405, 96
  %v7552 = vpop.permute.xlu0 %7551
  %v7602 = vadd.f32 %v7307, %v7456
  %v7603 = vadd.f32 %v7308, %v7458
  %v7604 = vadd.f32 %v7309, %v7460
  %v7605 = vadd.f32 %v7310, %v7462
  %v7606 = vadd.f32 %v7311, %v7464
  %v7607 = vadd.f32 %v7312, %v7466
  %v7608 = vadd.f32 %v7313, %v7468
  %v7609 = vadd.f32 %v7314, %v7470
  %v7610 = vadd.f32 %v7315, %v7472
  %v7611 = vadd.f32 %v7316, %v7474
  %v7612 = vadd.f32 %v7317, %v7476
  %v7613 = vadd.f32 %v7318, %v7478
  %v7614 = vadd.f32 %v7319, %v7480
  %v7615 = vadd.f32 %v7320, %v7482
  %v7616 = vadd.f32 %v7321, %v7484
  %v7617 = vadd.f32 %v7322, %v7486
  %v7618 = vadd.f32 %v7323, %v7488
  %v7619 = vadd.f32 %v7324, %v7490
  %v7620 = vadd.f32 %v7325, %v7492
  %v7621 = vadd.f32 %v7326, %v7494
  %v7622 = vadd.f32 %v7327, %v7496
  %v7623 = vadd.f32 %v7328, %v7498
  %v7624 = vadd.f32 %v7329, %v7500
  %v7625 = vadd.f32 %v7330, %v7502
  %v7626 = vadd.f32 %v7331, %v7504
  %v7627 = vadd.f32 %v7332, %v7506
  %v7628 = vadd.f32 %v7333, %v7508
  %v7629 = vadd.f32 %v7334, %v7510
  %v7630 = vadd.f32 %v7335, %v7512
  %v7631 = vadd.f32 %v7336, %v7514
  %v7632 = vadd.f32 %v7337, %v7516
  %v7633 = vadd.f32 %v7338, %v7518
  %v7634 = vadd.f32 %v7339, %v7520
  %v7635 = vadd.f32 %v7340, %v7522
  %v7636 = vadd.f32 %v7341, %v7524
  %v7637 = vadd.f32 %v7342, %v7526
  %v7638 = vadd.f32 %v7343, %v7528
  %v7639 = vadd.f32 %v7344, %v7530
  %v7640 = vadd.f32 %v7345, %v7532
  %v7641 = vadd.f32 %v7346, %v7534
  %v7642 = vadd.f32 %v7347, %v7536
  %v7643 = vadd.f32 %v7348, %v7538
  %v7644 = vadd.f32 %v7349, %v7540
  %v7645 = vadd.f32 %v7350, %v7542
  %v7646 = vadd.f32 %v7351, %v7544
  %v7647 = vadd.f32 %v7352, %v7546
  %v7648 = vadd.f32 %v7353, %v7548
  %v7649 = vadd.f32 %v7354, %v7550
  %v7650 = vadd.f32 %v7355, %v7552
  %v7651 = vld [vmem:[#allocation5 + $0x330] sm:$0xff]
  %v7652 = vld [vmem:[#allocation5 + $0x340] sm:$0xff]
  %v7653 = vld [vmem:[#allocation5 + $0x350] sm:$0xff]
  %v7654 = vld [vmem:[#allocation5 + $0x360] sm:$0xff]
  %v7655 = vld [vmem:[#allocation5 + $0x370] sm:$0xff]
  %v7656 = vmul.f32 %v6921, %v664
  %v7657 = vmul.f32 %v6922, %v665
  %v7658 = vmul.f32 %v6923, %v666
  %v7659 = vmul.f32 %v6924, %v667
  %v7660 = vmul.f32 %v6925, %v668
  %v7661 = vmul.f32 %v6926, %v669
  %v7662 = vmul.f32 %v6927, %v670
  %v7663 = vmul.f32 %v6928, %v671
  %v7664 = vmul.f32 %v6929, %v672
  %v7665 = vmul.f32 %v6930, %v673
  %v7666 = vmul.f32 %v6931, %v674
  %v7667 = vmul.f32 %v6932, %v675
  %v7668 = vmul.f32 %v6933, %v676
  %v7669 = vmul.f32 %v6934, %v677
  %v7670 = vmul.f32 %v6935, %v678
  %v7671 = vmul.f32 %v6936, %v679
  %v7672 = vmul.f32 %v6937, %v680
  %v7673 = vmul.f32 %v6938, %v681
  %v7674 = vmul.f32 %v6939, %v682
  %v7675 = vmul.f32 %v6940, %v683
  %v7676 = vmul.f32 %v6941, %v684
  %v7677 = vmul.f32 %v6942, %v685
  %v7678 = vmul.f32 %v6943, %v686
  %v7679 = vmul.f32 %v6944, %v687
  %v7680 = vmul.f32 %v6945, %v688
  %v7681 = vmul.f32 %v6946, %v689
  %v7682 = vmul.f32 %v6947, %v690
  %v7683 = vmul.f32 %v6948, %v691
  %v7684 = vmul.f32 %v6949, %v692
  %v7685 = vmul.f32 %v6950, %v693
  %v7686 = vmul.f32 %v6951, %v694
  %v7687 = vmul.f32 %v6952, %v695
  %v7688 = vmul.f32 %v6953, %v696
  %v7689 = vmul.f32 %v6954, %v697
  %v7690 = vmul.f32 %v6955, %v698
  %v7691 = vmul.f32 %v6956, %v699
  %v7692 = vmul.f32 %v6957, %v700
  %v7693 = vmul.f32 %v6958, %v701
  %v7694 = vmul.f32 %v6959, %v702
  %v7695 = vmul.f32 %v6960, %v703
  %v7696 = vmul.f32 %v6961, %v704
  %v7697 = vmul.f32 %v6962, %v705
  %v7698 = vmul.f32 %v7061, %v706
  %v7699 = vmul.f32 %v7356, %v707
  %v7700 = vmul.f32 %v7651, %v708
  %v7701 = vmul.f32 %v7652, %v709
  %v7702 = vmul.f32 %v7653, %v710
  %v7703 = vmul.f32 %v7654, %v711
  %v7704 = vmul.f32 %v7655, %v712
  %7754 = vrot.lane.b32.xlu0 %v7656, 80
  %v7755 = vpop.permute.xlu0 %7754
  %7756 = vrot.lane.b32.xlu0 %v7657, 80
  %v7757 = vpop.permute.xlu0 %7756
  %7758 = vrot.lane.b32.xlu0 %v7658, 80
  %v7759 = vpop.permute.xlu0 %7758
  %7760 = vrot.lane.b32.xlu0 %v7659, 80
  %v7761 = vpop.permute.xlu0 %7760
  %7762 = vrot.lane.b32.xlu0 %v7660, 80
  %v7763 = vpop.permute.xlu0 %7762
  %7764 = vrot.lane.b32.xlu0 %v7661, 80
  %v7765 = vpop.permute.xlu0 %7764
  %7766 = vrot.lane.b32.xlu0 %v7662, 80
  %v7767 = vpop.permute.xlu0 %7766
  %7768 = vrot.lane.b32.xlu0 %v7663, 80
  %v7769 = vpop.permute.xlu0 %7768
  %7770 = vrot.lane.b32.xlu0 %v7664, 80
  %v7771 = vpop.permute.xlu0 %7770
  %7772 = vrot.lane.b32.xlu0 %v7665, 80
  %v7773 = vpop.permute.xlu0 %7772
  %7774 = vrot.lane.b32.xlu0 %v7666, 80
  %v7775 = vpop.permute.xlu0 %7774
  %7776 = vrot.lane.b32.xlu0 %v7667, 80
  %v7777 = vpop.permute.xlu0 %7776
  %7778 = vrot.lane.b32.xlu0 %v7668, 80
  %v7779 = vpop.permute.xlu0 %7778
  %7780 = vrot.lane.b32.xlu0 %v7669, 80
  %v7781 = vpop.permute.xlu0 %7780
  %7782 = vrot.lane.b32.xlu0 %v7670, 80
  %v7783 = vpop.permute.xlu0 %7782
  %7784 = vrot.lane.b32.xlu0 %v7671, 80
  %v7785 = vpop.permute.xlu0 %7784
  %7786 = vrot.lane.b32.xlu0 %v7672, 80
  %v7787 = vpop.permute.xlu0 %7786
  %7788 = vrot.lane.b32.xlu0 %v7673, 80
  %v7789 = vpop.permute.xlu0 %7788
  %7790 = vrot.lane.b32.xlu0 %v7674, 80
  %v7791 = vpop.permute.xlu0 %7790
  %7792 = vrot.lane.b32.xlu0 %v7675, 80
  %v7793 = vpop.permute.xlu0 %7792
  %7794 = vrot.lane.b32.xlu0 %v7676, 80
  %v7795 = vpop.permute.xlu0 %7794
  %7796 = vrot.lane.b32.xlu0 %v7677, 80
  %v7797 = vpop.permute.xlu0 %7796
  %7798 = vrot.lane.b32.xlu0 %v7678, 80
  %v7799 = vpop.permute.xlu0 %7798
  %7800 = vrot.lane.b32.xlu0 %v7679, 80
  %v7801 = vpop.permute.xlu0 %7800
  %7802 = vrot.lane.b32.xlu0 %v7680, 80
  %v7803 = vpop.permute.xlu0 %7802
  %7804 = vrot.lane.b32.xlu0 %v7681, 80
  %v7805 = vpop.permute.xlu0 %7804
  %7806 = vrot.lane.b32.xlu0 %v7682, 80
  %v7807 = vpop.permute.xlu0 %7806
  %7808 = vrot.lane.b32.xlu0 %v7683, 80
  %v7809 = vpop.permute.xlu0 %7808
  %7810 = vrot.lane.b32.xlu0 %v7684, 80
  %v7811 = vpop.permute.xlu0 %7810
  %7812 = vrot.lane.b32.xlu0 %v7685, 80
  %v7813 = vpop.permute.xlu0 %7812
  %7814 = vrot.lane.b32.xlu0 %v7686, 80
  %v7815 = vpop.permute.xlu0 %7814
  %7816 = vrot.lane.b32.xlu0 %v7687, 80
  %v7817 = vpop.permute.xlu0 %7816
  %7818 = vrot.lane.b32.xlu0 %v7688, 80
  %v7819 = vpop.permute.xlu0 %7818
  %7820 = vrot.lane.b32.xlu0 %v7689, 80
  %v7821 = vpop.permute.xlu0 %7820
  %7822 = vrot.lane.b32.xlu0 %v7690, 80
  %v7823 = vpop.permute.xlu0 %7822
  %7824 = vrot.lane.b32.xlu0 %v7691, 80
  %v7825 = vpop.permute.xlu0 %7824
  %7826 = vrot.lane.b32.xlu0 %v7692, 80
  %v7827 = vpop.permute.xlu0 %7826
  %7828 = vrot.lane.b32.xlu0 %v7693, 80
  %v7829 = vpop.permute.xlu0 %7828
  %7830 = vrot.lane.b32.xlu0 %v7694, 80
  %v7831 = vpop.permute.xlu0 %7830
  %7832 = vrot.lane.b32.xlu0 %v7695, 80
  %v7833 = vpop.permute.xlu0 %7832
  %7834 = vrot.lane.b32.xlu0 %v7696, 80
  %v7835 = vpop.permute.xlu0 %7834
  %7836 = vrot.lane.b32.xlu0 %v7697, 80
  %v7837 = vpop.permute.xlu0 %7836
  %7838 = vrot.lane.b32.xlu0 %v7698, 80
  %v7839 = vpop.permute.xlu0 %7838
  %7840 = vrot.lane.b32.xlu0 %v7699, 80
  %v7841 = vpop.permute.xlu0 %7840
  %7842 = vrot.lane.b32.xlu0 %v7700, 80
  %v7843 = vpop.permute.xlu0 %7842
  %7844 = vrot.lane.b32.xlu0 %v7701, 80
  %v7845 = vpop.permute.xlu0 %7844
  %7846 = vrot.lane.b32.xlu0 %v7702, 80
  %v7847 = vpop.permute.xlu0 %7846
  %7848 = vrot.lane.b32.xlu0 %v7703, 80
  %v7849 = vpop.permute.xlu0 %7848
  %7850 = vrot.lane.b32.xlu0 %v7704, 80
  %v7851 = vpop.permute.xlu0 %7850
  %v7901 = vadd.f32 %v7602, %v7755
  %v7902 = vadd.f32 %v7603, %v7757
  %v7903 = vadd.f32 %v7604, %v7759
  %v7904 = vadd.f32 %v7605, %v7761
  %v7905 = vadd.f32 %v7606, %v7763
  %v7906 = vadd.f32 %v7607, %v7765
  %v7907 = vadd.f32 %v7608, %v7767
  %v7908 = vadd.f32 %v7609, %v7769
  %v7909 = vadd.f32 %v7610, %v7771
  %v7910 = vadd.f32 %v7611, %v7773
  %v7911 = vadd.f32 %v7612, %v7775
  %v7912 = vadd.f32 %v7613, %v7777
  %v7913 = vadd.f32 %v7614, %v7779
  %v7914 = vadd.f32 %v7615, %v7781
  %v7915 = vadd.f32 %v7616, %v7783
  %v7916 = vadd.f32 %v7617, %v7785
  %v7917 = vadd.f32 %v7618, %v7787
  %v7918 = vadd.f32 %v7619, %v7789
  %v7919 = vadd.f32 %v7620, %v7791
  %v7920 = vadd.f32 %v7621, %v7793
  %v7921 = vadd.f32 %v7622, %v7795
  %v7922 = vadd.f32 %v7623, %v7797
  %v7923 = vadd.f32 %v7624, %v7799
  %v7924 = vadd.f32 %v7625, %v7801
  %v7925 = vadd.f32 %v7626, %v7803
  %v7926 = vadd.f32 %v7627, %v7805
  %v7927 = vadd.f32 %v7628, %v7807
  %v7928 = vadd.f32 %v7629, %v7809
  %v7929 = vadd.f32 %v7630, %v7811
  %v7930 = vadd.f32 %v7631, %v7813
  %v7931 = vadd.f32 %v7632, %v7815
  %v7932 = vadd.f32 %v7633, %v7817
  %v7933 = vadd.f32 %v7634, %v7819
  %v7934 = vadd.f32 %v7635, %v7821
  %v7935 = vadd.f32 %v7636, %v7823
  %v7936 = vadd.f32 %v7637, %v7825
  %v7937 = vadd.f32 %v7638, %v7827
  %v7938 = vadd.f32 %v7639, %v7829
  %v7939 = vadd.f32 %v7640, %v7831
  %v7940 = vadd.f32 %v7641, %v7833
  %v7941 = vadd.f32 %v7642, %v7835
  %v7942 = vadd.f32 %v7643, %v7837
  %v7943 = vadd.f32 %v7644, %v7839
  %v7944 = vadd.f32 %v7645, %v7841
  %v7945 = vadd.f32 %v7646, %v7843
  %v7946 = vadd.f32 %v7647, %v7845
  %v7947 = vadd.f32 %v7648, %v7847
  %v7948 = vadd.f32 %v7649, %v7849
  %v7949 = vadd.f32 %v7650, %v7851
  %v7950 = vld [vmem:[#allocation5 + $0x380] sm:$0xff]
  %8000 = vrot.lane.b32.xlu0 %v6922, 64
  %v8001 = vpop.permute.xlu0 %8000
  %8002 = vrot.lane.b32.xlu0 %v6923, 64
  %v8003 = vpop.permute.xlu0 %8002
  %8004 = vrot.lane.b32.xlu0 %v6924, 64
  %v8005 = vpop.permute.xlu0 %8004
  %8006 = vrot.lane.b32.xlu0 %v6925, 64
  %v8007 = vpop.permute.xlu0 %8006
  %8008 = vrot.lane.b32.xlu0 %v6926, 64
  %v8009 = vpop.permute.xlu0 %8008
  %8010 = vrot.lane.b32.xlu0 %v6927, 64
  %v8011 = vpop.permute.xlu0 %8010
  %8012 = vrot.lane.b32.xlu0 %v6928, 64
  %v8013 = vpop.permute.xlu0 %8012
  %8014 = vrot.lane.b32.xlu0 %v6929, 64
  %v8015 = vpop.permute.xlu0 %8014
  %8016 = vrot.lane.b32.xlu0 %v6930, 64
  %v8017 = vpop.permute.xlu0 %8016
  %8018 = vrot.lane.b32.xlu0 %v6931, 64
  %v8019 = vpop.permute.xlu0 %8018
  %8020 = vrot.lane.b32.xlu0 %v6932, 64
  %v8021 = vpop.permute.xlu0 %8020
  %8022 = vrot.lane.b32.xlu0 %v6933, 64
  %v8023 = vpop.permute.xlu0 %8022
  %8024 = vrot.lane.b32.xlu0 %v6934, 64
  %v8025 = vpop.permute.xlu0 %8024
  %8026 = vrot.lane.b32.xlu0 %v6935, 64
  %v8027 = vpop.permute.xlu0 %8026
  %8028 = vrot.lane.b32.xlu0 %v6936, 64
  %v8029 = vpop.permute.xlu0 %8028
  %8030 = vrot.lane.b32.xlu0 %v6937, 64
  %v8031 = vpop.permute.xlu0 %8030
  %8032 = vrot.lane.b32.xlu0 %v6938, 64
  %v8033 = vpop.permute.xlu0 %8032
  %8034 = vrot.lane.b32.xlu0 %v6939, 64
  %v8035 = vpop.permute.xlu0 %8034
  %8036 = vrot.lane.b32.xlu0 %v6940, 64
  %v8037 = vpop.permute.xlu0 %8036
  %8038 = vrot.lane.b32.xlu0 %v6941, 64
  %v8039 = vpop.permute.xlu0 %8038
  %8040 = vrot.lane.b32.xlu0 %v6942, 64
  %v8041 = vpop.permute.xlu0 %8040
  %8042 = vrot.lane.b32.xlu0 %v6943, 64
  %v8043 = vpop.permute.xlu0 %8042
  %8044 = vrot.lane.b32.xlu0 %v6944, 64
  %v8045 = vpop.permute.xlu0 %8044
  %8046 = vrot.lane.b32.xlu0 %v6945, 64
  %v8047 = vpop.permute.xlu0 %8046
  %8048 = vrot.lane.b32.xlu0 %v6946, 64
  %v8049 = vpop.permute.xlu0 %8048
  %8050 = vrot.lane.b32.xlu0 %v6947, 64
  %v8051 = vpop.permute.xlu0 %8050
  %8052 = vrot.lane.b32.xlu0 %v6948, 64
  %v8053 = vpop.permute.xlu0 %8052
  %8054 = vrot.lane.b32.xlu0 %v6949, 64
  %v8055 = vpop.permute.xlu0 %8054
  %8056 = vrot.lane.b32.xlu0 %v6950, 64
  %v8057 = vpop.permute.xlu0 %8056
  %8058 = vrot.lane.b32.xlu0 %v6951, 64
  %v8059 = vpop.permute.xlu0 %8058
  %8060 = vrot.lane.b32.xlu0 %v6952, 64
  %v8061 = vpop.permute.xlu0 %8060
  %8062 = vrot.lane.b32.xlu0 %v6953, 64
  %v8063 = vpop.permute.xlu0 %8062
  %8064 = vrot.lane.b32.xlu0 %v6954, 64
  %v8065 = vpop.permute.xlu0 %8064
  %8066 = vrot.lane.b32.xlu0 %v6955, 64
  %v8067 = vpop.permute.xlu0 %8066
  %8068 = vrot.lane.b32.xlu0 %v6956, 64
  %v8069 = vpop.permute.xlu0 %8068
  %8070 = vrot.lane.b32.xlu0 %v6957, 64
  %v8071 = vpop.permute.xlu0 %8070
  %8072 = vrot.lane.b32.xlu0 %v6958, 64
  %v8073 = vpop.permute.xlu0 %8072
  %8074 = vrot.lane.b32.xlu0 %v6959, 64
  %v8075 = vpop.permute.xlu0 %8074
  %8076 = vrot.lane.b32.xlu0 %v6960, 64
  %v8077 = vpop.permute.xlu0 %8076
  %8078 = vrot.lane.b32.xlu0 %v6961, 64
  %v8079 = vpop.permute.xlu0 %8078
  %8080 = vrot.lane.b32.xlu0 %v6962, 64
  %v8081 = vpop.permute.xlu0 %8080
  %8082 = vrot.lane.b32.xlu0 %v7061, 64
  %v8083 = vpop.permute.xlu0 %8082
  %8084 = vrot.lane.b32.xlu0 %v7356, 64
  %v8085 = vpop.permute.xlu0 %8084
  %8086 = vrot.lane.b32.xlu0 %v7651, 64
  %v8087 = vpop.permute.xlu0 %8086
  %8088 = vrot.lane.b32.xlu0 %v7652, 64
  %v8089 = vpop.permute.xlu0 %8088
  %8090 = vrot.lane.b32.xlu0 %v7653, 64
  %v8091 = vpop.permute.xlu0 %8090
  %8092 = vrot.lane.b32.xlu0 %v7654, 64
  %v8093 = vpop.permute.xlu0 %8092
  %8094 = vrot.lane.b32.xlu0 %v7655, 64
  %v8095 = vpop.permute.xlu0 %8094
  %8096 = vrot.lane.b32.xlu0 %v7950, 64
  %v8097 = vpop.permute.xlu0 %8096
  %v8147 = vadd.f32 %v7901, %v8001
  %v8148 = vadd.f32 %v7902, %v8003
  %v8149 = vadd.f32 %v7903, %v8005
  %v8150 = vadd.f32 %v7904, %v8007
  %v8151 = vadd.f32 %v7905, %v8009
  %v8152 = vadd.f32 %v7906, %v8011
  %v8153 = vadd.f32 %v7907, %v8013
  %v8154 = vadd.f32 %v7908, %v8015
  %v8155 = vadd.f32 %v7909, %v8017
  %v8156 = vadd.f32 %v7910, %v8019
  %v8157 = vadd.f32 %v7911, %v8021
  %v8158 = vadd.f32 %v7912, %v8023
  %v8159 = vadd.f32 %v7913, %v8025
  %v8160 = vadd.f32 %v7914, %v8027
  %v8161 = vadd.f32 %v7915, %v8029
  %v8162 = vadd.f32 %v7916, %v8031
  %v8163 = vadd.f32 %v7917, %v8033
  %v8164 = vadd.f32 %v7918, %v8035
  %v8165 = vadd.f32 %v7919, %v8037
  %v8166 = vadd.f32 %v7920, %v8039
  %v8167 = vadd.f32 %v7921, %v8041
  %v8168 = vadd.f32 %v7922, %v8043
  %v8169 = vadd.f32 %v7923, %v8045
  %v8170 = vadd.f32 %v7924, %v8047
  %v8171 = vadd.f32 %v7925, %v8049
  %v8172 = vadd.f32 %v7926, %v8051
  %v8173 = vadd.f32 %v7927, %v8053
  %v8174 = vadd.f32 %v7928, %v8055
  %v8175 = vadd.f32 %v7929, %v8057
  %v8176 = vadd.f32 %v7930, %v8059
  %v8177 = vadd.f32 %v7931, %v8061
  %v8178 = vadd.f32 %v7932, %v8063
  %v8179 = vadd.f32 %v7933, %v8065
  %v8180 = vadd.f32 %v7934, %v8067
  %v8181 = vadd.f32 %v7935, %v8069
  %v8182 = vadd.f32 %v7936, %v8071
  %v8183 = vadd.f32 %v7937, %v8073
  %v8184 = vadd.f32 %v7938, %v8075
  %v8185 = vadd.f32 %v7939, %v8077
  %v8186 = vadd.f32 %v7940, %v8079
  %v8187 = vadd.f32 %v7941, %v8081
  %v8188 = vadd.f32 %v7942, %v8083
  %v8189 = vadd.f32 %v7943, %v8085
  %v8190 = vadd.f32 %v7944, %v8087
  %v8191 = vadd.f32 %v7945, %v8089
  %v8192 = vadd.f32 %v7946, %v8091
  %v8193 = vadd.f32 %v7947, %v8093
  %v8194 = vadd.f32 %v7948, %v8095
  %v8195 = vadd.f32 %v7949, %v8097
  %v8196 = vld [vmem:[#allocation5 + $0x390] sm:$0xff]
  %v8197 = vmul.f32 %v6923, %v762
  %v8198 = vmul.f32 %v6924, %v763
  %v8199 = vmul.f32 %v6925, %v764
  %v8200 = vmul.f32 %v6926, %v765
  %v8201 = vmul.f32 %v6927, %v766
  %v8202 = vmul.f32 %v6928, %v767
  %v8203 = vmul.f32 %v6929, %v768
  %v8204 = vmul.f32 %v6930, %v769
  %v8205 = vmul.f32 %v6931, %v770
  %v8206 = vmul.f32 %v6932, %v771
  %v8207 = vmul.f32 %v6933, %v772
  %v8208 = vmul.f32 %v6934, %v773
  %v8209 = vmul.f32 %v6935, %v774
  %v8210 = vmul.f32 %v6936, %v775
  %v8211 = vmul.f32 %v6937, %v776
  %v8212 = vmul.f32 %v6938, %v777
  %v8213 = vmul.f32 %v6939, %v778
  %v8214 = vmul.f32 %v6940, %v779
  %v8215 = vmul.f32 %v6941, %v780
  %v8216 = vmul.f32 %v6942, %v781
  %v8217 = vmul.f32 %v6943, %v782
  %v8218 = vmul.f32 %v6944, %v783
  %v8219 = vmul.f32 %v6945, %v784
  %v8220 = vmul.f32 %v6946, %v785
  %v8221 = vmul.f32 %v6947, %v786
  %v8222 = vmul.f32 %v6948, %v787
  %v8223 = vmul.f32 %v6949, %v788
  %v8224 = vmul.f32 %v6950, %v789
  %v8225 = vmul.f32 %v6951, %v790
  %v8226 = vmul.f32 %v6952, %v791
  %v8227 = vmul.f32 %v6953, %v792
  %v8228 = vmul.f32 %v6954, %v793
  %v8229 = vmul.f32 %v6955, %v794
  %v8230 = vmul.f32 %v6956, %v795
  %v8231 = vmul.f32 %v6957, %v796
  %v8232 = vmul.f32 %v6958, %v797
  %v8233 = vmul.f32 %v6959, %v798
  %v8234 = vmul.f32 %v6960, %v799
  %v8235 = vmul.f32 %v6961, %v800
  %v8236 = vmul.f32 %v6962, %v801
  %v8237 = vmul.f32 %v7061, %v802
  %v8238 = vmul.f32 %v7356, %v803
  %v8239 = vmul.f32 %v7651, %v804
  %v8240 = vmul.f32 %v7652, %v805
  %v8241 = vmul.f32 %v7653, %v806
  %v8242 = vmul.f32 %v7654, %v807
  %v8243 = vmul.f32 %v7655, %v808
  %v8244 = vmul.f32 %v7950, %v809
  %v8245 = vmul.f32 %v8196, %v810
  %8295 = vrot.lane.b32.xlu0 %v8197, 48
  %v8296 = vpop.permute.xlu0 %8295
  %8297 = vrot.lane.b32.xlu0 %v8198, 48
  %v8298 = vpop.permute.xlu0 %8297
  %8299 = vrot.lane.b32.xlu0 %v8199, 48
  %v8300 = vpop.permute.xlu0 %8299
  %8301 = vrot.lane.b32.xlu0 %v8200, 48
  %v8302 = vpop.permute.xlu0 %8301
  %8303 = vrot.lane.b32.xlu0 %v8201, 48
  %v8304 = vpop.permute.xlu0 %8303
  %8305 = vrot.lane.b32.xlu0 %v8202, 48
  %v8306 = vpop.permute.xlu0 %8305
  %8307 = vrot.lane.b32.xlu0 %v8203, 48
  %v8308 = vpop.permute.xlu0 %8307
  %8309 = vrot.lane.b32.xlu0 %v8204, 48
  %v8310 = vpop.permute.xlu0 %8309
  %8311 = vrot.lane.b32.xlu0 %v8205, 48
  %v8312 = vpop.permute.xlu0 %8311
  %8313 = vrot.lane.b32.xlu0 %v8206, 48
  %v8314 = vpop.permute.xlu0 %8313
  %8315 = vrot.lane.b32.xlu0 %v8207, 48
  %v8316 = vpop.permute.xlu0 %8315
  %8317 = vrot.lane.b32.xlu0 %v8208, 48
  %v8318 = vpop.permute.xlu0 %8317
  %8319 = vrot.lane.b32.xlu0 %v8209, 48
  %v8320 = vpop.permute.xlu0 %8319
  %8321 = vrot.lane.b32.xlu0 %v8210, 48
  %v8322 = vpop.permute.xlu0 %8321
  %8323 = vrot.lane.b32.xlu0 %v8211, 48
  %v8324 = vpop.permute.xlu0 %8323
  %8325 = vrot.lane.b32.xlu0 %v8212, 48
  %v8326 = vpop.permute.xlu0 %8325
  %8327 = vrot.lane.b32.xlu0 %v8213, 48
  %v8328 = vpop.permute.xlu0 %8327
  %8329 = vrot.lane.b32.xlu0 %v8214, 48
  %v8330 = vpop.permute.xlu0 %8329
  %8331 = vrot.lane.b32.xlu0 %v8215, 48
  %v8332 = vpop.permute.xlu0 %8331
  %8333 = vrot.lane.b32.xlu0 %v8216, 48
  %v8334 = vpop.permute.xlu0 %8333
  %8335 = vrot.lane.b32.xlu0 %v8217, 48
  %v8336 = vpop.permute.xlu0 %8335
  %8337 = vrot.lane.b32.xlu0 %v8218, 48
  %v8338 = vpop.permute.xlu0 %8337
  %8339 = vrot.lane.b32.xlu0 %v8219, 48
  %v8340 = vpop.permute.xlu0 %8339
  %8341 = vrot.lane.b32.xlu0 %v8220, 48
  %v8342 = vpop.permute.xlu0 %8341
  %8343 = vrot.lane.b32.xlu0 %v8221, 48
  %v8344 = vpop.permute.xlu0 %8343
  %8345 = vrot.lane.b32.xlu0 %v8222, 48
  %v8346 = vpop.permute.xlu0 %8345
  %8347 = vrot.lane.b32.xlu0 %v8223, 48
  %v8348 = vpop.permute.xlu0 %8347
  %8349 = vrot.lane.b32.xlu0 %v8224, 48
  %v8350 = vpop.permute.xlu0 %8349
  %8351 = vrot.lane.b32.xlu0 %v8225, 48
  %v8352 = vpop.permute.xlu0 %8351
  %8353 = vrot.lane.b32.xlu0 %v8226, 48
  %v8354 = vpop.permute.xlu0 %8353
  %8355 = vrot.lane.b32.xlu0 %v8227, 48
  %v8356 = vpop.permute.xlu0 %8355
  %8357 = vrot.lane.b32.xlu0 %v8228, 48
  %v8358 = vpop.permute.xlu0 %8357
  %8359 = vrot.lane.b32.xlu0 %v8229, 48
  %v8360 = vpop.permute.xlu0 %8359
  %8361 = vrot.lane.b32.xlu0 %v8230, 48
  %v8362 = vpop.permute.xlu0 %8361
  %8363 = vrot.lane.b32.xlu0 %v8231, 48
  %v8364 = vpop.permute.xlu0 %8363
  %8365 = vrot.lane.b32.xlu0 %v8232, 48
  %v8366 = vpop.permute.xlu0 %8365
  %8367 = vrot.lane.b32.xlu0 %v8233, 48
  %v8368 = vpop.permute.xlu0 %8367
  %8369 = vrot.lane.b32.xlu0 %v8234, 48
  %v8370 = vpop.permute.xlu0 %8369
  %8371 = vrot.lane.b32.xlu0 %v8235, 48
  %v8372 = vpop.permute.xlu0 %8371
  %8373 = vrot.lane.b32.xlu0 %v8236, 48
  %v8374 = vpop.permute.xlu0 %8373
  %8375 = vrot.lane.b32.xlu0 %v8237, 48
  %v8376 = vpop.permute.xlu0 %8375
  %8377 = vrot.lane.b32.xlu0 %v8238, 48
  %v8378 = vpop.permute.xlu0 %8377
  %8379 = vrot.lane.b32.xlu0 %v8239, 48
  %v8380 = vpop.permute.xlu0 %8379
  %8381 = vrot.lane.b32.xlu0 %v8240, 48
  %v8382 = vpop.permute.xlu0 %8381
  %8383 = vrot.lane.b32.xlu0 %v8241, 48
  %v8384 = vpop.permute.xlu0 %8383
  %8385 = vrot.lane.b32.xlu0 %v8242, 48
  %v8386 = vpop.permute.xlu0 %8385
  %8387 = vrot.lane.b32.xlu0 %v8243, 48
  %v8388 = vpop.permute.xlu0 %8387
  %8389 = vrot.lane.b32.xlu0 %v8244, 48
  %v8390 = vpop.permute.xlu0 %8389
  %8391 = vrot.lane.b32.xlu0 %v8245, 48
  %v8392 = vpop.permute.xlu0 %8391
  %v8442 = vadd.f32 %v8147, %v8296
  %v8443 = vadd.f32 %v8148, %v8298
  %v8444 = vadd.f32 %v8149, %v8300
  %v8445 = vadd.f32 %v8150, %v8302
  %v8446 = vadd.f32 %v8151, %v8304
  %v8447 = vadd.f32 %v8152, %v8306
  %v8448 = vadd.f32 %v8153, %v8308
  %v8449 = vadd.f32 %v8154, %v8310
  %v8450 = vadd.f32 %v8155, %v8312
  %v8451 = vadd.f32 %v8156, %v8314
  %v8452 = vadd.f32 %v8157, %v8316
  %v8453 = vadd.f32 %v8158, %v8318
  %v8454 = vadd.f32 %v8159, %v8320
  %v8455 = vadd.f32 %v8160, %v8322
  %v8456 = vadd.f32 %v8161, %v8324
  %v8457 = vadd.f32 %v8162, %v8326
  %v8458 = vadd.f32 %v8163, %v8328
  %v8459 = vadd.f32 %v8164, %v8330
  %v8460 = vadd.f32 %v8165, %v8332
  %v8461 = vadd.f32 %v8166, %v8334
  %v8462 = vadd.f32 %v8167, %v8336
  %v8463 = vadd.f32 %v8168, %v8338
  %v8464 = vadd.f32 %v8169, %v8340
  %v8465 = vadd.f32 %v8170, %v8342
  %v8466 = vadd.f32 %v8171, %v8344
  %v8467 = vadd.f32 %v8172, %v8346
  %v8468 = vadd.f32 %v8173, %v8348
  %v8469 = vadd.f32 %v8174, %v8350
  %v8470 = vadd.f32 %v8175, %v8352
  %v8471 = vadd.f32 %v8176, %v8354
  %v8472 = vadd.f32 %v8177, %v8356
  %v8473 = vadd.f32 %v8178, %v8358
  %v8474 = vadd.f32 %v8179, %v8360
  %v8475 = vadd.f32 %v8180, %v8362
  %v8476 = vadd.f32 %v8181, %v8364
  %v8477 = vadd.f32 %v8182, %v8366
  %v8478 = vadd.f32 %v8183, %v8368
  %v8479 = vadd.f32 %v8184, %v8370
  %v8480 = vadd.f32 %v8185, %v8372
  %v8481 = vadd.f32 %v8186, %v8374
  %v8482 = vadd.f32 %v8187, %v8376
  %v8483 = vadd.f32 %v8188, %v8378
  %v8484 = vadd.f32 %v8189, %v8380
  %v8485 = vadd.f32 %v8190, %v8382
  %v8486 = vadd.f32 %v8191, %v8384
  %v8487 = vadd.f32 %v8192, %v8386
  %v8488 = vadd.f32 %v8193, %v8388
  %v8489 = vadd.f32 %v8194, %v8390
  %v8490 = vadd.f32 %v8195, %v8392
  %v8491 = vld [vmem:[#allocation5 + $0x3a0] sm:$0xff]
  %v8492 = vld [vmem:[#allocation5 + $0x3b0] sm:$0xff]
  %v8493 = vld [vmem:[#allocation5 + $0x3c0] sm:$0xff]
  %v8494 = vld [vmem:[#allocation5 + $0x3d0] sm:$0xff]
  %v8495 = vld [vmem:[#allocation5 + $0x3e0] sm:$0xff]
  %v8496 = vmul.f32 %v6928, %v909
  %v8497 = vmul.f32 %v6929, %v910
  %v8498 = vmul.f32 %v6930, %v911
  %v8499 = vmul.f32 %v6931, %v912
  %v8500 = vmul.f32 %v6932, %v913
  %v8501 = vmul.f32 %v6933, %v914
  %v8502 = vmul.f32 %v6934, %v915
  %v8503 = vmul.f32 %v6935, %v916
  %v8504 = vmul.f32 %v6936, %v917
  %v8505 = vmul.f32 %v6937, %v918
  %v8506 = vmul.f32 %v6938, %v919
  %v8507 = vmul.f32 %v6939, %v920
  %v8508 = vmul.f32 %v6940, %v921
  %v8509 = vmul.f32 %v6941, %v922
  %v8510 = vmul.f32 %v6942, %v923
  %v8511 = vmul.f32 %v6943, %v924
  %v8512 = vmul.f32 %v6944, %v925
  %v8513 = vmul.f32 %v6945, %v926
  %v8514 = vmul.f32 %v6946, %v927
  %v8515 = vmul.f32 %v6947, %v928
  %v8516 = vmul.f32 %v6948, %v929
  %v8517 = vmul.f32 %v6949, %v930
  %v8518 = vmul.f32 %v6950, %v931
  %v8519 = vmul.f32 %v6951, %v932
  %v8520 = vmul.f32 %v6952, %v933
  %v8521 = vmul.f32 %v6953, %v934
  %v8522 = vmul.f32 %v6954, %v935
  %v8523 = vmul.f32 %v6955, %v936
  %v8524 = vmul.f32 %v6956, %v937
  %v8525 = vmul.f32 %v6957, %v938
  %v8526 = vmul.f32 %v6958, %v939
  %v8527 = vmul.f32 %v6959, %v940
  %v8528 = vmul.f32 %v6960, %v941
  %v8529 = vmul.f32 %v6961, %v942
  %v8530 = vmul.f32 %v6962, %v943
  %v8531 = vmul.f32 %v7061, %v944
  %v8532 = vmul.f32 %v7356, %v945
  %v8533 = vmul.f32 %v7651, %v946
  %v8534 = vmul.f32 %v7652, %v947
  %v8535 = vmul.f32 %v7653, %v948
  %v8536 = vmul.f32 %v7654, %v949
  %v8537 = vmul.f32 %v7655, %v950
  %v8538 = vmul.f32 %v7950, %v951
  %v8539 = vmul.f32 %v8196, %v952
  %v8540 = vmul.f32 %v8491, %v953
  %v8541 = vmul.f32 %v8492, %v954
  %v8542 = vmul.f32 %v8493, %v955
  %v8543 = vmul.f32 %v8494, %v956
  %v8544 = vmul.f32 %v8495, %v957
  %8594 = vrot.lane.b32.xlu0 %v8496, 32
  %v8595 = vpop.permute.xlu0 %8594
  %8596 = vrot.lane.b32.xlu0 %v8497, 32
  %v8597 = vpop.permute.xlu0 %8596
  %8598 = vrot.lane.b32.xlu0 %v8498, 32
  %v8599 = vpop.permute.xlu0 %8598
  %8600 = vrot.lane.b32.xlu0 %v8499, 32
  %v8601 = vpop.permute.xlu0 %8600
  %8602 = vrot.lane.b32.xlu0 %v8500, 32
  %v8603 = vpop.permute.xlu0 %8602
  %8604 = vrot.lane.b32.xlu0 %v8501, 32
  %v8605 = vpop.permute.xlu0 %8604
  %8606 = vrot.lane.b32.xlu0 %v8502, 32
  %v8607 = vpop.permute.xlu0 %8606
  %8608 = vrot.lane.b32.xlu0 %v8503, 32
  %v8609 = vpop.permute.xlu0 %8608
  %8610 = vrot.lane.b32.xlu0 %v8504, 32
  %v8611 = vpop.permute.xlu0 %8610
  %8612 = vrot.lane.b32.xlu0 %v8505, 32
  %v8613 = vpop.permute.xlu0 %8612
  %8614 = vrot.lane.b32.xlu0 %v8506, 32
  %v8615 = vpop.permute.xlu0 %8614
  %8616 = vrot.lane.b32.xlu0 %v8507, 32
  %v8617 = vpop.permute.xlu0 %8616
  %8618 = vrot.lane.b32.xlu0 %v8508, 32
  %v8619 = vpop.permute.xlu0 %8618
  %8620 = vrot.lane.b32.xlu0 %v8509, 32
  %v8621 = vpop.permute.xlu0 %8620
  %8622 = vrot.lane.b32.xlu0 %v8510, 32
  %v8623 = vpop.permute.xlu0 %8622
  %8624 = vrot.lane.b32.xlu0 %v8511, 32
  %v8625 = vpop.permute.xlu0 %8624
  %8626 = vrot.lane.b32.xlu0 %v8512, 32
  %v8627 = vpop.permute.xlu0 %8626
  %8628 = vrot.lane.b32.xlu0 %v8513, 32
  %v8629 = vpop.permute.xlu0 %8628
  %8630 = vrot.lane.b32.xlu0 %v8514, 32
  %v8631 = vpop.permute.xlu0 %8630
  %8632 = vrot.lane.b32.xlu0 %v8515, 32
  %v8633 = vpop.permute.xlu0 %8632
  %8634 = vrot.lane.b32.xlu0 %v8516, 32
  %v8635 = vpop.permute.xlu0 %8634
  %8636 = vrot.lane.b32.xlu0 %v8517, 32
  %v8637 = vpop.permute.xlu0 %8636
  %8638 = vrot.lane.b32.xlu0 %v8518, 32
  %v8639 = vpop.permute.xlu0 %8638
  %8640 = vrot.lane.b32.xlu0 %v8519, 32
  %v8641 = vpop.permute.xlu0 %8640
  %8642 = vrot.lane.b32.xlu0 %v8520, 32
  %v8643 = vpop.permute.xlu0 %8642
  %8644 = vrot.lane.b32.xlu0 %v8521, 32
  %v8645 = vpop.permute.xlu0 %8644
  %8646 = vrot.lane.b32.xlu0 %v8522, 32
  %v8647 = vpop.permute.xlu0 %8646
  %8648 = vrot.lane.b32.xlu0 %v8523, 32
  %v8649 = vpop.permute.xlu0 %8648
  %8650 = vrot.lane.b32.xlu0 %v8524, 32
  %v8651 = vpop.permute.xlu0 %8650
  %8652 = vrot.lane.b32.xlu0 %v8525, 32
  %v8653 = vpop.permute.xlu0 %8652
  %8654 = vrot.lane.b32.xlu0 %v8526, 32
  %v8655 = vpop.permute.xlu0 %8654
  %8656 = vrot.lane.b32.xlu0 %v8527, 32
  %v8657 = vpop.permute.xlu0 %8656
  %8658 = vrot.lane.b32.xlu0 %v8528, 32
  %v8659 = vpop.permute.xlu0 %8658
  %8660 = vrot.lane.b32.xlu0 %v8529, 32
  %v8661 = vpop.permute.xlu0 %8660
  %8662 = vrot.lane.b32.xlu0 %v8530, 32
  %v8663 = vpop.permute.xlu0 %8662
  %8664 = vrot.lane.b32.xlu0 %v8531, 32
  %v8665 = vpop.permute.xlu0 %8664
  %8666 = vrot.lane.b32.xlu0 %v8532, 32
  %v8667 = vpop.permute.xlu0 %8666
  %8668 = vrot.lane.b32.xlu0 %v8533, 32
  %v8669 = vpop.permute.xlu0 %8668
  %8670 = vrot.lane.b32.xlu0 %v8534, 32
  %v8671 = vpop.permute.xlu0 %8670
  %8672 = vrot.lane.b32.xlu0 %v8535, 32
  %v8673 = vpop.permute.xlu0 %8672
  %8674 = vrot.lane.b32.xlu0 %v8536, 32
  %v8675 = vpop.permute.xlu0 %8674
  %8676 = vrot.lane.b32.xlu0 %v8537, 32
  %v8677 = vpop.permute.xlu0 %8676
  %8678 = vrot.lane.b32.xlu0 %v8538, 32
  %v8679 = vpop.permute.xlu0 %8678
  %8680 = vrot.lane.b32.xlu0 %v8539, 32
  %v8681 = vpop.permute.xlu0 %8680
  %8682 = vrot.lane.b32.xlu0 %v8540, 32
  %v8683 = vpop.permute.xlu0 %8682
  %8684 = vrot.lane.b32.xlu0 %v8541, 32
  %v8685 = vpop.permute.xlu0 %8684
  %8686 = vrot.lane.b32.xlu0 %v8542, 32
  %v8687 = vpop.permute.xlu0 %8686
  %8688 = vrot.lane.b32.xlu0 %v8543, 32
  %v8689 = vpop.permute.xlu0 %8688
  %8690 = vrot.lane.b32.xlu0 %v8544, 32
  %v8691 = vpop.permute.xlu0 %8690
  %v8741 = vadd.f32 %v8442, %v8595
  %v8742 = vadd.f32 %v8443, %v8597
  %v8743 = vadd.f32 %v8444, %v8599
  %v8744 = vadd.f32 %v8445, %v8601
  %v8745 = vadd.f32 %v8446, %v8603
  %v8746 = vadd.f32 %v8447, %v8605
  %v8747 = vadd.f32 %v8448, %v8607
  %v8748 = vadd.f32 %v8449, %v8609
  %v8749 = vadd.f32 %v8450, %v8611
  %v8750 = vadd.f32 %v8451, %v8613
  %v8751 = vadd.f32 %v8452, %v8615
  %v8752 = vadd.f32 %v8453, %v8617
  %v8753 = vadd.f32 %v8454, %v8619
  %v8754 = vadd.f32 %v8455, %v8621
  %v8755 = vadd.f32 %v8456, %v8623
  %v8756 = vadd.f32 %v8457, %v8625
  %v8757 = vadd.f32 %v8458, %v8627
  %v8758 = vadd.f32 %v8459, %v8629
  %v8759 = vadd.f32 %v8460, %v8631
  %v8760 = vadd.f32 %v8461, %v8633
  %v8761 = vadd.f32 %v8462, %v8635
  %v8762 = vadd.f32 %v8463, %v8637
  %v8763 = vadd.f32 %v8464, %v8639
  %v8764 = vadd.f32 %v8465, %v8641
  %v8765 = vadd.f32 %v8466, %v8643
  %v8766 = vadd.f32 %v8467, %v8645
  %v8767 = vadd.f32 %v8468, %v8647
  %v8768 = vadd.f32 %v8469, %v8649
  %v8769 = vadd.f32 %v8470, %v8651
  %v8770 = vadd.f32 %v8471, %v8653
  %v8771 = vadd.f32 %v8472, %v8655
  %v8772 = vadd.f32 %v8473, %v8657
  %v8773 = vadd.f32 %v8474, %v8659
  %v8774 = vadd.f32 %v8475, %v8661
  %v8775 = vadd.f32 %v8476, %v8663
  %v8776 = vadd.f32 %v8477, %v8665
  %v8777 = vadd.f32 %v8478, %v8667
  %v8778 = vadd.f32 %v8479, %v8669
  %v8779 = vadd.f32 %v8480, %v8671
  %v8780 = vadd.f32 %v8481, %v8673
  %v8781 = vadd.f32 %v8482, %v8675
  %v8782 = vadd.f32 %v8483, %v8677
  %v8783 = vadd.f32 %v8484, %v8679
  %v8784 = vadd.f32 %v8485, %v8681
  %v8785 = vadd.f32 %v8486, %v8683
  %v8786 = vadd.f32 %v8487, %v8685
  %v8787 = vadd.f32 %v8488, %v8687
  %v8788 = vadd.f32 %v8489, %v8689
  %v8789 = vadd.f32 %v8490, %v8691
  %v8790 = vld [vmem:[#allocation5 + $0x3f0] sm:$0xff]
  %v8791 = vmul.f32 %v6929, %v566
  %v8792 = vmul.f32 %v6930, %v567
  %v8793 = vmul.f32 %v6931, %v568
  %v8794 = vmul.f32 %v6932, %v569
  %v8795 = vmul.f32 %v6933, %v570
  %v8796 = vmul.f32 %v6934, %v571
  %v8797 = vmul.f32 %v6935, %v572
  %v8798 = vmul.f32 %v6936, %v573
  %v8799 = vmul.f32 %v6937, %v574
  %v8800 = vmul.f32 %v6938, %v575
  %v8801 = vmul.f32 %v6939, %v576
  %v8802 = vmul.f32 %v6940, %v577
  %v8803 = vmul.f32 %v6941, %v578
  %v8804 = vmul.f32 %v6942, %v579
  %v8805 = vmul.f32 %v6943, %v580
  %v8806 = vmul.f32 %v6944, %v581
  %v8807 = vmul.f32 %v6945, %v582
  %v8808 = vmul.f32 %v6946, %v583
  %v8809 = vmul.f32 %v6947, %v584
  %v8810 = vmul.f32 %v6948, %v585
  %v8811 = vmul.f32 %v6949, %v586
  %v8812 = vmul.f32 %v6950, %v587
  %v8813 = vmul.f32 %v6951, %v588
  %v8814 = vmul.f32 %v6952, %v589
  %v8815 = vmul.f32 %v6953, %v590
  %v8816 = vmul.f32 %v6954, %v591
  %v8817 = vmul.f32 %v6955, %v592
  %v8818 = vmul.f32 %v6956, %v593
  %v8819 = vmul.f32 %v6957, %v594
  %v8820 = vmul.f32 %v6958, %v595
  %v8821 = vmul.f32 %v6959, %v596
  %v8822 = vmul.f32 %v6960, %v597
  %v8823 = vmul.f32 %v6961, %v598
  %v8824 = vmul.f32 %v6962, %v599
  %v8825 = vmul.f32 %v7061, %v600
  %v8826 = vmul.f32 %v7356, %v601
  %v8827 = vmul.f32 %v7651, %v602
  %v8828 = vmul.f32 %v7652, %v603
  %v8829 = vmul.f32 %v7653, %v604
  %v8830 = vmul.f32 %v7654, %v605
  %v8831 = vmul.f32 %v7655, %v606
  %v8832 = vmul.f32 %v7950, %v607
  %v8833 = vmul.f32 %v8196, %v608
  %v8834 = vmul.f32 %v8491, %v609
  %v8835 = vmul.f32 %v8492, %v610
  %v8836 = vmul.f32 %v8493, %v611
  %v8837 = vmul.f32 %v8494, %v612
  %v8838 = vmul.f32 %v8495, %v613
  %v8839 = vmul.f32 %v8790, %v614
  %8889 = vrot.lane.b32.xlu0 %v8791, 16
  %v8890 = vpop.permute.xlu0 %8889
  %8891 = vrot.lane.b32.xlu0 %v8792, 16
  %v8892 = vpop.permute.xlu0 %8891
  %8893 = vrot.lane.b32.xlu0 %v8793, 16
  %v8894 = vpop.permute.xlu0 %8893
  %8895 = vrot.lane.b32.xlu0 %v8794, 16
  %v8896 = vpop.permute.xlu0 %8895
  %8897 = vrot.lane.b32.xlu0 %v8795, 16
  %v8898 = vpop.permute.xlu0 %8897
  %8899 = vrot.lane.b32.xlu0 %v8796, 16
  %v8900 = vpop.permute.xlu0 %8899
  %8901 = vrot.lane.b32.xlu0 %v8797, 16
  %v8902 = vpop.permute.xlu0 %8901
  %8903 = vrot.lane.b32.xlu0 %v8798, 16
  %v8904 = vpop.permute.xlu0 %8903
  %8905 = vrot.lane.b32.xlu0 %v8799, 16
  %v8906 = vpop.permute.xlu0 %8905
  %8907 = vrot.lane.b32.xlu0 %v8800, 16
  %v8908 = vpop.permute.xlu0 %8907
  %8909 = vrot.lane.b32.xlu0 %v8801, 16
  %v8910 = vpop.permute.xlu0 %8909
  %8911 = vrot.lane.b32.xlu0 %v8802, 16
  %v8912 = vpop.permute.xlu0 %8911
  %8913 = vrot.lane.b32.xlu0 %v8803, 16
  %v8914 = vpop.permute.xlu0 %8913
  %8915 = vrot.lane.b32.xlu0 %v8804, 16
  %v8916 = vpop.permute.xlu0 %8915
  %8917 = vrot.lane.b32.xlu0 %v8805, 16
  %v8918 = vpop.permute.xlu0 %8917
  %8919 = vrot.lane.b32.xlu0 %v8806, 16
  %v8920 = vpop.permute.xlu0 %8919
  %8921 = vrot.lane.b32.xlu0 %v8807, 16
  %v8922 = vpop.permute.xlu0 %8921
  %8923 = vrot.lane.b32.xlu0 %v8808, 16
  %v8924 = vpop.permute.xlu0 %8923
  %8925 = vrot.lane.b32.xlu0 %v8809, 16
  %v8926 = vpop.permute.xlu0 %8925
  %8927 = vrot.lane.b32.xlu0 %v8810, 16
  %v8928 = vpop.permute.xlu0 %8927
  %8929 = vrot.lane.b32.xlu0 %v8811, 16
  %v8930 = vpop.permute.xlu0 %8929
  %8931 = vrot.lane.b32.xlu0 %v8812, 16
  %v8932 = vpop.permute.xlu0 %8931
  %8933 = vrot.lane.b32.xlu0 %v8813, 16
  %v8934 = vpop.permute.xlu0 %8933
  %8935 = vrot.lane.b32.xlu0 %v8814, 16
  %v8936 = vpop.permute.xlu0 %8935
  %8937 = vrot.lane.b32.xlu0 %v8815, 16
  %v8938 = vpop.permute.xlu0 %8937
  %8939 = vrot.lane.b32.xlu0 %v8816, 16
  %v8940 = vpop.permute.xlu0 %8939
  %8941 = vrot.lane.b32.xlu0 %v8817, 16
  %v8942 = vpop.permute.xlu0 %8941
  %8943 = vrot.lane.b32.xlu0 %v8818, 16
  %v8944 = vpop.permute.xlu0 %8943
  %8945 = vrot.lane.b32.xlu0 %v8819, 16
  %v8946 = vpop.permute.xlu0 %8945
  %8947 = vrot.lane.b32.xlu0 %v8820, 16
  %v8948 = vpop.permute.xlu0 %8947
  %8949 = vrot.lane.b32.xlu0 %v8821, 16
  %v8950 = vpop.permute.xlu0 %8949
  %8951 = vrot.lane.b32.xlu0 %v8822, 16
  %v8952 = vpop.permute.xlu0 %8951
  %8953 = vrot.lane.b32.xlu0 %v8823, 16
  %v8954 = vpop.permute.xlu0 %8953
  %8955 = vrot.lane.b32.xlu0 %v8824, 16
  %v8956 = vpop.permute.xlu0 %8955
  %8957 = vrot.lane.b32.xlu0 %v8825, 16
  %v8958 = vpop.permute.xlu0 %8957
  %8959 = vrot.lane.b32.xlu0 %v8826, 16
  %v8960 = vpop.permute.xlu0 %8959
  %8961 = vrot.lane.b32.xlu0 %v8827, 16
  %v8962 = vpop.permute.xlu0 %8961
  %8963 = vrot.lane.b32.xlu0 %v8828, 16
  %v8964 = vpop.permute.xlu0 %8963
  %8965 = vrot.lane.b32.xlu0 %v8829, 16
  %v8966 = vpop.permute.xlu0 %8965
  %8967 = vrot.lane.b32.xlu0 %v8830, 16
  %v8968 = vpop.permute.xlu0 %8967
  %8969 = vrot.lane.b32.xlu0 %v8831, 16
  %v8970 = vpop.permute.xlu0 %8969
  %8971 = vrot.lane.b32.xlu0 %v8832, 16
  %v8972 = vpop.permute.xlu0 %8971
  %8973 = vrot.lane.b32.xlu0 %v8833, 16
  %v8974 = vpop.permute.xlu0 %8973
  %8975 = vrot.lane.b32.xlu0 %v8834, 16
  %v8976 = vpop.permute.xlu0 %8975
  %8977 = vrot.lane.b32.xlu0 %v8835, 16
  %v8978 = vpop.permute.xlu0 %8977
  %8979 = vrot.lane.b32.xlu0 %v8836, 16
  %v8980 = vpop.permute.xlu0 %8979
  %8981 = vrot.lane.b32.xlu0 %v8837, 16
  %v8982 = vpop.permute.xlu0 %8981
  %8983 = vrot.lane.b32.xlu0 %v8838, 16
  %v8984 = vpop.permute.xlu0 %8983
  %8985 = vrot.lane.b32.xlu0 %v8839, 16
  %v8986 = vpop.permute.xlu0 %8985
  %v9036 = vadd.f32 %v8741, %v8890
  %v9037 = vadd.f32 %v8742, %v8892
  %v9038 = vadd.f32 %v8743, %v8894
  %v9039 = vadd.f32 %v8744, %v8896
  %v9040 = vadd.f32 %v8745, %v8898
  %v9041 = vadd.f32 %v8746, %v8900
  %v9042 = vadd.f32 %v8747, %v8902
  %v9043 = vadd.f32 %v8748, %v8904
  %v9044 = vadd.f32 %v8749, %v8906
  %v9045 = vadd.f32 %v8750, %v8908
  %v9046 = vadd.f32 %v8751, %v8910
  %v9047 = vadd.f32 %v8752, %v8912
  %v9048 = vadd.f32 %v8753, %v8914
  %v9049 = vadd.f32 %v8754, %v8916
  %v9050 = vadd.f32 %v8755, %v8918
  %v9051 = vadd.f32 %v8756, %v8920
  %v9052 = vadd.f32 %v8757, %v8922
  %v9053 = vadd.f32 %v8758, %v8924
  %v9054 = vadd.f32 %v8759, %v8926
  %v9055 = vadd.f32 %v8760, %v8928
  %v9056 = vadd.f32 %v8761, %v8930
  %v9057 = vadd.f32 %v8762, %v8932
  %v9058 = vadd.f32 %v8763, %v8934
  %v9059 = vadd.f32 %v8764, %v8936
  %v9060 = vadd.f32 %v8765, %v8938
  %v9061 = vadd.f32 %v8766, %v8940
  %v9062 = vadd.f32 %v8767, %v8942
  %v9063 = vadd.f32 %v8768, %v8944
  %v9064 = vadd.f32 %v8769, %v8946
  %v9065 = vadd.f32 %v8770, %v8948
  %v9066 = vadd.f32 %v8771, %v8950
  %v9067 = vadd.f32 %v8772, %v8952
  %v9068 = vadd.f32 %v8773, %v8954
  %v9069 = vadd.f32 %v8774, %v8956
  %v9070 = vadd.f32 %v8775, %v8958
  %v9071 = vadd.f32 %v8776, %v8960
  %v9072 = vadd.f32 %v8777, %v8962
  %v9073 = vadd.f32 %v8778, %v8964
  %v9074 = vadd.f32 %v8779, %v8966
  %v9075 = vadd.f32 %v8780, %v8968
  %v9076 = vadd.f32 %v8781, %v8970
  %v9077 = vadd.f32 %v8782, %v8972
  %v9078 = vadd.f32 %v8783, %v8974
  %v9079 = vadd.f32 %v8784, %v8976
  %v9080 = vadd.f32 %v8785, %v8978
  %v9081 = vadd.f32 %v8786, %v8980
  %v9082 = vadd.f32 %v8787, %v8982
  %v9083 = vadd.f32 %v8788, %v8984
  %v9084 = vadd.f32 %v8789, %v8986
  %v9085 = vld [vmem:[#allocation5 + $0x108] sm:$0xff]
  %v9086 = vld [vmem:[#allocation5 + $0x118] sm:$0xff]
  %v9087 = vld [vmem:[#allocation5 + $0x128] sm:$0xff]
  %v9088 = vld [vmem:[#allocation5 + $0x138] sm:$0xff]
  %v9089 = vld [vmem:[#allocation5 + $0x148] sm:$0xff]
  %v9090 = vld [vmem:[#allocation5 + $0x158] sm:$0xff]
  %v9091 = vld [vmem:[#allocation5 + $0x168] sm:$0xff]
  %v9092 = vld [vmem:[#allocation5 + $0x178] sm:$0xff]
  %v9093 = vld [vmem:[#allocation5 + $0x188] sm:$0xff]
  %v9094 = vld [vmem:[#allocation5 + $0x198] sm:$0xff]
  %v9095 = vld [vmem:[#allocation5 + $0x1a8] sm:$0xff]
  %v9096 = vld [vmem:[#allocation5 + $0x1b8] sm:$0xff]
  %v9097 = vld [vmem:[#allocation5 + $0x1c8] sm:$0xff]
  %v9098 = vld [vmem:[#allocation5 + $0x1d8] sm:$0xff]
  %v9099 = vld [vmem:[#allocation5 + $0x1e8] sm:$0xff]
  %v9100 = vld [vmem:[#allocation5 + $0x1f8] sm:$0xff]
  %v9101 = vld [vmem:[#allocation5 + $0x208] sm:$0xff]
  %v9102 = vld [vmem:[#allocation5 + $0x218] sm:$0xff]
  %v9103 = vld [vmem:[#allocation5 + $0x228] sm:$0xff]
  %v9104 = vld [vmem:[#allocation5 + $0x238] sm:$0xff]
  %v9105 = vld [vmem:[#allocation5 + $0x248] sm:$0xff]
  %v9106 = vld [vmem:[#allocation5 + $0x258] sm:$0xff]
  %v9107 = vld [vmem:[#allocation5 + $0x268] sm:$0xff]
  %v9108 = vld [vmem:[#allocation5 + $0x278] sm:$0xff]
  %v9109 = vld [vmem:[#allocation5 + $0x288] sm:$0xff]
  %v9110 = vld [vmem:[#allocation5 + $0x298] sm:$0xff]
  %v9111 = vld [vmem:[#allocation5 + $0x2a8] sm:$0xff]
  %v9112 = vld [vmem:[#allocation5 + $0x2b8] sm:$0xff]
  %v9113 = vld [vmem:[#allocation5 + $0x2c8] sm:$0xff]
  %v9114 = vld [vmem:[#allocation5 + $0x2d8] sm:$0xff]
  %v9115 = vld [vmem:[#allocation5 + $0x2e8] sm:$0xff]
  %v9116 = vld [vmem:[#allocation5 + $0x2f8] sm:$0xff]
  %v9117 = vld [vmem:[#allocation5 + $0x308] sm:$0xff]
  %v9118 = vld [vmem:[#allocation5 + $0x318] sm:$0xff]
  %v9119 = vld [vmem:[#allocation5 + $0x328] sm:$0xff]
  %v9120 = vld [vmem:[#allocation5 + $0x338] sm:$0xff]
  %v9121 = vld [vmem:[#allocation5 + $0x348] sm:$0xff]
  %v9122 = vld [vmem:[#allocation5 + $0x358] sm:$0xff]
  %v9123 = vld [vmem:[#allocation5 + $0x368] sm:$0xff]
  %v9124 = vld [vmem:[#allocation5 + $0x378] sm:$0xff]
  %v9125 = vld [vmem:[#allocation5 + $0x388] sm:$0xff]
  %v9126 = vld [vmem:[#allocation5 + $0x398] sm:$0xff]
  %v9127 = vld [vmem:[#allocation5 + $0x3a8] sm:$0xff]
  %v9128 = vld [vmem:[#allocation5 + $0x3b8] sm:$0xff]
  %v9129 = vld [vmem:[#allocation5 + $0x3c8] sm:$0xff]
  %v9130 = vld [vmem:[#allocation5 + $0x3d8] sm:$0xff]
  %v9131 = vld [vmem:[#allocation5 + $0x3e8] sm:$0xff]
  %v9132 = vld [vmem:[#allocation5 + $0x3f8] sm:$0xff]
  %v9133 = vld [vmem:[#allocation5 + $0x408] sm:$0xff]
  %v9134 = vmul.f32 %v9085, %v958
  %v9135 = vmul.f32 %v9086, %v959
  %v9136 = vmul.f32 %v9087, %v960
  %v9137 = vmul.f32 %v9088, %v961
  %v9138 = vmul.f32 %v9089, %v962
  %v9139 = vmul.f32 %v9090, %v963
  %v9140 = vmul.f32 %v9091, %v964
  %v9141 = vmul.f32 %v9092, %v965
  %v9142 = vmul.f32 %v9093, %v966
  %v9143 = vmul.f32 %v9094, %v967
  %v9144 = vmul.f32 %v9095, %v968
  %v9145 = vmul.f32 %v9096, %v969
  %v9146 = vmul.f32 %v9097, %v970
  %v9147 = vmul.f32 %v9098, %v971
  %v9148 = vmul.f32 %v9099, %v972
  %v9149 = vmul.f32 %v9100, %v973
  %v9150 = vmul.f32 %v9101, %v974
  %v9151 = vmul.f32 %v9102, %v975
  %v9152 = vmul.f32 %v9103, %v976
  %v9153 = vmul.f32 %v9104, %v977
  %v9154 = vmul.f32 %v9105, %v978
  %v9155 = vmul.f32 %v9106, %v979
  %v9156 = vmul.f32 %v9107, %v980
  %v9157 = vmul.f32 %v9108, %v981
  %v9158 = vmul.f32 %v9109, %v982
  %v9159 = vmul.f32 %v9110, %v983
  %v9160 = vmul.f32 %v9111, %v984
  %v9161 = vmul.f32 %v9112, %v985
  %v9162 = vmul.f32 %v9113, %v986
  %v9163 = vmul.f32 %v9114, %v987
  %v9164 = vmul.f32 %v9115, %v988
  %v9165 = vmul.f32 %v9116, %v989
  %v9166 = vmul.f32 %v9117, %v990
  %v9167 = vmul.f32 %v9118, %v991
  %v9168 = vmul.f32 %v9119, %v992
  %v9169 = vmul.f32 %v9120, %v993
  %v9170 = vmul.f32 %v9121, %v994
  %v9171 = vmul.f32 %v9122, %v995
  %v9172 = vmul.f32 %v9123, %v996
  %v9173 = vmul.f32 %v9124, %v997
  %v9174 = vmul.f32 %v9125, %v998
  %v9175 = vmul.f32 %v9126, %v999
  %v9176 = vmul.f32 %v9127, %v1000
  %v9177 = vmul.f32 %v9128, %v1001
  %v9178 = vmul.f32 %v9129, %v1002
  %v9179 = vmul.f32 %v9130, %v1003
  %v9180 = vmul.f32 %v9131, %v1004
  %v9181 = vmul.f32 %v9132, %v1005
  %v9182 = vmul.f32 %v9133, %v1006
  %v9183 = vadd.f32 %v9036, %v9134
  %v9184 = vadd.f32 %v9037, %v9135
  %v9185 = vadd.f32 %v9038, %v9136
  %v9186 = vadd.f32 %v9039, %v9137
  %v9187 = vadd.f32 %v9040, %v9138
  %v9188 = vadd.f32 %v9041, %v9139
  %v9189 = vadd.f32 %v9042, %v9140
  %v9190 = vadd.f32 %v9043, %v9141
  %v9191 = vadd.f32 %v9044, %v9142
  %v9192 = vadd.f32 %v9045, %v9143
  %v9193 = vadd.f32 %v9046, %v9144
  %v9194 = vadd.f32 %v9047, %v9145
  %v9195 = vadd.f32 %v9048, %v9146
  %v9196 = vadd.f32 %v9049, %v9147
  %v9197 = vadd.f32 %v9050, %v9148
  %v9198 = vadd.f32 %v9051, %v9149
  %v9199 = vadd.f32 %v9052, %v9150
  %v9200 = vadd.f32 %v9053, %v9151
  %v9201 = vadd.f32 %v9054, %v9152
  %v9202 = vadd.f32 %v9055, %v9153
  %v9203 = vadd.f32 %v9056, %v9154
  %v9204 = vadd.f32 %v9057, %v9155
  %v9205 = vadd.f32 %v9058, %v9156
  %v9206 = vadd.f32 %v9059, %v9157
  %v9207 = vadd.f32 %v9060, %v9158
  %v9208 = vadd.f32 %v9061, %v9159
  %v9209 = vadd.f32 %v9062, %v9160
  %v9210 = vadd.f32 %v9063, %v9161
  %v9211 = vadd.f32 %v9064, %v9162
  %v9212 = vadd.f32 %v9065, %v9163
  %v9213 = vadd.f32 %v9066, %v9164
  %v9214 = vadd.f32 %v9067, %v9165
  %v9215 = vadd.f32 %v9068, %v9166
  %v9216 = vadd.f32 %v9069, %v9167
  %v9217 = vadd.f32 %v9070, %v9168
  %v9218 = vadd.f32 %v9071, %v9169
  %v9219 = vadd.f32 %v9072, %v9170
  %v9220 = vadd.f32 %v9073, %v9171
  %v9221 = vadd.f32 %v9074, %v9172
  %v9222 = vadd.f32 %v9075, %v9173
  %v9223 = vadd.f32 %v9076, %v9174
  %v9224 = vadd.f32 %v9077, %v9175
  %v9225 = vadd.f32 %v9078, %v9176
  %v9226 = vadd.f32 %v9079, %v9177
  %v9227 = vadd.f32 %v9080, %v9178
  %v9228 = vadd.f32 %v9081, %v9179
  %v9229 = vadd.f32 %v9082, %v9180
  %v9230 = vadd.f32 %v9083, %v9181
  %v9231 = vadd.f32 %v9084, %v9182
  %v9232 = vxor.u32 %v9183, 2147483648
  %v9233 = vxor.u32 %v9184, 2147483648
  %v9234 = vxor.u32 %v9185, 2147483648
  %v9235 = vxor.u32 %v9186, 2147483648
  %v9236 = vxor.u32 %v9187, 2147483648
  %v9237 = vxor.u32 %v9188, 2147483648
  %v9238 = vxor.u32 %v9189, 2147483648
  %v9239 = vxor.u32 %v9190, 2147483648
  %v9240 = vxor.u32 %v9191, 2147483648
  %v9241 = vxor.u32 %v9192, 2147483648
  %v9242 = vxor.u32 %v9193, 2147483648
  %v9243 = vxor.u32 %v9194, 2147483648
  %v9244 = vxor.u32 %v9195, 2147483648
  %v9245 = vxor.u32 %v9196, 2147483648
  %v9246 = vxor.u32 %v9197, 2147483648
  %v9247 = vxor.u32 %v9198, 2147483648
  %v9248 = vxor.u32 %v9199, 2147483648
  %v9249 = vxor.u32 %v9200, 2147483648
  %v9250 = vxor.u32 %v9201, 2147483648
  %v9251 = vxor.u32 %v9202, 2147483648
  %v9252 = vxor.u32 %v9203, 2147483648
  %v9253 = vxor.u32 %v9204, 2147483648
  %v9254 = vxor.u32 %v9205, 2147483648
  %v9255 = vxor.u32 %v9206, 2147483648
  %v9256 = vxor.u32 %v9207, 2147483648
  %v9257 = vxor.u32 %v9208, 2147483648
  %v9258 = vxor.u32 %v9209, 2147483648
  %v9259 = vxor.u32 %v9210, 2147483648
  %v9260 = vxor.u32 %v9211, 2147483648
  %v9261 = vxor.u32 %v9212, 2147483648
  %v9262 = vxor.u32 %v9213, 2147483648
  %v9263 = vxor.u32 %v9214, 2147483648
  %v9264 = vxor.u32 %v9215, 2147483648
  %v9265 = vxor.u32 %v9216, 2147483648
  %v9266 = vxor.u32 %v9217, 2147483648
  %v9267 = vxor.u32 %v9218, 2147483648
  %v9268 = vxor.u32 %v9219, 2147483648
  %v9269 = vxor.u32 %v9220, 2147483648
  %v9270 = vxor.u32 %v9221, 2147483648
  %v9271 = vxor.u32 %v9222, 2147483648
  %v9272 = vxor.u32 %v9223, 2147483648
  %v9273 = vxor.u32 %v9224, 2147483648
  %v9274 = vxor.u32 %v9225, 2147483648
  %v9275 = vxor.u32 %v9226, 2147483648
  %v9276 = vxor.u32 %v9227, 2147483648
  %v9277 = vxor.u32 %v9228, 2147483648
  %v9278 = vxor.u32 %v9229, 2147483648
  %v9279 = vxor.u32 %v9230, 2147483648
  %v9280 = vxor.u32 %v9231, 2147483648
  %v9281 = vmul.f32 %v9232, 1.442695
  %v9282 = vpow.pop %v9281
  %v9283 = vmul.f32 %v9233, 1.442695
  %v9284 = vpow.pop %v9283
  %v9285 = vmul.f32 %v9234, 1.442695
  %v9286 = vpow.pop %v9285
  %v9287 = vmul.f32 %v9235, 1.442695
  %v9288 = vpow.pop %v9287
  %v9289 = vmul.f32 %v9236, 1.442695
  %v9290 = vpow.pop %v9289
  %v9291 = vmul.f32 %v9237, 1.442695
  %v9292 = vpow.pop %v9291
  %v9293 = vmul.f32 %v9238, 1.442695
  %v9294 = vpow.pop %v9293
  %v9295 = vmul.f32 %v9239, 1.442695
  %v9296 = vpow.pop %v9295
  %v9297 = vmul.f32 %v9240, 1.442695
  %v9298 = vpow.pop %v9297
  %v9299 = vmul.f32 %v9241, 1.442695
  %v9300 = vpow.pop %v9299
  %v9301 = vmul.f32 %v9242, 1.442695
  %v9302 = vpow.pop %v9301
  %v9303 = vmul.f32 %v9243, 1.442695
  %v9304 = vpow.pop %v9303
  %v9305 = vmul.f32 %v9244, 1.442695
  %v9306 = vpow.pop %v9305
  %v9307 = vmul.f32 %v9245, 1.442695
  %v9308 = vpow.pop %v9307
  %v9309 = vmul.f32 %v9246, 1.442695
  %v9310 = vpow.pop %v9309
  %v9311 = vmul.f32 %v9247, 1.442695
  %v9312 = vpow.pop %v9311
  %v9313 = vmul.f32 %v9248, 1.442695
  %v9314 = vpow.pop %v9313
  %v9315 = vmul.f32 %v9249, 1.442695
  %v9316 = vpow.pop %v9315
  %v9317 = vmul.f32 %v9250, 1.442695
  %v9318 = vpow.pop %v9317
  %v9319 = vmul.f32 %v9251, 1.442695
  %v9320 = vpow.pop %v9319
  %v9321 = vmul.f32 %v9252, 1.442695
  %v9322 = vpow.pop %v9321
  %v9323 = vmul.f32 %v9253, 1.442695
  %v9324 = vpow.pop %v9323
  %v9325 = vmul.f32 %v9254, 1.442695
  %v9326 = vpow.pop %v9325
  %v9327 = vmul.f32 %v9255, 1.442695
  %v9328 = vpow.pop %v9327
  %v9329 = vmul.f32 %v9256, 1.442695
  %v9330 = vpow.pop %v9329
  %v9331 = vmul.f32 %v9257, 1.442695
  %v9332 = vpow.pop %v9331
  %v9333 = vmul.f32 %v9258, 1.442695
  %v9334 = vpow.pop %v9333
  %v9335 = vmul.f32 %v9259, 1.442695
  %v9336 = vpow.pop %v9335
  %v9337 = vmul.f32 %v9260, 1.442695
  %v9338 = vpow.pop %v9337
  %v9339 = vmul.f32 %v9261, 1.442695
  %v9340 = vpow.pop %v9339
  %v9341 = vmul.f32 %v9262, 1.442695
  %v9342 = vpow.pop %v9341
  %v9343 = vmul.f32 %v9263, 1.442695
  %v9344 = vpow.pop %v9343
  %v9345 = vmul.f32 %v9264, 1.442695
  %v9346 = vpow.pop %v9345
  %v9347 = vmul.f32 %v9265, 1.442695
  %v9348 = vpow.pop %v9347
  %v9349 = vmul.f32 %v9266, 1.442695
  %v9350 = vpow.pop %v9349
  %v9351 = vmul.f32 %v9267, 1.442695
  %v9352 = vpow.pop %v9351
  %v9353 = vmul.f32 %v9268, 1.442695
  %v9354 = vpow.pop %v9353
  %v9355 = vmul.f32 %v9269, 1.442695
  %v9356 = vpow.pop %v9355
  %v9357 = vmul.f32 %v9270, 1.442695
  %v9358 = vpow.pop %v9357
  %v9359 = vmul.f32 %v9271, 1.442695
  %v9360 = vpow.pop %v9359
  %v9361 = vmul.f32 %v9272, 1.442695
  %v9362 = vpow.pop %v9361
  %v9363 = vmul.f32 %v9273, 1.442695
  %v9364 = vpow.pop %v9363
  %v9365 = vmul.f32 %v9274, 1.442695
  %v9366 = vpow.pop %v9365
  %v9367 = vmul.f32 %v9275, 1.442695
  %v9368 = vpow.pop %v9367
  %v9369 = vmul.f32 %v9276, 1.442695
  %v9370 = vpow.pop %v9369
  %v9371 = vmul.f32 %v9277, 1.442695
  %v9372 = vpow.pop %v9371
  %v9373 = vmul.f32 %v9278, 1.442695
  %v9374 = vpow.pop %v9373
  %v9375 = vmul.f32 %v9279, 1.442695
  %v9376 = vpow.pop %v9375
  %v9377 = vmul.f32 %v9280, 1.442695
  %v9378 = vpow.pop %v9377
  %v9379 = vadd.f32 %v9282, 1.0
  %v9380 = vadd.f32 %v9284, 1.0
  %v9381 = vadd.f32 %v9286, 1.0
  %v9382 = vadd.f32 %v9288, 1.0
  %v9383 = vadd.f32 %v9290, 1.0
  %v9384 = vadd.f32 %v9292, 1.0
  %v9385 = vadd.f32 %v9294, 1.0
  %v9386 = vadd.f32 %v9296, 1.0
  %v9387 = vadd.f32 %v9298, 1.0
  %v9388 = vadd.f32 %v9300, 1.0
  %v9389 = vadd.f32 %v9302, 1.0
  %v9390 = vadd.f32 %v9304, 1.0
  %v9391 = vadd.f32 %v9306, 1.0
  %v9392 = vadd.f32 %v9308, 1.0
  %v9393 = vadd.f32 %v9310, 1.0
  %v9394 = vadd.f32 %v9312, 1.0
  %v9395 = vadd.f32 %v9314, 1.0
  %v9396 = vadd.f32 %v9316, 1.0
  %v9397 = vadd.f32 %v9318, 1.0
  %v9398 = vadd.f32 %v9320, 1.0
  %v9399 = vadd.f32 %v9322, 1.0
  %v9400 = vadd.f32 %v9324, 1.0
  %v9401 = vadd.f32 %v9326, 1.0
  %v9402 = vadd.f32 %v9328, 1.0
  %v9403 = vadd.f32 %v9330, 1.0
  %v9404 = vadd.f32 %v9332, 1.0
  %v9405 = vadd.f32 %v9334, 1.0
  %v9406 = vadd.f32 %v9336, 1.0
  %v9407 = vadd.f32 %v9338, 1.0
  %v9408 = vadd.f32 %v9340, 1.0
  %v9409 = vadd.f32 %v9342, 1.0
  %v9410 = vadd.f32 %v9344, 1.0
  %v9411 = vadd.f32 %v9346, 1.0
  %v9412 = vadd.f32 %v9348, 1.0
  %v9413 = vadd.f32 %v9350, 1.0
  %v9414 = vadd.f32 %v9352, 1.0
  %v9415 = vadd.f32 %v9354, 1.0
  %v9416 = vadd.f32 %v9356, 1.0
  %v9417 = vadd.f32 %v9358, 1.0
  %v9418 = vadd.f32 %v9360, 1.0
  %v9419 = vadd.f32 %v9362, 1.0
  %v9420 = vadd.f32 %v9364, 1.0
  %v9421 = vadd.f32 %v9366, 1.0
  %v9422 = vadd.f32 %v9368, 1.0
  %v9423 = vadd.f32 %v9370, 1.0
  %v9424 = vadd.f32 %v9372, 1.0
  %v9425 = vadd.f32 %v9374, 1.0
  %v9426 = vadd.f32 %v9376, 1.0
  %v9427 = vadd.f32 %v9378, 1.0
  %v9428 = vrcp.pop %v9379
  %v9429 = vmul.f32 1.0, %v9428
  %v9430 = vrcp.pop %v9380
  %v9431 = vmul.f32 1.0, %v9430
  %v9432 = vrcp.pop %v9381
  %v9433 = vmul.f32 1.0, %v9432
  %v9434 = vrcp.pop %v9382
  %v9435 = vmul.f32 1.0, %v9434
  %v9436 = vrcp.pop %v9383
  %v9437 = vmul.f32 1.0, %v9436
  %v9438 = vrcp.pop %v9384
  %v9439 = vmul.f32 1.0, %v9438
  %v9440 = vrcp.pop %v9385
  %v9441 = vmul.f32 1.0, %v9440
  %v9442 = vrcp.pop %v9386
  %v9443 = vmul.f32 1.0, %v9442
  %v9444 = vrcp.pop %v9387
  %v9445 = vmul.f32 1.0, %v9444
  %v9446 = vrcp.pop %v9388
  %v9447 = vmul.f32 1.0, %v9446
  %v9448 = vrcp.pop %v9389
  %v9449 = vmul.f32 1.0, %v9448
  %v9450 = vrcp.pop %v9390
  %v9451 = vmul.f32 1.0, %v9450
  %v9452 = vrcp.pop %v9391
  %v9453 = vmul.f32 1.0, %v9452
  %v9454 = vrcp.pop %v9392
  %v9455 = vmul.f32 1.0, %v9454
  %v9456 = vrcp.pop %v9393
  %v9457 = vmul.f32 1.0, %v9456
  %v9458 = vrcp.pop %v9394
  %v9459 = vmul.f32 1.0, %v9458
  %v9460 = vrcp.pop %v9395
  %v9461 = vmul.f32 1.0, %v9460
  %v9462 = vrcp.pop %v9396
  %v9463 = vmul.f32 1.0, %v9462
  %v9464 = vrcp.pop %v9397
  %v9465 = vmul.f32 1.0, %v9464
  %v9466 = vrcp.pop %v9398
  %v9467 = vmul.f32 1.0, %v9466
  %v9468 = vrcp.pop %v9399
  %v9469 = vmul.f32 1.0, %v9468
  %v9470 = vrcp.pop %v9400
  %v9471 = vmul.f32 1.0, %v9470
  %v9472 = vrcp.pop %v9401
  %v9473 = vmul.f32 1.0, %v9472
  %v9474 = vrcp.pop %v9402
  %v9475 = vmul.f32 1.0, %v9474
  %v9476 = vrcp.pop %v9403
  %v9477 = vmul.f32 1.0, %v9476
  %v9478 = vrcp.pop %v9404
  %v9479 = vmul.f32 1.0, %v9478
  %v9480 = vrcp.pop %v9405
  %v9481 = vmul.f32 1.0, %v9480
  %v9482 = vrcp.pop %v9406
  %v9483 = vmul.f32 1.0, %v9482
  %v9484 = vrcp.pop %v9407
  %v9485 = vmul.f32 1.0, %v9484
  %v9486 = vrcp.pop %v9408
  %v9487 = vmul.f32 1.0, %v9486
  %v9488 = vrcp.pop %v9409
  %v9489 = vmul.f32 1.0, %v9488
  %v9490 = vrcp.pop %v9410
  %v9491 = vmul.f32 1.0, %v9490
  %v9492 = vrcp.pop %v9411
  %v9493 = vmul.f32 1.0, %v9492
  %v9494 = vrcp.pop %v9412
  %v9495 = vmul.f32 1.0, %v9494
  %v9496 = vrcp.pop %v9413
  %v9497 = vmul.f32 1.0, %v9496
  %v9498 = vrcp.pop %v9414
  %v9499 = vmul.f32 1.0, %v9498
  %v9500 = vrcp.pop %v9415
  %v9501 = vmul.f32 1.0, %v9500
  %v9502 = vrcp.pop %v9416
  %v9503 = vmul.f32 1.0, %v9502
  %v9504 = vrcp.pop %v9417
  %v9505 = vmul.f32 1.0, %v9504
  %v9506 = vrcp.pop %v9418
  %v9507 = vmul.f32 1.0, %v9506
  %v9508 = vrcp.pop %v9419
  %v9509 = vmul.f32 1.0, %v9508
  %v9510 = vrcp.pop %v9420
  %v9511 = vmul.f32 1.0, %v9510
  %v9512 = vrcp.pop %v9421
  %v9513 = vmul.f32 1.0, %v9512
  %v9514 = vrcp.pop %v9422
  %v9515 = vmul.f32 1.0, %v9514
  %v9516 = vrcp.pop %v9423
  %v9517 = vmul.f32 1.0, %v9516
  %v9518 = vrcp.pop %v9424
  %v9519 = vmul.f32 1.0, %v9518
  %v9520 = vrcp.pop %v9425
  %v9521 = vmul.f32 1.0, %v9520
  %v9522 = vrcp.pop %v9426
  %v9523 = vmul.f32 1.0, %v9522
  %v9524 = vrcp.pop %v9427
  %v9525 = vmul.f32 1.0, %v9524
  %9526 = vst.msk [vmem:[%s7] sm:$0xff] %vm6385, %v9429
  %9527 = vst.msk [vmem:[%s7 + $0x8] sm:$0xff] %vm6385, %v9431
  %9528 = vst.msk [vmem:[%s7 + $0x10] sm:$0xff] %vm6385, %v9433
  %9529 = vst.msk [vmem:[%s7 + $0x18] sm:$0xff] %vm6385, %v9435
  %9530 = vst.msk [vmem:[%s7 + $0x20] sm:$0xff] %vm6385, %v9437
  %9531 = vst.msk [vmem:[%s7 + $0x28] sm:$0xff] %vm6385, %v9439
  %9532 = vst.msk [vmem:[%s7 + $0x30] sm:$0xff] %vm6385, %v9441
  %9533 = vst.msk [vmem:[%s7 + $0x38] sm:$0xff] %vm6385, %v9443
  %9534 = vst.msk [vmem:[%s7 + $0x40] sm:$0xff] %vm6385, %v9445
  %9535 = vst.msk [vmem:[%s7 + $0x48] sm:$0xff] %vm6385, %v9447
  %9536 = vst.msk [vmem:[%s7 + $0x50] sm:$0xff] %vm6385, %v9449
  %9537 = vst.msk [vmem:[%s7 + $0x58] sm:$0xff] %vm6385, %v9451
  %9538 = vst.msk [vmem:[%s7 + $0x60] sm:$0xff] %vm6385, %v9453
  %9539 = vst.msk [vmem:[%s7 + $0x68] sm:$0xff] %vm6385, %v9455
  %9540 = vst.msk [vmem:[%s7 + $0x70] sm:$0xff] %vm6385, %v9457
  %9541 = vst.msk [vmem:[%s7 + $0x78] sm:$0xff] %vm6385, %v9459
  %9542 = vst.msk [vmem:[%s7 + $0x80] sm:$0xff] %vm6385, %v9461
  %9543 = vst.msk [vmem:[%s7 + $0x88] sm:$0xff] %vm6385, %v9463
  %9544 = vst.msk [vmem:[%s7 + $0x90] sm:$0xff] %vm6385, %v9465
  %9545 = vst.msk [vmem:[%s7 + $0x98] sm:$0xff] %vm6385, %v9467
  %9546 = vst.msk [vmem:[%s7 + $0xa0] sm:$0xff] %vm6385, %v9469
  %9547 = vst.msk [vmem:[%s7 + $0xa8] sm:$0xff] %vm6385, %v9471
  %9548 = vst.msk [vmem:[%s7 + $0xb0] sm:$0xff] %vm6385, %v9473
  %9549 = vst.msk [vmem:[%s7 + $0xb8] sm:$0xff] %vm6385, %v9475
  %9550 = vst.msk [vmem:[%s7 + $0xc0] sm:$0xff] %vm6385, %v9477
  %9551 = vst.msk [vmem:[%s7 + $0xc8] sm:$0xff] %vm6385, %v9479
  %9552 = vst.msk [vmem:[%s7 + $0xd0] sm:$0xff] %vm6385, %v9481
  %9553 = vst.msk [vmem:[%s7 + $0xd8] sm:$0xff] %vm6385, %v9483
  %9554 = vst.msk [vmem:[%s7 + $0xe0] sm:$0xff] %vm6385, %v9485
  %9555 = vst.msk [vmem:[%s7 + $0xe8] sm:$0xff] %vm6385, %v9487
  %9556 = vst.msk [vmem:[%s7 + $0xf0] sm:$0xff] %vm6385, %v9489
  %9557 = vst.msk [vmem:[%s7 + $0xf8] sm:$0xff] %vm6385, %v9491
  %9558 = vst.msk [vmem:[%s7 + $0x100] sm:$0xff] %vm6385, %v9493
  %9559 = vst.msk [vmem:[%s7 + $0x108] sm:$0xff] %vm6385, %v9495
  %9560 = vst.msk [vmem:[%s7 + $0x110] sm:$0xff] %vm6385, %v9497
  %9561 = vst.msk [vmem:[%s7 + $0x118] sm:$0xff] %vm6385, %v9499
  %9562 = vst.msk [vmem:[%s7 + $0x120] sm:$0xff] %vm6385, %v9501
  %9563 = vst.msk [vmem:[%s7 + $0x128] sm:$0xff] %vm6385, %v9503
  %9564 = vst.msk [vmem:[%s7 + $0x130] sm:$0xff] %vm6385, %v9505
  %9565 = vst.msk [vmem:[%s7 + $0x138] sm:$0xff] %vm6385, %v9507
  %9566 = vst.msk [vmem:[%s7 + $0x140] sm:$0xff] %vm6385, %v9509
  %9567 = vst.msk [vmem:[%s7 + $0x148] sm:$0xff] %vm6385, %v9511
  %9568 = vst.msk [vmem:[%s7 + $0x150] sm:$0xff] %vm6385, %v9513
  %9569 = vst.msk [vmem:[%s7 + $0x158] sm:$0xff] %vm6385, %v9515
  %9570 = vst.msk [vmem:[%s7 + $0x160] sm:$0xff] %vm6385, %v9517
  %9571 = vst.msk [vmem:[%s7 + $0x168] sm:$0xff] %vm6385, %v9519
  %9572 = vst.msk [vmem:[%s7 + $0x170] sm:$0xff] %vm6385, %v9521
  %9573 = vst.msk [vmem:[%s7 + $0x178] sm:$0xff] %vm6385, %v9523
  %9574 = vst.msk [vmem:[%s7 + $0x180] sm:$0xff] %vm6385, %v9525
  // Predicated region
  $region30: #{net3_forward.1} parent=0 // pred_check
    _
  $region31: #{net3_forward.1} parent=0 // pred_check_branch
    %9576 = sbr.rel (0) target = $region33
  $region32: #{net3_forward.1} parent=0 // pred_region
    _
  $region33: #{net3_forward.1} parent=0 // pred_fallthru
    _
  // Predicated region
  $region34: #{net3_forward.1} parent=0 // pred_check
    _
  $region35: #{net3_forward.1} parent=0 // pred_check_branch
    %9578 = sbr.rel (0) target = $region37
  $region36: #{net3_forward.1} parent=0 // pred_region
    _
  $region37: #{net3_forward.1} parent=0 // pred_fallthru
    _

</llo_original>
